<compile_context>
chip_gen: v7x
topology: tpu7x:2x2x1
jax: 0.10.0
libtpu: 0.0.40
codegen_flags: <defaults>
</compile_context>

<pallas_src>
import numpy as np
import jax
import jax.numpy as jnp
from jax.experimental import pallas as pl
from jax.experimental.pallas import tpu as pltpu

_BN_EPS = 1e-5


def _shift_matrices(n, h, w):
    """One-hot (M, M) shift operators: (A @ S_e)[:, (b,qy,qx)] = A[:, (b,qy+ey,qx+ex)],
    zero when the shifted base coordinate is out of range (the conv zero padding)."""
    m = n * h * w
    mats = np.zeros((9, m, m), np.float32)
    for ey in (-1, 0, 1):
        for ex in (-1, 0, 1):
            k = (ey + 1) * 3 + (ex + 1)
            for b in range(n):
                for qy in range(h):
                    sy = qy + ey
                    if sy < 0 or sy >= h:
                        continue
                    for qx in range(w):
                        sx = qx + ex
                        if sx < 0 or sx >= w:
                            continue
                        mats[k, (b * h + sy) * w + sx, (b * h + qy) * w + qx] = 1.0
    return mats


def _make_decoder_kernel(num_layers):
    """Kernel refs: [x2d, smats, (w_l, gamma_l, beta_l) * L, w_head, b_head, out]."""

    def kernel(*refs):
        x_ref, smat_ref = refs[0], refs[1]
        layer_refs = refs[2:2 + 3 * num_layers]
        wh_ref = refs[2 + 3 * num_layers]
        bh_ref = refs[3 + 3 * num_layers]
        o_ref = refs[4 + 3 * num_layers]

        m = x_ref.shape[1]

        # Activation = list of base-resolution sub-grids, each (C, M), channel-major.
        # After l layers (space-to-depth form, block size 2^l):
        #   A_l[c, n, Y, X] = grids[(Y % 2^l) * 2^l + (X % 2^l)]
        #                         [c, n*H0*W0 + (Y >> l)*W0 + (X >> l)]
        grids = [x_ref[...]]
        side = 1

        for l in range(num_layers):
            w_ref = layer_refs[3 * l]          # (16, C_out, C_in), tap k = kh*4 + kw
            gamma_ref = layer_refs[3 * l + 1]  # (C_out, 1)
            beta_ref = layer_refs[3 * l + 2]   # (C_out, 1)
            new_side = 2 * side
            new_grids = []

            # ConvTranspose2d(4,2,1) == 4 stride-1 2x2 sub-convolutions (one per output
            # parity), applied recursively on base-resolution sub-grids.  All heavy ops
            # are 2-D MXU matmuls; boundary taps use the one-hot shift operators.
            for gy in range(new_side):
                jy, ry = gy // 2, gy % 2
                for gx in range(new_side):
                    jx, rx = gx // 2, gx % 2
                    acc = None
                    for dy in range(2):
                        ty = jy + ry + dy - 1
                        uy, ey = ty % side, ty // side
                        kh = 3 - 2 * dy - ry
                        for dx in range(2):
                            tx = jx + rx + dx - 1
                            ux, ex = tx % side, tx // side
                            kw = 3 - 2 * dx - rx
                            z = jnp.dot(w_ref[kh * 4 + kw], grids[uy * side + ux],
                                        preferred_element_type=jnp.float32)
                            if ey or ex:  # boundary tap: shift + zero-fill on the MXU
                                z = jnp.dot(z, smat_ref[(ey + 1) * 3 + (ex + 1)],
                                            preferred_element_type=jnp.float32)
                            acc = z if acc is None else acc + z
                    new_grids.append(acc)

            # Fused BatchNorm2d (training-mode batch statistics) + ReLU.  Stats are
            # computed once per layer on the VMEM-resident output (no extra HBM pass),
            # using a stable two-pass: mean, then centered sum-of-squares.
            inv_cnt = 1.0 / (len(new_grids) * m)
            tot = new_grids[0]
            for y in new_grids[1:]:
                tot = tot + y
            mean = jnp.sum(tot, axis=1, keepdims=True) * inv_cnt          # (C_out, 1)
            ssq = None
            for y in new_grids:
                d = y - mean
                p = jnp.sum(d * d, axis=1, keepdims=True)
                ssq = p if ssq is None else ssq + p
            var = ssq * inv_cnt                                           # biased, like BN
            scale = gamma_ref[...] * jax.lax.rsqrt(var + _BN_EPS)
            shift = beta_ref[...] - mean * scale
            grids = [jnp.maximum(y * scale + shift, 0.0) for y in new_grids]
            side = new_side

        # 1x1 Conv2d head (bias kept), stats-free, still channel-major sub-grid form.
        wh = wh_ref[...]            # (C_head, C_last)
        bh = bh_ref[...]            # (C_head, 1)
        c_head = wh.shape[0]
        for g, y in enumerate(grids):
            o_ref[g * c_head:(g + 1) * c_head, :] = (
                jnp.dot(wh, y, preferred_element_type=jnp.float32) + bh)

    return kernel


@jax.jit
def decoder_forward(x, params):
    """x: (N, C0, H0, W0) -> (N, 1, H0*2^L, W0*2^L).  Matches Decoder.forward
    (BatchNorm uses batch statistics, as the module computes when called directly)."""
    n, c0, h0, w0 = x.shape
    num_layers = len(params["deconv"])
    s = 1 << num_layers
    m = n * h0 * w0

    args = [jnp.transpose(x, (1, 0, 2, 3)).reshape(c0, m),
            jnp.asarray(_shift_matrices(n, h0, w0))]
    for w, gamma, beta in params["deconv"]:
        c_in, c_out = w.shape[0], w.shape[1]
        # PyTorch ConvTranspose2d weight (C_in, C_out, kH, kW) -> (kH*kW, C_out, C_in).
        args += [jnp.transpose(w, (2, 3, 1, 0)).reshape(16, c_out, c_in),
                 gamma.reshape(-1, 1), beta.reshape(-1, 1)]
    w_head, b_head = params["head"]
    c_head, c_last = w_head.shape[0], w_head.shape[1]
    args += [w_head.reshape(c_head, c_last), b_head.reshape(c_head, 1)]

    out = pl.pallas_call(
        _make_decoder_kernel(num_layers),
        out_shape=jax.ShapeDtypeStruct((s * s * c_head, m), jnp.float32),
        compiler_params=pltpu.CompilerParams(vmem_limit_bytes=32 * 1024 * 1024),
    )(*args)

    # Depth-to-space of the tiny final output only — pure layout, done once in XLA.
    out = out.reshape(s, s, c_head, n, h0, w0)
    return jnp.transpose(out, (3, 2, 4, 0, 5, 1)).reshape(n, c_head, h0 * s, w0 * s)


# ---------------------------------------------------------------------------
# Pure-JAX reference (same math as the PyTorch Decoder forward in training mode).
# ---------------------------------------------------------------------------
def decoder_reference(x, params, eps=_BN_EPS):
    for w, gamma, beta in params["deconv"]:
        wf = jnp.transpose(w[:, :, ::-1, ::-1], (1, 0, 2, 3))
        y = jax.lax.conv_general_dilated(
            x, wf, window_strides=(1, 1), padding=((2, 2), (2, 2)),
            lhs_dilation=(2, 2), dimension_numbers=("NCHW", "OIHW", "NCHW"))
        mean = jnp.mean(y, axis=(0, 2, 3), keepdims=True)
        var = jnp.var(y, axis=(0, 2, 3), keepdims=True)
        y = (y - mean) / jnp.sqrt(var + eps)
        y = y * gamma[None, :, None, None] + beta[None, :, None, None]
        x = jnp.maximum(y, 0.0)
    w_head, b_head = params["head"]
    y = jax.lax.conv_general_dilated(
        x, w_head, window_strides=(1, 1), padding="VALID",
        dimension_numbers=("NCHW", "OIHW", "NCHW"))
    return y + b_head[None, :, None, None]


if __name__ == "__main__":
    key = jax.random.PRNGKey(0)
    input_size = 16
    channels = (8, 4, 2)
    batch = 2
    fmap = input_size // 2 ** (len(channels) - 1)  # 4

    n_layers = len(channels) - 1
    keys = jax.random.split(key, 3 * n_layers + 3)
    ki = 0
    deconv_params = []
    for i in range(n_layers):
        w = 0.1 * jax.random.normal(
            keys[ki], (channels[i], channels[i + 1], 4, 4), jnp.float32); ki += 1
        gamma = 1.0 + 0.1 * jax.random.normal(
            keys[ki], (channels[i + 1],), jnp.float32); ki += 1
        beta = 0.1 * jax.random.normal(
            keys[ki], (channels[i + 1],), jnp.float32); ki += 1
        deconv_params.append((w, gamma, beta))
    w_head = 0.1 * jax.random.normal(keys[ki], (1, channels[-1], 1, 1), jnp.float32); ki += 1
    b_head = 0.1 * jax.random.normal(keys[ki], (1,), jnp.float32); ki += 1
    x = jax.random.normal(keys[ki], (batch, channels[0], fmap, fmap), jnp.float32)

    params = {"deconv": deconv_params, "head": (w_head, b_head)}

    out = decoder_forward(x, params)
    jax.block_until_ready(out)

    ref = decoder_reference(x, params)
    assert out.shape == (batch, 1, input_size, input_size), out.shape
    err = float(jnp.max(jnp.abs(out - ref)))
    assert jnp.allclose(out, ref, rtol=1e-3, atol=1e-3), err

    print("KERNEL_OK")
</pallas_src>

<mosaic_0001>
module attributes {stable_mosaic.version = 11 : i64} {
  func.func @kernel(%arg0: memref<8x32xf32, #tpu.memory_space<vmem>>, %arg1: memref<9x32x32xf32, #tpu.memory_space<vmem>>, %arg2: memref<16x4x8xf32, #tpu.memory_space<vmem>>, %arg3: memref<4x1xf32, #tpu.memory_space<vmem>>, %arg4: memref<4x1xf32, #tpu.memory_space<vmem>>, %arg5: memref<16x2x4xf32, #tpu.memory_space<vmem>>, %arg6: memref<2x1xf32, #tpu.memory_space<vmem>>, %arg7: memref<2x1xf32, #tpu.memory_space<vmem>>, %arg8: memref<1x2xf32, #tpu.memory_space<vmem>>, %arg9: memref<1x1xf32, #tpu.memory_space<vmem>>, %arg10: memref<16x32xf32, #tpu.memory_space<vmem>>) attributes {dimension_semantics = [], scalar_prefetch = 0 : i64, scratch_operands = 0 : i64, tpu.core_type = #tpu.core_type<tc>} {
    %c0 = arith.constant 0 : index
    %c0_0 = arith.constant 0 : index
    %0 = vector.load %arg0[%c0, %c0_0] : memref<8x32xf32, #tpu.memory_space<vmem>>, vector<8x32xf32>
    %c15 = arith.constant 15 : index
    %c0_1 = arith.constant 0 : index
    %c0_2 = arith.constant 0 : index
    %1 = vector.load %arg2[%c15, %c0_1, %c0_2] : memref<16x4x8xf32, #tpu.memory_space<vmem>>, vector<1x4x8xf32>
    %2 = vector.shape_cast %1 : vector<1x4x8xf32> to vector<4x8xf32>
    %cst = arith.constant dense<0.000000e+00> : vector<4x32xf32>
    %3 = tpu.matmul %2, %0, %cst {dimension_numbers = #tpu.dot_dimension_numbers<[1], [0], [0], [1], [0, 0, 1, 1], [], []>} : vector<4x8xf32>, vector<8x32xf32>, vector<4x32xf32> -> vector<4x32xf32>
    %c0_3 = arith.constant 0 : index
    %c0_4 = arith.constant 0 : index
    %c0_5 = arith.constant 0 : index
    %4 = vector.load %arg1[%c0_3, %c0_4, %c0_5] : memref<9x32x32xf32, #tpu.memory_space<vmem>>, vector<1x32x32xf32>
    %5 = vector.shape_cast %4 : vector<1x32x32xf32> to vector<32x32xf32>
    %cst_6 = arith.constant dense<0.000000e+00> : vector<4x32xf32>
    %6 = tpu.matmul %3, %5, %cst_6 {dimension_numbers = #tpu.dot_dimension_numbers<[1], [0], [0], [1], [0, 0, 1, 1], [], []>} : vector<4x32xf32>, vector<32x32xf32>, vector<4x32xf32> -> vector<4x32xf32>
    %c13 = arith.constant 13 : index
    %c0_7 = arith.constant 0 : index
    %c0_8 = arith.constant 0 : index
    %7 = vector.load %arg2[%c13, %c0_7, %c0_8] : memref<16x4x8xf32, #tpu.memory_space<vmem>>, vector<1x4x8xf32>
    %8 = vector.shape_cast %7 : vector<1x4x8xf32> to vector<4x8xf32>
    %cst_9 = arith.constant dense<0.000000e+00> : vector<4x32xf32>
    %9 = tpu.matmul %8, %0, %cst_9 {dimension_numbers = #tpu.dot_dimension_numbers<[1], [0], [0], [1], [0, 0, 1, 1], [], []>} : vector<4x8xf32>, vector<8x32xf32>, vector<4x32xf32> -> vector<4x32xf32>
    %c1 = arith.constant 1 : index
    %c0_10 = arith.constant 0 : index
    %c0_11 = arith.constant 0 : index
    %10 = vector.load %arg1[%c1, %c0_10, %c0_11] : memref<9x32x32xf32, #tpu.memory_space<vmem>>, vector<1x32x32xf32>
    %11 = vector.shape_cast %10 : vector<1x32x32xf32> to vector<32x32xf32>
    %cst_12 = arith.constant dense<0.000000e+00> : vector<4x32xf32>
    %12 = tpu.matmul %9, %11, %cst_12 {dimension_numbers = #tpu.dot_dimension_numbers<[1], [0], [0], [1], [0, 0, 1, 1], [], []>} : vector<4x32xf32>, vector<32x32xf32>, vector<4x32xf32> -> vector<4x32xf32>
    %13 = arith.addf %6, %12 : vector<4x32xf32>
    %c7 = arith.constant 7 : index
    %c0_13 = arith.constant 0 : index
    %c0_14 = arith.constant 0 : index
    %14 = vector.load %arg2[%c7, %c0_13, %c0_14] : memref<16x4x8xf32, #tpu.memory_space<vmem>>, vector<1x4x8xf32>
    %15 = vector.shape_cast %14 : vector<1x4x8xf32> to vector<4x8xf32>
    %cst_15 = arith.constant dense<0.000000e+00> : vector<4x32xf32>
    %16 = tpu.matmul %15, %0, %cst_15 {dimension_numbers = #tpu.dot_dimension_numbers<[1], [0], [0], [1], [0, 0, 1, 1], [], []>} : vector<4x8xf32>, vector<8x32xf32>, vector<4x32xf32> -> vector<4x32xf32>
    %c3 = arith.constant 3 : index
    %c0_16 = arith.constant 0 : index
    %c0_17 = arith.constant 0 : index
    %17 = vector.load %arg1[%c3, %c0_16, %c0_17] : memref<9x32x32xf32, #tpu.memory_space<vmem>>, vector<1x32x32xf32>
    %18 = vector.shape_cast %17 : vector<1x32x32xf32> to vector<32x32xf32>
    %cst_18 = arith.constant dense<0.000000e+00> : vector<4x32xf32>
    %19 = tpu.matmul %16, %18, %cst_18 {dimension_numbers = #tpu.dot_dimension_numbers<[1], [0], [0], [1], [0, 0, 1, 1], [], []>} : vector<4x32xf32>, vector<32x32xf32>, vector<4x32xf32> -> vector<4x32xf32>
    %20 = arith.addf %13, %19 : vector<4x32xf32>
    %c5 = arith.constant 5 : index
    %c0_19 = arith.constant 0 : index
    %c0_20 = arith.constant 0 : index
    %21 = vector.load %arg2[%c5, %c0_19, %c0_20] : memref<16x4x8xf32, #tpu.memory_space<vmem>>, vector<1x4x8xf32>
    %22 = vector.shape_cast %21 : vector<1x4x8xf32> to vector<4x8xf32>
    %cst_21 = arith.constant dense<0.000000e+00> : vector<4x32xf32>
    %23 = tpu.matmul %22, %0, %cst_21 {dimension_numbers = #tpu.dot_dimension_numbers<[1], [0], [0], [1], [0, 0, 1, 1], [], []>} : vector<4x8xf32>, vector<8x32xf32>, vector<4x32xf32> -> vector<4x32xf32>
    %24 = arith.addf %20, %23 : vector<4x32xf32>
    %c14 = arith.constant 14 : index
    %c0_22 = arith.constant 0 : index
    %c0_23 = arith.constant 0 : index
    %25 = vector.load %arg2[%c14, %c0_22, %c0_23] : memref<16x4x8xf32, #tpu.memory_space<vmem>>, vector<1x4x8xf32>
    %26 = vector.shape_cast %25 : vector<1x4x8xf32> to vector<4x8xf32>
    %cst_24 = arith.constant dense<0.000000e+00> : vector<4x32xf32>
    %27 = tpu.matmul %26, %0, %cst_24 {dimension_numbers = #tpu.dot_dimension_numbers<[1], [0], [0], [1], [0, 0, 1, 1], [], []>} : vector<4x8xf32>, vector<8x32xf32>, vector<4x32xf32> -> vector<4x32xf32>
    %c1_25 = arith.constant 1 : index
    %c0_26 = arith.constant 0 : index
    %c0_27 = arith.constant 0 : index
    %28 = vector.load %arg1[%c1_25, %c0_26, %c0_27] : memref<9x32x32xf32, #tpu.memory_space<vmem>>, vector<1x32x32xf32>
    %29 = vector.shape_cast %28 : vector<1x32x32xf32> to vector<32x32xf32>
    %cst_28 = arith.constant dense<0.000000e+00> : vector<4x32xf32>
    %30 = tpu.matmul %27, %29, %cst_28 {dimension_numbers = #tpu.dot_dimension_numbers<[1], [0], [0], [1], [0, 0, 1, 1], [], []>} : vector<4x32xf32>, vector<32x32xf32>, vector<4x32xf32> -> vector<4x32xf32>
    %c12 = arith.constant 12 : index
    %c0_29 = arith.constant 0 : index
    %c0_30 = arith.constant 0 : index
    %31 = vector.load %arg2[%c12, %c0_29, %c0_30] : memref<16x4x8xf32, #tpu.memory_space<vmem>>, vector<1x4x8xf32>
    %32 = vector.shape_cast %31 : vector<1x4x8xf32> to vector<4x8xf32>
    %cst_31 = arith.constant dense<0.000000e+00> : vector<4x32xf32>
    %33 = tpu.matmul %32, %0, %cst_31 {dimension_numbers = #tpu.dot_dimension_numbers<[1], [0], [0], [1], [0, 0, 1, 1], [], []>} : vector<4x8xf32>, vector<8x32xf32>, vector<4x32xf32> -> vector<4x32xf32>
    %c2 = arith.constant 2 : index
    %c0_32 = arith.constant 0 : index
    %c0_33 = arith.constant 0 : index
    %34 = vector.load %arg1[%c2, %c0_32, %c0_33] : memref<9x32x32xf32, #tpu.memory_space<vmem>>, vector<1x32x32xf32>
    %35 = vector.shape_cast %34 : vector<1x32x32xf32> to vector<32x32xf32>
    %cst_34 = arith.constant dense<0.000000e+00> : vector<4x32xf32>
    %36 = tpu.matmul %33, %35, %cst_34 {dimension_numbers = #tpu.dot_dimension_numbers<[1], [0], [0], [1], [0, 0, 1, 1], [], []>} : vector<4x32xf32>, vector<32x32xf32>, vector<4x32xf32> -> vector<4x32xf32>
    %37 = arith.addf %30, %36 : vector<4x32xf32>
    %c6 = arith.constant 6 : index
    %c0_35 = arith.constant 0 : index
    %c0_36 = arith.constant 0 : index
    %38 = vector.load %arg2[%c6, %c0_35, %c0_36] : memref<16x4x8xf32, #tpu.memory_space<vmem>>, vector<1x4x8xf32>
    %39 = vector.shape_cast %38 : vector<1x4x8xf32> to vector<4x8xf32>
    %cst_37 = arith.constant dense<0.000000e+00> : vector<4x32xf32>
    %40 = tpu.matmul %39, %0, %cst_37 {dimension_numbers = #tpu.dot_dimension_numbers<[1], [0], [0], [1], [0, 0, 1, 1], [], []>} : vector<4x8xf32>, vector<8x32xf32>, vector<4x32xf32> -> vector<4x32xf32>
    %41 = arith.addf %37, %40 : vector<4x32xf32>
    %c4 = arith.constant 4 : index
    %c0_38 = arith.constant 0 : index
    %c0_39 = arith.constant 0 : index
    %42 = vector.load %arg2[%c4, %c0_38, %c0_39] : memref<16x4x8xf32, #tpu.memory_space<vmem>>, vector<1x4x8xf32>
    %43 = vector.shape_cast %42 : vector<1x4x8xf32> to vector<4x8xf32>
    %cst_40 = arith.constant dense<0.000000e+00> : vector<4x32xf32>
    %44 = tpu.matmul %43, %0, %cst_40 {dimension_numbers = #tpu.dot_dimension_numbers<[1], [0], [0], [1], [0, 0, 1, 1], [], []>} : vector<4x8xf32>, vector<8x32xf32>, vector<4x32xf32> -> vector<4x32xf32>
    %c5_41 = arith.constant 5 : index
    %c0_42 = arith.constant 0 : index
    %c0_43 = arith.constant 0 : index
    %45 = vector.load %arg1[%c5_41, %c0_42, %c0_43] : memref<9x32x32xf32, #tpu.memory_space<vmem>>, vector<1x32x32xf32>
    %46 = vector.shape_cast %45 : vector<1x32x32xf32> to vector<32x32xf32>
    %cst_44 = arith.constant dense<0.000000e+00> : vector<4x32xf32>
    %47 = tpu.matmul %44, %46, %cst_44 {dimension_numbers = #tpu.dot_dimension_numbers<[1], [0], [0], [1], [0, 0, 1, 1], [], []>} : vector<4x32xf32>, vector<32x32xf32>, vector<4x32xf32> -> vector<4x32xf32>
    %48 = arith.addf %41, %47 : vector<4x32xf32>
    %c11 = arith.constant 11 : index
    %c0_45 = arith.constant 0 : index
    %c0_46 = arith.constant 0 : index
    %49 = vector.load %arg2[%c11, %c0_45, %c0_46] : memref<16x4x8xf32, #tpu.memory_space<vmem>>, vector<1x4x8xf32>
    %50 = vector.shape_cast %49 : vector<1x4x8xf32> to vector<4x8xf32>
    %cst_47 = arith.constant dense<0.000000e+00> : vector<4x32xf32>
    %51 = tpu.matmul %50, %0, %cst_47 {dimension_numbers = #tpu.dot_dimension_numbers<[1], [0], [0], [1], [0, 0, 1, 1], [], []>} : vector<4x8xf32>, vector<8x32xf32>, vector<4x32xf32> -> vector<4x32xf32>
    %c3_48 = arith.constant 3 : index
    %c0_49 = arith.constant 0 : index
    %c0_50 = arith.constant 0 : index
    %52 = vector.load %arg1[%c3_48, %c0_49, %c0_50] : memref<9x32x32xf32, #tpu.memory_space<vmem>>, vector<1x32x32xf32>
    %53 = vector.shape_cast %52 : vector<1x32x32xf32> to vector<32x32xf32>
    %cst_51 = arith.constant dense<0.000000e+00> : vector<4x32xf32>
    %54 = tpu.matmul %51, %53, %cst_51 {dimension_numbers = #tpu.dot_dimension_numbers<[1], [0], [0], [1], [0, 0, 1, 1], [], []>} : vector<4x32xf32>, vector<32x32xf32>, vector<4x32xf32> -> vector<4x32xf32>
    %c9 = arith.constant 9 : index
    %c0_52 = arith.constant 0 : index
    %c0_53 = arith.constant 0 : index
    %55 = vector.load %arg2[%c9, %c0_52, %c0_53] : memref<16x4x8xf32, #tpu.memory_space<vmem>>, vector<1x4x8xf32>
    %56 = vector.shape_cast %55 : vector<1x4x8xf32> to vector<4x8xf32>
    %cst_54 = arith.constant dense<0.000000e+00> : vector<4x32xf32>
    %57 = tpu.matmul %56, %0, %cst_54 {dimension_numbers = #tpu.dot_dimension_numbers<[1], [0], [0], [1], [0, 0, 1, 1], [], []>} : vector<4x8xf32>, vector<8x32xf32>, vector<4x32xf32> -> vector<4x32xf32>
    %58 = arith.addf %54, %57 : vector<4x32xf32>
    %c3_55 = arith.constant 3 : index
    %c0_56 = arith.constant 0 : index
    %c0_57 = arith.constant 0 : index
    %59 = vector.load %arg2[%c3_55, %c0_56, %c0_57] : memref<16x4x8xf32, #tpu.memory_space<vmem>>, vector<1x4x8xf32>
    %60 = vector.shape_cast %59 : vector<1x4x8xf32> to vector<4x8xf32>
    %cst_58 = arith.constant dense<0.000000e+00> : vector<4x32xf32>
    %61 = tpu.matmul %60, %0, %cst_58 {dimension_numbers = #tpu.dot_dimension_numbers<[1], [0], [0], [1], [0, 0, 1, 1], [], []>} : vector<4x8xf32>, vector<8x32xf32>, vector<4x32xf32> -> vector<4x32xf32>
    %c6_59 = arith.constant 6 : index
    %c0_60 = arith.constant 0 : index
    %c0_61 = arith.constant 0 : index
    %62 = vector.load %arg1[%c6_59, %c0_60, %c0_61] : memref<9x32x32xf32, #tpu.memory_space<vmem>>, vector<1x32x32xf32>
    %63 = vector.shape_cast %62 : vector<1x32x32xf32> to vector<32x32xf32>
    %cst_62 = arith.constant dense<0.000000e+00> : vector<4x32xf32>
    %64 = tpu.matmul %61, %63, %cst_62 {dimension_numbers = #tpu.dot_dimension_numbers<[1], [0], [0], [1], [0, 0, 1, 1], [], []>} : vector<4x32xf32>, vector<32x32xf32>, vector<4x32xf32> -> vector<4x32xf32>
    %65 = arith.addf %58, %64 : vector<4x32xf32>
    %c1_63 = arith.constant 1 : index
    %c0_64 = arith.constant 0 : index
    %c0_65 = arith.constant 0 : index
    %66 = vector.load %arg2[%c1_63, %c0_64, %c0_65] : memref<16x4x8xf32, #tpu.memory_space<vmem>>, vector<1x4x8xf32>
    %67 = vector.shape_cast %66 : vector<1x4x8xf32> to vector<4x8xf32>
    %cst_66 = arith.constant dense<0.000000e+00> : vector<4x32xf32>
    %68 = tpu.matmul %67, %0, %cst_66 {dimension_numbers = #tpu.dot_dimension_numbers<[1], [0], [0], [1], [0, 0, 1, 1], [], []>} : vector<4x8xf32>, vector<8x32xf32>, vector<4x32xf32> -> vector<4x32xf32>
    %c7_67 = arith.constant 7 : index
    %c0_68 = arith.constant 0 : index
    %c0_69 = arith.constant 0 : index
    %69 = vector.load %arg1[%c7_67, %c0_68, %c0_69] : memref<9x32x32xf32, #tpu.memory_space<vmem>>, vector<1x32x32xf32>
    %70 = vector.shape_cast %69 : vector<1x32x32xf32> to vector<32x32xf32>
    %cst_70 = arith.constant dense<0.000000e+00> : vector<4x32xf32>
    %71 = tpu.matmul %68, %70, %cst_70 {dimension_numbers = #tpu.dot_dimension_numbers<[1], [0], [0], [1], [0, 0, 1, 1], [], []>} : vector<4x32xf32>, vector<32x32xf32>, vector<4x32xf32> -> vector<4x32xf32>
    %72 = arith.addf %65, %71 : vector<4x32xf32>
    %c10 = arith.constant 10 : index
    %c0_71 = arith.constant 0 : index
    %c0_72 = arith.constant 0 : index
    %73 = vector.load %arg2[%c10, %c0_71, %c0_72] : memref<16x4x8xf32, #tpu.memory_space<vmem>>, vector<1x4x8xf32>
    %74 = vector.shape_cast %73 : vector<1x4x8xf32> to vector<4x8xf32>
    %cst_73 = arith.constant dense<0.000000e+00> : vector<4x32xf32>
    %75 = tpu.matmul %74, %0, %cst_73 {dimension_numbers = #tpu.dot_dimension_numbers<[1], [0], [0], [1], [0, 0, 1, 1], [], []>} : vector<4x8xf32>, vector<8x32xf32>, vector<4x32xf32> -> vector<4x32xf32>
    %c8 = arith.constant 8 : index
    %c0_74 = arith.constant 0 : index
    %c0_75 = arith.constant 0 : index
    %76 = vector.load %arg2[%c8, %c0_74, %c0_75] : memref<16x4x8xf32, #tpu.memory_space<vmem>>, vector<1x4x8xf32>
    %77 = vector.shape_cast %76 : vector<1x4x8xf32> to vector<4x8xf32>
    %cst_76 = arith.constant dense<0.000000e+00> : vector<4x32xf32>
    %78 = tpu.matmul %77, %0, %cst_76 {dimension_numbers = #tpu.dot_dimension_numbers<[1], [0], [0], [1], [0, 0, 1, 1], [], []>} : vector<4x8xf32>, vector<8x32xf32>, vector<4x32xf32> -> vector<4x32xf32>
    %c5_77 = arith.constant 5 : index
    %c0_78 = arith.constant 0 : index
    %c0_79 = arith.constant 0 : index
    %79 = vector.load %arg1[%c5_77, %c0_78, %c0_79] : memref<9x32x32xf32, #tpu.memory_space<vmem>>, vector<1x32x32xf32>
    %80 = vector.shape_cast %79 : vector<1x32x32xf32> to vector<32x32xf32>
    %cst_80 = arith.constant dense<0.000000e+00> : vector<4x32xf32>
    %81 = tpu.matmul %78, %80, %cst_80 {dimension_numbers = #tpu.dot_dimension_numbers<[1], [0], [0], [1], [0, 0, 1, 1], [], []>} : vector<4x32xf32>, vector<32x32xf32>, vector<4x32xf32> -> vector<4x32xf32>
    %82 = arith.addf %75, %81 : vector<4x32xf32>
    %c2_81 = arith.constant 2 : index
    %c0_82 = arith.constant 0 : index
    %c0_83 = arith.constant 0 : index
    %83 = vector.load %arg2[%c2_81, %c0_82, %c0_83] : memref<16x4x8xf32, #tpu.memory_space<vmem>>, vector<1x4x8xf32>
    %84 = vector.shape_cast %83 : vector<1x4x8xf32> to vector<4x8xf32>
    %cst_84 = arith.constant dense<0.000000e+00> : vector<4x32xf32>
    %85 = tpu.matmul %84, %0, %cst_84 {dimension_numbers = #tpu.dot_dimension_numbers<[1], [0], [0], [1], [0, 0, 1, 1], [], []>} : vector<4x8xf32>, vector<8x32xf32>, vector<4x32xf32> -> vector<4x32xf32>
    %c7_85 = arith.constant 7 : index
    %c0_86 = arith.constant 0 : index
    %c0_87 = arith.constant 0 : index
    %86 = vector.load %arg1[%c7_85, %c0_86, %c0_87] : memref<9x32x32xf32, #tpu.memory_space<vmem>>, vector<1x32x32xf32>
    %87 = vector.shape_cast %86 : vector<1x32x32xf32> to vector<32x32xf32>
    %cst_88 = arith.constant dense<0.000000e+00> : vector<4x32xf32>
    %88 = tpu.matmul %85, %87, %cst_88 {dimension_numbers = #tpu.dot_dimension_numbers<[1], [0], [0], [1], [0, 0, 1, 1], [], []>} : vector<4x32xf32>, vector<32x32xf32>, vector<4x32xf32> -> vector<4x32xf32>
    %89 = arith.addf %82, %88 : vector<4x32xf32>
    %c0_89 = arith.constant 0 : index
    %c0_90 = arith.constant 0 : index
    %c0_91 = arith.constant 0 : index
    %90 = vector.load %arg2[%c0_89, %c0_90, %c0_91] : memref<16x4x8xf32, #tpu.memory_space<vmem>>, vector<1x4x8xf32>
    %91 = vector.shape_cast %90 : vector<1x4x8xf32> to vector<4x8xf32>
    %cst_92 = arith.constant dense<0.000000e+00> : vector<4x32xf32>
    %92 = tpu.matmul %91, %0, %cst_92 {dimension_numbers = #tpu.dot_dimension_numbers<[1], [0], [0], [1], [0, 0, 1, 1], [], []>} : vector<4x8xf32>, vector<8x32xf32>, vector<4x32xf32> -> vector<4x32xf32>
    %c8_93 = arith.constant 8 : index
    %c0_94 = arith.constant 0 : index
    %c0_95 = arith.constant 0 : index
    %93 = vector.load %arg1[%c8_93, %c0_94, %c0_95] : memref<9x32x32xf32, #tpu.memory_space<vmem>>, vector<1x32x32xf32>
    %94 = vector.shape_cast %93 : vector<1x32x32xf32> to vector<32x32xf32>
    %cst_96 = arith.constant dense<0.000000e+00> : vector<4x32xf32>
    %95 = tpu.matmul %92, %94, %cst_96 {dimension_numbers = #tpu.dot_dimension_numbers<[1], [0], [0], [1], [0, 0, 1, 1], [], []>} : vector<4x32xf32>, vector<32x32xf32>, vector<4x32xf32> -> vector<4x32xf32>
    %96 = arith.addf %89, %95 : vector<4x32xf32>
    %97 = arith.addf %24, %48 : vector<4x32xf32>
    %98 = arith.addf %97, %72 : vector<4x32xf32>
    %99 = arith.addf %98, %96 : vector<4x32xf32>
    %cst_97 = arith.constant dense<0.000000e+00> : vector<4xf32>
    %100 = vector.multi_reduction <add>, %99, %cst_97 [1] : vector<4x32xf32> to vector<4xf32>
    %101 = vector.shape_cast %100 : vector<4xf32> to vector<4x1xf32>
    %cst_98 = arith.constant 7.812500e-03 : f32
    %102 = vector.broadcast %cst_98 : f32 to vector<4x1xf32>
    %103 = arith.mulf %101, %102 : vector<4x1xf32>
    %104 = vector.broadcast %103 : vector<4x1xf32> to vector<4x32xf32>
    %105 = arith.subf %24, %104 : vector<4x32xf32>
    %106 = arith.mulf %105, %105 : vector<4x32xf32>
    %cst_99 = arith.constant dense<0.000000e+00> : vector<4xf32>
    %107 = vector.multi_reduction <add>, %106, %cst_99 [1] : vector<4x32xf32> to vector<4xf32>
    %108 = vector.shape_cast %107 : vector<4xf32> to vector<4x1xf32>
    %109 = vector.broadcast %103 : vector<4x1xf32> to vector<4x32xf32>
    %110 = arith.subf %48, %109 : vector<4x32xf32>
    %111 = arith.mulf %110, %110 : vector<4x32xf32>
    %cst_100 = arith.constant dense<0.000000e+00> : vector<4xf32>
    %112 = vector.multi_reduction <add>, %111, %cst_100 [1] : vector<4x32xf32> to vector<4xf32>
    %113 = vector.shape_cast %112 : vector<4xf32> to vector<4x1xf32>
    %114 = arith.addf %108, %113 : vector<4x1xf32>
    %115 = vector.broadcast %103 : vector<4x1xf32> to vector<4x32xf32>
    %116 = arith.subf %72, %115 : vector<4x32xf32>
    %117 = arith.mulf %116, %116 : vector<4x32xf32>
    %cst_101 = arith.constant dense<0.000000e+00> : vector<4xf32>
    %118 = vector.multi_reduction <add>, %117, %cst_101 [1] : vector<4x32xf32> to vector<4xf32>
    %119 = vector.shape_cast %118 : vector<4xf32> to vector<4x1xf32>
    %120 = arith.addf %114, %119 : vector<4x1xf32>
    %121 = vector.broadcast %103 : vector<4x1xf32> to vector<4x32xf32>
    %122 = arith.subf %96, %121 : vector<4x32xf32>
    %123 = arith.mulf %122, %122 : vector<4x32xf32>
    %cst_102 = arith.constant dense<0.000000e+00> : vector<4xf32>
    %124 = vector.multi_reduction <add>, %123, %cst_102 [1] : vector<4x32xf32> to vector<4xf32>
    %125 = vector.shape_cast %124 : vector<4xf32> to vector<4x1xf32>
    %126 = arith.addf %120, %125 : vector<4x1xf32>
    %cst_103 = arith.constant 7.812500e-03 : f32
    %127 = vector.broadcast %cst_103 : f32 to vector<4x1xf32>
    %128 = arith.mulf %126, %127 : vector<4x1xf32>
    %c0_104 = arith.constant 0 : index
    %c0_105 = arith.constant 0 : index
    %129 = vector.load %arg3[%c0_104, %c0_105] : memref<4x1xf32, #tpu.memory_space<vmem>>, vector<4x1xf32>
    %cst_106 = arith.constant 9.99999974E-6 : f32
    %130 = vector.broadcast %cst_106 : f32 to vector<4x1xf32>
    %131 = arith.addf %128, %130 : vector<4x1xf32>
    %132 = math.rsqrt %131 : vector<4x1xf32>
    %133 = arith.mulf %129, %132 : vector<4x1xf32>
    %c0_107 = arith.constant 0 : index
    %c0_108 = arith.constant 0 : index
    %134 = vector.load %arg4[%c0_107, %c0_108] : memref<4x1xf32, #tpu.memory_space<vmem>>, vector<4x1xf32>
    %135 = arith.mulf %103, %133 : vector<4x1xf32>
    %136 = arith.subf %134, %135 : vector<4x1xf32>
    %137 = vector.broadcast %133 : vector<4x1xf32> to vector<4x32xf32>
    %138 = arith.mulf %24, %137 : vector<4x32xf32>
    %139 = vector.broadcast %136 : vector<4x1xf32> to vector<4x32xf32>
    %140 = arith.addf %138, %139 : vector<4x32xf32>
    %cst_109 = arith.constant 0.000000e+00 : f32
    %141 = vector.broadcast %cst_109 : f32 to vector<4x32xf32>
    %142 = arith.maximumf %140, %141 : vector<4x32xf32>
    %143 = vector.broadcast %133 : vector<4x1xf32> to vector<4x32xf32>
    %144 = arith.mulf %48, %143 : vector<4x32xf32>
    %145 = vector.broadcast %136 : vector<4x1xf32> to vector<4x32xf32>
    %146 = arith.addf %144, %145 : vector<4x32xf32>
    %cst_110 = arith.constant 0.000000e+00 : f32
    %147 = vector.broadcast %cst_110 : f32 to vector<4x32xf32>
    %148 = arith.maximumf %146, %147 : vector<4x32xf32>
    %149 = vector.broadcast %133 : vector<4x1xf32> to vector<4x32xf32>
    %150 = arith.mulf %72, %149 : vector<4x32xf32>
    %151 = vector.broadcast %136 : vector<4x1xf32> to vector<4x32xf32>
    %152 = arith.addf %150, %151 : vector<4x32xf32>
    %cst_111 = arith.constant 0.000000e+00 : f32
    %153 = vector.broadcast %cst_111 : f32 to vector<4x32xf32>
    %154 = arith.maximumf %152, %153 : vector<4x32xf32>
    %155 = vector.broadcast %133 : vector<4x1xf32> to vector<4x32xf32>
    %156 = arith.mulf %96, %155 : vector<4x32xf32>
    %157 = vector.broadcast %136 : vector<4x1xf32> to vector<4x32xf32>
    %158 = arith.addf %156, %157 : vector<4x32xf32>
    %cst_112 = arith.constant 0.000000e+00 : f32
    %159 = vector.broadcast %cst_112 : f32 to vector<4x32xf32>
    %160 = arith.maximumf %158, %159 : vector<4x32xf32>
    %c15_113 = arith.constant 15 : index
    %c0_114 = arith.constant 0 : index
    %c0_115 = arith.constant 0 : index
    %161 = vector.load %arg5[%c15_113, %c0_114, %c0_115] : memref<16x2x4xf32, #tpu.memory_space<vmem>>, vector<1x2x4xf32>
    %162 = vector.shape_cast %161 : vector<1x2x4xf32> to vector<2x4xf32>
    %cst_116 = arith.constant dense<0.000000e+00> : vector<2x32xf32>
    %163 = tpu.matmul %162, %160, %cst_116 {dimension_numbers = #tpu.dot_dimension_numbers<[1], [0], [0], [1], [0, 0, 1, 1], [], []>} : vector<2x4xf32>, vector<4x32xf32>, vector<2x32xf32> -> vector<2x32xf32>
    %c0_117 = arith.constant 0 : index
    %c0_118 = arith.constant 0 : index
    %c0_119 = arith.constant 0 : index
    %164 = vector.load %arg1[%c0_117, %c0_118, %c0_119] : memref<9x32x32xf32, #tpu.memory_space<vmem>>, vector<1x32x32xf32>
    %165 = vector.shape_cast %164 : vector<1x32x32xf32> to vector<32x32xf32>
    %cst_120 = arith.constant dense<0.000000e+00> : vector<2x32xf32>
    %166 = tpu.matmul %163, %165, %cst_120 {dimension_numbers = #tpu.dot_dimension_numbers<[1], [0], [0], [1], [0, 0, 1, 1], [], []>} : vector<2x32xf32>, vector<32x32xf32>, vector<2x32xf32> -> vector<2x32xf32>
    %c13_121 = arith.constant 13 : index
    %c0_122 = arith.constant 0 : index
    %c0_123 = arith.constant 0 : index
    %167 = vector.load %arg5[%c13_121, %c0_122, %c0_123] : memref<16x2x4xf32, #tpu.memory_space<vmem>>, vector<1x2x4xf32>
    %168 = vector.shape_cast %167 : vector<1x2x4xf32> to vector<2x4xf32>
    %cst_124 = arith.constant dense<0.000000e+00> : vector<2x32xf32>
    %169 = tpu.matmul %168, %154, %cst_124 {dimension_numbers = #tpu.dot_dimension_numbers<[1], [0], [0], [1], [0, 0, 1, 1], [], []>} : vector<2x4xf32>, vector<4x32xf32>, vector<2x32xf32> -> vector<2x32xf32>
    %c1_125 = arith.constant 1 : index
    %c0_126 = arith.constant 0 : index
    %c0_127 = arith.constant 0 : index
    %170 = vector.load %arg1[%c1_125, %c0_126, %c0_127] : memref<9x32x32xf32, #tpu.memory_space<vmem>>, vector<1x32x32xf32>
    %171 = vector.shape_cast %170 : vector<1x32x32xf32> to vector<32x32xf32>
    %cst_128 = arith.constant dense<0.000000e+00> : vector<2x32xf32>
    %172 = tpu.matmul %169, %171, %cst_128 {dimension_numbers = #tpu.dot_dimension_numbers<[1], [0], [0], [1], [0, 0, 1, 1], [], []>} : vector<2x32xf32>, vector<32x32xf32>, vector<2x32xf32> -> vector<2x32xf32>
    %173 = arith.addf %166, %172 : vector<2x32xf32>
    %c7_129 = arith.constant 7 : index
    %c0_130 = arith.constant 0 : index
    %c0_131 = arith.constant 0 : index
    %174 = vector.load %arg5[%c7_129, %c0_130, %c0_131] : memref<16x2x4xf32, #tpu.memory_space<vmem>>, vector<1x2x4xf32>
    %175 = vector.shape_cast %174 : vector<1x2x4xf32> to vector<2x4xf32>
    %cst_132 = arith.constant dense<0.000000e+00> : vector<2x32xf32>
    %176 = tpu.matmul %175, %148, %cst_132 {dimension_numbers = #tpu.dot_dimension_numbers<[1], [0], [0], [1], [0, 0, 1, 1], [], []>} : vector<2x4xf32>, vector<4x32xf32>, vector<2x32xf32> -> vector<2x32xf32>
    %c3_133 = arith.constant 3 : index
    %c0_134 = arith.constant 0 : index
    %c0_135 = arith.constant 0 : index
    %177 = vector.load %arg1[%c3_133, %c0_134, %c0_135] : memref<9x32x32xf32, #tpu.memory_space<vmem>>, vector<1x32x32xf32>
    %178 = vector.shape_cast %177 : vector<1x32x32xf32> to vector<32x32xf32>
    %cst_136 = arith.constant dense<0.000000e+00> : vector<2x32xf32>
    %179 = tpu.matmul %176, %178, %cst_136 {dimension_numbers = #tpu.dot_dimension_numbers<[1], [0], [0], [1], [0, 0, 1, 1], [], []>} : vector<2x32xf32>, vector<32x32xf32>, vector<2x32xf32> -> vector<2x32xf32>
    %180 = arith.addf %173, %179 : vector<2x32xf32>
    %c5_137 = arith.constant 5 : index
    %c0_138 = arith.constant 0 : index
    %c0_139 = arith.constant 0 : index
    %181 = vector.load %arg5[%c5_137, %c0_138, %c0_139] : memref<16x2x4xf32, #tpu.memory_space<vmem>>, vector<1x2x4xf32>
    %182 = vector.shape_cast %181 : vector<1x2x4xf32> to vector<2x4xf32>
    %cst_140 = arith.constant dense<0.000000e+00> : vector<2x32xf32>
    %183 = tpu.matmul %182, %142, %cst_140 {dimension_numbers = #tpu.dot_dimension_numbers<[1], [0], [0], [1], [0, 0, 1, 1], [], []>} : vector<2x4xf32>, vector<4x32xf32>, vector<2x32xf32> -> vector<2x32xf32>
    %184 = arith.addf %180, %183 : vector<2x32xf32>
    %c14_141 = arith.constant 14 : index
    %c0_142 = arith.constant 0 : index
    %c0_143 = arith.constant 0 : index
    %185 = vector.load %arg5[%c14_141, %c0_142, %c0_143] : memref<16x2x4xf32, #tpu.memory_space<vmem>>, vector<1x2x4xf32>
    %186 = vector.shape_cast %185 : vector<1x2x4xf32> to vector<2x4xf32>
    %cst_144 = arith.constant dense<0.000000e+00> : vector<2x32xf32>
    %187 = tpu.matmul %186, %154, %cst_144 {dimension_numbers = #tpu.dot_dimension_numbers<[1], [0], [0], [1], [0, 0, 1, 1], [], []>} : vector<2x4xf32>, vector<4x32xf32>, vector<2x32xf32> -> vector<2x32xf32>
    %c1_145 = arith.constant 1 : index
    %c0_146 = arith.constant 0 : index
    %c0_147 = arith.constant 0 : index
    %188 = vector.load %arg1[%c1_145, %c0_146, %c0_147] : memref<9x32x32xf32, #tpu.memory_space<vmem>>, vector<1x32x32xf32>
    %189 = vector.shape_cast %188 : vector<1x32x32xf32> to vector<32x32xf32>
    %cst_148 = arith.constant dense<0.000000e+00> : vector<2x32xf32>
    %190 = tpu.matmul %187, %189, %cst_148 {dimension_numbers = #tpu.dot_dimension_numbers<[1], [0], [0], [1], [0, 0, 1, 1], [], []>} : vector<2x32xf32>, vector<32x32xf32>, vector<2x32xf32> -> vector<2x32xf32>
    %c12_149 = arith.constant 12 : index
    %c0_150 = arith.constant 0 : index
    %c0_151 = arith.constant 0 : index
    %191 = vector.load %arg5[%c12_149, %c0_150, %c0_151] : memref<16x2x4xf32, #tpu.memory_space<vmem>>, vector<1x2x4xf32>
    %192 = vector.shape_cast %191 : vector<1x2x4xf32> to vector<2x4xf32>
    %cst_152 = arith.constant dense<0.000000e+00> : vector<2x32xf32>
    %193 = tpu.matmul %192, %160, %cst_152 {dimension_numbers = #tpu.dot_dimension_numbers<[1], [0], [0], [1], [0, 0, 1, 1], [], []>} : vector<2x4xf32>, vector<4x32xf32>, vector<2x32xf32> -> vector<2x32xf32>
    %c1_153 = arith.constant 1 : index
    %c0_154 = arith.constant 0 : index
    %c0_155 = arith.constant 0 : index
    %194 = vector.load %arg1[%c1_153, %c0_154, %c0_155] : memref<9x32x32xf32, #tpu.memory_space<vmem>>, vector<1x32x32xf32>
    %195 = vector.shape_cast %194 : vector<1x32x32xf32> to vector<32x32xf32>
    %cst_156 = arith.constant dense<0.000000e+00> : vector<2x32xf32>
    %196 = tpu.matmul %193, %195, %cst_156 {dimension_numbers = #tpu.dot_dimension_numbers<[1], [0], [0], [1], [0, 0, 1, 1], [], []>} : vector<2x32xf32>, vector<32x32xf32>, vector<2x32xf32> -> vector<2x32xf32>
    %197 = arith.addf %190, %196 : vector<2x32xf32>
    %c6_157 = arith.constant 6 : index
    %c0_158 = arith.constant 0 : index
    %c0_159 = arith.constant 0 : index
    %198 = vector.load %arg5[%c6_157, %c0_158, %c0_159] : memref<16x2x4xf32, #tpu.memory_space<vmem>>, vector<1x2x4xf32>
    %199 = vector.shape_cast %198 : vector<1x2x4xf32> to vector<2x4xf32>
    %cst_160 = arith.constant dense<0.000000e+00> : vector<2x32xf32>
    %200 = tpu.matmul %199, %142, %cst_160 {dimension_numbers = #tpu.dot_dimension_numbers<[1], [0], [0], [1], [0, 0, 1, 1], [], []>} : vector<2x4xf32>, vector<4x32xf32>, vector<2x32xf32> -> vector<2x32xf32>
    %201 = arith.addf %197, %200 : vector<2x32xf32>
    %c4_161 = arith.constant 4 : index
    %c0_162 = arith.constant 0 : index
    %c0_163 = arith.constant 0 : index
    %202 = vector.load %arg5[%c4_161, %c0_162, %c0_163] : memref<16x2x4xf32, #tpu.memory_space<vmem>>, vector<1x2x4xf32>
    %203 = vector.shape_cast %202 : vector<1x2x4xf32> to vector<2x4xf32>
    %cst_164 = arith.constant dense<0.000000e+00> : vector<2x32xf32>
    %204 = tpu.matmul %203, %148, %cst_164 {dimension_numbers = #tpu.dot_dimension_numbers<[1], [0], [0], [1], [0, 0, 1, 1], [], []>} : vector<2x4xf32>, vector<4x32xf32>, vector<2x32xf32> -> vector<2x32xf32>
    %205 = arith.addf %201, %204 : vector<2x32xf32>
    %c15_165 = arith.constant 15 : index
    %c0_166 = arith.constant 0 : index
    %c0_167 = arith.constant 0 : index
    %206 = vector.load %arg5[%c15_165, %c0_166, %c0_167] : memref<16x2x4xf32, #tpu.memory_space<vmem>>, vector<1x2x4xf32>
    %207 = vector.shape_cast %206 : vector<1x2x4xf32> to vector<2x4xf32>
    %cst_168 = arith.constant dense<0.000000e+00> : vector<2x32xf32>
    %208 = tpu.matmul %207, %154, %cst_168 {dimension_numbers = #tpu.dot_dimension_numbers<[1], [0], [0], [1], [0, 0, 1, 1], [], []>} : vector<2x4xf32>, vector<4x32xf32>, vector<2x32xf32> -> vector<2x32xf32>
    %c1_169 = arith.constant 1 : index
    %c0_170 = arith.constant 0 : index
    %c0_171 = arith.constant 0 : index
    %209 = vector.load %arg1[%c1_169, %c0_170, %c0_171] : memref<9x32x32xf32, #tpu.memory_space<vmem>>, vector<1x32x32xf32>
    %210 = vector.shape_cast %209 : vector<1x32x32xf32> to vector<32x32xf32>
    %cst_172 = arith.constant dense<0.000000e+00> : vector<2x32xf32>
    %211 = tpu.matmul %208, %210, %cst_172 {dimension_numbers = #tpu.dot_dimension_numbers<[1], [0], [0], [1], [0, 0, 1, 1], [], []>} : vector<2x32xf32>, vector<32x32xf32>, vector<2x32xf32> -> vector<2x32xf32>
    %c13_173 = arith.constant 13 : index
    %c0_174 = arith.constant 0 : index
    %c0_175 = arith.constant 0 : index
    %212 = vector.load %arg5[%c13_173, %c0_174, %c0_175] : memref<16x2x4xf32, #tpu.memory_space<vmem>>, vector<1x2x4xf32>
    %213 = vector.shape_cast %212 : vector<1x2x4xf32> to vector<2x4xf32>
    %cst_176 = arith.constant dense<0.000000e+00> : vector<2x32xf32>
    %214 = tpu.matmul %213, %160, %cst_176 {dimension_numbers = #tpu.dot_dimension_numbers<[1], [0], [0], [1], [0, 0, 1, 1], [], []>} : vector<2x4xf32>, vector<4x32xf32>, vector<2x32xf32> -> vector<2x32xf32>
    %c1_177 = arith.constant 1 : index
    %c0_178 = arith.constant 0 : index
    %c0_179 = arith.constant 0 : index
    %215 = vector.load %arg1[%c1_177, %c0_178, %c0_179] : memref<9x32x32xf32, #tpu.memory_space<vmem>>, vector<1x32x32xf32>
    %216 = vector.shape_cast %215 : vector<1x32x32xf32> to vector<32x32xf32>
    %cst_180 = arith.constant dense<0.000000e+00> : vector<2x32xf32>
    %217 = tpu.matmul %214, %216, %cst_180 {dimension_numbers = #tpu.dot_dimension_numbers<[1], [0], [0], [1], [0, 0, 1, 1], [], []>} : vector<2x32xf32>, vector<32x32xf32>, vector<2x32xf32> -> vector<2x32xf32>
    %218 = arith.addf %211, %217 : vector<2x32xf32>
    %c7_181 = arith.constant 7 : index
    %c0_182 = arith.constant 0 : index
    %c0_183 = arith.constant 0 : index
    %219 = vector.load %arg5[%c7_181, %c0_182, %c0_183] : memref<16x2x4xf32, #tpu.memory_space<vmem>>, vector<1x2x4xf32>
    %220 = vector.shape_cast %219 : vector<1x2x4xf32> to vector<2x4xf32>
    %cst_184 = arith.constant dense<0.000000e+00> : vector<2x32xf32>
    %221 = tpu.matmul %220, %142, %cst_184 {dimension_numbers = #tpu.dot_dimension_numbers<[1], [0], [0], [1], [0, 0, 1, 1], [], []>} : vector<2x4xf32>, vector<4x32xf32>, vector<2x32xf32> -> vector<2x32xf32>
    %222 = arith.addf %218, %221 : vector<2x32xf32>
    %c5_185 = arith.constant 5 : index
    %c0_186 = arith.constant 0 : index
    %c0_187 = arith.constant 0 : index
    %223 = vector.load %arg5[%c5_185, %c0_186, %c0_187] : memref<16x2x4xf32, #tpu.memory_space<vmem>>, vector<1x2x4xf32>
    %224 = vector.shape_cast %223 : vector<1x2x4xf32> to vector<2x4xf32>
    %cst_188 = arith.constant dense<0.000000e+00> : vector<2x32xf32>
    %225 = tpu.matmul %224, %148, %cst_188 {dimension_numbers = #tpu.dot_dimension_numbers<[1], [0], [0], [1], [0, 0, 1, 1], [], []>} : vector<2x4xf32>, vector<4x32xf32>, vector<2x32xf32> -> vector<2x32xf32>
    %226 = arith.addf %222, %225 : vector<2x32xf32>
    %c14_189 = arith.constant 14 : index
    %c0_190 = arith.constant 0 : index
    %c0_191 = arith.constant 0 : index
    %227 = vector.load %arg5[%c14_189, %c0_190, %c0_191] : memref<16x2x4xf32, #tpu.memory_space<vmem>>, vector<1x2x4xf32>
    %228 = vector.shape_cast %227 : vector<1x2x4xf32> to vector<2x4xf32>
    %cst_192 = arith.constant dense<0.000000e+00> : vector<2x32xf32>
    %229 = tpu.matmul %228, %160, %cst_192 {dimension_numbers = #tpu.dot_dimension_numbers<[1], [0], [0], [1], [0, 0, 1, 1], [], []>} : vector<2x4xf32>, vector<4x32xf32>, vector<2x32xf32> -> vector<2x32xf32>
    %c1_193 = arith.constant 1 : index
    %c0_194 = arith.constant 0 : index
    %c0_195 = arith.constant 0 : index
    %230 = vector.load %arg1[%c1_193, %c0_194, %c0_195] : memref<9x32x32xf32, #tpu.memory_space<vmem>>, vector<1x32x32xf32>
    %231 = vector.shape_cast %230 : vector<1x32x32xf32> to vector<32x32xf32>
    %cst_196 = arith.constant dense<0.000000e+00> : vector<2x32xf32>
    %232 = tpu.matmul %229, %231, %cst_196 {dimension_numbers = #tpu.dot_dimension_numbers<[1], [0], [0], [1], [0, 0, 1, 1], [], []>} : vector<2x32xf32>, vector<32x32xf32>, vector<2x32xf32> -> vector<2x32xf32>
    %c12_197 = arith.constant 12 : index
    %c0_198 = arith.constant 0 : index
    %c0_199 = arith.constant 0 : index
    %233 = vector.load %arg5[%c12_197, %c0_198, %c0_199] : memref<16x2x4xf32, #tpu.memory_space<vmem>>, vector<1x2x4xf32>
    %234 = vector.shape_cast %233 : vector<1x2x4xf32> to vector<2x4xf32>
    %cst_200 = arith.constant dense<0.000000e+00> : vector<2x32xf32>
    %235 = tpu.matmul %234, %154, %cst_200 {dimension_numbers = #tpu.dot_dimension_numbers<[1], [0], [0], [1], [0, 0, 1, 1], [], []>} : vector<2x4xf32>, vector<4x32xf32>, vector<2x32xf32> -> vector<2x32xf32>
    %c2_201 = arith.constant 2 : index
    %c0_202 = arith.constant 0 : index
    %c0_203 = arith.constant 0 : index
    %236 = vector.load %arg1[%c2_201, %c0_202, %c0_203] : memref<9x32x32xf32, #tpu.memory_space<vmem>>, vector<1x32x32xf32>
    %237 = vector.shape_cast %236 : vector<1x32x32xf32> to vector<32x32xf32>
    %cst_204 = arith.constant dense<0.000000e+00> : vector<2x32xf32>
    %238 = tpu.matmul %235, %237, %cst_204 {dimension_numbers = #tpu.dot_dimension_numbers<[1], [0], [0], [1], [0, 0, 1, 1], [], []>} : vector<2x32xf32>, vector<32x32xf32>, vector<2x32xf32> -> vector<2x32xf32>
    %239 = arith.addf %232, %238 : vector<2x32xf32>
    %c6_205 = arith.constant 6 : index
    %c0_206 = arith.constant 0 : index
    %c0_207 = arith.constant 0 : index
    %240 = vector.load %arg5[%c6_205, %c0_206, %c0_207] : memref<16x2x4xf32, #tpu.memory_space<vmem>>, vector<1x2x4xf32>
    %241 = vector.shape_cast %240 : vector<1x2x4xf32> to vector<2x4xf32>
    %cst_208 = arith.constant dense<0.000000e+00> : vector<2x32xf32>
    %242 = tpu.matmul %241, %148, %cst_208 {dimension_numbers = #tpu.dot_dimension_numbers<[1], [0], [0], [1], [0, 0, 1, 1], [], []>} : vector<2x4xf32>, vector<4x32xf32>, vector<2x32xf32> -> vector<2x32xf32>
    %243 = arith.addf %239, %242 : vector<2x32xf32>
    %c4_209 = arith.constant 4 : index
    %c0_210 = arith.constant 0 : index
    %c0_211 = arith.constant 0 : index
    %244 = vector.load %arg5[%c4_209, %c0_210, %c0_211] : memref<16x2x4xf32, #tpu.memory_space<vmem>>, vector<1x2x4xf32>
    %245 = vector.shape_cast %244 : vector<1x2x4xf32> to vector<2x4xf32>
    %cst_212 = arith.constant dense<0.000000e+00> : vector<2x32xf32>
    %246 = tpu.matmul %245, %142, %cst_212 {dimension_numbers = #tpu.dot_dimension_numbers<[1], [0], [0], [1], [0, 0, 1, 1], [], []>} : vector<2x4xf32>, vector<4x32xf32>, vector<2x32xf32> -> vector<2x32xf32>
    %c5_213 = arith.constant 5 : index
    %c0_214 = arith.constant 0 : index
    %c0_215 = arith.constant 0 : index
    %247 = vector.load %arg1[%c5_213, %c0_214, %c0_215] : memref<9x32x32xf32, #tpu.memory_space<vmem>>, vector<1x32x32xf32>
    %248 = vector.shape_cast %247 : vector<1x32x32xf32> to vector<32x32xf32>
    %cst_216 = arith.constant dense<0.000000e+00> : vector<2x32xf32>
    %249 = tpu.matmul %246, %248, %cst_216 {dimension_numbers = #tpu.dot_dimension_numbers<[1], [0], [0], [1], [0, 0, 1, 1], [], []>} : vector<2x32xf32>, vector<32x32xf32>, vector<2x32xf32> -> vector<2x32xf32>
    %250 = arith.addf %243, %249 : vector<2x32xf32>
    %c11_217 = arith.constant 11 : index
    %c0_218 = arith.constant 0 : index
    %c0_219 = arith.constant 0 : index
    %251 = vector.load %arg5[%c11_217, %c0_218, %c0_219] : memref<16x2x4xf32, #tpu.memory_space<vmem>>, vector<1x2x4xf32>
    %252 = vector.shape_cast %251 : vector<1x2x4xf32> to vector<2x4xf32>
    %cst_220 = arith.constant dense<0.000000e+00> : vector<2x32xf32>
    %253 = tpu.matmul %252, %148, %cst_220 {dimension_numbers = #tpu.dot_dimension_numbers<[1], [0], [0], [1], [0, 0, 1, 1], [], []>} : vector<2x4xf32>, vector<4x32xf32>, vector<2x32xf32> -> vector<2x32xf32>
    %c3_221 = arith.constant 3 : index
    %c0_222 = arith.constant 0 : index
    %c0_223 = arith.constant 0 : index
    %254 = vector.load %arg1[%c3_221, %c0_222, %c0_223] : memref<9x32x32xf32, #tpu.memory_space<vmem>>, vector<1x32x32xf32>
    %255 = vector.shape_cast %254 : vector<1x32x32xf32> to vector<32x32xf32>
    %cst_224 = arith.constant dense<0.000000e+00> : vector<2x32xf32>
    %256 = tpu.matmul %253, %255, %cst_224 {dimension_numbers = #tpu.dot_dimension_numbers<[1], [0], [0], [1], [0, 0, 1, 1], [], []>} : vector<2x32xf32>, vector<32x32xf32>, vector<2x32xf32> -> vector<2x32xf32>
    %c9_225 = arith.constant 9 : index
    %c0_226 = arith.constant 0 : index
    %c0_227 = arith.constant 0 : index
    %257 = vector.load %arg5[%c9_225, %c0_226, %c0_227] : memref<16x2x4xf32, #tpu.memory_space<vmem>>, vector<1x2x4xf32>
    %258 = vector.shape_cast %257 : vector<1x2x4xf32> to vector<2x4xf32>
    %cst_228 = arith.constant dense<0.000000e+00> : vector<2x32xf32>
    %259 = tpu.matmul %258, %142, %cst_228 {dimension_numbers = #tpu.dot_dimension_numbers<[1], [0], [0], [1], [0, 0, 1, 1], [], []>} : vector<2x4xf32>, vector<4x32xf32>, vector<2x32xf32> -> vector<2x32xf32>
    %260 = arith.addf %256, %259 : vector<2x32xf32>
    %c3_229 = arith.constant 3 : index
    %c0_230 = arith.constant 0 : index
    %c0_231 = arith.constant 0 : index
    %261 = vector.load %arg5[%c3_229, %c0_230, %c0_231] : memref<16x2x4xf32, #tpu.memory_space<vmem>>, vector<1x2x4xf32>
    %262 = vector.shape_cast %261 : vector<1x2x4xf32> to vector<2x4xf32>
    %cst_232 = arith.constant dense<0.000000e+00> : vector<2x32xf32>
    %263 = tpu.matmul %262, %160, %cst_232 {dimension_numbers = #tpu.dot_dimension_numbers<[1], [0], [0], [1], [0, 0, 1, 1], [], []>} : vector<2x4xf32>, vector<4x32xf32>, vector<2x32xf32> -> vector<2x32xf32>
    %c3_233 = arith.constant 3 : index
    %c0_234 = arith.constant 0 : index
    %c0_235 = arith.constant 0 : index
    %264 = vector.load %arg1[%c3_233, %c0_234, %c0_235] : memref<9x32x32xf32, #tpu.memory_space<vmem>>, vector<1x32x32xf32>
    %265 = vector.shape_cast %264 : vector<1x32x32xf32> to vector<32x32xf32>
    %cst_236 = arith.constant dense<0.000000e+00> : vector<2x32xf32>
    %266 = tpu.matmul %263, %265, %cst_236 {dimension_numbers = #tpu.dot_dimension_numbers<[1], [0], [0], [1], [0, 0, 1, 1], [], []>} : vector<2x32xf32>, vector<32x32xf32>, vector<2x32xf32> -> vector<2x32xf32>
    %267 = arith.addf %260, %266 : vector<2x32xf32>
    %c1_237 = arith.constant 1 : index
    %c0_238 = arith.constant 0 : index
    %c0_239 = arith.constant 0 : index
    %268 = vector.load %arg5[%c1_237, %c0_238, %c0_239] : memref<16x2x4xf32, #tpu.memory_space<vmem>>, vector<1x2x4xf32>
    %269 = vector.shape_cast %268 : vector<1x2x4xf32> to vector<2x4xf32>
    %cst_240 = arith.constant dense<0.000000e+00> : vector<2x32xf32>
    %270 = tpu.matmul %269, %154, %cst_240 {dimension_numbers = #tpu.dot_dimension_numbers<[1], [0], [0], [1], [0, 0, 1, 1], [], []>} : vector<2x4xf32>, vector<4x32xf32>, vector<2x32xf32> -> vector<2x32xf32>
    %271 = arith.addf %267, %270 : vector<2x32xf32>
    %c10_241 = arith.constant 10 : index
    %c0_242 = arith.constant 0 : index
    %c0_243 = arith.constant 0 : index
    %272 = vector.load %arg5[%c10_241, %c0_242, %c0_243] : memref<16x2x4xf32, #tpu.memory_space<vmem>>, vector<1x2x4xf32>
    %273 = vector.shape_cast %272 : vector<1x2x4xf32> to vector<2x4xf32>
    %cst_244 = arith.constant dense<0.000000e+00> : vector<2x32xf32>
    %274 = tpu.matmul %273, %142, %cst_244 {dimension_numbers = #tpu.dot_dimension_numbers<[1], [0], [0], [1], [0, 0, 1, 1], [], []>} : vector<2x4xf32>, vector<4x32xf32>, vector<2x32xf32> -> vector<2x32xf32>
    %c8_245 = arith.constant 8 : index
    %c0_246 = arith.constant 0 : index
    %c0_247 = arith.constant 0 : index
    %275 = vector.load %arg5[%c8_245, %c0_246, %c0_247] : memref<16x2x4xf32, #tpu.memory_space<vmem>>, vector<1x2x4xf32>
    %276 = vector.shape_cast %275 : vector<1x2x4xf32> to vector<2x4xf32>
    %cst_248 = arith.constant dense<0.000000e+00> : vector<2x32xf32>
    %277 = tpu.matmul %276, %148, %cst_248 {dimension_numbers = #tpu.dot_dimension_numbers<[1], [0], [0], [1], [0, 0, 1, 1], [], []>} : vector<2x4xf32>, vector<4x32xf32>, vector<2x32xf32> -> vector<2x32xf32>
    %278 = arith.addf %274, %277 : vector<2x32xf32>
    %c2_249 = arith.constant 2 : index
    %c0_250 = arith.constant 0 : index
    %c0_251 = arith.constant 0 : index
    %279 = vector.load %arg5[%c2_249, %c0_250, %c0_251] : memref<16x2x4xf32, #tpu.memory_space<vmem>>, vector<1x2x4xf32>
    %280 = vector.shape_cast %279 : vector<1x2x4xf32> to vector<2x4xf32>
    %cst_252 = arith.constant dense<0.000000e+00> : vector<2x32xf32>
    %281 = tpu.matmul %280, %154, %cst_252 {dimension_numbers = #tpu.dot_dimension_numbers<[1], [0], [0], [1], [0, 0, 1, 1], [], []>} : vector<2x4xf32>, vector<4x32xf32>, vector<2x32xf32> -> vector<2x32xf32>
    %282 = arith.addf %278, %281 : vector<2x32xf32>
    %c0_253 = arith.constant 0 : index
    %c0_254 = arith.constant 0 : index
    %c0_255 = arith.constant 0 : index
    %283 = vector.load %arg5[%c0_253, %c0_254, %c0_255] : memref<16x2x4xf32, #tpu.memory_space<vmem>>, vector<1x2x4xf32>
    %284 = vector.shape_cast %283 : vector<1x2x4xf32> to vector<2x4xf32>
    %cst_256 = arith.constant dense<0.000000e+00> : vector<2x32xf32>
    %285 = tpu.matmul %284, %160, %cst_256 {dimension_numbers = #tpu.dot_dimension_numbers<[1], [0], [0], [1], [0, 0, 1, 1], [], []>} : vector<2x4xf32>, vector<4x32xf32>, vector<2x32xf32> -> vector<2x32xf32>
    %286 = arith.addf %282, %285 : vector<2x32xf32>
    %c11_257 = arith.constant 11 : index
    %c0_258 = arith.constant 0 : index
    %c0_259 = arith.constant 0 : index
    %287 = vector.load %arg5[%c11_257, %c0_258, %c0_259] : memref<16x2x4xf32, #tpu.memory_space<vmem>>, vector<1x2x4xf32>
    %288 = vector.shape_cast %287 : vector<1x2x4xf32> to vector<2x4xf32>
    %cst_260 = arith.constant dense<0.000000e+00> : vector<2x32xf32>
    %289 = tpu.matmul %288, %142, %cst_260 {dimension_numbers = #tpu.dot_dimension_numbers<[1], [0], [0], [1], [0, 0, 1, 1], [], []>} : vector<2x4xf32>, vector<4x32xf32>, vector<2x32xf32> -> vector<2x32xf32>
    %c9_261 = arith.constant 9 : index
    %c0_262 = arith.constant 0 : index
    %c0_263 = arith.constant 0 : index
    %290 = vector.load %arg5[%c9_261, %c0_262, %c0_263] : memref<16x2x4xf32, #tpu.memory_space<vmem>>, vector<1x2x4xf32>
    %291 = vector.shape_cast %290 : vector<1x2x4xf32> to vector<2x4xf32>
    %cst_264 = arith.constant dense<0.000000e+00> : vector<2x32xf32>
    %292 = tpu.matmul %291, %148, %cst_264 {dimension_numbers = #tpu.dot_dimension_numbers<[1], [0], [0], [1], [0, 0, 1, 1], [], []>} : vector<2x4xf32>, vector<4x32xf32>, vector<2x32xf32> -> vector<2x32xf32>
    %293 = arith.addf %289, %292 : vector<2x32xf32>
    %c3_265 = arith.constant 3 : index
    %c0_266 = arith.constant 0 : index
    %c0_267 = arith.constant 0 : index
    %294 = vector.load %arg5[%c3_265, %c0_266, %c0_267] : memref<16x2x4xf32, #tpu.memory_space<vmem>>, vector<1x2x4xf32>
    %295 = vector.shape_cast %294 : vector<1x2x4xf32> to vector<2x4xf32>
    %cst_268 = arith.constant dense<0.000000e+00> : vector<2x32xf32>
    %296 = tpu.matmul %295, %154, %cst_268 {dimension_numbers = #tpu.dot_dimension_numbers<[1], [0], [0], [1], [0, 0, 1, 1], [], []>} : vector<2x4xf32>, vector<4x32xf32>, vector<2x32xf32> -> vector<2x32xf32>
    %297 = arith.addf %293, %296 : vector<2x32xf32>
    %c1_269 = arith.constant 1 : index
    %c0_270 = arith.constant 0 : index
    %c0_271 = arith.constant 0 : index
    %298 = vector.load %arg5[%c1_269, %c0_270, %c0_271] : memref<16x2x4xf32, #tpu.memory_space<vmem>>, vector<1x2x4xf32>
    %299 = vector.shape_cast %298 : vector<1x2x4xf32> to vector<2x4xf32>
    %cst_272 = arith.constant dense<0.000000e+00> : vector<2x32xf32>
    %300 = tpu.matmul %299, %160, %cst_272 {dimension_numbers = #tpu.dot_dimension_numbers<[1], [0], [0], [1], [0, 0, 1, 1], [], []>} : vector<2x4xf32>, vector<4x32xf32>, vector<2x32xf32> -> vector<2x32xf32>
    %301 = arith.addf %297, %300 : vector<2x32xf32>
    %c10_273 = arith.constant 10 : index
    %c0_274 = arith.constant 0 : index
    %c0_275 = arith.constant 0 : index
    %302 = vector.load %arg5[%c10_273, %c0_274, %c0_275] : memref<16x2x4xf32, #tpu.memory_space<vmem>>, vector<1x2x4xf32>
    %303 = vector.shape_cast %302 : vector<1x2x4xf32> to vector<2x4xf32>
    %cst_276 = arith.constant dense<0.000000e+00> : vector<2x32xf32>
    %304 = tpu.matmul %303, %148, %cst_276 {dimension_numbers = #tpu.dot_dimension_numbers<[1], [0], [0], [1], [0, 0, 1, 1], [], []>} : vector<2x4xf32>, vector<4x32xf32>, vector<2x32xf32> -> vector<2x32xf32>
    %c8_277 = arith.constant 8 : index
    %c0_278 = arith.constant 0 : index
    %c0_279 = arith.constant 0 : index
    %305 = vector.load %arg5[%c8_277, %c0_278, %c0_279] : memref<16x2x4xf32, #tpu.memory_space<vmem>>, vector<1x2x4xf32>
    %306 = vector.shape_cast %305 : vector<1x2x4xf32> to vector<2x4xf32>
    %cst_280 = arith.constant dense<0.000000e+00> : vector<2x32xf32>
    %307 = tpu.matmul %306, %142, %cst_280 {dimension_numbers = #tpu.dot_dimension_numbers<[1], [0], [0], [1], [0, 0, 1, 1], [], []>} : vector<2x4xf32>, vector<4x32xf32>, vector<2x32xf32> -> vector<2x32xf32>
    %c5_281 = arith.constant 5 : index
    %c0_282 = arith.constant 0 : index
    %c0_283 = arith.constant 0 : index
    %308 = vector.load %arg1[%c5_281, %c0_282, %c0_283] : memref<9x32x32xf32, #tpu.memory_space<vmem>>, vector<1x32x32xf32>
    %309 = vector.shape_cast %308 : vector<1x32x32xf32> to vector<32x32xf32>
    %cst_284 = arith.constant dense<0.000000e+00> : vector<2x32xf32>
    %310 = tpu.matmul %307, %309, %cst_284 {dimension_numbers = #tpu.dot_dimension_numbers<[1], [0], [0], [1], [0, 0, 1, 1], [], []>} : vector<2x32xf32>, vector<32x32xf32>, vector<2x32xf32> -> vector<2x32xf32>
    %311 = arith.addf %304, %310 : vector<2x32xf32>
    %c2_285 = arith.constant 2 : index
    %c0_286 = arith.constant 0 : index
    %c0_287 = arith.constant 0 : index
    %312 = vector.load %arg5[%c2_285, %c0_286, %c0_287] : memref<16x2x4xf32, #tpu.memory_space<vmem>>, vector<1x2x4xf32>
    %313 = vector.shape_cast %312 : vector<1x2x4xf32> to vector<2x4xf32>
    %cst_288 = arith.constant dense<0.000000e+00> : vector<2x32xf32>
    %314 = tpu.matmul %313, %160, %cst_288 {dimension_numbers = #tpu.dot_dimension_numbers<[1], [0], [0], [1], [0, 0, 1, 1], [], []>} : vector<2x4xf32>, vector<4x32xf32>, vector<2x32xf32> -> vector<2x32xf32>
    %315 = arith.addf %311, %314 : vector<2x32xf32>
    %c0_289 = arith.constant 0 : index
    %c0_290 = arith.constant 0 : index
    %c0_291 = arith.constant 0 : index
    %316 = vector.load %arg5[%c0_289, %c0_290, %c0_291] : memref<16x2x4xf32, #tpu.memory_space<vmem>>, vector<1x2x4xf32>
    %317 = vector.shape_cast %316 : vector<1x2x4xf32> to vector<2x4xf32>
    %cst_292 = arith.constant dense<0.000000e+00> : vector<2x32xf32>
    %318 = tpu.matmul %317, %154, %cst_292 {dimension_numbers = #tpu.dot_dimension_numbers<[1], [0], [0], [1], [0, 0, 1, 1], [], []>} : vector<2x4xf32>, vector<4x32xf32>, vector<2x32xf32> -> vector<2x32xf32>
    %c5_293 = arith.constant 5 : index
    %c0_294 = arith.constant 0 : index
    %c0_295 = arith.constant 0 : index
    %319 = vector.load %arg1[%c5_293, %c0_294, %c0_295] : memref<9x32x32xf32, #tpu.memory_space<vmem>>, vector<1x32x32xf32>
    %320 = vector.shape_cast %319 : vector<1x32x32xf32> to vector<32x32xf32>
    %cst_296 = arith.constant dense<0.000000e+00> : vector<2x32xf32>
    %321 = tpu.matmul %318, %320, %cst_296 {dimension_numbers = #tpu.dot_dimension_numbers<[1], [0], [0], [1], [0, 0, 1, 1], [], []>} : vector<2x32xf32>, vector<32x32xf32>, vector<2x32xf32> -> vector<2x32xf32>
    %322 = arith.addf %315, %321 : vector<2x32xf32>
    %c15_297 = arith.constant 15 : index
    %c0_298 = arith.constant 0 : index
    %c0_299 = arith.constant 0 : index
    %323 = vector.load %arg5[%c15_297, %c0_298, %c0_299] : memref<16x2x4xf32, #tpu.memory_space<vmem>>, vector<1x2x4xf32>
    %324 = vector.shape_cast %323 : vector<1x2x4xf32> to vector<2x4xf32>
    %cst_300 = arith.constant dense<0.000000e+00> : vector<2x32xf32>
    %325 = tpu.matmul %324, %148, %cst_300 {dimension_numbers = #tpu.dot_dimension_numbers<[1], [0], [0], [1], [0, 0, 1, 1], [], []>} : vector<2x4xf32>, vector<4x32xf32>, vector<2x32xf32> -> vector<2x32xf32>
    %c3_301 = arith.constant 3 : index
    %c0_302 = arith.constant 0 : index
    %c0_303 = arith.constant 0 : index
    %326 = vector.load %arg1[%c3_301, %c0_302, %c0_303] : memref<9x32x32xf32, #tpu.memory_space<vmem>>, vector<1x32x32xf32>
    %327 = vector.shape_cast %326 : vector<1x32x32xf32> to vector<32x32xf32>
    %cst_304 = arith.constant dense<0.000000e+00> : vector<2x32xf32>
    %328 = tpu.matmul %325, %327, %cst_304 {dimension_numbers = #tpu.dot_dimension_numbers<[1], [0], [0], [1], [0, 0, 1, 1], [], []>} : vector<2x32xf32>, vector<32x32xf32>, vector<2x32xf32> -> vector<2x32xf32>
    %c13_305 = arith.constant 13 : index
    %c0_306 = arith.constant 0 : index
    %c0_307 = arith.constant 0 : index
    %329 = vector.load %arg5[%c13_305, %c0_306, %c0_307] : memref<16x2x4xf32, #tpu.memory_space<vmem>>, vector<1x2x4xf32>
    %330 = vector.shape_cast %329 : vector<1x2x4xf32> to vector<2x4xf32>
    %cst_308 = arith.constant dense<0.000000e+00> : vector<2x32xf32>
    %331 = tpu.matmul %330, %142, %cst_308 {dimension_numbers = #tpu.dot_dimension_numbers<[1], [0], [0], [1], [0, 0, 1, 1], [], []>} : vector<2x4xf32>, vector<4x32xf32>, vector<2x32xf32> -> vector<2x32xf32>
    %332 = arith.addf %328, %331 : vector<2x32xf32>
    %c7_309 = arith.constant 7 : index
    %c0_310 = arith.constant 0 : index
    %c0_311 = arith.constant 0 : index
    %333 = vector.load %arg5[%c7_309, %c0_310, %c0_311] : memref<16x2x4xf32, #tpu.memory_space<vmem>>, vector<1x2x4xf32>
    %334 = vector.shape_cast %333 : vector<1x2x4xf32> to vector<2x4xf32>
    %cst_312 = arith.constant dense<0.000000e+00> : vector<2x32xf32>
    %335 = tpu.matmul %334, %160, %cst_312 {dimension_numbers = #tpu.dot_dimension_numbers<[1], [0], [0], [1], [0, 0, 1, 1], [], []>} : vector<2x4xf32>, vector<4x32xf32>, vector<2x32xf32> -> vector<2x32xf32>
    %c3_313 = arith.constant 3 : index
    %c0_314 = arith.constant 0 : index
    %c0_315 = arith.constant 0 : index
    %336 = vector.load %arg1[%c3_313, %c0_314, %c0_315] : memref<9x32x32xf32, #tpu.memory_space<vmem>>, vector<1x32x32xf32>
    %337 = vector.shape_cast %336 : vector<1x32x32xf32> to vector<32x32xf32>
    %cst_316 = arith.constant dense<0.000000e+00> : vector<2x32xf32>
    %338 = tpu.matmul %335, %337, %cst_316 {dimension_numbers = #tpu.dot_dimension_numbers<[1], [0], [0], [1], [0, 0, 1, 1], [], []>} : vector<2x32xf32>, vector<32x32xf32>, vector<2x32xf32> -> vector<2x32xf32>
    %339 = arith.addf %332, %338 : vector<2x32xf32>
    %c5_317 = arith.constant 5 : index
    %c0_318 = arith.constant 0 : index
    %c0_319 = arith.constant 0 : index
    %340 = vector.load %arg5[%c5_317, %c0_318, %c0_319] : memref<16x2x4xf32, #tpu.memory_space<vmem>>, vector<1x2x4xf32>
    %341 = vector.shape_cast %340 : vector<1x2x4xf32> to vector<2x4xf32>
    %cst_320 = arith.constant dense<0.000000e+00> : vector<2x32xf32>
    %342 = tpu.matmul %341, %154, %cst_320 {dimension_numbers = #tpu.dot_dimension_numbers<[1], [0], [0], [1], [0, 0, 1, 1], [], []>} : vector<2x4xf32>, vector<4x32xf32>, vector<2x32xf32> -> vector<2x32xf32>
    %343 = arith.addf %339, %342 : vector<2x32xf32>
    %c14_321 = arith.constant 14 : index
    %c0_322 = arith.constant 0 : index
    %c0_323 = arith.constant 0 : index
    %344 = vector.load %arg5[%c14_321, %c0_322, %c0_323] : memref<16x2x4xf32, #tpu.memory_space<vmem>>, vector<1x2x4xf32>
    %345 = vector.shape_cast %344 : vector<1x2x4xf32> to vector<2x4xf32>
    %cst_324 = arith.constant dense<0.000000e+00> : vector<2x32xf32>
    %346 = tpu.matmul %345, %142, %cst_324 {dimension_numbers = #tpu.dot_dimension_numbers<[1], [0], [0], [1], [0, 0, 1, 1], [], []>} : vector<2x4xf32>, vector<4x32xf32>, vector<2x32xf32> -> vector<2x32xf32>
    %c12_325 = arith.constant 12 : index
    %c0_326 = arith.constant 0 : index
    %c0_327 = arith.constant 0 : index
    %347 = vector.load %arg5[%c12_325, %c0_326, %c0_327] : memref<16x2x4xf32, #tpu.memory_space<vmem>>, vector<1x2x4xf32>
    %348 = vector.shape_cast %347 : vector<1x2x4xf32> to vector<2x4xf32>
    %cst_328 = arith.constant dense<0.000000e+00> : vector<2x32xf32>
    %349 = tpu.matmul %348, %148, %cst_328 {dimension_numbers = #tpu.dot_dimension_numbers<[1], [0], [0], [1], [0, 0, 1, 1], [], []>} : vector<2x4xf32>, vector<4x32xf32>, vector<2x32xf32> -> vector<2x32xf32>
    %350 = arith.addf %346, %349 : vector<2x32xf32>
    %c6_329 = arith.constant 6 : index
    %c0_330 = arith.constant 0 : index
    %c0_331 = arith.constant 0 : index
    %351 = vector.load %arg5[%c6_329, %c0_330, %c0_331] : memref<16x2x4xf32, #tpu.memory_space<vmem>>, vector<1x2x4xf32>
    %352 = vector.shape_cast %351 : vector<1x2x4xf32> to vector<2x4xf32>
    %cst_332 = arith.constant dense<0.000000e+00> : vector<2x32xf32>
    %353 = tpu.matmul %352, %154, %cst_332 {dimension_numbers = #tpu.dot_dimension_numbers<[1], [0], [0], [1], [0, 0, 1, 1], [], []>} : vector<2x4xf32>, vector<4x32xf32>, vector<2x32xf32> -> vector<2x32xf32>
    %354 = arith.addf %350, %353 : vector<2x32xf32>
    %c4_333 = arith.constant 4 : index
    %c0_334 = arith.constant 0 : index
    %c0_335 = arith.constant 0 : index
    %355 = vector.load %arg5[%c4_333, %c0_334, %c0_335] : memref<16x2x4xf32, #tpu.memory_space<vmem>>, vector<1x2x4xf32>
    %356 = vector.shape_cast %355 : vector<1x2x4xf32> to vector<2x4xf32>
    %cst_336 = arith.constant dense<0.000000e+00> : vector<2x32xf32>
    %357 = tpu.matmul %356, %160, %cst_336 {dimension_numbers = #tpu.dot_dimension_numbers<[1], [0], [0], [1], [0, 0, 1, 1], [], []>} : vector<2x4xf32>, vector<4x32xf32>, vector<2x32xf32> -> vector<2x32xf32>
    %358 = arith.addf %354, %357 : vector<2x32xf32>
    %c15_337 = arith.constant 15 : index
    %c0_338 = arith.constant 0 : index
    %c0_339 = arith.constant 0 : index
    %359 = vector.load %arg5[%c15_337, %c0_338, %c0_339] : memref<16x2x4xf32, #tpu.memory_space<vmem>>, vector<1x2x4xf32>
    %360 = vector.shape_cast %359 : vector<1x2x4xf32> to vector<2x4xf32>
    %cst_340 = arith.constant dense<0.000000e+00> : vector<2x32xf32>
    %361 = tpu.matmul %360, %142, %cst_340 {dimension_numbers = #tpu.dot_dimension_numbers<[1], [0], [0], [1], [0, 0, 1, 1], [], []>} : vector<2x4xf32>, vector<4x32xf32>, vector<2x32xf32> -> vector<2x32xf32>
    %c13_341 = arith.constant 13 : index
    %c0_342 = arith.constant 0 : index
    %c0_343 = arith.constant 0 : index
    %362 = vector.load %arg5[%c13_341, %c0_342, %c0_343] : memref<16x2x4xf32, #tpu.memory_space<vmem>>, vector<1x2x4xf32>
    %363 = vector.shape_cast %362 : vector<1x2x4xf32> to vector<2x4xf32>
    %cst_344 = arith.constant dense<0.000000e+00> : vector<2x32xf32>
    %364 = tpu.matmul %363, %148, %cst_344 {dimension_numbers = #tpu.dot_dimension_numbers<[1], [0], [0], [1], [0, 0, 1, 1], [], []>} : vector<2x4xf32>, vector<4x32xf32>, vector<2x32xf32> -> vector<2x32xf32>
    %365 = arith.addf %361, %364 : vector<2x32xf32>
    %c7_345 = arith.constant 7 : index
    %c0_346 = arith.constant 0 : index
    %c0_347 = arith.constant 0 : index
    %366 = vector.load %arg5[%c7_345, %c0_346, %c0_347] : memref<16x2x4xf32, #tpu.memory_space<vmem>>, vector<1x2x4xf32>
    %367 = vector.shape_cast %366 : vector<1x2x4xf32> to vector<2x4xf32>
    %cst_348 = arith.constant dense<0.000000e+00> : vector<2x32xf32>
    %368 = tpu.matmul %367, %154, %cst_348 {dimension_numbers = #tpu.dot_dimension_numbers<[1], [0], [0], [1], [0, 0, 1, 1], [], []>} : vector<2x4xf32>, vector<4x32xf32>, vector<2x32xf32> -> vector<2x32xf32>
    %369 = arith.addf %365, %368 : vector<2x32xf32>
    %c5_349 = arith.constant 5 : index
    %c0_350 = arith.constant 0 : index
    %c0_351 = arith.constant 0 : index
    %370 = vector.load %arg5[%c5_349, %c0_350, %c0_351] : memref<16x2x4xf32, #tpu.memory_space<vmem>>, vector<1x2x4xf32>
    %371 = vector.shape_cast %370 : vector<1x2x4xf32> to vector<2x4xf32>
    %cst_352 = arith.constant dense<0.000000e+00> : vector<2x32xf32>
    %372 = tpu.matmul %371, %160, %cst_352 {dimension_numbers = #tpu.dot_dimension_numbers<[1], [0], [0], [1], [0, 0, 1, 1], [], []>} : vector<2x4xf32>, vector<4x32xf32>, vector<2x32xf32> -> vector<2x32xf32>
    %373 = arith.addf %369, %372 : vector<2x32xf32>
    %c14_353 = arith.constant 14 : index
    %c0_354 = arith.constant 0 : index
    %c0_355 = arith.constant 0 : index
    %374 = vector.load %arg5[%c14_353, %c0_354, %c0_355] : memref<16x2x4xf32, #tpu.memory_space<vmem>>, vector<1x2x4xf32>
    %375 = vector.shape_cast %374 : vector<1x2x4xf32> to vector<2x4xf32>
    %cst_356 = arith.constant dense<0.000000e+00> : vector<2x32xf32>
    %376 = tpu.matmul %375, %148, %cst_356 {dimension_numbers = #tpu.dot_dimension_numbers<[1], [0], [0], [1], [0, 0, 1, 1], [], []>} : vector<2x4xf32>, vector<4x32xf32>, vector<2x32xf32> -> vector<2x32xf32>
    %c12_357 = arith.constant 12 : index
    %c0_358 = arith.constant 0 : index
    %c0_359 = arith.constant 0 : index
    %377 = vector.load %arg5[%c12_357, %c0_358, %c0_359] : memref<16x2x4xf32, #tpu.memory_space<vmem>>, vector<1x2x4xf32>
    %378 = vector.shape_cast %377 : vector<1x2x4xf32> to vector<2x4xf32>
    %cst_360 = arith.constant dense<0.000000e+00> : vector<2x32xf32>
    %379 = tpu.matmul %378, %142, %cst_360 {dimension_numbers = #tpu.dot_dimension_numbers<[1], [0], [0], [1], [0, 0, 1, 1], [], []>} : vector<2x4xf32>, vector<4x32xf32>, vector<2x32xf32> -> vector<2x32xf32>
    %c5_361 = arith.constant 5 : index
    %c0_362 = arith.constant 0 : index
    %c0_363 = arith.constant 0 : index
    %380 = vector.load %arg1[%c5_361, %c0_362, %c0_363] : memref<9x32x32xf32, #tpu.memory_space<vmem>>, vector<1x32x32xf32>
    %381 = vector.shape_cast %380 : vector<1x32x32xf32> to vector<32x32xf32>
    %cst_364 = arith.constant dense<0.000000e+00> : vector<2x32xf32>
    %382 = tpu.matmul %379, %381, %cst_364 {dimension_numbers = #tpu.dot_dimension_numbers<[1], [0], [0], [1], [0, 0, 1, 1], [], []>} : vector<2x32xf32>, vector<32x32xf32>, vector<2x32xf32> -> vector<2x32xf32>
    %383 = arith.addf %376, %382 : vector<2x32xf32>
    %c6_365 = arith.constant 6 : index
    %c0_366 = arith.constant 0 : index
    %c0_367 = arith.constant 0 : index
    %384 = vector.load %arg5[%c6_365, %c0_366, %c0_367] : memref<16x2x4xf32, #tpu.memory_space<vmem>>, vector<1x2x4xf32>
    %385 = vector.shape_cast %384 : vector<1x2x4xf32> to vector<2x4xf32>
    %cst_368 = arith.constant dense<0.000000e+00> : vector<2x32xf32>
    %386 = tpu.matmul %385, %160, %cst_368 {dimension_numbers = #tpu.dot_dimension_numbers<[1], [0], [0], [1], [0, 0, 1, 1], [], []>} : vector<2x4xf32>, vector<4x32xf32>, vector<2x32xf32> -> vector<2x32xf32>
    %387 = arith.addf %383, %386 : vector<2x32xf32>
    %c4_369 = arith.constant 4 : index
    %c0_370 = arith.constant 0 : index
    %c0_371 = arith.constant 0 : index
    %388 = vector.load %arg5[%c4_369, %c0_370, %c0_371] : memref<16x2x4xf32, #tpu.memory_space<vmem>>, vector<1x2x4xf32>
    %389 = vector.shape_cast %388 : vector<1x2x4xf32> to vector<2x4xf32>
    %cst_372 = arith.constant dense<0.000000e+00> : vector<2x32xf32>
    %390 = tpu.matmul %389, %154, %cst_372 {dimension_numbers = #tpu.dot_dimension_numbers<[1], [0], [0], [1], [0, 0, 1, 1], [], []>} : vector<2x4xf32>, vector<4x32xf32>, vector<2x32xf32> -> vector<2x32xf32>
    %c5_373 = arith.constant 5 : index
    %c0_374 = arith.constant 0 : index
    %c0_375 = arith.constant 0 : index
    %391 = vector.load %arg1[%c5_373, %c0_374, %c0_375] : memref<9x32x32xf32, #tpu.memory_space<vmem>>, vector<1x32x32xf32>
    %392 = vector.shape_cast %391 : vector<1x32x32xf32> to vector<32x32xf32>
    %cst_376 = arith.constant dense<0.000000e+00> : vector<2x32xf32>
    %393 = tpu.matmul %390, %392, %cst_376 {dimension_numbers = #tpu.dot_dimension_numbers<[1], [0], [0], [1], [0, 0, 1, 1], [], []>} : vector<2x32xf32>, vector<32x32xf32>, vector<2x32xf32> -> vector<2x32xf32>
    %394 = arith.addf %387, %393 : vector<2x32xf32>
    %c11_377 = arith.constant 11 : index
    %c0_378 = arith.constant 0 : index
    %c0_379 = arith.constant 0 : index
    %395 = vector.load %arg5[%c11_377, %c0_378, %c0_379] : memref<16x2x4xf32, #tpu.memory_space<vmem>>, vector<1x2x4xf32>
    %396 = vector.shape_cast %395 : vector<1x2x4xf32> to vector<2x4xf32>
    %cst_380 = arith.constant dense<0.000000e+00> : vector<2x32xf32>
    %397 = tpu.matmul %396, %160, %cst_380 {dimension_numbers = #tpu.dot_dimension_numbers<[1], [0], [0], [1], [0, 0, 1, 1], [], []>} : vector<2x4xf32>, vector<4x32xf32>, vector<2x32xf32> -> vector<2x32xf32>
    %c3_381 = arith.constant 3 : index
    %c0_382 = arith.constant 0 : index
    %c0_383 = arith.constant 0 : index
    %398 = vector.load %arg1[%c3_381, %c0_382, %c0_383] : memref<9x32x32xf32, #tpu.memory_space<vmem>>, vector<1x32x32xf32>
    %399 = vector.shape_cast %398 : vector<1x32x32xf32> to vector<32x32xf32>
    %cst_384 = arith.constant dense<0.000000e+00> : vector<2x32xf32>
    %400 = tpu.matmul %397, %399, %cst_384 {dimension_numbers = #tpu.dot_dimension_numbers<[1], [0], [0], [1], [0, 0, 1, 1], [], []>} : vector<2x32xf32>, vector<32x32xf32>, vector<2x32xf32> -> vector<2x32xf32>
    %c9_385 = arith.constant 9 : index
    %c0_386 = arith.constant 0 : index
    %c0_387 = arith.constant 0 : index
    %401 = vector.load %arg5[%c9_385, %c0_386, %c0_387] : memref<16x2x4xf32, #tpu.memory_space<vmem>>, vector<1x2x4xf32>
    %402 = vector.shape_cast %401 : vector<1x2x4xf32> to vector<2x4xf32>
    %cst_388 = arith.constant dense<0.000000e+00> : vector<2x32xf32>
    %403 = tpu.matmul %402, %154, %cst_388 {dimension_numbers = #tpu.dot_dimension_numbers<[1], [0], [0], [1], [0, 0, 1, 1], [], []>} : vector<2x4xf32>, vector<4x32xf32>, vector<2x32xf32> -> vector<2x32xf32>
    %404 = arith.addf %400, %403 : vector<2x32xf32>
    %c3_389 = arith.constant 3 : index
    %c0_390 = arith.constant 0 : index
    %c0_391 = arith.constant 0 : index
    %405 = vector.load %arg5[%c3_389, %c0_390, %c0_391] : memref<16x2x4xf32, #tpu.memory_space<vmem>>, vector<1x2x4xf32>
    %406 = vector.shape_cast %405 : vector<1x2x4xf32> to vector<2x4xf32>
    %cst_392 = arith.constant dense<0.000000e+00> : vector<2x32xf32>
    %407 = tpu.matmul %406, %148, %cst_392 {dimension_numbers = #tpu.dot_dimension_numbers<[1], [0], [0], [1], [0, 0, 1, 1], [], []>} : vector<2x4xf32>, vector<4x32xf32>, vector<2x32xf32> -> vector<2x32xf32>
    %c6_393 = arith.constant 6 : index
    %c0_394 = arith.constant 0 : index
    %c0_395 = arith.constant 0 : index
    %408 = vector.load %arg1[%c6_393, %c0_394, %c0_395] : memref<9x32x32xf32, #tpu.memory_space<vmem>>, vector<1x32x32xf32>
    %409 = vector.shape_cast %408 : vector<1x32x32xf32> to vector<32x32xf32>
    %cst_396 = arith.constant dense<0.000000e+00> : vector<2x32xf32>
    %410 = tpu.matmul %407, %409, %cst_396 {dimension_numbers = #tpu.dot_dimension_numbers<[1], [0], [0], [1], [0, 0, 1, 1], [], []>} : vector<2x32xf32>, vector<32x32xf32>, vector<2x32xf32> -> vector<2x32xf32>
    %411 = arith.addf %404, %410 : vector<2x32xf32>
    %c1_397 = arith.constant 1 : index
    %c0_398 = arith.constant 0 : index
    %c0_399 = arith.constant 0 : index
    %412 = vector.load %arg5[%c1_397, %c0_398, %c0_399] : memref<16x2x4xf32, #tpu.memory_space<vmem>>, vector<1x2x4xf32>
    %413 = vector.shape_cast %412 : vector<1x2x4xf32> to vector<2x4xf32>
    %cst_400 = arith.constant dense<0.000000e+00> : vector<2x32xf32>
    %414 = tpu.matmul %413, %142, %cst_400 {dimension_numbers = #tpu.dot_dimension_numbers<[1], [0], [0], [1], [0, 0, 1, 1], [], []>} : vector<2x4xf32>, vector<4x32xf32>, vector<2x32xf32> -> vector<2x32xf32>
    %c7_401 = arith.constant 7 : index
    %c0_402 = arith.constant 0 : index
    %c0_403 = arith.constant 0 : index
    %415 = vector.load %arg1[%c7_401, %c0_402, %c0_403] : memref<9x32x32xf32, #tpu.memory_space<vmem>>, vector<1x32x32xf32>
    %416 = vector.shape_cast %415 : vector<1x32x32xf32> to vector<32x32xf32>
    %cst_404 = arith.constant dense<0.000000e+00> : vector<2x32xf32>
    %417 = tpu.matmul %414, %416, %cst_404 {dimension_numbers = #tpu.dot_dimension_numbers<[1], [0], [0], [1], [0, 0, 1, 1], [], []>} : vector<2x32xf32>, vector<32x32xf32>, vector<2x32xf32> -> vector<2x32xf32>
    %418 = arith.addf %411, %417 : vector<2x32xf32>
    %c10_405 = arith.constant 10 : index
    %c0_406 = arith.constant 0 : index
    %c0_407 = arith.constant 0 : index
    %419 = vector.load %arg5[%c10_405, %c0_406, %c0_407] : memref<16x2x4xf32, #tpu.memory_space<vmem>>, vector<1x2x4xf32>
    %420 = vector.shape_cast %419 : vector<1x2x4xf32> to vector<2x4xf32>
    %cst_408 = arith.constant dense<0.000000e+00> : vector<2x32xf32>
    %421 = tpu.matmul %420, %154, %cst_408 {dimension_numbers = #tpu.dot_dimension_numbers<[1], [0], [0], [1], [0, 0, 1, 1], [], []>} : vector<2x4xf32>, vector<4x32xf32>, vector<2x32xf32> -> vector<2x32xf32>
    %c8_409 = arith.constant 8 : index
    %c0_410 = arith.constant 0 : index
    %c0_411 = arith.constant 0 : index
    %422 = vector.load %arg5[%c8_409, %c0_410, %c0_411] : memref<16x2x4xf32, #tpu.memory_space<vmem>>, vector<1x2x4xf32>
    %423 = vector.shape_cast %422 : vector<1x2x4xf32> to vector<2x4xf32>
    %cst_412 = arith.constant dense<0.000000e+00> : vector<2x32xf32>
    %424 = tpu.matmul %423, %160, %cst_412 {dimension_numbers = #tpu.dot_dimension_numbers<[1], [0], [0], [1], [0, 0, 1, 1], [], []>} : vector<2x4xf32>, vector<4x32xf32>, vector<2x32xf32> -> vector<2x32xf32>
    %425 = arith.addf %421, %424 : vector<2x32xf32>
    %c2_413 = arith.constant 2 : index
    %c0_414 = arith.constant 0 : index
    %c0_415 = arith.constant 0 : index
    %426 = vector.load %arg5[%c2_413, %c0_414, %c0_415] : memref<16x2x4xf32, #tpu.memory_space<vmem>>, vector<1x2x4xf32>
    %427 = vector.shape_cast %426 : vector<1x2x4xf32> to vector<2x4xf32>
    %cst_416 = arith.constant dense<0.000000e+00> : vector<2x32xf32>
    %428 = tpu.matmul %427, %142, %cst_416 {dimension_numbers = #tpu.dot_dimension_numbers<[1], [0], [0], [1], [0, 0, 1, 1], [], []>} : vector<2x4xf32>, vector<4x32xf32>, vector<2x32xf32> -> vector<2x32xf32>
    %c7_417 = arith.constant 7 : index
    %c0_418 = arith.constant 0 : index
    %c0_419 = arith.constant 0 : index
    %429 = vector.load %arg1[%c7_417, %c0_418, %c0_419] : memref<9x32x32xf32, #tpu.memory_space<vmem>>, vector<1x32x32xf32>
    %430 = vector.shape_cast %429 : vector<1x32x32xf32> to vector<32x32xf32>
    %cst_420 = arith.constant dense<0.000000e+00> : vector<2x32xf32>
    %431 = tpu.matmul %428, %430, %cst_420 {dimension_numbers = #tpu.dot_dimension_numbers<[1], [0], [0], [1], [0, 0, 1, 1], [], []>} : vector<2x32xf32>, vector<32x32xf32>, vector<2x32xf32> -> vector<2x32xf32>
    %432 = arith.addf %425, %431 : vector<2x32xf32>
    %c0_421 = arith.constant 0 : index
    %c0_422 = arith.constant 0 : index
    %c0_423 = arith.constant 0 : index
    %433 = vector.load %arg5[%c0_421, %c0_422, %c0_423] : memref<16x2x4xf32, #tpu.memory_space<vmem>>, vector<1x2x4xf32>
    %434 = vector.shape_cast %433 : vector<1x2x4xf32> to vector<2x4xf32>
    %cst_424 = arith.constant dense<0.000000e+00> : vector<2x32xf32>
    %435 = tpu.matmul %434, %148, %cst_424 {dimension_numbers = #tpu.dot_dimension_numbers<[1], [0], [0], [1], [0, 0, 1, 1], [], []>} : vector<2x4xf32>, vector<4x32xf32>, vector<2x32xf32> -> vector<2x32xf32>
    %c7_425 = arith.constant 7 : index
    %c0_426 = arith.constant 0 : index
    %c0_427 = arith.constant 0 : index
    %436 = vector.load %arg1[%c7_425, %c0_426, %c0_427] : memref<9x32x32xf32, #tpu.memory_space<vmem>>, vector<1x32x32xf32>
    %437 = vector.shape_cast %436 : vector<1x32x32xf32> to vector<32x32xf32>
    %cst_428 = arith.constant dense<0.000000e+00> : vector<2x32xf32>
    %438 = tpu.matmul %435, %437, %cst_428 {dimension_numbers = #tpu.dot_dimension_numbers<[1], [0], [0], [1], [0, 0, 1, 1], [], []>} : vector<2x32xf32>, vector<32x32xf32>, vector<2x32xf32> -> vector<2x32xf32>
    %439 = arith.addf %432, %438 : vector<2x32xf32>
    %c11_429 = arith.constant 11 : index
    %c0_430 = arith.constant 0 : index
    %c0_431 = arith.constant 0 : index
    %440 = vector.load %arg5[%c11_429, %c0_430, %c0_431] : memref<16x2x4xf32, #tpu.memory_space<vmem>>, vector<1x2x4xf32>
    %441 = vector.shape_cast %440 : vector<1x2x4xf32> to vector<2x4xf32>
    %cst_432 = arith.constant dense<0.000000e+00> : vector<2x32xf32>
    %442 = tpu.matmul %441, %154, %cst_432 {dimension_numbers = #tpu.dot_dimension_numbers<[1], [0], [0], [1], [0, 0, 1, 1], [], []>} : vector<2x4xf32>, vector<4x32xf32>, vector<2x32xf32> -> vector<2x32xf32>
    %c9_433 = arith.constant 9 : index
    %c0_434 = arith.constant 0 : index
    %c0_435 = arith.constant 0 : index
    %443 = vector.load %arg5[%c9_433, %c0_434, %c0_435] : memref<16x2x4xf32, #tpu.memory_space<vmem>>, vector<1x2x4xf32>
    %444 = vector.shape_cast %443 : vector<1x2x4xf32> to vector<2x4xf32>
    %cst_436 = arith.constant dense<0.000000e+00> : vector<2x32xf32>
    %445 = tpu.matmul %444, %160, %cst_436 {dimension_numbers = #tpu.dot_dimension_numbers<[1], [0], [0], [1], [0, 0, 1, 1], [], []>} : vector<2x4xf32>, vector<4x32xf32>, vector<2x32xf32> -> vector<2x32xf32>
    %446 = arith.addf %442, %445 : vector<2x32xf32>
    %c3_437 = arith.constant 3 : index
    %c0_438 = arith.constant 0 : index
    %c0_439 = arith.constant 0 : index
    %447 = vector.load %arg5[%c3_437, %c0_438, %c0_439] : memref<16x2x4xf32, #tpu.memory_space<vmem>>, vector<1x2x4xf32>
    %448 = vector.shape_cast %447 : vector<1x2x4xf32> to vector<2x4xf32>
    %cst_440 = arith.constant dense<0.000000e+00> : vector<2x32xf32>
    %449 = tpu.matmul %448, %142, %cst_440 {dimension_numbers = #tpu.dot_dimension_numbers<[1], [0], [0], [1], [0, 0, 1, 1], [], []>} : vector<2x4xf32>, vector<4x32xf32>, vector<2x32xf32> -> vector<2x32xf32>
    %c7_441 = arith.constant 7 : index
    %c0_442 = arith.constant 0 : index
    %c0_443 = arith.constant 0 : index
    %450 = vector.load %arg1[%c7_441, %c0_442, %c0_443] : memref<9x32x32xf32, #tpu.memory_space<vmem>>, vector<1x32x32xf32>
    %451 = vector.shape_cast %450 : vector<1x32x32xf32> to vector<32x32xf32>
    %cst_444 = arith.constant dense<0.000000e+00> : vector<2x32xf32>
    %452 = tpu.matmul %449, %451, %cst_444 {dimension_numbers = #tpu.dot_dimension_numbers<[1], [0], [0], [1], [0, 0, 1, 1], [], []>} : vector<2x32xf32>, vector<32x32xf32>, vector<2x32xf32> -> vector<2x32xf32>
    %453 = arith.addf %446, %452 : vector<2x32xf32>
    %c1_445 = arith.constant 1 : index
    %c0_446 = arith.constant 0 : index
    %c0_447 = arith.constant 0 : index
    %454 = vector.load %arg5[%c1_445, %c0_446, %c0_447] : memref<16x2x4xf32, #tpu.memory_space<vmem>>, vector<1x2x4xf32>
    %455 = vector.shape_cast %454 : vector<1x2x4xf32> to vector<2x4xf32>
    %cst_448 = arith.constant dense<0.000000e+00> : vector<2x32xf32>
    %456 = tpu.matmul %455, %148, %cst_448 {dimension_numbers = #tpu.dot_dimension_numbers<[1], [0], [0], [1], [0, 0, 1, 1], [], []>} : vector<2x4xf32>, vector<4x32xf32>, vector<2x32xf32> -> vector<2x32xf32>
    %c7_449 = arith.constant 7 : index
    %c0_450 = arith.constant 0 : index
    %c0_451 = arith.constant 0 : index
    %457 = vector.load %arg1[%c7_449, %c0_450, %c0_451] : memref<9x32x32xf32, #tpu.memory_space<vmem>>, vector<1x32x32xf32>
    %458 = vector.shape_cast %457 : vector<1x32x32xf32> to vector<32x32xf32>
    %cst_452 = arith.constant dense<0.000000e+00> : vector<2x32xf32>
    %459 = tpu.matmul %456, %458, %cst_452 {dimension_numbers = #tpu.dot_dimension_numbers<[1], [0], [0], [1], [0, 0, 1, 1], [], []>} : vector<2x32xf32>, vector<32x32xf32>, vector<2x32xf32> -> vector<2x32xf32>
    %460 = arith.addf %453, %459 : vector<2x32xf32>
    %c10_453 = arith.constant 10 : index
    %c0_454 = arith.constant 0 : index
    %c0_455 = arith.constant 0 : index
    %461 = vector.load %arg5[%c10_453, %c0_454, %c0_455] : memref<16x2x4xf32, #tpu.memory_space<vmem>>, vector<1x2x4xf32>
    %462 = vector.shape_cast %461 : vector<1x2x4xf32> to vector<2x4xf32>
    %cst_456 = arith.constant dense<0.000000e+00> : vector<2x32xf32>
    %463 = tpu.matmul %462, %160, %cst_456 {dimension_numbers = #tpu.dot_dimension_numbers<[1], [0], [0], [1], [0, 0, 1, 1], [], []>} : vector<2x4xf32>, vector<4x32xf32>, vector<2x32xf32> -> vector<2x32xf32>
    %c8_457 = arith.constant 8 : index
    %c0_458 = arith.constant 0 : index
    %c0_459 = arith.constant 0 : index
    %464 = vector.load %arg5[%c8_457, %c0_458, %c0_459] : memref<16x2x4xf32, #tpu.memory_space<vmem>>, vector<1x2x4xf32>
    %465 = vector.shape_cast %464 : vector<1x2x4xf32> to vector<2x4xf32>
    %cst_460 = arith.constant dense<0.000000e+00> : vector<2x32xf32>
    %466 = tpu.matmul %465, %154, %cst_460 {dimension_numbers = #tpu.dot_dimension_numbers<[1], [0], [0], [1], [0, 0, 1, 1], [], []>} : vector<2x4xf32>, vector<4x32xf32>, vector<2x32xf32> -> vector<2x32xf32>
    %c5_461 = arith.constant 5 : index
    %c0_462 = arith.constant 0 : index
    %c0_463 = arith.constant 0 : index
    %467 = vector.load %arg1[%c5_461, %c0_462, %c0_463] : memref<9x32x32xf32, #tpu.memory_space<vmem>>, vector<1x32x32xf32>
    %468 = vector.shape_cast %467 : vector<1x32x32xf32> to vector<32x32xf32>
    %cst_464 = arith.constant dense<0.000000e+00> : vector<2x32xf32>
    %469 = tpu.matmul %466, %468, %cst_464 {dimension_numbers = #tpu.dot_dimension_numbers<[1], [0], [0], [1], [0, 0, 1, 1], [], []>} : vector<2x32xf32>, vector<32x32xf32>, vector<2x32xf32> -> vector<2x32xf32>
    %470 = arith.addf %463, %469 : vector<2x32xf32>
    %c2_465 = arith.constant 2 : index
    %c0_466 = arith.constant 0 : index
    %c0_467 = arith.constant 0 : index
    %471 = vector.load %arg5[%c2_465, %c0_466, %c0_467] : memref<16x2x4xf32, #tpu.memory_space<vmem>>, vector<1x2x4xf32>
    %472 = vector.shape_cast %471 : vector<1x2x4xf32> to vector<2x4xf32>
    %cst_468 = arith.constant dense<0.000000e+00> : vector<2x32xf32>
    %473 = tpu.matmul %472, %148, %cst_468 {dimension_numbers = #tpu.dot_dimension_numbers<[1], [0], [0], [1], [0, 0, 1, 1], [], []>} : vector<2x4xf32>, vector<4x32xf32>, vector<2x32xf32> -> vector<2x32xf32>
    %c7_469 = arith.constant 7 : index
    %c0_470 = arith.constant 0 : index
    %c0_471 = arith.constant 0 : index
    %474 = vector.load %arg1[%c7_469, %c0_470, %c0_471] : memref<9x32x32xf32, #tpu.memory_space<vmem>>, vector<1x32x32xf32>
    %475 = vector.shape_cast %474 : vector<1x32x32xf32> to vector<32x32xf32>
    %cst_472 = arith.constant dense<0.000000e+00> : vector<2x32xf32>
    %476 = tpu.matmul %473, %475, %cst_472 {dimension_numbers = #tpu.dot_dimension_numbers<[1], [0], [0], [1], [0, 0, 1, 1], [], []>} : vector<2x32xf32>, vector<32x32xf32>, vector<2x32xf32> -> vector<2x32xf32>
    %477 = arith.addf %470, %476 : vector<2x32xf32>
    %c0_473 = arith.constant 0 : index
    %c0_474 = arith.constant 0 : index
    %c0_475 = arith.constant 0 : index
    %478 = vector.load %arg5[%c0_473, %c0_474, %c0_475] : memref<16x2x4xf32, #tpu.memory_space<vmem>>, vector<1x2x4xf32>
    %479 = vector.shape_cast %478 : vector<1x2x4xf32> to vector<2x4xf32>
    %cst_476 = arith.constant dense<0.000000e+00> : vector<2x32xf32>
    %480 = tpu.matmul %479, %142, %cst_476 {dimension_numbers = #tpu.dot_dimension_numbers<[1], [0], [0], [1], [0, 0, 1, 1], [], []>} : vector<2x4xf32>, vector<4x32xf32>, vector<2x32xf32> -> vector<2x32xf32>
    %c8_477 = arith.constant 8 : index
    %c0_478 = arith.constant 0 : index
    %c0_479 = arith.constant 0 : index
    %481 = vector.load %arg1[%c8_477, %c0_478, %c0_479] : memref<9x32x32xf32, #tpu.memory_space<vmem>>, vector<1x32x32xf32>
    %482 = vector.shape_cast %481 : vector<1x32x32xf32> to vector<32x32xf32>
    %cst_480 = arith.constant dense<0.000000e+00> : vector<2x32xf32>
    %483 = tpu.matmul %480, %482, %cst_480 {dimension_numbers = #tpu.dot_dimension_numbers<[1], [0], [0], [1], [0, 0, 1, 1], [], []>} : vector<2x32xf32>, vector<32x32xf32>, vector<2x32xf32> -> vector<2x32xf32>
    %484 = arith.addf %477, %483 : vector<2x32xf32>
    %485 = arith.addf %184, %205 : vector<2x32xf32>
    %486 = arith.addf %485, %226 : vector<2x32xf32>
    %487 = arith.addf %486, %250 : vector<2x32xf32>
    %488 = arith.addf %487, %271 : vector<2x32xf32>
    %489 = arith.addf %488, %286 : vector<2x32xf32>
    %490 = arith.addf %489, %301 : vector<2x32xf32>
    %491 = arith.addf %490, %322 : vector<2x32xf32>
    %492 = arith.addf %491, %343 : vector<2x32xf32>
    %493 = arith.addf %492, %358 : vector<2x32xf32>
    %494 = arith.addf %493, %373 : vector<2x32xf32>
    %495 = arith.addf %494, %394 : vector<2x32xf32>
    %496 = arith.addf %495, %418 : vector<2x32xf32>
    %497 = arith.addf %496, %439 : vector<2x32xf32>
    %498 = arith.addf %497, %460 : vector<2x32xf32>
    %499 = arith.addf %498, %484 : vector<2x32xf32>
    %cst_481 = arith.constant dense<0.000000e+00> : vector<2xf32>
    %500 = vector.multi_reduction <add>, %499, %cst_481 [1] : vector<2x32xf32> to vector<2xf32>
    %501 = vector.shape_cast %500 : vector<2xf32> to vector<2x1xf32>
    %cst_482 = arith.constant 0.001953125 : f32
    %502 = vector.broadcast %cst_482 : f32 to vector<2x1xf32>
    %503 = arith.mulf %501, %502 : vector<2x1xf32>
    %504 = vector.broadcast %503 : vector<2x1xf32> to vector<2x32xf32>
    %505 = arith.subf %184, %504 : vector<2x32xf32>
    %506 = arith.mulf %505, %505 : vector<2x32xf32>
    %cst_483 = arith.constant dense<0.000000e+00> : vector<2xf32>
    %507 = vector.multi_reduction <add>, %506, %cst_483 [1] : vector<2x32xf32> to vector<2xf32>
    %508 = vector.shape_cast %507 : vector<2xf32> to vector<2x1xf32>
    %509 = vector.broadcast %503 : vector<2x1xf32> to vector<2x32xf32>
    %510 = arith.subf %205, %509 : vector<2x32xf32>
    %511 = arith.mulf %510, %510 : vector<2x32xf32>
    %cst_484 = arith.constant dense<0.000000e+00> : vector<2xf32>
    %512 = vector.multi_reduction <add>, %511, %cst_484 [1] : vector<2x32xf32> to vector<2xf32>
    %513 = vector.shape_cast %512 : vector<2xf32> to vector<2x1xf32>
    %514 = arith.addf %508, %513 : vector<2x1xf32>
    %515 = vector.broadcast %503 : vector<2x1xf32> to vector<2x32xf32>
    %516 = arith.subf %226, %515 : vector<2x32xf32>
    %517 = arith.mulf %516, %516 : vector<2x32xf32>
    %cst_485 = arith.constant dense<0.000000e+00> : vector<2xf32>
    %518 = vector.multi_reduction <add>, %517, %cst_485 [1] : vector<2x32xf32> to vector<2xf32>
    %519 = vector.shape_cast %518 : vector<2xf32> to vector<2x1xf32>
    %520 = arith.addf %514, %519 : vector<2x1xf32>
    %521 = vector.broadcast %503 : vector<2x1xf32> to vector<2x32xf32>
    %522 = arith.subf %250, %521 : vector<2x32xf32>
    %523 = arith.mulf %522, %522 : vector<2x32xf32>
    %cst_486 = arith.constant dense<0.000000e+00> : vector<2xf32>
    %524 = vector.multi_reduction <add>, %523, %cst_486 [1] : vector<2x32xf32> to vector<2xf32>
    %525 = vector.shape_cast %524 : vector<2xf32> to vector<2x1xf32>
    %526 = arith.addf %520, %525 : vector<2x1xf32>
    %527 = vector.broadcast %503 : vector<2x1xf32> to vector<2x32xf32>
    %528 = arith.subf %271, %527 : vector<2x32xf32>
    %529 = arith.mulf %528, %528 : vector<2x32xf32>
    %cst_487 = arith.constant dense<0.000000e+00> : vector<2xf32>
    %530 = vector.multi_reduction <add>, %529, %cst_487 [1] : vector<2x32xf32> to vector<2xf32>
    %531 = vector.shape_cast %530 : vector<2xf32> to vector<2x1xf32>
    %532 = arith.addf %526, %531 : vector<2x1xf32>
    %533 = vector.broadcast %503 : vector<2x1xf32> to vector<2x32xf32>
    %534 = arith.subf %286, %533 : vector<2x32xf32>
    %535 = arith.mulf %534, %534 : vector<2x32xf32>
    %cst_488 = arith.constant dense<0.000000e+00> : vector<2xf32>
    %536 = vector.multi_reduction <add>, %535, %cst_488 [1] : vector<2x32xf32> to vector<2xf32>
    %537 = vector.shape_cast %536 : vector<2xf32> to vector<2x1xf32>
    %538 = arith.addf %532, %537 : vector<2x1xf32>
    %539 = vector.broadcast %503 : vector<2x1xf32> to vector<2x32xf32>
    %540 = arith.subf %301, %539 : vector<2x32xf32>
    %541 = arith.mulf %540, %540 : vector<2x32xf32>
    %cst_489 = arith.constant dense<0.000000e+00> : vector<2xf32>
    %542 = vector.multi_reduction <add>, %541, %cst_489 [1] : vector<2x32xf32> to vector<2xf32>
    %543 = vector.shape_cast %542 : vector<2xf32> to vector<2x1xf32>
    %544 = arith.addf %538, %543 : vector<2x1xf32>
    %545 = vector.broadcast %503 : vector<2x1xf32> to vector<2x32xf32>
    %546 = arith.subf %322, %545 : vector<2x32xf32>
    %547 = arith.mulf %546, %546 : vector<2x32xf32>
    %cst_490 = arith.constant dense<0.000000e+00> : vector<2xf32>
    %548 = vector.multi_reduction <add>, %547, %cst_490 [1] : vector<2x32xf32> to vector<2xf32>
    %549 = vector.shape_cast %548 : vector<2xf32> to vector<2x1xf32>
    %550 = arith.addf %544, %549 : vector<2x1xf32>
    %551 = vector.broadcast %503 : vector<2x1xf32> to vector<2x32xf32>
    %552 = arith.subf %343, %551 : vector<2x32xf32>
    %553 = arith.mulf %552, %552 : vector<2x32xf32>
    %cst_491 = arith.constant dense<0.000000e+00> : vector<2xf32>
    %554 = vector.multi_reduction <add>, %553, %cst_491 [1] : vector<2x32xf32> to vector<2xf32>
    %555 = vector.shape_cast %554 : vector<2xf32> to vector<2x1xf32>
    %556 = arith.addf %550, %555 : vector<2x1xf32>
    %557 = vector.broadcast %503 : vector<2x1xf32> to vector<2x32xf32>
    %558 = arith.subf %358, %557 : vector<2x32xf32>
    %559 = arith.mulf %558, %558 : vector<2x32xf32>
    %cst_492 = arith.constant dense<0.000000e+00> : vector<2xf32>
    %560 = vector.multi_reduction <add>, %559, %cst_492 [1] : vector<2x32xf32> to vector<2xf32>
    %561 = vector.shape_cast %560 : vector<2xf32> to vector<2x1xf32>
    %562 = arith.addf %556, %561 : vector<2x1xf32>
    %563 = vector.broadcast %503 : vector<2x1xf32> to vector<2x32xf32>
    %564 = arith.subf %373, %563 : vector<2x32xf32>
    %565 = arith.mulf %564, %564 : vector<2x32xf32>
    %cst_493 = arith.constant dense<0.000000e+00> : vector<2xf32>
    %566 = vector.multi_reduction <add>, %565, %cst_493 [1] : vector<2x32xf32> to vector<2xf32>
    %567 = vector.shape_cast %566 : vector<2xf32> to vector<2x1xf32>
    %568 = arith.addf %562, %567 : vector<2x1xf32>
    %569 = vector.broadcast %503 : vector<2x1xf32> to vector<2x32xf32>
    %570 = arith.subf %394, %569 : vector<2x32xf32>
    %571 = arith.mulf %570, %570 : vector<2x32xf32>
    %cst_494 = arith.constant dense<0.000000e+00> : vector<2xf32>
    %572 = vector.multi_reduction <add>, %571, %cst_494 [1] : vector<2x32xf32> to vector<2xf32>
    %573 = vector.shape_cast %572 : vector<2xf32> to vector<2x1xf32>
    %574 = arith.addf %568, %573 : vector<2x1xf32>
    %575 = vector.broadcast %503 : vector<2x1xf32> to vector<2x32xf32>
    %576 = arith.subf %418, %575 : vector<2x32xf32>
    %577 = arith.mulf %576, %576 : vector<2x32xf32>
    %cst_495 = arith.constant dense<0.000000e+00> : vector<2xf32>
    %578 = vector.multi_reduction <add>, %577, %cst_495 [1] : vector<2x32xf32> to vector<2xf32>
    %579 = vector.shape_cast %578 : vector<2xf32> to vector<2x1xf32>
    %580 = arith.addf %574, %579 : vector<2x1xf32>
    %581 = vector.broadcast %503 : vector<2x1xf32> to vector<2x32xf32>
    %582 = arith.subf %439, %581 : vector<2x32xf32>
    %583 = arith.mulf %582, %582 : vector<2x32xf32>
    %cst_496 = arith.constant dense<0.000000e+00> : vector<2xf32>
    %584 = vector.multi_reduction <add>, %583, %cst_496 [1] : vector<2x32xf32> to vector<2xf32>
    %585 = vector.shape_cast %584 : vector<2xf32> to vector<2x1xf32>
    %586 = arith.addf %580, %585 : vector<2x1xf32>
    %587 = vector.broadcast %503 : vector<2x1xf32> to vector<2x32xf32>
    %588 = arith.subf %460, %587 : vector<2x32xf32>
    %589 = arith.mulf %588, %588 : vector<2x32xf32>
    %cst_497 = arith.constant dense<0.000000e+00> : vector<2xf32>
    %590 = vector.multi_reduction <add>, %589, %cst_497 [1] : vector<2x32xf32> to vector<2xf32>
    %591 = vector.shape_cast %590 : vector<2xf32> to vector<2x1xf32>
    %592 = arith.addf %586, %591 : vector<2x1xf32>
    %593 = vector.broadcast %503 : vector<2x1xf32> to vector<2x32xf32>
    %594 = arith.subf %484, %593 : vector<2x32xf32>
    %595 = arith.mulf %594, %594 : vector<2x32xf32>
    %cst_498 = arith.constant dense<0.000000e+00> : vector<2xf32>
    %596 = vector.multi_reduction <add>, %595, %cst_498 [1] : vector<2x32xf32> to vector<2xf32>
    %597 = vector.shape_cast %596 : vector<2xf32> to vector<2x1xf32>
    %598 = arith.addf %592, %597 : vector<2x1xf32>
    %cst_499 = arith.constant 0.001953125 : f32
    %599 = vector.broadcast %cst_499 : f32 to vector<2x1xf32>
    %600 = arith.mulf %598, %599 : vector<2x1xf32>
    %c0_500 = arith.constant 0 : index
    %c0_501 = arith.constant 0 : index
    %601 = vector.load %arg6[%c0_500, %c0_501] : memref<2x1xf32, #tpu.memory_space<vmem>>, vector<2x1xf32>
    %cst_502 = arith.constant 9.99999974E-6 : f32
    %602 = vector.broadcast %cst_502 : f32 to vector<2x1xf32>
    %603 = arith.addf %600, %602 : vector<2x1xf32>
    %604 = math.rsqrt %603 : vector<2x1xf32>
    %605 = arith.mulf %601, %604 : vector<2x1xf32>
    %c0_503 = arith.constant 0 : index
    %c0_504 = arith.constant 0 : index
    %606 = vector.load %arg7[%c0_503, %c0_504] : memref<2x1xf32, #tpu.memory_space<vmem>>, vector<2x1xf32>
    %607 = arith.mulf %503, %605 : vector<2x1xf32>
    %608 = arith.subf %606, %607 : vector<2x1xf32>
    %609 = vector.broadcast %605 : vector<2x1xf32> to vector<2x32xf32>
    %610 = arith.mulf %184, %609 : vector<2x32xf32>
    %611 = vector.broadcast %608 : vector<2x1xf32> to vector<2x32xf32>
    %612 = arith.addf %610, %611 : vector<2x32xf32>
    %cst_505 = arith.constant 0.000000e+00 : f32
    %613 = vector.broadcast %cst_505 : f32 to vector<2x32xf32>
    %614 = arith.maximumf %612, %613 : vector<2x32xf32>
    %615 = vector.broadcast %605 : vector<2x1xf32> to vector<2x32xf32>
    %616 = arith.mulf %205, %615 : vector<2x32xf32>
    %617 = vector.broadcast %608 : vector<2x1xf32> to vector<2x32xf32>
    %618 = arith.addf %616, %617 : vector<2x32xf32>
    %cst_506 = arith.constant 0.000000e+00 : f32
    %619 = vector.broadcast %cst_506 : f32 to vector<2x32xf32>
    %620 = arith.maximumf %618, %619 : vector<2x32xf32>
    %621 = vector.broadcast %605 : vector<2x1xf32> to vector<2x32xf32>
    %622 = arith.mulf %226, %621 : vector<2x32xf32>
    %623 = vector.broadcast %608 : vector<2x1xf32> to vector<2x32xf32>
    %624 = arith.addf %622, %623 : vector<2x32xf32>
    %cst_507 = arith.constant 0.000000e+00 : f32
    %625 = vector.broadcast %cst_507 : f32 to vector<2x32xf32>
    %626 = arith.maximumf %624, %625 : vector<2x32xf32>
    %627 = vector.broadcast %605 : vector<2x1xf32> to vector<2x32xf32>
    %628 = arith.mulf %250, %627 : vector<2x32xf32>
    %629 = vector.broadcast %608 : vector<2x1xf32> to vector<2x32xf32>
    %630 = arith.addf %628, %629 : vector<2x32xf32>
    %cst_508 = arith.constant 0.000000e+00 : f32
    %631 = vector.broadcast %cst_508 : f32 to vector<2x32xf32>
    %632 = arith.maximumf %630, %631 : vector<2x32xf32>
    %633 = vector.broadcast %605 : vector<2x1xf32> to vector<2x32xf32>
    %634 = arith.mulf %271, %633 : vector<2x32xf32>
    %635 = vector.broadcast %608 : vector<2x1xf32> to vector<2x32xf32>
    %636 = arith.addf %634, %635 : vector<2x32xf32>
    %cst_509 = arith.constant 0.000000e+00 : f32
    %637 = vector.broadcast %cst_509 : f32 to vector<2x32xf32>
    %638 = arith.maximumf %636, %637 : vector<2x32xf32>
    %639 = vector.broadcast %605 : vector<2x1xf32> to vector<2x32xf32>
    %640 = arith.mulf %286, %639 : vector<2x32xf32>
    %641 = vector.broadcast %608 : vector<2x1xf32> to vector<2x32xf32>
    %642 = arith.addf %640, %641 : vector<2x32xf32>
    %cst_510 = arith.constant 0.000000e+00 : f32
    %643 = vector.broadcast %cst_510 : f32 to vector<2x32xf32>
    %644 = arith.maximumf %642, %643 : vector<2x32xf32>
    %645 = vector.broadcast %605 : vector<2x1xf32> to vector<2x32xf32>
    %646 = arith.mulf %301, %645 : vector<2x32xf32>
    %647 = vector.broadcast %608 : vector<2x1xf32> to vector<2x32xf32>
    %648 = arith.addf %646, %647 : vector<2x32xf32>
    %cst_511 = arith.constant 0.000000e+00 : f32
    %649 = vector.broadcast %cst_511 : f32 to vector<2x32xf32>
    %650 = arith.maximumf %648, %649 : vector<2x32xf32>
    %651 = vector.broadcast %605 : vector<2x1xf32> to vector<2x32xf32>
    %652 = arith.mulf %322, %651 : vector<2x32xf32>
    %653 = vector.broadcast %608 : vector<2x1xf32> to vector<2x32xf32>
    %654 = arith.addf %652, %653 : vector<2x32xf32>
    %cst_512 = arith.constant 0.000000e+00 : f32
    %655 = vector.broadcast %cst_512 : f32 to vector<2x32xf32>
    %656 = arith.maximumf %654, %655 : vector<2x32xf32>
    %657 = vector.broadcast %605 : vector<2x1xf32> to vector<2x32xf32>
    %658 = arith.mulf %343, %657 : vector<2x32xf32>
    %659 = vector.broadcast %608 : vector<2x1xf32> to vector<2x32xf32>
    %660 = arith.addf %658, %659 : vector<2x32xf32>
    %cst_513 = arith.constant 0.000000e+00 : f32
    %661 = vector.broadcast %cst_513 : f32 to vector<2x32xf32>
    %662 = arith.maximumf %660, %661 : vector<2x32xf32>
    %663 = vector.broadcast %605 : vector<2x1xf32> to vector<2x32xf32>
    %664 = arith.mulf %358, %663 : vector<2x32xf32>
    %665 = vector.broadcast %608 : vector<2x1xf32> to vector<2x32xf32>
    %666 = arith.addf %664, %665 : vector<2x32xf32>
    %cst_514 = arith.constant 0.000000e+00 : f32
    %667 = vector.broadcast %cst_514 : f32 to vector<2x32xf32>
    %668 = arith.maximumf %666, %667 : vector<2x32xf32>
    %669 = vector.broadcast %605 : vector<2x1xf32> to vector<2x32xf32>
    %670 = arith.mulf %373, %669 : vector<2x32xf32>
    %671 = vector.broadcast %608 : vector<2x1xf32> to vector<2x32xf32>
    %672 = arith.addf %670, %671 : vector<2x32xf32>
    %cst_515 = arith.constant 0.000000e+00 : f32
    %673 = vector.broadcast %cst_515 : f32 to vector<2x32xf32>
    %674 = arith.maximumf %672, %673 : vector<2x32xf32>
    %675 = vector.broadcast %605 : vector<2x1xf32> to vector<2x32xf32>
    %676 = arith.mulf %394, %675 : vector<2x32xf32>
    %677 = vector.broadcast %608 : vector<2x1xf32> to vector<2x32xf32>
    %678 = arith.addf %676, %677 : vector<2x32xf32>
    %cst_516 = arith.constant 0.000000e+00 : f32
    %679 = vector.broadcast %cst_516 : f32 to vector<2x32xf32>
    %680 = arith.maximumf %678, %679 : vector<2x32xf32>
    %681 = vector.broadcast %605 : vector<2x1xf32> to vector<2x32xf32>
    %682 = arith.mulf %418, %681 : vector<2x32xf32>
    %683 = vector.broadcast %608 : vector<2x1xf32> to vector<2x32xf32>
    %684 = arith.addf %682, %683 : vector<2x32xf32>
    %cst_517 = arith.constant 0.000000e+00 : f32
    %685 = vector.broadcast %cst_517 : f32 to vector<2x32xf32>
    %686 = arith.maximumf %684, %685 : vector<2x32xf32>
    %687 = vector.broadcast %605 : vector<2x1xf32> to vector<2x32xf32>
    %688 = arith.mulf %439, %687 : vector<2x32xf32>
    %689 = vector.broadcast %608 : vector<2x1xf32> to vector<2x32xf32>
    %690 = arith.addf %688, %689 : vector<2x32xf32>
    %cst_518 = arith.constant 0.000000e+00 : f32
    %691 = vector.broadcast %cst_518 : f32 to vector<2x32xf32>
    %692 = arith.maximumf %690, %691 : vector<2x32xf32>
    %693 = vector.broadcast %605 : vector<2x1xf32> to vector<2x32xf32>
    %694 = arith.mulf %460, %693 : vector<2x32xf32>
    %695 = vector.broadcast %608 : vector<2x1xf32> to vector<2x32xf32>
    %696 = arith.addf %694, %695 : vector<2x32xf32>
    %cst_519 = arith.constant 0.000000e+00 : f32
    %697 = vector.broadcast %cst_519 : f32 to vector<2x32xf32>
    %698 = arith.maximumf %696, %697 : vector<2x32xf32>
    %699 = vector.broadcast %605 : vector<2x1xf32> to vector<2x32xf32>
    %700 = arith.mulf %484, %699 : vector<2x32xf32>
    %701 = vector.broadcast %608 : vector<2x1xf32> to vector<2x32xf32>
    %702 = arith.addf %700, %701 : vector<2x32xf32>
    %cst_520 = arith.constant 0.000000e+00 : f32
    %703 = vector.broadcast %cst_520 : f32 to vector<2x32xf32>
    %704 = arith.maximumf %702, %703 : vector<2x32xf32>
    %c0_521 = arith.constant 0 : index
    %c0_522 = arith.constant 0 : index
    %705 = vector.load %arg8[%c0_521, %c0_522] : memref<1x2xf32, #tpu.memory_space<vmem>>, vector<1x2xf32>
    %c0_523 = arith.constant 0 : index
    %c0_524 = arith.constant 0 : index
    %706 = vector.load %arg9[%c0_523, %c0_524] : memref<1x1xf32, #tpu.memory_space<vmem>>, vector<1x1xf32>
    %cst_525 = arith.constant dense<0.000000e+00> : vector<1x32xf32>
    %707 = tpu.matmul %705, %614, %cst_525 {dimension_numbers = #tpu.dot_dimension_numbers<[1], [0], [0], [1], [0, 0, 1, 1], [], []>} : vector<1x2xf32>, vector<2x32xf32>, vector<1x32xf32> -> vector<1x32xf32>
    %708 = vector.broadcast %706 : vector<1x1xf32> to vector<1x32xf32>
    %709 = arith.addf %707, %708 : vector<1x32xf32>
    %c0_526 = arith.constant 0 : index
    %c0_527 = arith.constant 0 : index
    %710 = vector.load %arg10[%c0_526, %c0_527] : memref<16x32xf32, #tpu.memory_space<vmem>>, vector<1x32xf32>
    tpu.vector_store %arg10[%c0_526, %c0_527], %709 {strides = array<i32>} : memref<16x32xf32, #tpu.memory_space<vmem>>, vector<1x32xf32>,
    %cst_528 = arith.constant dense<0.000000e+00> : vector<1x32xf32>
    %711 = tpu.matmul %705, %620, %cst_528 {dimension_numbers = #tpu.dot_dimension_numbers<[1], [0], [0], [1], [0, 0, 1, 1], [], []>} : vector<1x2xf32>, vector<2x32xf32>, vector<1x32xf32> -> vector<1x32xf32>
    %712 = vector.broadcast %706 : vector<1x1xf32> to vector<1x32xf32>
    %713 = arith.addf %711, %712 : vector<1x32xf32>
    %c1_529 = arith.constant 1 : index
    %c0_530 = arith.constant 0 : index
    %714 = vector.load %arg10[%c1_529, %c0_530] : memref<16x32xf32, #tpu.memory_space<vmem>>, vector<1x32xf32>
    tpu.vector_store %arg10[%c1_529, %c0_530], %713 {strides = array<i32>} : memref<16x32xf32, #tpu.memory_space<vmem>>, vector<1x32xf32>,
    %cst_531 = arith.constant dense<0.000000e+00> : vector<1x32xf32>
    %715 = tpu.matmul %705, %626, %cst_531 {dimension_numbers = #tpu.dot_dimension_numbers<[1], [0], [0], [1], [0, 0, 1, 1], [], []>} : vector<1x2xf32>, vector<2x32xf32>, vector<1x32xf32> -> vector<1x32xf32>
    %716 = vector.broadcast %706 : vector<1x1xf32> to vector<1x32xf32>
    %717 = arith.addf %715, %716 : vector<1x32xf32>
    %c2_532 = arith.constant 2 : index
    %c0_533 = arith.constant 0 : index
    %718 = vector.load %arg10[%c2_532, %c0_533] : memref<16x32xf32, #tpu.memory_space<vmem>>, vector<1x32xf32>
    tpu.vector_store %arg10[%c2_532, %c0_533], %717 {strides = array<i32>} : memref<16x32xf32, #tpu.memory_space<vmem>>, vector<1x32xf32>,
    %cst_534 = arith.constant dense<0.000000e+00> : vector<1x32xf32>
    %719 = tpu.matmul %705, %632, %cst_534 {dimension_numbers = #tpu.dot_dimension_numbers<[1], [0], [0], [1], [0, 0, 1, 1], [], []>} : vector<1x2xf32>, vector<2x32xf32>, vector<1x32xf32> -> vector<1x32xf32>
    %720 = vector.broadcast %706 : vector<1x1xf32> to vector<1x32xf32>
    %721 = arith.addf %719, %720 : vector<1x32xf32>
    %c3_535 = arith.constant 3 : index
    %c0_536 = arith.constant 0 : index
    %722 = vector.load %arg10[%c3_535, %c0_536] : memref<16x32xf32, #tpu.memory_space<vmem>>, vector<1x32xf32>
    tpu.vector_store %arg10[%c3_535, %c0_536], %721 {strides = array<i32>} : memref<16x32xf32, #tpu.memory_space<vmem>>, vector<1x32xf32>,
    %cst_537 = arith.constant dense<0.000000e+00> : vector<1x32xf32>
    %723 = tpu.matmul %705, %638, %cst_537 {dimension_numbers = #tpu.dot_dimension_numbers<[1], [0], [0], [1], [0, 0, 1, 1], [], []>} : vector<1x2xf32>, vector<2x32xf32>, vector<1x32xf32> -> vector<1x32xf32>
    %724 = vector.broadcast %706 : vector<1x1xf32> to vector<1x32xf32>
    %725 = arith.addf %723, %724 : vector<1x32xf32>
    %c4_538 = arith.constant 4 : index
    %c0_539 = arith.constant 0 : index
    %726 = vector.load %arg10[%c4_538, %c0_539] : memref<16x32xf32, #tpu.memory_space<vmem>>, vector<1x32xf32>
    tpu.vector_store %arg10[%c4_538, %c0_539], %725 {strides = array<i32>} : memref<16x32xf32, #tpu.memory_space<vmem>>, vector<1x32xf32>,
    %cst_540 = arith.constant dense<0.000000e+00> : vector<1x32xf32>
    %727 = tpu.matmul %705, %644, %cst_540 {dimension_numbers = #tpu.dot_dimension_numbers<[1], [0], [0], [1], [0, 0, 1, 1], [], []>} : vector<1x2xf32>, vector<2x32xf32>, vector<1x32xf32> -> vector<1x32xf32>
    %728 = vector.broadcast %706 : vector<1x1xf32> to vector<1x32xf32>
    %729 = arith.addf %727, %728 : vector<1x32xf32>
    %c5_541 = arith.constant 5 : index
    %c0_542 = arith.constant 0 : index
    %730 = vector.load %arg10[%c5_541, %c0_542] : memref<16x32xf32, #tpu.memory_space<vmem>>, vector<1x32xf32>
    tpu.vector_store %arg10[%c5_541, %c0_542], %729 {strides = array<i32>} : memref<16x32xf32, #tpu.memory_space<vmem>>, vector<1x32xf32>,
    %cst_543 = arith.constant dense<0.000000e+00> : vector<1x32xf32>
    %731 = tpu.matmul %705, %650, %cst_543 {dimension_numbers = #tpu.dot_dimension_numbers<[1], [0], [0], [1], [0, 0, 1, 1], [], []>} : vector<1x2xf32>, vector<2x32xf32>, vector<1x32xf32> -> vector<1x32xf32>
    %732 = vector.broadcast %706 : vector<1x1xf32> to vector<1x32xf32>
    %733 = arith.addf %731, %732 : vector<1x32xf32>
    %c6_544 = arith.constant 6 : index
    %c0_545 = arith.constant 0 : index
    %734 = vector.load %arg10[%c6_544, %c0_545] : memref<16x32xf32, #tpu.memory_space<vmem>>, vector<1x32xf32>
    tpu.vector_store %arg10[%c6_544, %c0_545], %733 {strides = array<i32>} : memref<16x32xf32, #tpu.memory_space<vmem>>, vector<1x32xf32>,
    %cst_546 = arith.constant dense<0.000000e+00> : vector<1x32xf32>
    %735 = tpu.matmul %705, %656, %cst_546 {dimension_numbers = #tpu.dot_dimension_numbers<[1], [0], [0], [1], [0, 0, 1, 1], [], []>} : vector<1x2xf32>, vector<2x32xf32>, vector<1x32xf32> -> vector<1x32xf32>
    %736 = vector.broadcast %706 : vector<1x1xf32> to vector<1x32xf32>
    %737 = arith.addf %735, %736 : vector<1x32xf32>
    %c7_547 = arith.constant 7 : index
    %c0_548 = arith.constant 0 : index
    %738 = vector.load %arg10[%c7_547, %c0_548] : memref<16x32xf32, #tpu.memory_space<vmem>>, vector<1x32xf32>
    tpu.vector_store %arg10[%c7_547, %c0_548], %737 {strides = array<i32>} : memref<16x32xf32, #tpu.memory_space<vmem>>, vector<1x32xf32>,
    %cst_549 = arith.constant dense<0.000000e+00> : vector<1x32xf32>
    %739 = tpu.matmul %705, %662, %cst_549 {dimension_numbers = #tpu.dot_dimension_numbers<[1], [0], [0], [1], [0, 0, 1, 1], [], []>} : vector<1x2xf32>, vector<2x32xf32>, vector<1x32xf32> -> vector<1x32xf32>
    %740 = vector.broadcast %706 : vector<1x1xf32> to vector<1x32xf32>
    %741 = arith.addf %739, %740 : vector<1x32xf32>
    %c8_550 = arith.constant 8 : index
    %c0_551 = arith.constant 0 : index
    %742 = vector.load %arg10[%c8_550, %c0_551] : memref<16x32xf32, #tpu.memory_space<vmem>>, vector<1x32xf32>
    tpu.vector_store %arg10[%c8_550, %c0_551], %741 {strides = array<i32>} : memref<16x32xf32, #tpu.memory_space<vmem>>, vector<1x32xf32>,
    %cst_552 = arith.constant dense<0.000000e+00> : vector<1x32xf32>
    %743 = tpu.matmul %705, %668, %cst_552 {dimension_numbers = #tpu.dot_dimension_numbers<[1], [0], [0], [1], [0, 0, 1, 1], [], []>} : vector<1x2xf32>, vector<2x32xf32>, vector<1x32xf32> -> vector<1x32xf32>
    %744 = vector.broadcast %706 : vector<1x1xf32> to vector<1x32xf32>
    %745 = arith.addf %743, %744 : vector<1x32xf32>
    %c9_553 = arith.constant 9 : index
    %c0_554 = arith.constant 0 : index
    %746 = vector.load %arg10[%c9_553, %c0_554] : memref<16x32xf32, #tpu.memory_space<vmem>>, vector<1x32xf32>
    tpu.vector_store %arg10[%c9_553, %c0_554], %745 {strides = array<i32>} : memref<16x32xf32, #tpu.memory_space<vmem>>, vector<1x32xf32>,
    %cst_555 = arith.constant dense<0.000000e+00> : vector<1x32xf32>
    %747 = tpu.matmul %705, %674, %cst_555 {dimension_numbers = #tpu.dot_dimension_numbers<[1], [0], [0], [1], [0, 0, 1, 1], [], []>} : vector<1x2xf32>, vector<2x32xf32>, vector<1x32xf32> -> vector<1x32xf32>
    %748 = vector.broadcast %706 : vector<1x1xf32> to vector<1x32xf32>
    %749 = arith.addf %747, %748 : vector<1x32xf32>
    %c10_556 = arith.constant 10 : index
    %c0_557 = arith.constant 0 : index
    %750 = vector.load %arg10[%c10_556, %c0_557] : memref<16x32xf32, #tpu.memory_space<vmem>>, vector<1x32xf32>
    tpu.vector_store %arg10[%c10_556, %c0_557], %749 {strides = array<i32>} : memref<16x32xf32, #tpu.memory_space<vmem>>, vector<1x32xf32>,
    %cst_558 = arith.constant dense<0.000000e+00> : vector<1x32xf32>
    %751 = tpu.matmul %705, %680, %cst_558 {dimension_numbers = #tpu.dot_dimension_numbers<[1], [0], [0], [1], [0, 0, 1, 1], [], []>} : vector<1x2xf32>, vector<2x32xf32>, vector<1x32xf32> -> vector<1x32xf32>
    %752 = vector.broadcast %706 : vector<1x1xf32> to vector<1x32xf32>
    %753 = arith.addf %751, %752 : vector<1x32xf32>
    %c11_559 = arith.constant 11 : index
    %c0_560 = arith.constant 0 : index
    %754 = vector.load %arg10[%c11_559, %c0_560] : memref<16x32xf32, #tpu.memory_space<vmem>>, vector<1x32xf32>
    tpu.vector_store %arg10[%c11_559, %c0_560], %753 {strides = array<i32>} : memref<16x32xf32, #tpu.memory_space<vmem>>, vector<1x32xf32>,
    %cst_561 = arith.constant dense<0.000000e+00> : vector<1x32xf32>
    %755 = tpu.matmul %705, %686, %cst_561 {dimension_numbers = #tpu.dot_dimension_numbers<[1], [0], [0], [1], [0, 0, 1, 1], [], []>} : vector<1x2xf32>, vector<2x32xf32>, vector<1x32xf32> -> vector<1x32xf32>
    %756 = vector.broadcast %706 : vector<1x1xf32> to vector<1x32xf32>
    %757 = arith.addf %755, %756 : vector<1x32xf32>
    %c12_562 = arith.constant 12 : index
    %c0_563 = arith.constant 0 : index
    %758 = vector.load %arg10[%c12_562, %c0_563] : memref<16x32xf32, #tpu.memory_space<vmem>>, vector<1x32xf32>
    tpu.vector_store %arg10[%c12_562, %c0_563], %757 {strides = array<i32>} : memref<16x32xf32, #tpu.memory_space<vmem>>, vector<1x32xf32>,
    %cst_564 = arith.constant dense<0.000000e+00> : vector<1x32xf32>
    %759 = tpu.matmul %705, %692, %cst_564 {dimension_numbers = #tpu.dot_dimension_numbers<[1], [0], [0], [1], [0, 0, 1, 1], [], []>} : vector<1x2xf32>, vector<2x32xf32>, vector<1x32xf32> -> vector<1x32xf32>
    %760 = vector.broadcast %706 : vector<1x1xf32> to vector<1x32xf32>
    %761 = arith.addf %759, %760 : vector<1x32xf32>
    %c13_565 = arith.constant 13 : index
    %c0_566 = arith.constant 0 : index
    %762 = vector.load %arg10[%c13_565, %c0_566] : memref<16x32xf32, #tpu.memory_space<vmem>>, vector<1x32xf32>
    tpu.vector_store %arg10[%c13_565, %c0_566], %761 {strides = array<i32>} : memref<16x32xf32, #tpu.memory_space<vmem>>, vector<1x32xf32>,
    %cst_567 = arith.constant dense<0.000000e+00> : vector<1x32xf32>
    %763 = tpu.matmul %705, %698, %cst_567 {dimension_numbers = #tpu.dot_dimension_numbers<[1], [0], [0], [1], [0, 0, 1, 1], [], []>} : vector<1x2xf32>, vector<2x32xf32>, vector<1x32xf32> -> vector<1x32xf32>
    %764 = vector.broadcast %706 : vector<1x1xf32> to vector<1x32xf32>
    %765 = arith.addf %763, %764 : vector<1x32xf32>
    %c14_568 = arith.constant 14 : index
    %c0_569 = arith.constant 0 : index
    %766 = vector.load %arg10[%c14_568, %c0_569] : memref<16x32xf32, #tpu.memory_space<vmem>>, vector<1x32xf32>
    tpu.vector_store %arg10[%c14_568, %c0_569], %765 {strides = array<i32>} : memref<16x32xf32, #tpu.memory_space<vmem>>, vector<1x32xf32>,
    %cst_570 = arith.constant dense<0.000000e+00> : vector<1x32xf32>
    %767 = tpu.matmul %705, %704, %cst_570 {dimension_numbers = #tpu.dot_dimension_numbers<[1], [0], [0], [1], [0, 0, 1, 1], [], []>} : vector<1x2xf32>, vector<2x32xf32>, vector<1x32xf32> -> vector<1x32xf32>
    %768 = vector.broadcast %706 : vector<1x1xf32> to vector<1x32xf32>
    %769 = arith.addf %767, %768 : vector<1x32xf32>
    %c15_571 = arith.constant 15 : index
    %c0_572 = arith.constant 0 : index
    %770 = vector.load %arg10[%c15_571, %c0_572] : memref<16x32xf32, #tpu.memory_space<vmem>>, vector<1x32xf32>
    tpu.vector_store %arg10[%c15_571, %c0_572], %769 {strides = array<i32>} : memref<16x32xf32, #tpu.memory_space<vmem>>, vector<1x32xf32>,
    return
  }
}

</mosaic_0001>

<llo_original>
// kernel: decoder_forward.1
$region0: #{decoder_forward.1}
  #allocation0 [shape = 'u32[]', space=smem, size = 0x4, offset = 0x4, fixed_abs, tag = 'smem constant byte address 0x4 - core index']
  #allocation1 [shape = 'u32[144,128]{1,0:T(1,128)}', space=vmem, size = 0x12000, scoped, tag = 'internal scratch']
  #allocation2 [shape = 'f32[1,1]{1,0:T(1,128)S(1)}', space=vmem, size = 0x200, scoped, tag = 'scoped memory for decoder_forward.1']
  %s0 = inlined_call_operand.vmem [shape: f32[8,32], index: 0, kind: input, shape index: {}]
  %s1 = inlined_call_operand.vmem [shape: f32[9,32,32], index: 1, kind: input, shape index: {}]
  %s2 = inlined_call_operand.vmem [shape: f32[16,4,8], index: 2, kind: input, shape index: {}]
  %s3 = inlined_call_operand.vmem [shape: f32[4,1], index: 3, kind: input, shape index: {}]
  %s4 = inlined_call_operand.vmem [shape: f32[4,1], index: 4, kind: input, shape index: {}]
  %s5 = inlined_call_operand.vmem [shape: f32[16,2,4], index: 5, kind: input, shape index: {}]
  %s6 = inlined_call_operand.vmem [shape: f32[2,1], index: 6, kind: input, shape index: {}]
  %s7 = inlined_call_operand.vmem [shape: f32[2,1], index: 7, kind: input, shape index: {}]
  %s8 = inlined_call_operand.vmem [shape: f32[1,2], index: 8, kind: input, shape index: {}]
  %s9 = inlined_call_operand.<no memory space> [shape: f32[1,1], index: 9, kind: input, shape index: {}]
  %s10 = inlined_call_operand.vmem [shape: f32[16,32], index: 10, kind: output, shape index: {}]
  %s11 = sld [smem:[#allocation0]]
  $region50: #{decoder_forward.1} parent=0
    _
  %s13 = ssub.s32 1, %s11
  %s14 = scalar_select 0, %s13, %s11
  %v15 = vstv %s9
  %16 = vst [vmem:[#allocation2] sm:$0x1] %v15
  // Predicated region
  $region2: #{decoder_forward.1} parent=0 // pred_check
    _
  $region3: #{decoder_forward.1} parent=0 // pred_check_branch
    %18 = sbr.rel (0) target = $region5
  $region4: #{decoder_forward.1} parent=0 // pred_region
    _
  $region5: #{decoder_forward.1} parent=0 // pred_fallthru
    _
  // Predicated region
  $region6: #{decoder_forward.1} parent=0 // pred_check
    _
  $region7: #{decoder_forward.1} parent=0 // pred_check_branch
    %20 = sbr.rel (0) target = $region9
  $region8: #{decoder_forward.1} parent=0 // pred_region
    _
  $region9: #{decoder_forward.1} parent=0 // pred_fallthru
    _
  // Predicated region
  $region10: #{decoder_forward.1} parent=0 // pred_check
    _
  $region11: #{decoder_forward.1} parent=0 // pred_check_branch
    %22 = sbr.rel (0) target = $region13
  $region12: #{decoder_forward.1} parent=0 // pred_region
    _
  $region13: #{decoder_forward.1} parent=0 // pred_fallthru
    _
  // Predicated region
  $region14: #{decoder_forward.1} parent=0 // pred_check
    _
  $region15: #{decoder_forward.1} parent=0 // pred_check_branch
    %24 = sbr.rel (0) target = $region17
  $region16: #{decoder_forward.1} parent=0 // pred_region
    _
  $region17: #{decoder_forward.1} parent=0 // pred_fallthru
    _
  // Predicated region
  $region18: #{decoder_forward.1} parent=0 // pred_check
    _
  $region19: #{decoder_forward.1} parent=0 // pred_check_branch
    %26 = sbr.rel (0) target = $region21
  $region20: #{decoder_forward.1} parent=0 // pred_region
    _
  $region21: #{decoder_forward.1} parent=0 // pred_fallthru
    _
  // Predicated region
  $region22: #{decoder_forward.1} parent=0 // pred_check
    _
  $region23: #{decoder_forward.1} parent=0 // pred_check_branch
    %28 = sbr.rel (0) target = $region25
  $region24: #{decoder_forward.1} parent=0 // pred_region
    _
  $region25: #{decoder_forward.1} parent=0 // pred_fallthru
    _
  // Predicated region
  $region26: #{decoder_forward.1} parent=0 // pred_check
    _
  $region27: #{decoder_forward.1} parent=0 // pred_check_branch
    %30 = sbr.rel (0) target = $region29
  $region28: #{decoder_forward.1} parent=0 // pred_region
    _
  $region29: #{decoder_forward.1} parent=0 // pred_fallthru
    _
  // Predicated region
  $region30: #{decoder_forward.1} parent=0 // pred_check
    _
  $region31: #{decoder_forward.1} parent=0 // pred_check_branch
    %32 = sbr.rel (0) target = $region33
  $region32: #{decoder_forward.1} parent=0 // pred_region
    _
  $region33: #{decoder_forward.1} parent=0 // pred_fallthru
    _
  // Predicated region
  $region34: #{decoder_forward.1} parent=0 // pred_check
    _
  $region35: #{decoder_forward.1} parent=0 // pred_check_branch
    %34 = sbr.rel (0) target = $region37
  $region36: #{decoder_forward.1} parent=0 // pred_region
    _
  $region37: #{decoder_forward.1} parent=0 // pred_fallthru
    _
  // Predicated region
  $region38: #{decoder_forward.1} parent=0 // pred_check
    _
  $region39: #{decoder_forward.1} parent=0 // pred_check_branch
    %36 = sbr.rel (0) target = $region41
  $region40: #{decoder_forward.1} parent=0 // pred_region
    _
  $region41: #{decoder_forward.1} parent=0 // pred_fallthru
    _
  %v37 = vld [vmem:[%s0] sm:$0xff]
  %s38 = scalar_lea.vmem %s2, 60
  %v39 = vld [vmem:[%s38] sm:$0xf]
  %vm40 = vcmask 64512
  %v42 = vsel %vm40, %v39, 0
  %44 = vmatprep.subr.mxu0 0.0
  %45 = vmatpush1.msra.mxu0 %v37
  %46 = vmatprep.subr.mxu0 0.0
  %47 = vmatpush1.msra.mxu0 0.0
  %48 = vmatprep.subr.mxu0 0.0
  %49 = vmatpush1.msra.mxu0 0.0
  %50 = vmatprep.subr.mxu0 0.0
  %51 = vmatpush1.msra.mxu0 0.0
  %52 = vmatprep.subr.mxu0 0.0
  %53 = vmatpush1.msra.mxu0 0.0
  %54 = vmatprep.subr.mxu0 0.0
  %55 = vmatpush1.msra.mxu0 0.0
  %56 = vmatprep.subr.mxu0 0.0
  %57 = vmatpush1.msra.mxu0 0.0
  %58 = vmatprep.subr.mxu0 0.0
  %59 = vmatpush1.msra.mxu0 0.0
  %60 = vmatprep.subr.mxu0 0.0
  %61 = vmatpush1.msra.mxu0 0.0
  %62 = vmatprep.subr.mxu0 0.0
  %63 = vmatpush1.msra.mxu0 0.0
  %64 = vmatprep.subr.mxu0 0.0
  %65 = vmatpush1.msra.mxu0 0.0
  %66 = vmatprep.subr.mxu0 0.0
  %67 = vmatpush1.msra.mxu0 0.0
  %68 = vmatprep.subr.mxu0 0.0
  %69 = vmatpush1.msra.mxu0 0.0
  %70 = vmatprep.subr.mxu0 0.0
  %71 = vmatpush1.msra.mxu0 0.0
  %72 = vmatprep.subr.mxu0 0.0
  %73 = vmatpush1.msra.mxu0 0.0
  %74 = vmatprep.subr.mxu0 0.0
  %75 = vmatpush1.msra.mxu0 0.0
  %76 = vmatprep.subr.mxu0 0.0
  %77 = vmatpush1.msra.mxu0 0.0
  %78 = vmatprep.subr.mxu0 0.0
  %79 = vmatpush1.msra.mxu0 0.0
  %80 = vmatprep.subr.mxu0 0.0
  %81 = vmatpush1.msra.mxu0 0.0
  %82 = vmatprep.subr.mxu0 0.0
  %83 = vmatpush1.msra.mxu0 0.0
  %84 = vmatprep.subr.mxu0 0.0
  %85 = vmatpush1.msra.mxu0 0.0
  %86 = vmatprep.subr.mxu0 0.0
  %87 = vmatpush1.msra.mxu0 0.0
  %88 = vmatprep.subr.mxu0 0.0
  %89 = vmatpush1.msra.mxu0 0.0
  %90 = vmatprep.subr.mxu0 0.0
  %91 = vmatpush1.msra.mxu0 0.0
  %92 = vmatprep.subr.mxu0 0.0
  %93 = vmatpush1.msra.mxu0 0.0
  %94 = vmatprep.subr.mxu0 0.0
  %95 = vmatpush1.msra.mxu0 0.0
  %96 = vmatprep.subr.mxu0 0.0
  %97 = vmatpush1.msra.mxu0 0.0
  %98 = vmatprep.subr.mxu0 0.0
  %99 = vmatpush1.msra.mxu0 0.0
  %100 = vmatprep.subr.mxu0 0.0
  %101 = vmatpush1.msra.mxu0 0.0
  %102 = vmatprep.subr.mxu0 0.0
  %103 = vmatpush1.msra.mxu0 0.0
  %104 = vmatprep.subr.mxu0 0.0
  %105 = vmatpush1.msra.mxu0 0.0
  %106 = vmatprep.subr.mxu0 0.0
  %107 = vmatpush1.msra.mxu0 0.0
  %108 = vmatprep.mubr.f32.mxu0 0.0
  %109 = vmatmul.mubr.f32.gmra.mrb[0].mxu0 %v42
  %v110 = vpop.f32.mrb[0].mxu0
  %v111 = vadd.f32 0.0, %v110
  %v112 = vpop.f32.mrb[0].mxu0
  %113 = vdwg.mxu0
  %v114 = vld [vmem:[%s1] sm:$0xff]
  %v115 = vld [vmem:[%s1 + $0x8] sm:$0xff]
  %v116 = vld [vmem:[%s1 + $0x10] sm:$0xff]
  %v117 = vld [vmem:[%s1 + $0x18] sm:$0xff]
  %s118 = scalar_lea.vmem %s2, 52
  %v119 = vld [vmem:[%s118] sm:$0xf]
  %v121 = vsel %vm40, %v119, 0
  %123 = vmatprep.subr.mxu0 0.0
  %124 = vmatpush1.msra.mxu0 %v37
  %125 = vmatprep.subr.mxu0 0.0
  %126 = vmatpush1.msra.mxu0 0.0
  %127 = vmatprep.subr.mxu0 0.0
  %128 = vmatpush1.msra.mxu0 0.0
  %129 = vmatprep.subr.mxu0 0.0
  %130 = vmatpush1.msra.mxu0 0.0
  %131 = vmatprep.subr.mxu0 0.0
  %132 = vmatpush1.msra.mxu0 0.0
  %133 = vmatprep.subr.mxu0 0.0
  %134 = vmatpush1.msra.mxu0 0.0
  %135 = vmatprep.subr.mxu0 0.0
  %136 = vmatpush1.msra.mxu0 0.0
  %137 = vmatprep.subr.mxu0 0.0
  %138 = vmatpush1.msra.mxu0 0.0
  %139 = vmatprep.subr.mxu0 0.0
  %140 = vmatpush1.msra.mxu0 0.0
  %141 = vmatprep.subr.mxu0 0.0
  %142 = vmatpush1.msra.mxu0 0.0
  %143 = vmatprep.subr.mxu0 0.0
  %144 = vmatpush1.msra.mxu0 0.0
  %145 = vmatprep.subr.mxu0 0.0
  %146 = vmatpush1.msra.mxu0 0.0
  %147 = vmatprep.subr.mxu0 0.0
  %148 = vmatpush1.msra.mxu0 0.0
  %149 = vmatprep.subr.mxu0 0.0
  %150 = vmatpush1.msra.mxu0 0.0
  %151 = vmatprep.subr.mxu0 0.0
  %152 = vmatpush1.msra.mxu0 0.0
  %153 = vmatprep.subr.mxu0 0.0
  %154 = vmatpush1.msra.mxu0 0.0
  %155 = vmatprep.subr.mxu0 0.0
  %156 = vmatpush1.msra.mxu0 0.0
  %157 = vmatprep.subr.mxu0 0.0
  %158 = vmatpush1.msra.mxu0 0.0
  %159 = vmatprep.subr.mxu0 0.0
  %160 = vmatpush1.msra.mxu0 0.0
  %161 = vmatprep.subr.mxu0 0.0
  %162 = vmatpush1.msra.mxu0 0.0
  %163 = vmatprep.subr.mxu0 0.0
  %164 = vmatpush1.msra.mxu0 0.0
  %165 = vmatprep.subr.mxu0 0.0
  %166 = vmatpush1.msra.mxu0 0.0
  %167 = vmatprep.subr.mxu0 0.0
  %168 = vmatpush1.msra.mxu0 0.0
  %169 = vmatprep.subr.mxu0 0.0
  %170 = vmatpush1.msra.mxu0 0.0
  %171 = vmatprep.subr.mxu0 0.0
  %172 = vmatpush1.msra.mxu0 0.0
  %173 = vmatprep.subr.mxu0 0.0
  %174 = vmatpush1.msra.mxu0 0.0
  %175 = vmatprep.subr.mxu0 0.0
  %176 = vmatpush1.msra.mxu0 0.0
  %177 = vmatprep.subr.mxu0 0.0
  %178 = vmatpush1.msra.mxu0 0.0
  %179 = vmatprep.subr.mxu0 0.0
  %180 = vmatpush1.msra.mxu0 0.0
  %181 = vmatprep.subr.mxu0 0.0
  %182 = vmatpush1.msra.mxu0 0.0
  %183 = vmatprep.subr.mxu0 0.0
  %184 = vmatpush1.msra.mxu0 0.0
  %185 = vmatprep.subr.mxu0 0.0
  %186 = vmatpush1.msra.mxu0 0.0
  %187 = vmatprep.mubr.f32.mxu0 0.0
  %188 = vmatmul.mubr.f32.gmra.mrb[0].mxu0 %v121
  %v189 = vpop.f32.mrb[0].mxu0
  %v190 = vadd.f32 0.0, %v189
  %v191 = vpop.f32.mrb[0].mxu0
  %192 = vdwg.mxu0
  %s193 = scalar_lea.vmem %s1, 32
  %v194 = vld [vmem:[%s193] sm:$0xff]
  %v195 = vld [vmem:[%s193 + $0x8] sm:$0xff]
  %v196 = vld [vmem:[%s193 + $0x10] sm:$0xff]
  %v197 = vld [vmem:[%s193 + $0x18] sm:$0xff]
  %vm198 = vcmask 261120
  %v200 = vsel %vm198, %v190, 0
  %202 = vmatprep.subr.mxu0 0.0
  %203 = vmatpush1.msra.mxu0 %v194
  %204 = vmatprep.subr.mxu0 0.0
  %205 = vmatpush1.msra.mxu0 %v195
  %206 = vmatprep.subr.mxu0 0.0
  %207 = vmatpush1.msra.mxu0 %v196
  %208 = vmatprep.subr.mxu0 0.0
  %209 = vmatpush1.msra.mxu0 %v197
  %210 = vmatprep.subr.mxu0 0.0
  %211 = vmatpush1.msra.mxu0 0.0
  %212 = vmatprep.subr.mxu0 0.0
  %213 = vmatpush1.msra.mxu0 0.0
  %214 = vmatprep.subr.mxu0 0.0
  %215 = vmatpush1.msra.mxu0 0.0
  %216 = vmatprep.subr.mxu0 0.0
  %217 = vmatpush1.msra.mxu0 0.0
  %218 = vmatprep.subr.mxu0 0.0
  %219 = vmatpush1.msra.mxu0 0.0
  %220 = vmatprep.subr.mxu0 0.0
  %221 = vmatpush1.msra.mxu0 0.0
  %222 = vmatprep.subr.mxu0 0.0
  %223 = vmatpush1.msra.mxu0 0.0
  %224 = vmatprep.subr.mxu0 0.0
  %225 = vmatpush1.msra.mxu0 0.0
  %226 = vmatprep.subr.mxu0 0.0
  %227 = vmatpush1.msra.mxu0 0.0
  %228 = vmatprep.subr.mxu0 0.0
  %229 = vmatpush1.msra.mxu0 0.0
  %230 = vmatprep.subr.mxu0 0.0
  %231 = vmatpush1.msra.mxu0 0.0
  %232 = vmatprep.subr.mxu0 0.0
  %233 = vmatpush1.msra.mxu0 0.0
  %234 = vmatprep.subr.mxu0 0.0
  %235 = vmatpush1.msra.mxu0 0.0
  %236 = vmatprep.subr.mxu0 0.0
  %237 = vmatpush1.msra.mxu0 0.0
  %238 = vmatprep.subr.mxu0 0.0
  %239 = vmatpush1.msra.mxu0 0.0
  %240 = vmatprep.subr.mxu0 0.0
  %241 = vmatpush1.msra.mxu0 0.0
  %242 = vmatprep.subr.mxu0 0.0
  %243 = vmatpush1.msra.mxu0 0.0
  %244 = vmatprep.subr.mxu0 0.0
  %245 = vmatpush1.msra.mxu0 0.0
  %246 = vmatprep.subr.mxu0 0.0
  %247 = vmatpush1.msra.mxu0 0.0
  %248 = vmatprep.subr.mxu0 0.0
  %249 = vmatpush1.msra.mxu0 0.0
  %250 = vmatprep.subr.mxu0 0.0
  %251 = vmatpush1.msra.mxu0 0.0
  %252 = vmatprep.subr.mxu0 0.0
  %253 = vmatpush1.msra.mxu0 0.0
  %254 = vmatprep.subr.mxu0 0.0
  %255 = vmatpush1.msra.mxu0 0.0
  %256 = vmatprep.subr.mxu0 0.0
  %257 = vmatpush1.msra.mxu0 0.0
  %258 = vmatprep.subr.mxu0 0.0
  %259 = vmatpush1.msra.mxu0 0.0
  %260 = vmatprep.subr.mxu0 0.0
  %261 = vmatpush1.msra.mxu0 0.0
  %262 = vmatprep.subr.mxu0 0.0
  %263 = vmatpush1.msra.mxu0 0.0
  %264 = vmatprep.subr.mxu0 0.0
  %265 = vmatpush1.msra.mxu0 0.0
  %266 = vmatprep.mubr.f32.mxu0 0.0
  %267 = vmatmul.mubr.f32.gmra.mrb[0].mxu0 %v200
  %v268 = vpop.f32.mrb[0].mxu0
  %v269 = vadd.f32 0.0, %v268
  %v270 = vpop.f32.mrb[0].mxu0
  %271 = vdwg.mxu0
  %v273 = vsel %vm198, %v111, 0
  %275 = vmatprep.subr.mxu0 0.0
  %276 = vmatpush1.msra.mxu0 %v114
  %277 = vmatprep.subr.mxu0 0.0
  %278 = vmatpush1.msra.mxu0 %v115
  %279 = vmatprep.subr.mxu0 0.0
  %280 = vmatpush1.msra.mxu0 %v116
  %281 = vmatprep.subr.mxu0 0.0
  %282 = vmatpush1.msra.mxu0 %v117
  %283 = vmatprep.subr.mxu0 0.0
  %284 = vmatpush1.msra.mxu0 0.0
  %285 = vmatprep.subr.mxu0 0.0
  %286 = vmatpush1.msra.mxu0 0.0
  %287 = vmatprep.subr.mxu0 0.0
  %288 = vmatpush1.msra.mxu0 0.0
  %289 = vmatprep.subr.mxu0 0.0
  %290 = vmatpush1.msra.mxu0 0.0
  %291 = vmatprep.subr.mxu0 0.0
  %292 = vmatpush1.msra.mxu0 0.0
  %293 = vmatprep.subr.mxu0 0.0
  %294 = vmatpush1.msra.mxu0 0.0
  %295 = vmatprep.subr.mxu0 0.0
  %296 = vmatpush1.msra.mxu0 0.0
  %297 = vmatprep.subr.mxu0 0.0
  %298 = vmatpush1.msra.mxu0 0.0
  %299 = vmatprep.subr.mxu0 0.0
  %300 = vmatpush1.msra.mxu0 0.0
  %301 = vmatprep.subr.mxu0 0.0
  %302 = vmatpush1.msra.mxu0 0.0
  %303 = vmatprep.subr.mxu0 0.0
  %304 = vmatpush1.msra.mxu0 0.0
  %305 = vmatprep.subr.mxu0 0.0
  %306 = vmatpush1.msra.mxu0 0.0
  %307 = vmatprep.subr.mxu0 0.0
  %308 = vmatpush1.msra.mxu0 0.0
  %309 = vmatprep.subr.mxu0 0.0
  %310 = vmatpush1.msra.mxu0 0.0
  %311 = vmatprep.subr.mxu0 0.0
  %312 = vmatpush1.msra.mxu0 0.0
  %313 = vmatprep.subr.mxu0 0.0
  %314 = vmatpush1.msra.mxu0 0.0
  %315 = vmatprep.subr.mxu0 0.0
  %316 = vmatpush1.msra.mxu0 0.0
  %317 = vmatprep.subr.mxu0 0.0
  %318 = vmatpush1.msra.mxu0 0.0
  %319 = vmatprep.subr.mxu0 0.0
  %320 = vmatpush1.msra.mxu0 0.0
  %321 = vmatprep.subr.mxu0 0.0
  %322 = vmatpush1.msra.mxu0 0.0
  %323 = vmatprep.subr.mxu0 0.0
  %324 = vmatpush1.msra.mxu0 0.0
  %325 = vmatprep.subr.mxu0 0.0
  %326 = vmatpush1.msra.mxu0 0.0
  %327 = vmatprep.subr.mxu0 0.0
  %328 = vmatpush1.msra.mxu0 0.0
  %329 = vmatprep.subr.mxu0 0.0
  %330 = vmatpush1.msra.mxu0 0.0
  %331 = vmatprep.subr.mxu0 0.0
  %332 = vmatpush1.msra.mxu0 0.0
  %333 = vmatprep.subr.mxu0 0.0
  %334 = vmatpush1.msra.mxu0 0.0
  %335 = vmatprep.subr.mxu0 0.0
  %336 = vmatpush1.msra.mxu0 0.0
  %337 = vmatprep.subr.mxu0 0.0
  %338 = vmatpush1.msra.mxu0 0.0
  %339 = vmatprep.mubr.f32.mxu0 0.0
  %340 = vmatmul.mubr.f32.gmra.mrb[0].mxu0 %v273
  %v341 = vpop.f32.mrb[0].mxu0
  %v342 = vadd.f32 %v269, %v341
  %v343 = vpop.f32.mrb[0].mxu0
  %344 = vdwg.mxu0
  %s345 = scalar_lea.vmem %s2, 28
  %v346 = vld [vmem:[%s345] sm:$0xf]
  %v348 = vsel %vm40, %v346, 0
  %350 = vmatprep.subr.mxu0 0.0
  %351 = vmatpush1.msra.mxu0 %v37
  %352 = vmatprep.subr.mxu0 0.0
  %353 = vmatpush1.msra.mxu0 0.0
  %354 = vmatprep.subr.mxu0 0.0
  %355 = vmatpush1.msra.mxu0 0.0
  %356 = vmatprep.subr.mxu0 0.0
  %357 = vmatpush1.msra.mxu0 0.0
  %358 = vmatprep.subr.mxu0 0.0
  %359 = vmatpush1.msra.mxu0 0.0
  %360 = vmatprep.subr.mxu0 0.0
  %361 = vmatpush1.msra.mxu0 0.0
  %362 = vmatprep.subr.mxu0 0.0
  %363 = vmatpush1.msra.mxu0 0.0
  %364 = vmatprep.subr.mxu0 0.0
  %365 = vmatpush1.msra.mxu0 0.0
  %366 = vmatprep.subr.mxu0 0.0
  %367 = vmatpush1.msra.mxu0 0.0
  %368 = vmatprep.subr.mxu0 0.0
  %369 = vmatpush1.msra.mxu0 0.0
  %370 = vmatprep.subr.mxu0 0.0
  %371 = vmatpush1.msra.mxu0 0.0
  %372 = vmatprep.subr.mxu0 0.0
  %373 = vmatpush1.msra.mxu0 0.0
  %374 = vmatprep.subr.mxu0 0.0
  %375 = vmatpush1.msra.mxu0 0.0
  %376 = vmatprep.subr.mxu0 0.0
  %377 = vmatpush1.msra.mxu0 0.0
  %378 = vmatprep.subr.mxu0 0.0
  %379 = vmatpush1.msra.mxu0 0.0
  %380 = vmatprep.subr.mxu0 0.0
  %381 = vmatpush1.msra.mxu0 0.0
  %382 = vmatprep.subr.mxu0 0.0
  %383 = vmatpush1.msra.mxu0 0.0
  %384 = vmatprep.subr.mxu0 0.0
  %385 = vmatpush1.msra.mxu0 0.0
  %386 = vmatprep.subr.mxu0 0.0
  %387 = vmatpush1.msra.mxu0 0.0
  %388 = vmatprep.subr.mxu0 0.0
  %389 = vmatpush1.msra.mxu0 0.0
  %390 = vmatprep.subr.mxu0 0.0
  %391 = vmatpush1.msra.mxu0 0.0
  %392 = vmatprep.subr.mxu0 0.0
  %393 = vmatpush1.msra.mxu0 0.0
  %394 = vmatprep.subr.mxu0 0.0
  %395 = vmatpush1.msra.mxu0 0.0
  %396 = vmatprep.subr.mxu0 0.0
  %397 = vmatpush1.msra.mxu0 0.0
  %398 = vmatprep.subr.mxu0 0.0
  %399 = vmatpush1.msra.mxu0 0.0
  %400 = vmatprep.subr.mxu0 0.0
  %401 = vmatpush1.msra.mxu0 0.0
  %402 = vmatprep.subr.mxu0 0.0
  %403 = vmatpush1.msra.mxu0 0.0
  %404 = vmatprep.subr.mxu0 0.0
  %405 = vmatpush1.msra.mxu0 0.0
  %406 = vmatprep.subr.mxu0 0.0
  %407 = vmatpush1.msra.mxu0 0.0
  %408 = vmatprep.subr.mxu0 0.0
  %409 = vmatpush1.msra.mxu0 0.0
  %410 = vmatprep.subr.mxu0 0.0
  %411 = vmatpush1.msra.mxu0 0.0
  %412 = vmatprep.subr.mxu0 0.0
  %413 = vmatpush1.msra.mxu0 0.0
  %414 = vmatprep.mubr.f32.mxu0 0.0
  %415 = vmatmul.mubr.f32.gmra.mrb[0].mxu0 %v348
  %v416 = vpop.f32.mrb[0].mxu0
  %v417 = vadd.f32 0.0, %v416
  %v418 = vpop.f32.mrb[0].mxu0
  %419 = vdwg.mxu0
  %s420 = scalar_lea.vmem %s1, 96
  %v421 = vld [vmem:[%s420] sm:$0xff]
  %v422 = vld [vmem:[%s420 + $0x8] sm:$0xff]
  %v423 = vld [vmem:[%s420 + $0x10] sm:$0xff]
  %v424 = vld [vmem:[%s420 + $0x18] sm:$0xff]
  %v426 = vsel %vm198, %v417, 0
  %428 = vmatprep.subr.mxu0 0.0
  %429 = vmatpush1.msra.mxu0 %v421
  %430 = vmatprep.subr.mxu0 0.0
  %431 = vmatpush1.msra.mxu0 %v422
  %432 = vmatprep.subr.mxu0 0.0
  %433 = vmatpush1.msra.mxu0 %v423
  %434 = vmatprep.subr.mxu0 0.0
  %435 = vmatpush1.msra.mxu0 %v424
  %436 = vmatprep.subr.mxu0 0.0
  %437 = vmatpush1.msra.mxu0 0.0
  %438 = vmatprep.subr.mxu0 0.0
  %439 = vmatpush1.msra.mxu0 0.0
  %440 = vmatprep.subr.mxu0 0.0
  %441 = vmatpush1.msra.mxu0 0.0
  %442 = vmatprep.subr.mxu0 0.0
  %443 = vmatpush1.msra.mxu0 0.0
  %444 = vmatprep.subr.mxu0 0.0
  %445 = vmatpush1.msra.mxu0 0.0
  %446 = vmatprep.subr.mxu0 0.0
  %447 = vmatpush1.msra.mxu0 0.0
  %448 = vmatprep.subr.mxu0 0.0
  %449 = vmatpush1.msra.mxu0 0.0
  %450 = vmatprep.subr.mxu0 0.0
  %451 = vmatpush1.msra.mxu0 0.0
  %452 = vmatprep.subr.mxu0 0.0
  %453 = vmatpush1.msra.mxu0 0.0
  %454 = vmatprep.subr.mxu0 0.0
  %455 = vmatpush1.msra.mxu0 0.0
  %456 = vmatprep.subr.mxu0 0.0
  %457 = vmatpush1.msra.mxu0 0.0
  %458 = vmatprep.subr.mxu0 0.0
  %459 = vmatpush1.msra.mxu0 0.0
  %460 = vmatprep.subr.mxu0 0.0
  %461 = vmatpush1.msra.mxu0 0.0
  %462 = vmatprep.subr.mxu0 0.0
  %463 = vmatpush1.msra.mxu0 0.0
  %464 = vmatprep.subr.mxu0 0.0
  %465 = vmatpush1.msra.mxu0 0.0
  %466 = vmatprep.subr.mxu0 0.0
  %467 = vmatpush1.msra.mxu0 0.0
  %468 = vmatprep.subr.mxu0 0.0
  %469 = vmatpush1.msra.mxu0 0.0
  %470 = vmatprep.subr.mxu0 0.0
  %471 = vmatpush1.msra.mxu0 0.0
  %472 = vmatprep.subr.mxu0 0.0
  %473 = vmatpush1.msra.mxu0 0.0
  %474 = vmatprep.subr.mxu0 0.0
  %475 = vmatpush1.msra.mxu0 0.0
  %476 = vmatprep.subr.mxu0 0.0
  %477 = vmatpush1.msra.mxu0 0.0
  %478 = vmatprep.subr.mxu0 0.0
  %479 = vmatpush1.msra.mxu0 0.0
  %480 = vmatprep.subr.mxu0 0.0
  %481 = vmatpush1.msra.mxu0 0.0
  %482 = vmatprep.subr.mxu0 0.0
  %483 = vmatpush1.msra.mxu0 0.0
  %484 = vmatprep.subr.mxu0 0.0
  %485 = vmatpush1.msra.mxu0 0.0
  %486 = vmatprep.subr.mxu0 0.0
  %487 = vmatpush1.msra.mxu0 0.0
  %488 = vmatprep.subr.mxu0 0.0
  %489 = vmatpush1.msra.mxu0 0.0
  %490 = vmatprep.subr.mxu0 0.0
  %491 = vmatpush1.msra.mxu0 0.0
  %492 = vmatprep.mubr.f32.mxu0 0.0
  %493 = vmatmul.mubr.f32.gmra.mrb[0].mxu0 %v426
  %v494 = vpop.f32.mrb[0].mxu0
  %v495 = vadd.f32 0.0, %v494
  %v496 = vpop.f32.mrb[0].mxu0
  %497 = vdwg.mxu0
  %v498 = vadd.f32 %v342, %v495
  %s499 = scalar_lea.vmem %s2, 20
  %v500 = vld [vmem:[%s499] sm:$0xf]
  %v502 = vsel %vm40, %v500, 0
  %504 = vmatprep.subr.mxu0 0.0
  %505 = vmatpush1.msra.mxu0 %v37
  %506 = vmatprep.subr.mxu0 0.0
  %507 = vmatpush1.msra.mxu0 0.0
  %508 = vmatprep.subr.mxu0 0.0
  %509 = vmatpush1.msra.mxu0 0.0
  %510 = vmatprep.subr.mxu0 0.0
  %511 = vmatpush1.msra.mxu0 0.0
  %512 = vmatprep.subr.mxu0 0.0
  %513 = vmatpush1.msra.mxu0 0.0
  %514 = vmatprep.subr.mxu0 0.0
  %515 = vmatpush1.msra.mxu0 0.0
  %516 = vmatprep.subr.mxu0 0.0
  %517 = vmatpush1.msra.mxu0 0.0
  %518 = vmatprep.subr.mxu0 0.0
  %519 = vmatpush1.msra.mxu0 0.0
  %520 = vmatprep.subr.mxu0 0.0
  %521 = vmatpush1.msra.mxu0 0.0
  %522 = vmatprep.subr.mxu0 0.0
  %523 = vmatpush1.msra.mxu0 0.0
  %524 = vmatprep.subr.mxu0 0.0
  %525 = vmatpush1.msra.mxu0 0.0
  %526 = vmatprep.subr.mxu0 0.0
  %527 = vmatpush1.msra.mxu0 0.0
  %528 = vmatprep.subr.mxu0 0.0
  %529 = vmatpush1.msra.mxu0 0.0
  %530 = vmatprep.subr.mxu0 0.0
  %531 = vmatpush1.msra.mxu0 0.0
  %532 = vmatprep.subr.mxu0 0.0
  %533 = vmatpush1.msra.mxu0 0.0
  %534 = vmatprep.subr.mxu0 0.0
  %535 = vmatpush1.msra.mxu0 0.0
  %536 = vmatprep.subr.mxu0 0.0
  %537 = vmatpush1.msra.mxu0 0.0
  %538 = vmatprep.subr.mxu0 0.0
  %539 = vmatpush1.msra.mxu0 0.0
  %540 = vmatprep.subr.mxu0 0.0
  %541 = vmatpush1.msra.mxu0 0.0
  %542 = vmatprep.subr.mxu0 0.0
  %543 = vmatpush1.msra.mxu0 0.0
  %544 = vmatprep.subr.mxu0 0.0
  %545 = vmatpush1.msra.mxu0 0.0
  %546 = vmatprep.subr.mxu0 0.0
  %547 = vmatpush1.msra.mxu0 0.0
  %548 = vmatprep.subr.mxu0 0.0
  %549 = vmatpush1.msra.mxu0 0.0
  %550 = vmatprep.subr.mxu0 0.0
  %551 = vmatpush1.msra.mxu0 0.0
  %552 = vmatprep.subr.mxu0 0.0
  %553 = vmatpush1.msra.mxu0 0.0
  %554 = vmatprep.subr.mxu0 0.0
  %555 = vmatpush1.msra.mxu0 0.0
  %556 = vmatprep.subr.mxu0 0.0
  %557 = vmatpush1.msra.mxu0 0.0
  %558 = vmatprep.subr.mxu0 0.0
  %559 = vmatpush1.msra.mxu0 0.0
  %560 = vmatprep.subr.mxu0 0.0
  %561 = vmatpush1.msra.mxu0 0.0
  %562 = vmatprep.subr.mxu0 0.0
  %563 = vmatpush1.msra.mxu0 0.0
  %564 = vmatprep.subr.mxu0 0.0
  %565 = vmatpush1.msra.mxu0 0.0
  %566 = vmatprep.subr.mxu0 0.0
  %567 = vmatpush1.msra.mxu0 0.0
  %568 = vmatprep.mubr.f32.mxu0 0.0
  %569 = vmatmul.mubr.f32.gmra.mrb[0].mxu0 %v502
  %v570 = vpop.f32.mrb[0].mxu0
  %v571 = vadd.f32 0.0, %v570
  %v572 = vpop.f32.mrb[0].mxu0
  %573 = vdwg.mxu0
  %v574 = vadd.f32 %v498, %v571
  %s575 = scalar_lea.vmem %s2, 56
  %v576 = vld [vmem:[%s575] sm:$0xf]
  %v578 = vsel %vm40, %v576, 0
  %580 = vmatprep.subr.mxu0 0.0
  %581 = vmatpush1.msra.mxu0 %v37
  %582 = vmatprep.subr.mxu0 0.0
  %583 = vmatpush1.msra.mxu0 0.0
  %584 = vmatprep.subr.mxu0 0.0
  %585 = vmatpush1.msra.mxu0 0.0
  %586 = vmatprep.subr.mxu0 0.0
  %587 = vmatpush1.msra.mxu0 0.0
  %588 = vmatprep.subr.mxu0 0.0
  %589 = vmatpush1.msra.mxu0 0.0
  %590 = vmatprep.subr.mxu0 0.0
  %591 = vmatpush1.msra.mxu0 0.0
  %592 = vmatprep.subr.mxu0 0.0
  %593 = vmatpush1.msra.mxu0 0.0
  %594 = vmatprep.subr.mxu0 0.0
  %595 = vmatpush1.msra.mxu0 0.0
  %596 = vmatprep.subr.mxu0 0.0
  %597 = vmatpush1.msra.mxu0 0.0
  %598 = vmatprep.subr.mxu0 0.0
  %599 = vmatpush1.msra.mxu0 0.0
  %600 = vmatprep.subr.mxu0 0.0
  %601 = vmatpush1.msra.mxu0 0.0
  %602 = vmatprep.subr.mxu0 0.0
  %603 = vmatpush1.msra.mxu0 0.0
  %604 = vmatprep.subr.mxu0 0.0
  %605 = vmatpush1.msra.mxu0 0.0
  %606 = vmatprep.subr.mxu0 0.0
  %607 = vmatpush1.msra.mxu0 0.0
  %608 = vmatprep.subr.mxu0 0.0
  %609 = vmatpush1.msra.mxu0 0.0
  %610 = vmatprep.subr.mxu0 0.0
  %611 = vmatpush1.msra.mxu0 0.0
  %612 = vmatprep.subr.mxu0 0.0
  %613 = vmatpush1.msra.mxu0 0.0
  %614 = vmatprep.subr.mxu0 0.0
  %615 = vmatpush1.msra.mxu0 0.0
  %616 = vmatprep.subr.mxu0 0.0
  %617 = vmatpush1.msra.mxu0 0.0
  %618 = vmatprep.subr.mxu0 0.0
  %619 = vmatpush1.msra.mxu0 0.0
  %620 = vmatprep.subr.mxu0 0.0
  %621 = vmatpush1.msra.mxu0 0.0
  %622 = vmatprep.subr.mxu0 0.0
  %623 = vmatpush1.msra.mxu0 0.0
  %624 = vmatprep.subr.mxu0 0.0
  %625 = vmatpush1.msra.mxu0 0.0
  %626 = vmatprep.subr.mxu0 0.0
  %627 = vmatpush1.msra.mxu0 0.0
  %628 = vmatprep.subr.mxu0 0.0
  %629 = vmatpush1.msra.mxu0 0.0
  %630 = vmatprep.subr.mxu0 0.0
  %631 = vmatpush1.msra.mxu0 0.0
  %632 = vmatprep.subr.mxu0 0.0
  %633 = vmatpush1.msra.mxu0 0.0
  %634 = vmatprep.subr.mxu0 0.0
  %635 = vmatpush1.msra.mxu0 0.0
  %636 = vmatprep.subr.mxu0 0.0
  %637 = vmatpush1.msra.mxu0 0.0
  %638 = vmatprep.subr.mxu0 0.0
  %639 = vmatpush1.msra.mxu0 0.0
  %640 = vmatprep.subr.mxu0 0.0
  %641 = vmatpush1.msra.mxu0 0.0
  %642 = vmatprep.subr.mxu0 0.0
  %643 = vmatpush1.msra.mxu0 0.0
  %644 = vmatprep.mubr.f32.mxu0 0.0
  %645 = vmatmul.mubr.f32.gmra.mrb[0].mxu0 %v578
  %v646 = vpop.f32.mrb[0].mxu0
  %v647 = vadd.f32 0.0, %v646
  %v648 = vpop.f32.mrb[0].mxu0
  %649 = vdwg.mxu0
  %s650 = scalar_lea.vmem %s2, 48
  %v651 = vld [vmem:[%s650] sm:$0xf]
  %v653 = vsel %vm40, %v651, 0
  %655 = vmatprep.subr.mxu0 0.0
  %656 = vmatpush1.msra.mxu0 %v37
  %657 = vmatprep.subr.mxu0 0.0
  %658 = vmatpush1.msra.mxu0 0.0
  %659 = vmatprep.subr.mxu0 0.0
  %660 = vmatpush1.msra.mxu0 0.0
  %661 = vmatprep.subr.mxu0 0.0
  %662 = vmatpush1.msra.mxu0 0.0
  %663 = vmatprep.subr.mxu0 0.0
  %664 = vmatpush1.msra.mxu0 0.0
  %665 = vmatprep.subr.mxu0 0.0
  %666 = vmatpush1.msra.mxu0 0.0
  %667 = vmatprep.subr.mxu0 0.0
  %668 = vmatpush1.msra.mxu0 0.0
  %669 = vmatprep.subr.mxu0 0.0
  %670 = vmatpush1.msra.mxu0 0.0
  %671 = vmatprep.subr.mxu0 0.0
  %672 = vmatpush1.msra.mxu0 0.0
  %673 = vmatprep.subr.mxu0 0.0
  %674 = vmatpush1.msra.mxu0 0.0
  %675 = vmatprep.subr.mxu0 0.0
  %676 = vmatpush1.msra.mxu0 0.0
  %677 = vmatprep.subr.mxu0 0.0
  %678 = vmatpush1.msra.mxu0 0.0
  %679 = vmatprep.subr.mxu0 0.0
  %680 = vmatpush1.msra.mxu0 0.0
  %681 = vmatprep.subr.mxu0 0.0
  %682 = vmatpush1.msra.mxu0 0.0
  %683 = vmatprep.subr.mxu0 0.0
  %684 = vmatpush1.msra.mxu0 0.0
  %685 = vmatprep.subr.mxu0 0.0
  %686 = vmatpush1.msra.mxu0 0.0
  %687 = vmatprep.subr.mxu0 0.0
  %688 = vmatpush1.msra.mxu0 0.0
  %689 = vmatprep.subr.mxu0 0.0
  %690 = vmatpush1.msra.mxu0 0.0
  %691 = vmatprep.subr.mxu0 0.0
  %692 = vmatpush1.msra.mxu0 0.0
  %693 = vmatprep.subr.mxu0 0.0
  %694 = vmatpush1.msra.mxu0 0.0
  %695 = vmatprep.subr.mxu0 0.0
  %696 = vmatpush1.msra.mxu0 0.0
  %697 = vmatprep.subr.mxu0 0.0
  %698 = vmatpush1.msra.mxu0 0.0
  %699 = vmatprep.subr.mxu0 0.0
  %700 = vmatpush1.msra.mxu0 0.0
  %701 = vmatprep.subr.mxu0 0.0
  %702 = vmatpush1.msra.mxu0 0.0
  %703 = vmatprep.subr.mxu0 0.0
  %704 = vmatpush1.msra.mxu0 0.0
  %705 = vmatprep.subr.mxu0 0.0
  %706 = vmatpush1.msra.mxu0 0.0
  %707 = vmatprep.subr.mxu0 0.0
  %708 = vmatpush1.msra.mxu0 0.0
  %709 = vmatprep.subr.mxu0 0.0
  %710 = vmatpush1.msra.mxu0 0.0
  %711 = vmatprep.subr.mxu0 0.0
  %712 = vmatpush1.msra.mxu0 0.0
  %713 = vmatprep.subr.mxu0 0.0
  %714 = vmatpush1.msra.mxu0 0.0
  %715 = vmatprep.subr.mxu0 0.0
  %716 = vmatpush1.msra.mxu0 0.0
  %717 = vmatprep.subr.mxu0 0.0
  %718 = vmatpush1.msra.mxu0 0.0
  %719 = vmatprep.mubr.f32.mxu0 0.0
  %720 = vmatmul.mubr.f32.gmra.mrb[0].mxu0 %v653
  %v721 = vpop.f32.mrb[0].mxu0
  %v722 = vadd.f32 0.0, %v721
  %v723 = vpop.f32.mrb[0].mxu0
  %724 = vdwg.mxu0
  %s725 = scalar_lea.vmem %s1, 64
  %v726 = vld [vmem:[%s725] sm:$0xff]
  %v727 = vld [vmem:[%s725 + $0x8] sm:$0xff]
  %v728 = vld [vmem:[%s725 + $0x10] sm:$0xff]
  %v729 = vld [vmem:[%s725 + $0x18] sm:$0xff]
  %v731 = vsel %vm198, %v722, 0
  %733 = vmatprep.subr.mxu0 0.0
  %734 = vmatpush1.msra.mxu0 %v726
  %735 = vmatprep.subr.mxu0 0.0
  %736 = vmatpush1.msra.mxu0 %v727
  %737 = vmatprep.subr.mxu0 0.0
  %738 = vmatpush1.msra.mxu0 %v728
  %739 = vmatprep.subr.mxu0 0.0
  %740 = vmatpush1.msra.mxu0 %v729
  %741 = vmatprep.subr.mxu0 0.0
  %742 = vmatpush1.msra.mxu0 0.0
  %743 = vmatprep.subr.mxu0 0.0
  %744 = vmatpush1.msra.mxu0 0.0
  %745 = vmatprep.subr.mxu0 0.0
  %746 = vmatpush1.msra.mxu0 0.0
  %747 = vmatprep.subr.mxu0 0.0
  %748 = vmatpush1.msra.mxu0 0.0
  %749 = vmatprep.subr.mxu0 0.0
  %750 = vmatpush1.msra.mxu0 0.0
  %751 = vmatprep.subr.mxu0 0.0
  %752 = vmatpush1.msra.mxu0 0.0
  %753 = vmatprep.subr.mxu0 0.0
  %754 = vmatpush1.msra.mxu0 0.0
  %755 = vmatprep.subr.mxu0 0.0
  %756 = vmatpush1.msra.mxu0 0.0
  %757 = vmatprep.subr.mxu0 0.0
  %758 = vmatpush1.msra.mxu0 0.0
  %759 = vmatprep.subr.mxu0 0.0
  %760 = vmatpush1.msra.mxu0 0.0
  %761 = vmatprep.subr.mxu0 0.0
  %762 = vmatpush1.msra.mxu0 0.0
  %763 = vmatprep.subr.mxu0 0.0
  %764 = vmatpush1.msra.mxu0 0.0
  %765 = vmatprep.subr.mxu0 0.0
  %766 = vmatpush1.msra.mxu0 0.0
  %767 = vmatprep.subr.mxu0 0.0
  %768 = vmatpush1.msra.mxu0 0.0
  %769 = vmatprep.subr.mxu0 0.0
  %770 = vmatpush1.msra.mxu0 0.0
  %771 = vmatprep.subr.mxu0 0.0
  %772 = vmatpush1.msra.mxu0 0.0
  %773 = vmatprep.subr.mxu0 0.0
  %774 = vmatpush1.msra.mxu0 0.0
  %775 = vmatprep.subr.mxu0 0.0
  %776 = vmatpush1.msra.mxu0 0.0
  %777 = vmatprep.subr.mxu0 0.0
  %778 = vmatpush1.msra.mxu0 0.0
  %779 = vmatprep.subr.mxu0 0.0
  %780 = vmatpush1.msra.mxu0 0.0
  %781 = vmatprep.subr.mxu0 0.0
  %782 = vmatpush1.msra.mxu0 0.0
  %783 = vmatprep.subr.mxu0 0.0
  %784 = vmatpush1.msra.mxu0 0.0
  %785 = vmatprep.subr.mxu0 0.0
  %786 = vmatpush1.msra.mxu0 0.0
  %787 = vmatprep.subr.mxu0 0.0
  %788 = vmatpush1.msra.mxu0 0.0
  %789 = vmatprep.subr.mxu0 0.0
  %790 = vmatpush1.msra.mxu0 0.0
  %791 = vmatprep.subr.mxu0 0.0
  %792 = vmatpush1.msra.mxu0 0.0
  %793 = vmatprep.subr.mxu0 0.0
  %794 = vmatpush1.msra.mxu0 0.0
  %795 = vmatprep.subr.mxu0 0.0
  %796 = vmatpush1.msra.mxu0 0.0
  %797 = vmatprep.mubr.f32.mxu0 0.0
  %798 = vmatmul.mubr.f32.gmra.mrb[0].mxu0 %v731
  %v799 = vpop.f32.mrb[0].mxu0
  %v800 = vadd.f32 0.0, %v799
  %v801 = vpop.f32.mrb[0].mxu0
  %802 = vdwg.mxu0
  %v804 = vsel %vm198, %v647, 0
  %806 = vmatprep.subr.mxu0 0.0
  %807 = vmatpush1.msra.mxu0 %v194
  %808 = vmatprep.subr.mxu0 0.0
  %809 = vmatpush1.msra.mxu0 %v195
  %810 = vmatprep.subr.mxu0 0.0
  %811 = vmatpush1.msra.mxu0 %v196
  %812 = vmatprep.subr.mxu0 0.0
  %813 = vmatpush1.msra.mxu0 %v197
  %814 = vmatprep.subr.mxu0 0.0
  %815 = vmatpush1.msra.mxu0 0.0
  %816 = vmatprep.subr.mxu0 0.0
  %817 = vmatpush1.msra.mxu0 0.0
  %818 = vmatprep.subr.mxu0 0.0
  %819 = vmatpush1.msra.mxu0 0.0
  %820 = vmatprep.subr.mxu0 0.0
  %821 = vmatpush1.msra.mxu0 0.0
  %822 = vmatprep.subr.mxu0 0.0
  %823 = vmatpush1.msra.mxu0 0.0
  %824 = vmatprep.subr.mxu0 0.0
  %825 = vmatpush1.msra.mxu0 0.0
  %826 = vmatprep.subr.mxu0 0.0
  %827 = vmatpush1.msra.mxu0 0.0
  %828 = vmatprep.subr.mxu0 0.0
  %829 = vmatpush1.msra.mxu0 0.0
  %830 = vmatprep.subr.mxu0 0.0
  %831 = vmatpush1.msra.mxu0 0.0
  %832 = vmatprep.subr.mxu0 0.0
  %833 = vmatpush1.msra.mxu0 0.0
  %834 = vmatprep.subr.mxu0 0.0
  %835 = vmatpush1.msra.mxu0 0.0
  %836 = vmatprep.subr.mxu0 0.0
  %837 = vmatpush1.msra.mxu0 0.0
  %838 = vmatprep.subr.mxu0 0.0
  %839 = vmatpush1.msra.mxu0 0.0
  %840 = vmatprep.subr.mxu0 0.0
  %841 = vmatpush1.msra.mxu0 0.0
  %842 = vmatprep.subr.mxu0 0.0
  %843 = vmatpush1.msra.mxu0 0.0
  %844 = vmatprep.subr.mxu0 0.0
  %845 = vmatpush1.msra.mxu0 0.0
  %846 = vmatprep.subr.mxu0 0.0
  %847 = vmatpush1.msra.mxu0 0.0
  %848 = vmatprep.subr.mxu0 0.0
  %849 = vmatpush1.msra.mxu0 0.0
  %850 = vmatprep.subr.mxu0 0.0
  %851 = vmatpush1.msra.mxu0 0.0
  %852 = vmatprep.subr.mxu0 0.0
  %853 = vmatpush1.msra.mxu0 0.0
  %854 = vmatprep.subr.mxu0 0.0
  %855 = vmatpush1.msra.mxu0 0.0
  %856 = vmatprep.subr.mxu0 0.0
  %857 = vmatpush1.msra.mxu0 0.0
  %858 = vmatprep.subr.mxu0 0.0
  %859 = vmatpush1.msra.mxu0 0.0
  %860 = vmatprep.subr.mxu0 0.0
  %861 = vmatpush1.msra.mxu0 0.0
  %862 = vmatprep.subr.mxu0 0.0
  %863 = vmatpush1.msra.mxu0 0.0
  %864 = vmatprep.subr.mxu0 0.0
  %865 = vmatpush1.msra.mxu0 0.0
  %866 = vmatprep.subr.mxu0 0.0
  %867 = vmatpush1.msra.mxu0 0.0
  %868 = vmatprep.subr.mxu0 0.0
  %869 = vmatpush1.msra.mxu0 0.0
  %870 = vmatprep.mubr.f32.mxu0 0.0
  %871 = vmatmul.mubr.f32.gmra.mrb[0].mxu0 %v804
  %v872 = vpop.f32.mrb[0].mxu0
  %v873 = vadd.f32 %v800, %v872
  %v874 = vpop.f32.mrb[0].mxu0
  %875 = vdwg.mxu0
  %s876 = scalar_lea.vmem %s2, 24
  %v877 = vld [vmem:[%s876] sm:$0xf]
  %v879 = vsel %vm40, %v877, 0
  %881 = vmatprep.subr.mxu0 0.0
  %882 = vmatpush1.msra.mxu0 %v37
  %883 = vmatprep.subr.mxu0 0.0
  %884 = vmatpush1.msra.mxu0 0.0
  %885 = vmatprep.subr.mxu0 0.0
  %886 = vmatpush1.msra.mxu0 0.0
  %887 = vmatprep.subr.mxu0 0.0
  %888 = vmatpush1.msra.mxu0 0.0
  %889 = vmatprep.subr.mxu0 0.0
  %890 = vmatpush1.msra.mxu0 0.0
  %891 = vmatprep.subr.mxu0 0.0
  %892 = vmatpush1.msra.mxu0 0.0
  %893 = vmatprep.subr.mxu0 0.0
  %894 = vmatpush1.msra.mxu0 0.0
  %895 = vmatprep.subr.mxu0 0.0
  %896 = vmatpush1.msra.mxu0 0.0
  %897 = vmatprep.subr.mxu0 0.0
  %898 = vmatpush1.msra.mxu0 0.0
  %899 = vmatprep.subr.mxu0 0.0
  %900 = vmatpush1.msra.mxu0 0.0
  %901 = vmatprep.subr.mxu0 0.0
  %902 = vmatpush1.msra.mxu0 0.0
  %903 = vmatprep.subr.mxu0 0.0
  %904 = vmatpush1.msra.mxu0 0.0
  %905 = vmatprep.subr.mxu0 0.0
  %906 = vmatpush1.msra.mxu0 0.0
  %907 = vmatprep.subr.mxu0 0.0
  %908 = vmatpush1.msra.mxu0 0.0
  %909 = vmatprep.subr.mxu0 0.0
  %910 = vmatpush1.msra.mxu0 0.0
  %911 = vmatprep.subr.mxu0 0.0
  %912 = vmatpush1.msra.mxu0 0.0
  %913 = vmatprep.subr.mxu0 0.0
  %914 = vmatpush1.msra.mxu0 0.0
  %915 = vmatprep.subr.mxu0 0.0
  %916 = vmatpush1.msra.mxu0 0.0
  %917 = vmatprep.subr.mxu0 0.0
  %918 = vmatpush1.msra.mxu0 0.0
  %919 = vmatprep.subr.mxu0 0.0
  %920 = vmatpush1.msra.mxu0 0.0
  %921 = vmatprep.subr.mxu0 0.0
  %922 = vmatpush1.msra.mxu0 0.0
  %923 = vmatprep.subr.mxu0 0.0
  %924 = vmatpush1.msra.mxu0 0.0
  %925 = vmatprep.subr.mxu0 0.0
  %926 = vmatpush1.msra.mxu0 0.0
  %927 = vmatprep.subr.mxu0 0.0
  %928 = vmatpush1.msra.mxu0 0.0
  %929 = vmatprep.subr.mxu0 0.0
  %930 = vmatpush1.msra.mxu0 0.0
  %931 = vmatprep.subr.mxu0 0.0
  %932 = vmatpush1.msra.mxu0 0.0
  %933 = vmatprep.subr.mxu0 0.0
  %934 = vmatpush1.msra.mxu0 0.0
  %935 = vmatprep.subr.mxu0 0.0
  %936 = vmatpush1.msra.mxu0 0.0
  %937 = vmatprep.subr.mxu0 0.0
  %938 = vmatpush1.msra.mxu0 0.0
  %939 = vmatprep.subr.mxu0 0.0
  %940 = vmatpush1.msra.mxu0 0.0
  %941 = vmatprep.subr.mxu0 0.0
  %942 = vmatpush1.msra.mxu0 0.0
  %943 = vmatprep.subr.mxu0 0.0
  %944 = vmatpush1.msra.mxu0 0.0
  %945 = vmatprep.mubr.f32.mxu0 0.0
  %946 = vmatmul.mubr.f32.gmra.mrb[0].mxu0 %v879
  %v947 = vpop.f32.mrb[0].mxu0
  %v948 = vadd.f32 0.0, %v947
  %v949 = vpop.f32.mrb[0].mxu0
  %950 = vdwg.mxu0
  %v951 = vadd.f32 %v873, %v948
  %s952 = scalar_lea.vmem %s2, 16
  %v953 = vld [vmem:[%s952] sm:$0xf]
  %v955 = vsel %vm40, %v953, 0
  %957 = vmatprep.subr.mxu0 0.0
  %958 = vmatpush1.msra.mxu0 %v37
  %959 = vmatprep.subr.mxu0 0.0
  %960 = vmatpush1.msra.mxu0 0.0
  %961 = vmatprep.subr.mxu0 0.0
  %962 = vmatpush1.msra.mxu0 0.0
  %963 = vmatprep.subr.mxu0 0.0
  %964 = vmatpush1.msra.mxu0 0.0
  %965 = vmatprep.subr.mxu0 0.0
  %966 = vmatpush1.msra.mxu0 0.0
  %967 = vmatprep.subr.mxu0 0.0
  %968 = vmatpush1.msra.mxu0 0.0
  %969 = vmatprep.subr.mxu0 0.0
  %970 = vmatpush1.msra.mxu0 0.0
  %971 = vmatprep.subr.mxu0 0.0
  %972 = vmatpush1.msra.mxu0 0.0
  %973 = vmatprep.subr.mxu0 0.0
  %974 = vmatpush1.msra.mxu0 0.0
  %975 = vmatprep.subr.mxu0 0.0
  %976 = vmatpush1.msra.mxu0 0.0
  %977 = vmatprep.subr.mxu0 0.0
  %978 = vmatpush1.msra.mxu0 0.0
  %979 = vmatprep.subr.mxu0 0.0
  %980 = vmatpush1.msra.mxu0 0.0
  %981 = vmatprep.subr.mxu0 0.0
  %982 = vmatpush1.msra.mxu0 0.0
  %983 = vmatprep.subr.mxu0 0.0
  %984 = vmatpush1.msra.mxu0 0.0
  %985 = vmatprep.subr.mxu0 0.0
  %986 = vmatpush1.msra.mxu0 0.0
  %987 = vmatprep.subr.mxu0 0.0
  %988 = vmatpush1.msra.mxu0 0.0
  %989 = vmatprep.subr.mxu0 0.0
  %990 = vmatpush1.msra.mxu0 0.0
  %991 = vmatprep.subr.mxu0 0.0
  %992 = vmatpush1.msra.mxu0 0.0
  %993 = vmatprep.subr.mxu0 0.0
  %994 = vmatpush1.msra.mxu0 0.0
  %995 = vmatprep.subr.mxu0 0.0
  %996 = vmatpush1.msra.mxu0 0.0
  %997 = vmatprep.subr.mxu0 0.0
  %998 = vmatpush1.msra.mxu0 0.0
  %999 = vmatprep.subr.mxu0 0.0
  %1000 = vmatpush1.msra.mxu0 0.0
  %1001 = vmatprep.subr.mxu0 0.0
  %1002 = vmatpush1.msra.mxu0 0.0
  %1003 = vmatprep.subr.mxu0 0.0
  %1004 = vmatpush1.msra.mxu0 0.0
  %1005 = vmatprep.subr.mxu0 0.0
  %1006 = vmatpush1.msra.mxu0 0.0
  %1007 = vmatprep.subr.mxu0 0.0
  %1008 = vmatpush1.msra.mxu0 0.0
  %1009 = vmatprep.subr.mxu0 0.0
  %1010 = vmatpush1.msra.mxu0 0.0
  %1011 = vmatprep.subr.mxu0 0.0
  %1012 = vmatpush1.msra.mxu0 0.0
  %1013 = vmatprep.subr.mxu0 0.0
  %1014 = vmatpush1.msra.mxu0 0.0
  %1015 = vmatprep.subr.mxu0 0.0
  %1016 = vmatpush1.msra.mxu0 0.0
  %1017 = vmatprep.subr.mxu0 0.0
  %1018 = vmatpush1.msra.mxu0 0.0
  %1019 = vmatprep.subr.mxu0 0.0
  %1020 = vmatpush1.msra.mxu0 0.0
  %1021 = vmatprep.mubr.f32.mxu0 0.0
  %1022 = vmatmul.mubr.f32.gmra.mrb[0].mxu0 %v955
  %v1023 = vpop.f32.mrb[0].mxu0
  %v1024 = vadd.f32 0.0, %v1023
  %v1025 = vpop.f32.mrb[0].mxu0
  %1026 = vdwg.mxu0
  %s1027 = scalar_lea.vmem %s1, 160
  %v1028 = vld [vmem:[%s1027] sm:$0xff]
  %v1029 = vld [vmem:[%s1027 + $0x8] sm:$0xff]
  %v1030 = vld [vmem:[%s1027 + $0x10] sm:$0xff]
  %v1031 = vld [vmem:[%s1027 + $0x18] sm:$0xff]
  %v1033 = vsel %vm198, %v1024, 0
  %1035 = vmatprep.subr.mxu0 0.0
  %1036 = vmatpush1.msra.mxu0 %v1028
  %1037 = vmatprep.subr.mxu0 0.0
  %1038 = vmatpush1.msra.mxu0 %v1029
  %1039 = vmatprep.subr.mxu0 0.0
  %1040 = vmatpush1.msra.mxu0 %v1030
  %1041 = vmatprep.subr.mxu0 0.0
  %1042 = vmatpush1.msra.mxu0 %v1031
  %1043 = vmatprep.subr.mxu0 0.0
  %1044 = vmatpush1.msra.mxu0 0.0
  %1045 = vmatprep.subr.mxu0 0.0
  %1046 = vmatpush1.msra.mxu0 0.0
  %1047 = vmatprep.subr.mxu0 0.0
  %1048 = vmatpush1.msra.mxu0 0.0
  %1049 = vmatprep.subr.mxu0 0.0
  %1050 = vmatpush1.msra.mxu0 0.0
  %1051 = vmatprep.subr.mxu0 0.0
  %1052 = vmatpush1.msra.mxu0 0.0
  %1053 = vmatprep.subr.mxu0 0.0
  %1054 = vmatpush1.msra.mxu0 0.0
  %1055 = vmatprep.subr.mxu0 0.0
  %1056 = vmatpush1.msra.mxu0 0.0
  %1057 = vmatprep.subr.mxu0 0.0
  %1058 = vmatpush1.msra.mxu0 0.0
  %1059 = vmatprep.subr.mxu0 0.0
  %1060 = vmatpush1.msra.mxu0 0.0
  %1061 = vmatprep.subr.mxu0 0.0
  %1062 = vmatpush1.msra.mxu0 0.0
  %1063 = vmatprep.subr.mxu0 0.0
  %1064 = vmatpush1.msra.mxu0 0.0
  %1065 = vmatprep.subr.mxu0 0.0
  %1066 = vmatpush1.msra.mxu0 0.0
  %1067 = vmatprep.subr.mxu0 0.0
  %1068 = vmatpush1.msra.mxu0 0.0
  %1069 = vmatprep.subr.mxu0 0.0
  %1070 = vmatpush1.msra.mxu0 0.0
  %1071 = vmatprep.subr.mxu0 0.0
  %1072 = vmatpush1.msra.mxu0 0.0
  %1073 = vmatprep.subr.mxu0 0.0
  %1074 = vmatpush1.msra.mxu0 0.0
  %1075 = vmatprep.subr.mxu0 0.0
  %1076 = vmatpush1.msra.mxu0 0.0
  %1077 = vmatprep.subr.mxu0 0.0
  %1078 = vmatpush1.msra.mxu0 0.0
  %1079 = vmatprep.subr.mxu0 0.0
  %1080 = vmatpush1.msra.mxu0 0.0
  %1081 = vmatprep.subr.mxu0 0.0
  %1082 = vmatpush1.msra.mxu0 0.0
  %1083 = vmatprep.subr.mxu0 0.0
  %1084 = vmatpush1.msra.mxu0 0.0
  %1085 = vmatprep.subr.mxu0 0.0
  %1086 = vmatpush1.msra.mxu0 0.0
  %1087 = vmatprep.subr.mxu0 0.0
  %1088 = vmatpush1.msra.mxu0 0.0
  %1089 = vmatprep.subr.mxu0 0.0
  %1090 = vmatpush1.msra.mxu0 0.0
  %1091 = vmatprep.subr.mxu0 0.0
  %1092 = vmatpush1.msra.mxu0 0.0
  %1093 = vmatprep.subr.mxu0 0.0
  %1094 = vmatpush1.msra.mxu0 0.0
  %1095 = vmatprep.subr.mxu0 0.0
  %1096 = vmatpush1.msra.mxu0 0.0
  %1097 = vmatprep.subr.mxu0 0.0
  %1098 = vmatpush1.msra.mxu0 0.0
  %1099 = vmatprep.mubr.f32.mxu0 0.0
  %1100 = vmatmul.mubr.f32.gmra.mrb[0].mxu0 %v1033
  %v1101 = vpop.f32.mrb[0].mxu0
  %v1102 = vadd.f32 0.0, %v1101
  %v1103 = vpop.f32.mrb[0].mxu0
  %1104 = vdwg.mxu0
  %v1105 = vadd.f32 %v951, %v1102
  %s1106 = scalar_lea.vmem %s2, 44
  %v1107 = vld [vmem:[%s1106] sm:$0xf]
  %v1109 = vsel %vm40, %v1107, 0
  %1111 = vmatprep.subr.mxu0 0.0
  %1112 = vmatpush1.msra.mxu0 %v37
  %1113 = vmatprep.subr.mxu0 0.0
  %1114 = vmatpush1.msra.mxu0 0.0
  %1115 = vmatprep.subr.mxu0 0.0
  %1116 = vmatpush1.msra.mxu0 0.0
  %1117 = vmatprep.subr.mxu0 0.0
  %1118 = vmatpush1.msra.mxu0 0.0
  %1119 = vmatprep.subr.mxu0 0.0
  %1120 = vmatpush1.msra.mxu0 0.0
  %1121 = vmatprep.subr.mxu0 0.0
  %1122 = vmatpush1.msra.mxu0 0.0
  %1123 = vmatprep.subr.mxu0 0.0
  %1124 = vmatpush1.msra.mxu0 0.0
  %1125 = vmatprep.subr.mxu0 0.0
  %1126 = vmatpush1.msra.mxu0 0.0
  %1127 = vmatprep.subr.mxu0 0.0
  %1128 = vmatpush1.msra.mxu0 0.0
  %1129 = vmatprep.subr.mxu0 0.0
  %1130 = vmatpush1.msra.mxu0 0.0
  %1131 = vmatprep.subr.mxu0 0.0
  %1132 = vmatpush1.msra.mxu0 0.0
  %1133 = vmatprep.subr.mxu0 0.0
  %1134 = vmatpush1.msra.mxu0 0.0
  %1135 = vmatprep.subr.mxu0 0.0
  %1136 = vmatpush1.msra.mxu0 0.0
  %1137 = vmatprep.subr.mxu0 0.0
  %1138 = vmatpush1.msra.mxu0 0.0
  %1139 = vmatprep.subr.mxu0 0.0
  %1140 = vmatpush1.msra.mxu0 0.0
  %1141 = vmatprep.subr.mxu0 0.0
  %1142 = vmatpush1.msra.mxu0 0.0
  %1143 = vmatprep.subr.mxu0 0.0
  %1144 = vmatpush1.msra.mxu0 0.0
  %1145 = vmatprep.subr.mxu0 0.0
  %1146 = vmatpush1.msra.mxu0 0.0
  %1147 = vmatprep.subr.mxu0 0.0
  %1148 = vmatpush1.msra.mxu0 0.0
  %1149 = vmatprep.subr.mxu0 0.0
  %1150 = vmatpush1.msra.mxu0 0.0
  %1151 = vmatprep.subr.mxu0 0.0
  %1152 = vmatpush1.msra.mxu0 0.0
  %1153 = vmatprep.subr.mxu0 0.0
  %1154 = vmatpush1.msra.mxu0 0.0
  %1155 = vmatprep.subr.mxu0 0.0
  %1156 = vmatpush1.msra.mxu0 0.0
  %1157 = vmatprep.subr.mxu0 0.0
  %1158 = vmatpush1.msra.mxu0 0.0
  %1159 = vmatprep.subr.mxu0 0.0
  %1160 = vmatpush1.msra.mxu0 0.0
  %1161 = vmatprep.subr.mxu0 0.0
  %1162 = vmatpush1.msra.mxu0 0.0
  %1163 = vmatprep.subr.mxu0 0.0
  %1164 = vmatpush1.msra.mxu0 0.0
  %1165 = vmatprep.subr.mxu0 0.0
  %1166 = vmatpush1.msra.mxu0 0.0
  %1167 = vmatprep.subr.mxu0 0.0
  %1168 = vmatpush1.msra.mxu0 0.0
  %1169 = vmatprep.subr.mxu0 0.0
  %1170 = vmatpush1.msra.mxu0 0.0
  %1171 = vmatprep.subr.mxu0 0.0
  %1172 = vmatpush1.msra.mxu0 0.0
  %1173 = vmatprep.subr.mxu0 0.0
  %1174 = vmatpush1.msra.mxu0 0.0
  %1175 = vmatprep.mubr.f32.mxu0 0.0
  %1176 = vmatmul.mubr.f32.gmra.mrb[0].mxu0 %v1109
  %v1177 = vpop.f32.mrb[0].mxu0
  %v1178 = vadd.f32 0.0, %v1177
  %v1179 = vpop.f32.mrb[0].mxu0
  %1180 = vdwg.mxu0
  %s1181 = scalar_lea.vmem %s2, 36
  %v1182 = vld [vmem:[%s1181] sm:$0xf]
  %v1184 = vsel %vm40, %v1182, 0
  %1186 = vmatprep.subr.mxu0 0.0
  %1187 = vmatpush1.msra.mxu0 %v37
  %1188 = vmatprep.subr.mxu0 0.0
  %1189 = vmatpush1.msra.mxu0 0.0
  %1190 = vmatprep.subr.mxu0 0.0
  %1191 = vmatpush1.msra.mxu0 0.0
  %1192 = vmatprep.subr.mxu0 0.0
  %1193 = vmatpush1.msra.mxu0 0.0
  %1194 = vmatprep.subr.mxu0 0.0
  %1195 = vmatpush1.msra.mxu0 0.0
  %1196 = vmatprep.subr.mxu0 0.0
  %1197 = vmatpush1.msra.mxu0 0.0
  %1198 = vmatprep.subr.mxu0 0.0
  %1199 = vmatpush1.msra.mxu0 0.0
  %1200 = vmatprep.subr.mxu0 0.0
  %1201 = vmatpush1.msra.mxu0 0.0
  %1202 = vmatprep.subr.mxu0 0.0
  %1203 = vmatpush1.msra.mxu0 0.0
  %1204 = vmatprep.subr.mxu0 0.0
  %1205 = vmatpush1.msra.mxu0 0.0
  %1206 = vmatprep.subr.mxu0 0.0
  %1207 = vmatpush1.msra.mxu0 0.0
  %1208 = vmatprep.subr.mxu0 0.0
  %1209 = vmatpush1.msra.mxu0 0.0
  %1210 = vmatprep.subr.mxu0 0.0
  %1211 = vmatpush1.msra.mxu0 0.0
  %1212 = vmatprep.subr.mxu0 0.0
  %1213 = vmatpush1.msra.mxu0 0.0
  %1214 = vmatprep.subr.mxu0 0.0
  %1215 = vmatpush1.msra.mxu0 0.0
  %1216 = vmatprep.subr.mxu0 0.0
  %1217 = vmatpush1.msra.mxu0 0.0
  %1218 = vmatprep.subr.mxu0 0.0
  %1219 = vmatpush1.msra.mxu0 0.0
  %1220 = vmatprep.subr.mxu0 0.0
  %1221 = vmatpush1.msra.mxu0 0.0
  %1222 = vmatprep.subr.mxu0 0.0
  %1223 = vmatpush1.msra.mxu0 0.0
  %1224 = vmatprep.subr.mxu0 0.0
  %1225 = vmatpush1.msra.mxu0 0.0
  %1226 = vmatprep.subr.mxu0 0.0
  %1227 = vmatpush1.msra.mxu0 0.0
  %1228 = vmatprep.subr.mxu0 0.0
  %1229 = vmatpush1.msra.mxu0 0.0
  %1230 = vmatprep.subr.mxu0 0.0
  %1231 = vmatpush1.msra.mxu0 0.0
  %1232 = vmatprep.subr.mxu0 0.0
  %1233 = vmatpush1.msra.mxu0 0.0
  %1234 = vmatprep.subr.mxu0 0.0
  %1235 = vmatpush1.msra.mxu0 0.0
  %1236 = vmatprep.subr.mxu0 0.0
  %1237 = vmatpush1.msra.mxu0 0.0
  %1238 = vmatprep.subr.mxu0 0.0
  %1239 = vmatpush1.msra.mxu0 0.0
  %1240 = vmatprep.subr.mxu0 0.0
  %1241 = vmatpush1.msra.mxu0 0.0
  %1242 = vmatprep.subr.mxu0 0.0
  %1243 = vmatpush1.msra.mxu0 0.0
  %1244 = vmatprep.subr.mxu0 0.0
  %1245 = vmatpush1.msra.mxu0 0.0
  %1246 = vmatprep.subr.mxu0 0.0
  %1247 = vmatpush1.msra.mxu0 0.0
  %1248 = vmatprep.subr.mxu0 0.0
  %1249 = vmatpush1.msra.mxu0 0.0
  %1250 = vmatprep.mubr.f32.mxu0 0.0
  %1251 = vmatmul.mubr.f32.gmra.mrb[0].mxu0 %v1184
  %v1252 = vpop.f32.mrb[0].mxu0
  %v1253 = vadd.f32 0.0, %v1252
  %v1254 = vpop.f32.mrb[0].mxu0
  %1255 = vdwg.mxu0
  %v1257 = vsel %vm198, %v1178, 0
  %1259 = vmatprep.subr.mxu0 0.0
  %1260 = vmatpush1.msra.mxu0 %v421
  %1261 = vmatprep.subr.mxu0 0.0
  %1262 = vmatpush1.msra.mxu0 %v422
  %1263 = vmatprep.subr.mxu0 0.0
  %1264 = vmatpush1.msra.mxu0 %v423
  %1265 = vmatprep.subr.mxu0 0.0
  %1266 = vmatpush1.msra.mxu0 %v424
  %1267 = vmatprep.subr.mxu0 0.0
  %1268 = vmatpush1.msra.mxu0 0.0
  %1269 = vmatprep.subr.mxu0 0.0
  %1270 = vmatpush1.msra.mxu0 0.0
  %1271 = vmatprep.subr.mxu0 0.0
  %1272 = vmatpush1.msra.mxu0 0.0
  %1273 = vmatprep.subr.mxu0 0.0
  %1274 = vmatpush1.msra.mxu0 0.0
  %1275 = vmatprep.subr.mxu0 0.0
  %1276 = vmatpush1.msra.mxu0 0.0
  %1277 = vmatprep.subr.mxu0 0.0
  %1278 = vmatpush1.msra.mxu0 0.0
  %1279 = vmatprep.subr.mxu0 0.0
  %1280 = vmatpush1.msra.mxu0 0.0
  %1281 = vmatprep.subr.mxu0 0.0
  %1282 = vmatpush1.msra.mxu0 0.0
  %1283 = vmatprep.subr.mxu0 0.0
  %1284 = vmatpush1.msra.mxu0 0.0
  %1285 = vmatprep.subr.mxu0 0.0
  %1286 = vmatpush1.msra.mxu0 0.0
  %1287 = vmatprep.subr.mxu0 0.0
  %1288 = vmatpush1.msra.mxu0 0.0
  %1289 = vmatprep.subr.mxu0 0.0
  %1290 = vmatpush1.msra.mxu0 0.0
  %1291 = vmatprep.subr.mxu0 0.0
  %1292 = vmatpush1.msra.mxu0 0.0
  %1293 = vmatprep.subr.mxu0 0.0
  %1294 = vmatpush1.msra.mxu0 0.0
  %1295 = vmatprep.subr.mxu0 0.0
  %1296 = vmatpush1.msra.mxu0 0.0
  %1297 = vmatprep.subr.mxu0 0.0
  %1298 = vmatpush1.msra.mxu0 0.0
  %1299 = vmatprep.subr.mxu0 0.0
  %1300 = vmatpush1.msra.mxu0 0.0
  %1301 = vmatprep.subr.mxu0 0.0
  %1302 = vmatpush1.msra.mxu0 0.0
  %1303 = vmatprep.subr.mxu0 0.0
  %1304 = vmatpush1.msra.mxu0 0.0
  %1305 = vmatprep.subr.mxu0 0.0
  %1306 = vmatpush1.msra.mxu0 0.0
  %1307 = vmatprep.subr.mxu0 0.0
  %1308 = vmatpush1.msra.mxu0 0.0
  %1309 = vmatprep.subr.mxu0 0.0
  %1310 = vmatpush1.msra.mxu0 0.0
  %1311 = vmatprep.subr.mxu0 0.0
  %1312 = vmatpush1.msra.mxu0 0.0
  %1313 = vmatprep.subr.mxu0 0.0
  %1314 = vmatpush1.msra.mxu0 0.0
  %1315 = vmatprep.subr.mxu0 0.0
  %1316 = vmatpush1.msra.mxu0 0.0
  %1317 = vmatprep.subr.mxu0 0.0
  %1318 = vmatpush1.msra.mxu0 0.0
  %1319 = vmatprep.subr.mxu0 0.0
  %1320 = vmatpush1.msra.mxu0 0.0
  %1321 = vmatprep.subr.mxu0 0.0
  %1322 = vmatpush1.msra.mxu0 0.0
  %1323 = vmatprep.mubr.f32.mxu0 0.0
  %1324 = vmatmul.mubr.f32.gmra.mrb[0].mxu0 %v1257
  %v1325 = vpop.f32.mrb[0].mxu0
  %v1326 = vadd.f32 %v1253, %v1325
  %v1327 = vpop.f32.mrb[0].mxu0
  %1328 = vdwg.mxu0
  %s1329 = scalar_lea.vmem %s2, 12
  %v1330 = vld [vmem:[%s1329] sm:$0xf]
  %v1332 = vsel %vm40, %v1330, 0
  %1334 = vmatprep.subr.mxu0 0.0
  %1335 = vmatpush1.msra.mxu0 %v37
  %1336 = vmatprep.subr.mxu0 0.0
  %1337 = vmatpush1.msra.mxu0 0.0
  %1338 = vmatprep.subr.mxu0 0.0
  %1339 = vmatpush1.msra.mxu0 0.0
  %1340 = vmatprep.subr.mxu0 0.0
  %1341 = vmatpush1.msra.mxu0 0.0
  %1342 = vmatprep.subr.mxu0 0.0
  %1343 = vmatpush1.msra.mxu0 0.0
  %1344 = vmatprep.subr.mxu0 0.0
  %1345 = vmatpush1.msra.mxu0 0.0
  %1346 = vmatprep.subr.mxu0 0.0
  %1347 = vmatpush1.msra.mxu0 0.0
  %1348 = vmatprep.subr.mxu0 0.0
  %1349 = vmatpush1.msra.mxu0 0.0
  %1350 = vmatprep.subr.mxu0 0.0
  %1351 = vmatpush1.msra.mxu0 0.0
  %1352 = vmatprep.subr.mxu0 0.0
  %1353 = vmatpush1.msra.mxu0 0.0
  %1354 = vmatprep.subr.mxu0 0.0
  %1355 = vmatpush1.msra.mxu0 0.0
  %1356 = vmatprep.subr.mxu0 0.0
  %1357 = vmatpush1.msra.mxu0 0.0
  %1358 = vmatprep.subr.mxu0 0.0
  %1359 = vmatpush1.msra.mxu0 0.0
  %1360 = vmatprep.subr.mxu0 0.0
  %1361 = vmatpush1.msra.mxu0 0.0
  %1362 = vmatprep.subr.mxu0 0.0
  %1363 = vmatpush1.msra.mxu0 0.0
  %1364 = vmatprep.subr.mxu0 0.0
  %1365 = vmatpush1.msra.mxu0 0.0
  %1366 = vmatprep.subr.mxu0 0.0
  %1367 = vmatpush1.msra.mxu0 0.0
  %1368 = vmatprep.subr.mxu0 0.0
  %1369 = vmatpush1.msra.mxu0 0.0
  %1370 = vmatprep.subr.mxu0 0.0
  %1371 = vmatpush1.msra.mxu0 0.0
  %1372 = vmatprep.subr.mxu0 0.0
  %1373 = vmatpush1.msra.mxu0 0.0
  %1374 = vmatprep.subr.mxu0 0.0
  %1375 = vmatpush1.msra.mxu0 0.0
  %1376 = vmatprep.subr.mxu0 0.0
  %1377 = vmatpush1.msra.mxu0 0.0
  %1378 = vmatprep.subr.mxu0 0.0
  %1379 = vmatpush1.msra.mxu0 0.0
  %1380 = vmatprep.subr.mxu0 0.0
  %1381 = vmatpush1.msra.mxu0 0.0
  %1382 = vmatprep.subr.mxu0 0.0
  %1383 = vmatpush1.msra.mxu0 0.0
  %1384 = vmatprep.subr.mxu0 0.0
  %1385 = vmatpush1.msra.mxu0 0.0
  %1386 = vmatprep.subr.mxu0 0.0
  %1387 = vmatpush1.msra.mxu0 0.0
  %1388 = vmatprep.subr.mxu0 0.0
  %1389 = vmatpush1.msra.mxu0 0.0
  %1390 = vmatprep.subr.mxu0 0.0
  %1391 = vmatpush1.msra.mxu0 0.0
  %1392 = vmatprep.subr.mxu0 0.0
  %1393 = vmatpush1.msra.mxu0 0.0
  %1394 = vmatprep.subr.mxu0 0.0
  %1395 = vmatpush1.msra.mxu0 0.0
  %1396 = vmatprep.subr.mxu0 0.0
  %1397 = vmatpush1.msra.mxu0 0.0
  %1398 = vmatprep.mubr.f32.mxu0 0.0
  %1399 = vmatmul.mubr.f32.gmra.mrb[0].mxu0 %v1332
  %v1400 = vpop.f32.mrb[0].mxu0
  %v1401 = vadd.f32 0.0, %v1400
  %v1402 = vpop.f32.mrb[0].mxu0
  %1403 = vdwg.mxu0
  %s1404 = scalar_lea.vmem %s1, 192
  %v1405 = vld [vmem:[%s1404] sm:$0xff]
  %v1406 = vld [vmem:[%s1404 + $0x8] sm:$0xff]
  %v1407 = vld [vmem:[%s1404 + $0x10] sm:$0xff]
  %v1408 = vld [vmem:[%s1404 + $0x18] sm:$0xff]
  %v1410 = vsel %vm198, %v1401, 0
  %1412 = vmatprep.subr.mxu0 0.0
  %1413 = vmatpush1.msra.mxu0 %v1405
  %1414 = vmatprep.subr.mxu0 0.0
  %1415 = vmatpush1.msra.mxu0 %v1406
  %1416 = vmatprep.subr.mxu0 0.0
  %1417 = vmatpush1.msra.mxu0 %v1407
  %1418 = vmatprep.subr.mxu0 0.0
  %1419 = vmatpush1.msra.mxu0 %v1408
  %1420 = vmatprep.subr.mxu0 0.0
  %1421 = vmatpush1.msra.mxu0 0.0
  %1422 = vmatprep.subr.mxu0 0.0
  %1423 = vmatpush1.msra.mxu0 0.0
  %1424 = vmatprep.subr.mxu0 0.0
  %1425 = vmatpush1.msra.mxu0 0.0
  %1426 = vmatprep.subr.mxu0 0.0
  %1427 = vmatpush1.msra.mxu0 0.0
  %1428 = vmatprep.subr.mxu0 0.0
  %1429 = vmatpush1.msra.mxu0 0.0
  %1430 = vmatprep.subr.mxu0 0.0
  %1431 = vmatpush1.msra.mxu0 0.0
  %1432 = vmatprep.subr.mxu0 0.0
  %1433 = vmatpush1.msra.mxu0 0.0
  %1434 = vmatprep.subr.mxu0 0.0
  %1435 = vmatpush1.msra.mxu0 0.0
  %1436 = vmatprep.subr.mxu0 0.0
  %1437 = vmatpush1.msra.mxu0 0.0
  %1438 = vmatprep.subr.mxu0 0.0
  %1439 = vmatpush1.msra.mxu0 0.0
  %1440 = vmatprep.subr.mxu0 0.0
  %1441 = vmatpush1.msra.mxu0 0.0
  %1442 = vmatprep.subr.mxu0 0.0
  %1443 = vmatpush1.msra.mxu0 0.0
  %1444 = vmatprep.subr.mxu0 0.0
  %1445 = vmatpush1.msra.mxu0 0.0
  %1446 = vmatprep.subr.mxu0 0.0
  %1447 = vmatpush1.msra.mxu0 0.0
  %1448 = vmatprep.subr.mxu0 0.0
  %1449 = vmatpush1.msra.mxu0 0.0
  %1450 = vmatprep.subr.mxu0 0.0
  %1451 = vmatpush1.msra.mxu0 0.0
  %1452 = vmatprep.subr.mxu0 0.0
  %1453 = vmatpush1.msra.mxu0 0.0
  %1454 = vmatprep.subr.mxu0 0.0
  %1455 = vmatpush1.msra.mxu0 0.0
  %1456 = vmatprep.subr.mxu0 0.0
  %1457 = vmatpush1.msra.mxu0 0.0
  %1458 = vmatprep.subr.mxu0 0.0
  %1459 = vmatpush1.msra.mxu0 0.0
  %1460 = vmatprep.subr.mxu0 0.0
  %1461 = vmatpush1.msra.mxu0 0.0
  %1462 = vmatprep.subr.mxu0 0.0
  %1463 = vmatpush1.msra.mxu0 0.0
  %1464 = vmatprep.subr.mxu0 0.0
  %1465 = vmatpush1.msra.mxu0 0.0
  %1466 = vmatprep.subr.mxu0 0.0
  %1467 = vmatpush1.msra.mxu0 0.0
  %1468 = vmatprep.subr.mxu0 0.0
  %1469 = vmatpush1.msra.mxu0 0.0
  %1470 = vmatprep.subr.mxu0 0.0
  %1471 = vmatpush1.msra.mxu0 0.0
  %1472 = vmatprep.subr.mxu0 0.0
  %1473 = vmatpush1.msra.mxu0 0.0
  %1474 = vmatprep.subr.mxu0 0.0
  %1475 = vmatpush1.msra.mxu0 0.0
  %1476 = vmatprep.mubr.f32.mxu0 0.0
  %1477 = vmatmul.mubr.f32.gmra.mrb[0].mxu0 %v1410
  %v1478 = vpop.f32.mrb[0].mxu0
  %v1479 = vadd.f32 0.0, %v1478
  %v1480 = vpop.f32.mrb[0].mxu0
  %1481 = vdwg.mxu0
  %v1482 = vadd.f32 %v1326, %v1479
  %s1483 = scalar_lea.vmem %s2, 4
  %v1484 = vld [vmem:[%s1483] sm:$0xf]
  %v1486 = vsel %vm40, %v1484, 0
  %1488 = vmatprep.subr.mxu0 0.0
  %1489 = vmatpush1.msra.mxu0 %v37
  %1490 = vmatprep.subr.mxu0 0.0
  %1491 = vmatpush1.msra.mxu0 0.0
  %1492 = vmatprep.subr.mxu0 0.0
  %1493 = vmatpush1.msra.mxu0 0.0
  %1494 = vmatprep.subr.mxu0 0.0
  %1495 = vmatpush1.msra.mxu0 0.0
  %1496 = vmatprep.subr.mxu0 0.0
  %1497 = vmatpush1.msra.mxu0 0.0
  %1498 = vmatprep.subr.mxu0 0.0
  %1499 = vmatpush1.msra.mxu0 0.0
  %1500 = vmatprep.subr.mxu0 0.0
  %1501 = vmatpush1.msra.mxu0 0.0
  %1502 = vmatprep.subr.mxu0 0.0
  %1503 = vmatpush1.msra.mxu0 0.0
  %1504 = vmatprep.subr.mxu0 0.0
  %1505 = vmatpush1.msra.mxu0 0.0
  %1506 = vmatprep.subr.mxu0 0.0
  %1507 = vmatpush1.msra.mxu0 0.0
  %1508 = vmatprep.subr.mxu0 0.0
  %1509 = vmatpush1.msra.mxu0 0.0
  %1510 = vmatprep.subr.mxu0 0.0
  %1511 = vmatpush1.msra.mxu0 0.0
  %1512 = vmatprep.subr.mxu0 0.0
  %1513 = vmatpush1.msra.mxu0 0.0
  %1514 = vmatprep.subr.mxu0 0.0
  %1515 = vmatpush1.msra.mxu0 0.0
  %1516 = vmatprep.subr.mxu0 0.0
  %1517 = vmatpush1.msra.mxu0 0.0
  %1518 = vmatprep.subr.mxu0 0.0
  %1519 = vmatpush1.msra.mxu0 0.0
  %1520 = vmatprep.subr.mxu0 0.0
  %1521 = vmatpush1.msra.mxu0 0.0
  %1522 = vmatprep.subr.mxu0 0.0
  %1523 = vmatpush1.msra.mxu0 0.0
  %1524 = vmatprep.subr.mxu0 0.0
  %1525 = vmatpush1.msra.mxu0 0.0
  %1526 = vmatprep.subr.mxu0 0.0
  %1527 = vmatpush1.msra.mxu0 0.0
  %1528 = vmatprep.subr.mxu0 0.0
  %1529 = vmatpush1.msra.mxu0 0.0
  %1530 = vmatprep.subr.mxu0 0.0
  %1531 = vmatpush1.msra.mxu0 0.0
  %1532 = vmatprep.subr.mxu0 0.0
  %1533 = vmatpush1.msra.mxu0 0.0
  %1534 = vmatprep.subr.mxu0 0.0
  %1535 = vmatpush1.msra.mxu0 0.0
  %1536 = vmatprep.subr.mxu0 0.0
  %1537 = vmatpush1.msra.mxu0 0.0
  %1538 = vmatprep.subr.mxu0 0.0
  %1539 = vmatpush1.msra.mxu0 0.0
  %1540 = vmatprep.subr.mxu0 0.0
  %1541 = vmatpush1.msra.mxu0 0.0
  %1542 = vmatprep.subr.mxu0 0.0
  %1543 = vmatpush1.msra.mxu0 0.0
  %1544 = vmatprep.subr.mxu0 0.0
  %1545 = vmatpush1.msra.mxu0 0.0
  %1546 = vmatprep.subr.mxu0 0.0
  %1547 = vmatpush1.msra.mxu0 0.0
  %1548 = vmatprep.subr.mxu0 0.0
  %1549 = vmatpush1.msra.mxu0 0.0
  %1550 = vmatprep.subr.mxu0 0.0
  %1551 = vmatpush1.msra.mxu0 0.0
  %1552 = vmatprep.mubr.f32.mxu0 0.0
  %1553 = vmatmul.mubr.f32.gmra.mrb[0].mxu0 %v1486
  %v1554 = vpop.f32.mrb[0].mxu0
  %v1555 = vadd.f32 0.0, %v1554
  %v1556 = vpop.f32.mrb[0].mxu0
  %1557 = vdwg.mxu0
  %s1558 = scalar_lea.vmem %s1, 224
  %v1559 = vld [vmem:[%s1558] sm:$0xff]
  %v1560 = vld [vmem:[%s1558 + $0x8] sm:$0xff]
  %v1561 = vld [vmem:[%s1558 + $0x10] sm:$0xff]
  %v1562 = vld [vmem:[%s1558 + $0x18] sm:$0xff]
  %v1564 = vsel %vm198, %v1555, 0
  %1566 = vmatprep.subr.mxu0 0.0
  %1567 = vmatpush1.msra.mxu0 %v1559
  %1568 = vmatprep.subr.mxu0 0.0
  %1569 = vmatpush1.msra.mxu0 %v1560
  %1570 = vmatprep.subr.mxu0 0.0
  %1571 = vmatpush1.msra.mxu0 %v1561
  %1572 = vmatprep.subr.mxu0 0.0
  %1573 = vmatpush1.msra.mxu0 %v1562
  %1574 = vmatprep.subr.mxu0 0.0
  %1575 = vmatpush1.msra.mxu0 0.0
  %1576 = vmatprep.subr.mxu0 0.0
  %1577 = vmatpush1.msra.mxu0 0.0
  %1578 = vmatprep.subr.mxu0 0.0
  %1579 = vmatpush1.msra.mxu0 0.0
  %1580 = vmatprep.subr.mxu0 0.0
  %1581 = vmatpush1.msra.mxu0 0.0
  %1582 = vmatprep.subr.mxu0 0.0
  %1583 = vmatpush1.msra.mxu0 0.0
  %1584 = vmatprep.subr.mxu0 0.0
  %1585 = vmatpush1.msra.mxu0 0.0
  %1586 = vmatprep.subr.mxu0 0.0
  %1587 = vmatpush1.msra.mxu0 0.0
  %1588 = vmatprep.subr.mxu0 0.0
  %1589 = vmatpush1.msra.mxu0 0.0
  %1590 = vmatprep.subr.mxu0 0.0
  %1591 = vmatpush1.msra.mxu0 0.0
  %1592 = vmatprep.subr.mxu0 0.0
  %1593 = vmatpush1.msra.mxu0 0.0
  %1594 = vmatprep.subr.mxu0 0.0
  %1595 = vmatpush1.msra.mxu0 0.0
  %1596 = vmatprep.subr.mxu0 0.0
  %1597 = vmatpush1.msra.mxu0 0.0
  %1598 = vmatprep.subr.mxu0 0.0
  %1599 = vmatpush1.msra.mxu0 0.0
  %1600 = vmatprep.subr.mxu0 0.0
  %1601 = vmatpush1.msra.mxu0 0.0
  %1602 = vmatprep.subr.mxu0 0.0
  %1603 = vmatpush1.msra.mxu0 0.0
  %1604 = vmatprep.subr.mxu0 0.0
  %1605 = vmatpush1.msra.mxu0 0.0
  %1606 = vmatprep.subr.mxu0 0.0
  %1607 = vmatpush1.msra.mxu0 0.0
  %1608 = vmatprep.subr.mxu0 0.0
  %1609 = vmatpush1.msra.mxu0 0.0
  %1610 = vmatprep.subr.mxu0 0.0
  %1611 = vmatpush1.msra.mxu0 0.0
  %1612 = vmatprep.subr.mxu0 0.0
  %1613 = vmatpush1.msra.mxu0 0.0
  %1614 = vmatprep.subr.mxu0 0.0
  %1615 = vmatpush1.msra.mxu0 0.0
  %1616 = vmatprep.subr.mxu0 0.0
  %1617 = vmatpush1.msra.mxu0 0.0
  %1618 = vmatprep.subr.mxu0 0.0
  %1619 = vmatpush1.msra.mxu0 0.0
  %1620 = vmatprep.subr.mxu0 0.0
  %1621 = vmatpush1.msra.mxu0 0.0
  %1622 = vmatprep.subr.mxu0 0.0
  %1623 = vmatpush1.msra.mxu0 0.0
  %1624 = vmatprep.subr.mxu0 0.0
  %1625 = vmatpush1.msra.mxu0 0.0
  %1626 = vmatprep.subr.mxu0 0.0
  %1627 = vmatpush1.msra.mxu0 0.0
  %1628 = vmatprep.subr.mxu0 0.0
  %1629 = vmatpush1.msra.mxu0 0.0
  %1630 = vmatprep.mubr.f32.mxu0 0.0
  %1631 = vmatmul.mubr.f32.gmra.mrb[0].mxu0 %v1564
  %v1632 = vpop.f32.mrb[0].mxu0
  %v1633 = vadd.f32 0.0, %v1632
  %v1634 = vpop.f32.mrb[0].mxu0
  %1635 = vdwg.mxu0
  %v1636 = vadd.f32 %v1482, %v1633
  %s1637 = scalar_lea.vmem %s2, 40
  %v1638 = vld [vmem:[%s1637] sm:$0xf]
  %s1639 = scalar_lea.vmem %s2, 32
  %v1640 = vld [vmem:[%s1639] sm:$0xf]
  %v1642 = vsel %vm40, %v1640, 0
  %1644 = vmatprep.subr.mxu0 0.0
  %1645 = vmatpush1.msra.mxu0 %v37
  %1646 = vmatprep.subr.mxu0 0.0
  %1647 = vmatpush1.msra.mxu0 0.0
  %1648 = vmatprep.subr.mxu0 0.0
  %1649 = vmatpush1.msra.mxu0 0.0
  %1650 = vmatprep.subr.mxu0 0.0
  %1651 = vmatpush1.msra.mxu0 0.0
  %1652 = vmatprep.subr.mxu0 0.0
  %1653 = vmatpush1.msra.mxu0 0.0
  %1654 = vmatprep.subr.mxu0 0.0
  %1655 = vmatpush1.msra.mxu0 0.0
  %1656 = vmatprep.subr.mxu0 0.0
  %1657 = vmatpush1.msra.mxu0 0.0
  %1658 = vmatprep.subr.mxu0 0.0
  %1659 = vmatpush1.msra.mxu0 0.0
  %1660 = vmatprep.subr.mxu0 0.0
  %1661 = vmatpush1.msra.mxu0 0.0
  %1662 = vmatprep.subr.mxu0 0.0
  %1663 = vmatpush1.msra.mxu0 0.0
  %1664 = vmatprep.subr.mxu0 0.0
  %1665 = vmatpush1.msra.mxu0 0.0
  %1666 = vmatprep.subr.mxu0 0.0
  %1667 = vmatpush1.msra.mxu0 0.0
  %1668 = vmatprep.subr.mxu0 0.0
  %1669 = vmatpush1.msra.mxu0 0.0
  %1670 = vmatprep.subr.mxu0 0.0
  %1671 = vmatpush1.msra.mxu0 0.0
  %1672 = vmatprep.subr.mxu0 0.0
  %1673 = vmatpush1.msra.mxu0 0.0
  %1674 = vmatprep.subr.mxu0 0.0
  %1675 = vmatpush1.msra.mxu0 0.0
  %1676 = vmatprep.subr.mxu0 0.0
  %1677 = vmatpush1.msra.mxu0 0.0
  %1678 = vmatprep.subr.mxu0 0.0
  %1679 = vmatpush1.msra.mxu0 0.0
  %1680 = vmatprep.subr.mxu0 0.0
  %1681 = vmatpush1.msra.mxu0 0.0
  %1682 = vmatprep.subr.mxu0 0.0
  %1683 = vmatpush1.msra.mxu0 0.0
  %1684 = vmatprep.subr.mxu0 0.0
  %1685 = vmatpush1.msra.mxu0 0.0
  %1686 = vmatprep.subr.mxu0 0.0
  %1687 = vmatpush1.msra.mxu0 0.0
  %1688 = vmatprep.subr.mxu0 0.0
  %1689 = vmatpush1.msra.mxu0 0.0
  %1690 = vmatprep.subr.mxu0 0.0
  %1691 = vmatpush1.msra.mxu0 0.0
  %1692 = vmatprep.subr.mxu0 0.0
  %1693 = vmatpush1.msra.mxu0 0.0
  %1694 = vmatprep.subr.mxu0 0.0
  %1695 = vmatpush1.msra.mxu0 0.0
  %1696 = vmatprep.subr.mxu0 0.0
  %1697 = vmatpush1.msra.mxu0 0.0
  %1698 = vmatprep.subr.mxu0 0.0
  %1699 = vmatpush1.msra.mxu0 0.0
  %1700 = vmatprep.subr.mxu0 0.0
  %1701 = vmatpush1.msra.mxu0 0.0
  %1702 = vmatprep.subr.mxu0 0.0
  %1703 = vmatpush1.msra.mxu0 0.0
  %1704 = vmatprep.subr.mxu0 0.0
  %1705 = vmatpush1.msra.mxu0 0.0
  %1706 = vmatprep.subr.mxu0 0.0
  %1707 = vmatpush1.msra.mxu0 0.0
  %1708 = vmatprep.mubr.f32.mxu0 0.0
  %1709 = vmatmul.mubr.f32.gmra.mrb[0].mxu0 %v1642
  %v1710 = vpop.f32.mrb[0].mxu0
  %v1711 = vadd.f32 0.0, %v1710
  %v1712 = vpop.f32.mrb[0].mxu0
  %1713 = vdwg.mxu0
  %v1715 = vsel %vm198, %v1711, 0
  %1717 = vmatprep.subr.mxu0 0.0
  %1718 = vmatpush1.msra.mxu0 %v1028
  %1719 = vmatprep.subr.mxu0 0.0
  %1720 = vmatpush1.msra.mxu0 %v1029
  %1721 = vmatprep.subr.mxu0 0.0
  %1722 = vmatpush1.msra.mxu0 %v1030
  %1723 = vmatprep.subr.mxu0 0.0
  %1724 = vmatpush1.msra.mxu0 %v1031
  %1725 = vmatprep.subr.mxu0 0.0
  %1726 = vmatpush1.msra.mxu0 0.0
  %1727 = vmatprep.subr.mxu0 0.0
  %1728 = vmatpush1.msra.mxu0 0.0
  %1729 = vmatprep.subr.mxu0 0.0
  %1730 = vmatpush1.msra.mxu0 0.0
  %1731 = vmatprep.subr.mxu0 0.0
  %1732 = vmatpush1.msra.mxu0 0.0
  %1733 = vmatprep.subr.mxu0 0.0
  %1734 = vmatpush1.msra.mxu0 0.0
  %1735 = vmatprep.subr.mxu0 0.0
  %1736 = vmatpush1.msra.mxu0 0.0
  %1737 = vmatprep.subr.mxu0 0.0
  %1738 = vmatpush1.msra.mxu0 0.0
  %1739 = vmatprep.subr.mxu0 0.0
  %1740 = vmatpush1.msra.mxu0 0.0
  %1741 = vmatprep.subr.mxu0 0.0
  %1742 = vmatpush1.msra.mxu0 0.0
  %1743 = vmatprep.subr.mxu0 0.0
  %1744 = vmatpush1.msra.mxu0 0.0
  %1745 = vmatprep.subr.mxu0 0.0
  %1746 = vmatpush1.msra.mxu0 0.0
  %1747 = vmatprep.subr.mxu0 0.0
  %1748 = vmatpush1.msra.mxu0 0.0
  %1749 = vmatprep.subr.mxu0 0.0
  %1750 = vmatpush1.msra.mxu0 0.0
  %1751 = vmatprep.subr.mxu0 0.0
  %1752 = vmatpush1.msra.mxu0 0.0
  %1753 = vmatprep.subr.mxu0 0.0
  %1754 = vmatpush1.msra.mxu0 0.0
  %1755 = vmatprep.subr.mxu0 0.0
  %1756 = vmatpush1.msra.mxu0 0.0
  %1757 = vmatprep.subr.mxu0 0.0
  %1758 = vmatpush1.msra.mxu0 0.0
  %1759 = vmatprep.subr.mxu0 0.0
  %1760 = vmatpush1.msra.mxu0 0.0
  %1761 = vmatprep.subr.mxu0 0.0
  %1762 = vmatpush1.msra.mxu0 0.0
  %1763 = vmatprep.subr.mxu0 0.0
  %1764 = vmatpush1.msra.mxu0 0.0
  %1765 = vmatprep.subr.mxu0 0.0
  %1766 = vmatpush1.msra.mxu0 0.0
  %1767 = vmatprep.subr.mxu0 0.0
  %1768 = vmatpush1.msra.mxu0 0.0
  %1769 = vmatprep.subr.mxu0 0.0
  %1770 = vmatpush1.msra.mxu0 0.0
  %1771 = vmatprep.subr.mxu0 0.0
  %1772 = vmatpush1.msra.mxu0 0.0
  %1773 = vmatprep.subr.mxu0 0.0
  %1774 = vmatpush1.msra.mxu0 0.0
  %1775 = vmatprep.subr.mxu0 0.0
  %1776 = vmatpush1.msra.mxu0 0.0
  %1777 = vmatprep.subr.mxu0 0.0
  %1778 = vmatpush1.msra.mxu0 0.0
  %1779 = vmatprep.subr.mxu0 0.0
  %1780 = vmatpush1.msra.mxu0 0.0
  %1781 = vmatprep.mubr.f32.mxu0 0.0
  %1782 = vmatmul.mubr.f32.gmra.mrb[0].mxu0 %v1715
  %v1783 = vpop.f32.mrb[0].mxu0
  %v1784 = vadd.f32 0.0, %v1783
  %v1785 = vpop.f32.mrb[0].mxu0
  %1786 = vdwg.mxu0
  %v1788 = vsel %vm40, %v1638, 0
  %1790 = vmatprep.subr.mxu0 0.0
  %1791 = vmatpush1.msra.mxu0 %v37
  %1792 = vmatprep.subr.mxu0 0.0
  %1793 = vmatpush1.msra.mxu0 0.0
  %1794 = vmatprep.subr.mxu0 0.0
  %1795 = vmatpush1.msra.mxu0 0.0
  %1796 = vmatprep.subr.mxu0 0.0
  %1797 = vmatpush1.msra.mxu0 0.0
  %1798 = vmatprep.subr.mxu0 0.0
  %1799 = vmatpush1.msra.mxu0 0.0
  %1800 = vmatprep.subr.mxu0 0.0
  %1801 = vmatpush1.msra.mxu0 0.0
  %1802 = vmatprep.subr.mxu0 0.0
  %1803 = vmatpush1.msra.mxu0 0.0
  %1804 = vmatprep.subr.mxu0 0.0
  %1805 = vmatpush1.msra.mxu0 0.0
  %1806 = vmatprep.subr.mxu0 0.0
  %1807 = vmatpush1.msra.mxu0 0.0
  %1808 = vmatprep.subr.mxu0 0.0
  %1809 = vmatpush1.msra.mxu0 0.0
  %1810 = vmatprep.subr.mxu0 0.0
  %1811 = vmatpush1.msra.mxu0 0.0
  %1812 = vmatprep.subr.mxu0 0.0
  %1813 = vmatpush1.msra.mxu0 0.0
  %1814 = vmatprep.subr.mxu0 0.0
  %1815 = vmatpush1.msra.mxu0 0.0
  %1816 = vmatprep.subr.mxu0 0.0
  %1817 = vmatpush1.msra.mxu0 0.0
  %1818 = vmatprep.subr.mxu0 0.0
  %1819 = vmatpush1.msra.mxu0 0.0
  %1820 = vmatprep.subr.mxu0 0.0
  %1821 = vmatpush1.msra.mxu0 0.0
  %1822 = vmatprep.subr.mxu0 0.0
  %1823 = vmatpush1.msra.mxu0 0.0
  %1824 = vmatprep.subr.mxu0 0.0
  %1825 = vmatpush1.msra.mxu0 0.0
  %1826 = vmatprep.subr.mxu0 0.0
  %1827 = vmatpush1.msra.mxu0 0.0
  %1828 = vmatprep.subr.mxu0 0.0
  %1829 = vmatpush1.msra.mxu0 0.0
  %1830 = vmatprep.subr.mxu0 0.0
  %1831 = vmatpush1.msra.mxu0 0.0
  %1832 = vmatprep.subr.mxu0 0.0
  %1833 = vmatpush1.msra.mxu0 0.0
  %1834 = vmatprep.subr.mxu0 0.0
  %1835 = vmatpush1.msra.mxu0 0.0
  %1836 = vmatprep.subr.mxu0 0.0
  %1837 = vmatpush1.msra.mxu0 0.0
  %1838 = vmatprep.subr.mxu0 0.0
  %1839 = vmatpush1.msra.mxu0 0.0
  %1840 = vmatprep.subr.mxu0 0.0
  %1841 = vmatpush1.msra.mxu0 0.0
  %1842 = vmatprep.subr.mxu0 0.0
  %1843 = vmatpush1.msra.mxu0 0.0
  %1844 = vmatprep.subr.mxu0 0.0
  %1845 = vmatpush1.msra.mxu0 0.0
  %1846 = vmatprep.subr.mxu0 0.0
  %1847 = vmatpush1.msra.mxu0 0.0
  %1848 = vmatprep.subr.mxu0 0.0
  %1849 = vmatpush1.msra.mxu0 0.0
  %1850 = vmatprep.subr.mxu0 0.0
  %1851 = vmatpush1.msra.mxu0 0.0
  %1852 = vmatprep.subr.mxu0 0.0
  %1853 = vmatpush1.msra.mxu0 0.0
  %1854 = vmatprep.mubr.f32.mxu0 0.0
  %1855 = vmatmul.mubr.f32.gmra.mrb[0].mxu0 %v1788
  %v1856 = vpop.f32.mrb[0].mxu0
  %v1857 = vadd.f32 %v1784, %v1856
  %v1858 = vpop.f32.mrb[0].mxu0
  %1859 = vdwg.mxu0
  %s1860 = scalar_lea.vmem %s2, 8
  %v1861 = vld [vmem:[%s1860] sm:$0xf]
  %v1863 = vsel %vm40, %v1861, 0
  %1865 = vmatprep.subr.mxu0 0.0
  %1866 = vmatpush1.msra.mxu0 %v37
  %1867 = vmatprep.subr.mxu0 0.0
  %1868 = vmatpush1.msra.mxu0 0.0
  %1869 = vmatprep.subr.mxu0 0.0
  %1870 = vmatpush1.msra.mxu0 0.0
  %1871 = vmatprep.subr.mxu0 0.0
  %1872 = vmatpush1.msra.mxu0 0.0
  %1873 = vmatprep.subr.mxu0 0.0
  %1874 = vmatpush1.msra.mxu0 0.0
  %1875 = vmatprep.subr.mxu0 0.0
  %1876 = vmatpush1.msra.mxu0 0.0
  %1877 = vmatprep.subr.mxu0 0.0
  %1878 = vmatpush1.msra.mxu0 0.0
  %1879 = vmatprep.subr.mxu0 0.0
  %1880 = vmatpush1.msra.mxu0 0.0
  %1881 = vmatprep.subr.mxu0 0.0
  %1882 = vmatpush1.msra.mxu0 0.0
  %1883 = vmatprep.subr.mxu0 0.0
  %1884 = vmatpush1.msra.mxu0 0.0
  %1885 = vmatprep.subr.mxu0 0.0
  %1886 = vmatpush1.msra.mxu0 0.0
  %1887 = vmatprep.subr.mxu0 0.0
  %1888 = vmatpush1.msra.mxu0 0.0
  %1889 = vmatprep.subr.mxu0 0.0
  %1890 = vmatpush1.msra.mxu0 0.0
  %1891 = vmatprep.subr.mxu0 0.0
  %1892 = vmatpush1.msra.mxu0 0.0
  %1893 = vmatprep.subr.mxu0 0.0
  %1894 = vmatpush1.msra.mxu0 0.0
  %1895 = vmatprep.subr.mxu0 0.0
  %1896 = vmatpush1.msra.mxu0 0.0
  %1897 = vmatprep.subr.mxu0 0.0
  %1898 = vmatpush1.msra.mxu0 0.0
  %1899 = vmatprep.subr.mxu0 0.0
  %1900 = vmatpush1.msra.mxu0 0.0
  %1901 = vmatprep.subr.mxu0 0.0
  %1902 = vmatpush1.msra.mxu0 0.0
  %1903 = vmatprep.subr.mxu0 0.0
  %1904 = vmatpush1.msra.mxu0 0.0
  %1905 = vmatprep.subr.mxu0 0.0
  %1906 = vmatpush1.msra.mxu0 0.0
  %1907 = vmatprep.subr.mxu0 0.0
  %1908 = vmatpush1.msra.mxu0 0.0
  %1909 = vmatprep.subr.mxu0 0.0
  %1910 = vmatpush1.msra.mxu0 0.0
  %1911 = vmatprep.subr.mxu0 0.0
  %1912 = vmatpush1.msra.mxu0 0.0
  %1913 = vmatprep.subr.mxu0 0.0
  %1914 = vmatpush1.msra.mxu0 0.0
  %1915 = vmatprep.subr.mxu0 0.0
  %1916 = vmatpush1.msra.mxu0 0.0
  %1917 = vmatprep.subr.mxu0 0.0
  %1918 = vmatpush1.msra.mxu0 0.0
  %1919 = vmatprep.subr.mxu0 0.0
  %1920 = vmatpush1.msra.mxu0 0.0
  %1921 = vmatprep.subr.mxu0 0.0
  %1922 = vmatpush1.msra.mxu0 0.0
  %1923 = vmatprep.subr.mxu0 0.0
  %1924 = vmatpush1.msra.mxu0 0.0
  %1925 = vmatprep.subr.mxu0 0.0
  %1926 = vmatpush1.msra.mxu0 0.0
  %1927 = vmatprep.subr.mxu0 0.0
  %1928 = vmatpush1.msra.mxu0 0.0
  %1929 = vmatprep.mubr.f32.mxu0 0.0
  %1930 = vmatmul.mubr.f32.gmra.mrb[0].mxu0 %v1863
  %v1931 = vpop.f32.mrb[0].mxu0
  %v1932 = vadd.f32 0.0, %v1931
  %v1933 = vpop.f32.mrb[0].mxu0
  %1934 = vdwg.mxu0
  %v1936 = vsel %vm198, %v1932, 0
  %1938 = vmatprep.subr.mxu0 0.0
  %1939 = vmatpush1.msra.mxu0 %v1559
  %1940 = vmatprep.subr.mxu0 0.0
  %1941 = vmatpush1.msra.mxu0 %v1560
  %1942 = vmatprep.subr.mxu0 0.0
  %1943 = vmatpush1.msra.mxu0 %v1561
  %1944 = vmatprep.subr.mxu0 0.0
  %1945 = vmatpush1.msra.mxu0 %v1562
  %1946 = vmatprep.subr.mxu0 0.0
  %1947 = vmatpush1.msra.mxu0 0.0
  %1948 = vmatprep.subr.mxu0 0.0
  %1949 = vmatpush1.msra.mxu0 0.0
  %1950 = vmatprep.subr.mxu0 0.0
  %1951 = vmatpush1.msra.mxu0 0.0
  %1952 = vmatprep.subr.mxu0 0.0
  %1953 = vmatpush1.msra.mxu0 0.0
  %1954 = vmatprep.subr.mxu0 0.0
  %1955 = vmatpush1.msra.mxu0 0.0
  %1956 = vmatprep.subr.mxu0 0.0
  %1957 = vmatpush1.msra.mxu0 0.0
  %1958 = vmatprep.subr.mxu0 0.0
  %1959 = vmatpush1.msra.mxu0 0.0
  %1960 = vmatprep.subr.mxu0 0.0
  %1961 = vmatpush1.msra.mxu0 0.0
  %1962 = vmatprep.subr.mxu0 0.0
  %1963 = vmatpush1.msra.mxu0 0.0
  %1964 = vmatprep.subr.mxu0 0.0
  %1965 = vmatpush1.msra.mxu0 0.0
  %1966 = vmatprep.subr.mxu0 0.0
  %1967 = vmatpush1.msra.mxu0 0.0
  %1968 = vmatprep.subr.mxu0 0.0
  %1969 = vmatpush1.msra.mxu0 0.0
  %1970 = vmatprep.subr.mxu0 0.0
  %1971 = vmatpush1.msra.mxu0 0.0
  %1972 = vmatprep.subr.mxu0 0.0
  %1973 = vmatpush1.msra.mxu0 0.0
  %1974 = vmatprep.subr.mxu0 0.0
  %1975 = vmatpush1.msra.mxu0 0.0
  %1976 = vmatprep.subr.mxu0 0.0
  %1977 = vmatpush1.msra.mxu0 0.0
  %1978 = vmatprep.subr.mxu0 0.0
  %1979 = vmatpush1.msra.mxu0 0.0
  %1980 = vmatprep.subr.mxu0 0.0
  %1981 = vmatpush1.msra.mxu0 0.0
  %1982 = vmatprep.subr.mxu0 0.0
  %1983 = vmatpush1.msra.mxu0 0.0
  %1984 = vmatprep.subr.mxu0 0.0
  %1985 = vmatpush1.msra.mxu0 0.0
  %1986 = vmatprep.subr.mxu0 0.0
  %1987 = vmatpush1.msra.mxu0 0.0
  %1988 = vmatprep.subr.mxu0 0.0
  %1989 = vmatpush1.msra.mxu0 0.0
  %1990 = vmatprep.subr.mxu0 0.0
  %1991 = vmatpush1.msra.mxu0 0.0
  %1992 = vmatprep.subr.mxu0 0.0
  %1993 = vmatpush1.msra.mxu0 0.0
  %1994 = vmatprep.subr.mxu0 0.0
  %1995 = vmatpush1.msra.mxu0 0.0
  %1996 = vmatprep.subr.mxu0 0.0
  %1997 = vmatpush1.msra.mxu0 0.0
  %1998 = vmatprep.subr.mxu0 0.0
  %1999 = vmatpush1.msra.mxu0 0.0
  %2000 = vmatprep.subr.mxu0 0.0
  %2001 = vmatpush1.msra.mxu0 0.0
  %2002 = vmatprep.mubr.f32.mxu0 0.0
  %2003 = vmatmul.mubr.f32.gmra.mrb[0].mxu0 %v1936
  %v2004 = vpop.f32.mrb[0].mxu0
  %v2005 = vadd.f32 0.0, %v2004
  %v2006 = vpop.f32.mrb[0].mxu0
  %2007 = vdwg.mxu0
  %v2008 = vadd.f32 %v1857, %v2005
  %v2009 = vld [vmem:[%s2] sm:$0xf]
  %v2011 = vsel %vm40, %v2009, 0
  %2013 = vmatprep.subr.mxu0 0.0
  %2014 = vmatpush1.msra.mxu0 %v37
  %2015 = vmatprep.subr.mxu0 0.0
  %2016 = vmatpush1.msra.mxu0 0.0
  %2017 = vmatprep.subr.mxu0 0.0
  %2018 = vmatpush1.msra.mxu0 0.0
  %2019 = vmatprep.subr.mxu0 0.0
  %2020 = vmatpush1.msra.mxu0 0.0
  %2021 = vmatprep.subr.mxu0 0.0
  %2022 = vmatpush1.msra.mxu0 0.0
  %2023 = vmatprep.subr.mxu0 0.0
  %2024 = vmatpush1.msra.mxu0 0.0
  %2025 = vmatprep.subr.mxu0 0.0
  %2026 = vmatpush1.msra.mxu0 0.0
  %2027 = vmatprep.subr.mxu0 0.0
  %2028 = vmatpush1.msra.mxu0 0.0
  %2029 = vmatprep.subr.mxu0 0.0
  %2030 = vmatpush1.msra.mxu0 0.0
  %2031 = vmatprep.subr.mxu0 0.0
  %2032 = vmatpush1.msra.mxu0 0.0
  %2033 = vmatprep.subr.mxu0 0.0
  %2034 = vmatpush1.msra.mxu0 0.0
  %2035 = vmatprep.subr.mxu0 0.0
  %2036 = vmatpush1.msra.mxu0 0.0
  %2037 = vmatprep.subr.mxu0 0.0
  %2038 = vmatpush1.msra.mxu0 0.0
  %2039 = vmatprep.subr.mxu0 0.0
  %2040 = vmatpush1.msra.mxu0 0.0
  %2041 = vmatprep.subr.mxu0 0.0
  %2042 = vmatpush1.msra.mxu0 0.0
  %2043 = vmatprep.subr.mxu0 0.0
  %2044 = vmatpush1.msra.mxu0 0.0
  %2045 = vmatprep.subr.mxu0 0.0
  %2046 = vmatpush1.msra.mxu0 0.0
  %2047 = vmatprep.subr.mxu0 0.0
  %2048 = vmatpush1.msra.mxu0 0.0
  %2049 = vmatprep.subr.mxu0 0.0
  %2050 = vmatpush1.msra.mxu0 0.0
  %2051 = vmatprep.subr.mxu0 0.0
  %2052 = vmatpush1.msra.mxu0 0.0
  %2053 = vmatprep.subr.mxu0 0.0
  %2054 = vmatpush1.msra.mxu0 0.0
  %2055 = vmatprep.subr.mxu0 0.0
  %2056 = vmatpush1.msra.mxu0 0.0
  %2057 = vmatprep.subr.mxu0 0.0
  %2058 = vmatpush1.msra.mxu0 0.0
  %2059 = vmatprep.subr.mxu0 0.0
  %2060 = vmatpush1.msra.mxu0 0.0
  %2061 = vmatprep.subr.mxu0 0.0
  %2062 = vmatpush1.msra.mxu0 0.0
  %2063 = vmatprep.subr.mxu0 0.0
  %2064 = vmatpush1.msra.mxu0 0.0
  %2065 = vmatprep.subr.mxu0 0.0
  %2066 = vmatpush1.msra.mxu0 0.0
  %2067 = vmatprep.subr.mxu0 0.0
  %2068 = vmatpush1.msra.mxu0 0.0
  %2069 = vmatprep.subr.mxu0 0.0
  %2070 = vmatpush1.msra.mxu0 0.0
  %2071 = vmatprep.subr.mxu0 0.0
  %2072 = vmatpush1.msra.mxu0 0.0
  %2073 = vmatprep.subr.mxu0 0.0
  %2074 = vmatpush1.msra.mxu0 0.0
  %2075 = vmatprep.subr.mxu0 0.0
  %2076 = vmatpush1.msra.mxu0 0.0
  %2077 = vmatprep.mubr.f32.mxu0 0.0
  %2078 = vmatmul.mubr.f32.gmra.mrb[0].mxu0 %v2011
  %v2079 = vpop.f32.mrb[0].mxu0
  %v2080 = vadd.f32 0.0, %v2079
  %v2081 = vpop.f32.mrb[0].mxu0
  %2082 = vdwg.mxu0
  %s2083 = scalar_lea.vmem %s1, 256
  %v2084 = vld [vmem:[%s2083] sm:$0xff]
  %v2085 = vld [vmem:[%s2083 + $0x8] sm:$0xff]
  %v2086 = vld [vmem:[%s2083 + $0x10] sm:$0xff]
  %v2087 = vld [vmem:[%s2083 + $0x18] sm:$0xff]
  %v2089 = vsel %vm198, %v2080, 0
  %2091 = vmatprep.subr.mxu0 0.0
  %2092 = vmatpush1.msra.mxu0 %v2084
  %2093 = vmatprep.subr.mxu0 0.0
  %2094 = vmatpush1.msra.mxu0 %v2085
  %2095 = vmatprep.subr.mxu0 0.0
  %2096 = vmatpush1.msra.mxu0 %v2086
  %2097 = vmatprep.subr.mxu0 0.0
  %2098 = vmatpush1.msra.mxu0 %v2087
  %2099 = vmatprep.subr.mxu0 0.0
  %2100 = vmatpush1.msra.mxu0 0.0
  %2101 = vmatprep.subr.mxu0 0.0
  %2102 = vmatpush1.msra.mxu0 0.0
  %2103 = vmatprep.subr.mxu0 0.0
  %2104 = vmatpush1.msra.mxu0 0.0
  %2105 = vmatprep.subr.mxu0 0.0
  %2106 = vmatpush1.msra.mxu0 0.0
  %2107 = vmatprep.subr.mxu0 0.0
  %2108 = vmatpush1.msra.mxu0 0.0
  %2109 = vmatprep.subr.mxu0 0.0
  %2110 = vmatpush1.msra.mxu0 0.0
  %2111 = vmatprep.subr.mxu0 0.0
  %2112 = vmatpush1.msra.mxu0 0.0
  %2113 = vmatprep.subr.mxu0 0.0
  %2114 = vmatpush1.msra.mxu0 0.0
  %2115 = vmatprep.subr.mxu0 0.0
  %2116 = vmatpush1.msra.mxu0 0.0
  %2117 = vmatprep.subr.mxu0 0.0
  %2118 = vmatpush1.msra.mxu0 0.0
  %2119 = vmatprep.subr.mxu0 0.0
  %2120 = vmatpush1.msra.mxu0 0.0
  %2121 = vmatprep.subr.mxu0 0.0
  %2122 = vmatpush1.msra.mxu0 0.0
  %2123 = vmatprep.subr.mxu0 0.0
  %2124 = vmatpush1.msra.mxu0 0.0
  %2125 = vmatprep.subr.mxu0 0.0
  %2126 = vmatpush1.msra.mxu0 0.0
  %2127 = vmatprep.subr.mxu0 0.0
  %2128 = vmatpush1.msra.mxu0 0.0
  %2129 = vmatprep.subr.mxu0 0.0
  %2130 = vmatpush1.msra.mxu0 0.0
  %2131 = vmatprep.subr.mxu0 0.0
  %2132 = vmatpush1.msra.mxu0 0.0
  %2133 = vmatprep.subr.mxu0 0.0
  %2134 = vmatpush1.msra.mxu0 0.0
  %2135 = vmatprep.subr.mxu0 0.0
  %2136 = vmatpush1.msra.mxu0 0.0
  %2137 = vmatprep.subr.mxu0 0.0
  %2138 = vmatpush1.msra.mxu0 0.0
  %2139 = vmatprep.subr.mxu0 0.0
  %2140 = vmatpush1.msra.mxu0 0.0
  %2141 = vmatprep.subr.mxu0 0.0
  %2142 = vmatpush1.msra.mxu0 0.0
  %2143 = vmatprep.subr.mxu0 0.0
  %2144 = vmatpush1.msra.mxu0 0.0
  %2145 = vmatprep.subr.mxu0 0.0
  %2146 = vmatpush1.msra.mxu0 0.0
  %2147 = vmatprep.subr.mxu0 0.0
  %2148 = vmatpush1.msra.mxu0 0.0
  %2149 = vmatprep.subr.mxu0 0.0
  %2150 = vmatpush1.msra.mxu0 0.0
  %2151 = vmatprep.subr.mxu0 0.0
  %2152 = vmatpush1.msra.mxu0 0.0
  %2153 = vmatprep.subr.mxu0 0.0
  %2154 = vmatpush1.msra.mxu0 0.0
  %2155 = vmatprep.mubr.f32.mxu0 0.0
  %2156 = vmatmul.mubr.f32.gmra.mrb[0].mxu0 %v2089
  %v2157 = vpop.f32.mrb[0].mxu0
  %v2158 = vadd.f32 0.0, %v2157
  %v2159 = vpop.f32.mrb[0].mxu0
  %2160 = vdwg.mxu0
  %v2161 = vadd.f32 %v2008, %v2158
  %v2162 = vadd.f32 %v574, %v1105
  %v2163 = vadd.f32 %v2162, %v1636
  %v2164 = vadd.f32 %v2163, %v2161
  %vm2165 = vcmask 257024
  %v2166 = vsel %vm2165, %v2164, 0.0
  %2167 = vadd.xlane.f32.xlu0 %v2166
  %v2168 = vpop.xlane.xlu0 %2167
  %v2169 = vmul.f32 %v2168, 0.0078125
  %v2170 = vsub.f32 %v574, %v2169
  %v2171 = vmul.f32 %v2170, %v2170
  %v2172 = vsel %vm2165, %v2171, 0.0
  %2173 = vadd.xlane.f32.xlu0 %v2172
  %v2174 = vpop.xlane.xlu0 %2173
  %v2175 = vsub.f32 %v1105, %v2169
  %v2176 = vmul.f32 %v2175, %v2175
  %v2177 = vsel %vm2165, %v2176, 0.0
  %2178 = vadd.xlane.f32.xlu0 %v2177
  %v2179 = vpop.xlane.xlu0 %2178
  %v2180 = vadd.f32 %v2174, %v2179
  %v2181 = vsub.f32 %v1636, %v2169
  %v2182 = vmul.f32 %v2181, %v2181
  %v2183 = vsel %vm2165, %v2182, 0.0
  %2184 = vadd.xlane.f32.xlu0 %v2183
  %v2185 = vpop.xlane.xlu0 %2184
  %v2186 = vadd.f32 %v2180, %v2185
  %v2187 = vsub.f32 %v2161, %v2169
  %v2188 = vmul.f32 %v2187, %v2187
  %v2189 = vsel %vm2165, %v2188, 0.0
  %2190 = vadd.xlane.f32.xlu0 %v2189
  %v2191 = vpop.xlane.xlu0 %2190
  %v2192 = vadd.f32 %v2186, %v2191
  %v2193 = vmul.f32 %v2192, 0.0078125
  %v2194 = vld [vmem:[%s3] sm:$0xf]
  %v2195 = vadd.f32 %v2193, 1e-05
  %v2196 = vrsqrt.pop %v2195
  %v2197 = vmul.f32 %v2194, %v2196
  %v2198 = vld [vmem:[%s4] sm:$0xf]
  %v2199 = vmul.f32 %v2169, %v2197
  %v2200 = vsub.f32 %v2198, %v2199
  %2202 = vset.pattern.permute.xlu0 0
  %2203 = vperm.xlu0 %2202, %v2197
  %v2204 = vpop.permute.xlu0 %2203
  %v2206 = vmul.f32 %v574, %v2204
  %2208 = vset.pattern.permute.xlu0 0
  %2209 = vperm.xlu0 %2208, %v2200
  %v2210 = vpop.permute.xlu0 %2209
  %v2212 = vadd.f32 %v2206, %v2210
  %v2213 = vmax.f32 %v2212, 0.0
  %v2214 = vmul.f32 %v1105, %v2204
  %v2215 = vadd.f32 %v2214, %v2210
  %v2216 = vmax.f32 %v2215, 0.0
  %v2217 = vmul.f32 %v1636, %v2204
  %v2218 = vadd.f32 %v2217, %v2210
  %v2219 = vmax.f32 %v2218, 0.0
  %v2220 = vmul.f32 %v2161, %v2204
  %v2221 = vadd.f32 %v2220, %v2210
  %v2222 = vmax.f32 %v2221, 0.0
  %s2223 = scalar_lea.vmem %s5, 30
  %v2224 = vld [vmem:[%s2223] sm:$0x3]
  %vm2225 = vcmask 31744
  %v2227 = vsel %vm2225, %v2224, 0
  %vm2229 = vcmask 1043456
  %v2231 = vsel %vm2229, %v2222, 0
  %2233 = vmatprep.subr.mxu0 0.0
  %2234 = vmatpush1.msra.mxu0 %v2231
  %2235 = vmatprep.subr.mxu0 0.0
  %2236 = vmatpush1.msra.mxu0 0.0
  %2237 = vmatprep.subr.mxu0 0.0
  %2238 = vmatpush1.msra.mxu0 0.0
  %2239 = vmatprep.subr.mxu0 0.0
  %2240 = vmatpush1.msra.mxu0 0.0
  %2241 = vmatprep.subr.mxu0 0.0
  %2242 = vmatpush1.msra.mxu0 0.0
  %2243 = vmatprep.subr.mxu0 0.0
  %2244 = vmatpush1.msra.mxu0 0.0
  %2245 = vmatprep.subr.mxu0 0.0
  %2246 = vmatpush1.msra.mxu0 0.0
  %2247 = vmatprep.subr.mxu0 0.0
  %2248 = vmatpush1.msra.mxu0 0.0
  %2249 = vmatprep.subr.mxu0 0.0
  %2250 = vmatpush1.msra.mxu0 0.0
  %2251 = vmatprep.subr.mxu0 0.0
  %2252 = vmatpush1.msra.mxu0 0.0
  %2253 = vmatprep.subr.mxu0 0.0
  %2254 = vmatpush1.msra.mxu0 0.0
  %2255 = vmatprep.subr.mxu0 0.0
  %2256 = vmatpush1.msra.mxu0 0.0
  %2257 = vmatprep.subr.mxu0 0.0
  %2258 = vmatpush1.msra.mxu0 0.0
  %2259 = vmatprep.subr.mxu0 0.0
  %2260 = vmatpush1.msra.mxu0 0.0
  %2261 = vmatprep.subr.mxu0 0.0
  %2262 = vmatpush1.msra.mxu0 0.0
  %2263 = vmatprep.subr.mxu0 0.0
  %2264 = vmatpush1.msra.mxu0 0.0
  %2265 = vmatprep.subr.mxu0 0.0
  %2266 = vmatpush1.msra.mxu0 0.0
  %2267 = vmatprep.subr.mxu0 0.0
  %2268 = vmatpush1.msra.mxu0 0.0
  %2269 = vmatprep.subr.mxu0 0.0
  %2270 = vmatpush1.msra.mxu0 0.0
  %2271 = vmatprep.subr.mxu0 0.0
  %2272 = vmatpush1.msra.mxu0 0.0
  %2273 = vmatprep.subr.mxu0 0.0
  %2274 = vmatpush1.msra.mxu0 0.0
  %2275 = vmatprep.subr.mxu0 0.0
  %2276 = vmatpush1.msra.mxu0 0.0
  %2277 = vmatprep.subr.mxu0 0.0
  %2278 = vmatpush1.msra.mxu0 0.0
  %2279 = vmatprep.subr.mxu0 0.0
  %2280 = vmatpush1.msra.mxu0 0.0
  %2281 = vmatprep.subr.mxu0 0.0
  %2282 = vmatpush1.msra.mxu0 0.0
  %2283 = vmatprep.subr.mxu0 0.0
  %2284 = vmatpush1.msra.mxu0 0.0
  %2285 = vmatprep.subr.mxu0 0.0
  %2286 = vmatpush1.msra.mxu0 0.0
  %2287 = vmatprep.subr.mxu0 0.0
  %2288 = vmatpush1.msra.mxu0 0.0
  %2289 = vmatprep.subr.mxu0 0.0
  %2290 = vmatpush1.msra.mxu0 0.0
  %2291 = vmatprep.subr.mxu0 0.0
  %2292 = vmatpush1.msra.mxu0 0.0
  %2293 = vmatprep.subr.mxu0 0.0
  %2294 = vmatpush1.msra.mxu0 0.0
  %2295 = vmatprep.subr.mxu0 0.0
  %2296 = vmatpush1.msra.mxu0 0.0
  %2297 = vmatprep.mubr.f32.mxu0 0.0
  %2298 = vmatmul.mubr.f32.gmra.mrb[0].mxu0 %v2227
  %v2299 = vpop.f32.mrb[0].mxu0
  %v2300 = vadd.f32 0.0, %v2299
  %v2301 = vpop.f32.mrb[0].mxu0
  %2302 = vdwg.mxu0
  %s2303 = scalar_lea.vmem %s5, 26
  %v2304 = vld [vmem:[%s2303] sm:$0x3]
  %v2306 = vsel %vm2225, %v2304, 0
  %v2309 = vsel %vm2229, %v2219, 0
  %2311 = vmatprep.subr.mxu0 0.0
  %2312 = vmatpush1.msra.mxu0 %v2309
  %2313 = vmatprep.subr.mxu0 0.0
  %2314 = vmatpush1.msra.mxu0 0.0
  %2315 = vmatprep.subr.mxu0 0.0
  %2316 = vmatpush1.msra.mxu0 0.0
  %2317 = vmatprep.subr.mxu0 0.0
  %2318 = vmatpush1.msra.mxu0 0.0
  %2319 = vmatprep.subr.mxu0 0.0
  %2320 = vmatpush1.msra.mxu0 0.0
  %2321 = vmatprep.subr.mxu0 0.0
  %2322 = vmatpush1.msra.mxu0 0.0
  %2323 = vmatprep.subr.mxu0 0.0
  %2324 = vmatpush1.msra.mxu0 0.0
  %2325 = vmatprep.subr.mxu0 0.0
  %2326 = vmatpush1.msra.mxu0 0.0
  %2327 = vmatprep.subr.mxu0 0.0
  %2328 = vmatpush1.msra.mxu0 0.0
  %2329 = vmatprep.subr.mxu0 0.0
  %2330 = vmatpush1.msra.mxu0 0.0
  %2331 = vmatprep.subr.mxu0 0.0
  %2332 = vmatpush1.msra.mxu0 0.0
  %2333 = vmatprep.subr.mxu0 0.0
  %2334 = vmatpush1.msra.mxu0 0.0
  %2335 = vmatprep.subr.mxu0 0.0
  %2336 = vmatpush1.msra.mxu0 0.0
  %2337 = vmatprep.subr.mxu0 0.0
  %2338 = vmatpush1.msra.mxu0 0.0
  %2339 = vmatprep.subr.mxu0 0.0
  %2340 = vmatpush1.msra.mxu0 0.0
  %2341 = vmatprep.subr.mxu0 0.0
  %2342 = vmatpush1.msra.mxu0 0.0
  %2343 = vmatprep.subr.mxu0 0.0
  %2344 = vmatpush1.msra.mxu0 0.0
  %2345 = vmatprep.subr.mxu0 0.0
  %2346 = vmatpush1.msra.mxu0 0.0
  %2347 = vmatprep.subr.mxu0 0.0
  %2348 = vmatpush1.msra.mxu0 0.0
  %2349 = vmatprep.subr.mxu0 0.0
  %2350 = vmatpush1.msra.mxu0 0.0
  %2351 = vmatprep.subr.mxu0 0.0
  %2352 = vmatpush1.msra.mxu0 0.0
  %2353 = vmatprep.subr.mxu0 0.0
  %2354 = vmatpush1.msra.mxu0 0.0
  %2355 = vmatprep.subr.mxu0 0.0
  %2356 = vmatpush1.msra.mxu0 0.0
  %2357 = vmatprep.subr.mxu0 0.0
  %2358 = vmatpush1.msra.mxu0 0.0
  %2359 = vmatprep.subr.mxu0 0.0
  %2360 = vmatpush1.msra.mxu0 0.0
  %2361 = vmatprep.subr.mxu0 0.0
  %2362 = vmatpush1.msra.mxu0 0.0
  %2363 = vmatprep.subr.mxu0 0.0
  %2364 = vmatpush1.msra.mxu0 0.0
  %2365 = vmatprep.subr.mxu0 0.0
  %2366 = vmatpush1.msra.mxu0 0.0
  %2367 = vmatprep.subr.mxu0 0.0
  %2368 = vmatpush1.msra.mxu0 0.0
  %2369 = vmatprep.subr.mxu0 0.0
  %2370 = vmatpush1.msra.mxu0 0.0
  %2371 = vmatprep.subr.mxu0 0.0
  %2372 = vmatpush1.msra.mxu0 0.0
  %2373 = vmatprep.subr.mxu0 0.0
  %2374 = vmatpush1.msra.mxu0 0.0
  %2375 = vmatprep.mubr.f32.mxu0 0.0
  %2376 = vmatmul.mubr.f32.gmra.mrb[0].mxu0 %v2306
  %v2377 = vpop.f32.mrb[0].mxu0
  %v2378 = vadd.f32 0.0, %v2377
  %v2379 = vpop.f32.mrb[0].mxu0
  %2380 = vdwg.mxu0
  %v2382 = vsel %vm198, %v2378, 0
  %2384 = vmatprep.subr.mxu0 0.0
  %2385 = vmatpush1.msra.mxu0 %v194
  %2386 = vmatprep.subr.mxu0 0.0
  %2387 = vmatpush1.msra.mxu0 %v195
  %2388 = vmatprep.subr.mxu0 0.0
  %2389 = vmatpush1.msra.mxu0 %v196
  %2390 = vmatprep.subr.mxu0 0.0
  %2391 = vmatpush1.msra.mxu0 %v197
  %2392 = vmatprep.subr.mxu0 0.0
  %2393 = vmatpush1.msra.mxu0 0.0
  %2394 = vmatprep.subr.mxu0 0.0
  %2395 = vmatpush1.msra.mxu0 0.0
  %2396 = vmatprep.subr.mxu0 0.0
  %2397 = vmatpush1.msra.mxu0 0.0
  %2398 = vmatprep.subr.mxu0 0.0
  %2399 = vmatpush1.msra.mxu0 0.0
  %2400 = vmatprep.subr.mxu0 0.0
  %2401 = vmatpush1.msra.mxu0 0.0
  %2402 = vmatprep.subr.mxu0 0.0
  %2403 = vmatpush1.msra.mxu0 0.0
  %2404 = vmatprep.subr.mxu0 0.0
  %2405 = vmatpush1.msra.mxu0 0.0
  %2406 = vmatprep.subr.mxu0 0.0
  %2407 = vmatpush1.msra.mxu0 0.0
  %2408 = vmatprep.subr.mxu0 0.0
  %2409 = vmatpush1.msra.mxu0 0.0
  %2410 = vmatprep.subr.mxu0 0.0
  %2411 = vmatpush1.msra.mxu0 0.0
  %2412 = vmatprep.subr.mxu0 0.0
  %2413 = vmatpush1.msra.mxu0 0.0
  %2414 = vmatprep.subr.mxu0 0.0
  %2415 = vmatpush1.msra.mxu0 0.0
  %2416 = vmatprep.subr.mxu0 0.0
  %2417 = vmatpush1.msra.mxu0 0.0
  %2418 = vmatprep.subr.mxu0 0.0
  %2419 = vmatpush1.msra.mxu0 0.0
  %2420 = vmatprep.subr.mxu0 0.0
  %2421 = vmatpush1.msra.mxu0 0.0
  %2422 = vmatprep.subr.mxu0 0.0
  %2423 = vmatpush1.msra.mxu0 0.0
  %2424 = vmatprep.subr.mxu0 0.0
  %2425 = vmatpush1.msra.mxu0 0.0
  %2426 = vmatprep.subr.mxu0 0.0
  %2427 = vmatpush1.msra.mxu0 0.0
  %2428 = vmatprep.subr.mxu0 0.0
  %2429 = vmatpush1.msra.mxu0 0.0
  %2430 = vmatprep.subr.mxu0 0.0
  %2431 = vmatpush1.msra.mxu0 0.0
  %2432 = vmatprep.subr.mxu0 0.0
  %2433 = vmatpush1.msra.mxu0 0.0
  %2434 = vmatprep.subr.mxu0 0.0
  %2435 = vmatpush1.msra.mxu0 0.0
  %2436 = vmatprep.subr.mxu0 0.0
  %2437 = vmatpush1.msra.mxu0 0.0
  %2438 = vmatprep.subr.mxu0 0.0
  %2439 = vmatpush1.msra.mxu0 0.0
  %2440 = vmatprep.subr.mxu0 0.0
  %2441 = vmatpush1.msra.mxu0 0.0
  %2442 = vmatprep.subr.mxu0 0.0
  %2443 = vmatpush1.msra.mxu0 0.0
  %2444 = vmatprep.subr.mxu0 0.0
  %2445 = vmatpush1.msra.mxu0 0.0
  %2446 = vmatprep.subr.mxu0 0.0
  %2447 = vmatpush1.msra.mxu0 0.0
  %2448 = vmatprep.mubr.f32.mxu0 0.0
  %2449 = vmatmul.mubr.f32.gmra.mrb[0].mxu0 %v2382
  %v2450 = vpop.f32.mrb[0].mxu0
  %v2451 = vadd.f32 0.0, %v2450
  %v2452 = vpop.f32.mrb[0].mxu0
  %2453 = vdwg.mxu0
  %v2455 = vsel %vm198, %v2300, 0
  %2457 = vmatprep.subr.mxu0 0.0
  %2458 = vmatpush1.msra.mxu0 %v114
  %2459 = vmatprep.subr.mxu0 0.0
  %2460 = vmatpush1.msra.mxu0 %v115
  %2461 = vmatprep.subr.mxu0 0.0
  %2462 = vmatpush1.msra.mxu0 %v116
  %2463 = vmatprep.subr.mxu0 0.0
  %2464 = vmatpush1.msra.mxu0 %v117
  %2465 = vmatprep.subr.mxu0 0.0
  %2466 = vmatpush1.msra.mxu0 0.0
  %2467 = vmatprep.subr.mxu0 0.0
  %2468 = vmatpush1.msra.mxu0 0.0
  %2469 = vmatprep.subr.mxu0 0.0
  %2470 = vmatpush1.msra.mxu0 0.0
  %2471 = vmatprep.subr.mxu0 0.0
  %2472 = vmatpush1.msra.mxu0 0.0
  %2473 = vmatprep.subr.mxu0 0.0
  %2474 = vmatpush1.msra.mxu0 0.0
  %2475 = vmatprep.subr.mxu0 0.0
  %2476 = vmatpush1.msra.mxu0 0.0
  %2477 = vmatprep.subr.mxu0 0.0
  %2478 = vmatpush1.msra.mxu0 0.0
  %2479 = vmatprep.subr.mxu0 0.0
  %2480 = vmatpush1.msra.mxu0 0.0
  %2481 = vmatprep.subr.mxu0 0.0
  %2482 = vmatpush1.msra.mxu0 0.0
  %2483 = vmatprep.subr.mxu0 0.0
  %2484 = vmatpush1.msra.mxu0 0.0
  %2485 = vmatprep.subr.mxu0 0.0
  %2486 = vmatpush1.msra.mxu0 0.0
  %2487 = vmatprep.subr.mxu0 0.0
  %2488 = vmatpush1.msra.mxu0 0.0
  %2489 = vmatprep.subr.mxu0 0.0
  %2490 = vmatpush1.msra.mxu0 0.0
  %2491 = vmatprep.subr.mxu0 0.0
  %2492 = vmatpush1.msra.mxu0 0.0
  %2493 = vmatprep.subr.mxu0 0.0
  %2494 = vmatpush1.msra.mxu0 0.0
  %2495 = vmatprep.subr.mxu0 0.0
  %2496 = vmatpush1.msra.mxu0 0.0
  %2497 = vmatprep.subr.mxu0 0.0
  %2498 = vmatpush1.msra.mxu0 0.0
  %2499 = vmatprep.subr.mxu0 0.0
  %2500 = vmatpush1.msra.mxu0 0.0
  %2501 = vmatprep.subr.mxu0 0.0
  %2502 = vmatpush1.msra.mxu0 0.0
  %2503 = vmatprep.subr.mxu0 0.0
  %2504 = vmatpush1.msra.mxu0 0.0
  %2505 = vmatprep.subr.mxu0 0.0
  %2506 = vmatpush1.msra.mxu0 0.0
  %2507 = vmatprep.subr.mxu0 0.0
  %2508 = vmatpush1.msra.mxu0 0.0
  %2509 = vmatprep.subr.mxu0 0.0
  %2510 = vmatpush1.msra.mxu0 0.0
  %2511 = vmatprep.subr.mxu0 0.0
  %2512 = vmatpush1.msra.mxu0 0.0
  %2513 = vmatprep.subr.mxu0 0.0
  %2514 = vmatpush1.msra.mxu0 0.0
  %2515 = vmatprep.subr.mxu0 0.0
  %2516 = vmatpush1.msra.mxu0 0.0
  %2517 = vmatprep.subr.mxu0 0.0
  %2518 = vmatpush1.msra.mxu0 0.0
  %2519 = vmatprep.subr.mxu0 0.0
  %2520 = vmatpush1.msra.mxu0 0.0
  %2521 = vmatprep.mubr.f32.mxu0 0.0
  %2522 = vmatmul.mubr.f32.gmra.mrb[0].mxu0 %v2455
  %v2523 = vpop.f32.mrb[0].mxu0
  %v2524 = vadd.f32 %v2451, %v2523
  %v2525 = vpop.f32.mrb[0].mxu0
  %2526 = vdwg.mxu0
  %s2527 = scalar_lea.vmem %s5, 14
  %v2528 = vld [vmem:[%s2527] sm:$0x3]
  %v2530 = vsel %vm2225, %v2528, 0
  %v2533 = vsel %vm2229, %v2216, 0
  %2535 = vmatprep.subr.mxu0 0.0
  %2536 = vmatpush1.msra.mxu0 %v2533
  %2537 = vmatprep.subr.mxu0 0.0
  %2538 = vmatpush1.msra.mxu0 0.0
  %2539 = vmatprep.subr.mxu0 0.0
  %2540 = vmatpush1.msra.mxu0 0.0
  %2541 = vmatprep.subr.mxu0 0.0
  %2542 = vmatpush1.msra.mxu0 0.0
  %2543 = vmatprep.subr.mxu0 0.0
  %2544 = vmatpush1.msra.mxu0 0.0
  %2545 = vmatprep.subr.mxu0 0.0
  %2546 = vmatpush1.msra.mxu0 0.0
  %2547 = vmatprep.subr.mxu0 0.0
  %2548 = vmatpush1.msra.mxu0 0.0
  %2549 = vmatprep.subr.mxu0 0.0
  %2550 = vmatpush1.msra.mxu0 0.0
  %2551 = vmatprep.subr.mxu0 0.0
  %2552 = vmatpush1.msra.mxu0 0.0
  %2553 = vmatprep.subr.mxu0 0.0
  %2554 = vmatpush1.msra.mxu0 0.0
  %2555 = vmatprep.subr.mxu0 0.0
  %2556 = vmatpush1.msra.mxu0 0.0
  %2557 = vmatprep.subr.mxu0 0.0
  %2558 = vmatpush1.msra.mxu0 0.0
  %2559 = vmatprep.subr.mxu0 0.0
  %2560 = vmatpush1.msra.mxu0 0.0
  %2561 = vmatprep.subr.mxu0 0.0
  %2562 = vmatpush1.msra.mxu0 0.0
  %2563 = vmatprep.subr.mxu0 0.0
  %2564 = vmatpush1.msra.mxu0 0.0
  %2565 = vmatprep.subr.mxu0 0.0
  %2566 = vmatpush1.msra.mxu0 0.0
  %2567 = vmatprep.subr.mxu0 0.0
  %2568 = vmatpush1.msra.mxu0 0.0
  %2569 = vmatprep.subr.mxu0 0.0
  %2570 = vmatpush1.msra.mxu0 0.0
  %2571 = vmatprep.subr.mxu0 0.0
  %2572 = vmatpush1.msra.mxu0 0.0
  %2573 = vmatprep.subr.mxu0 0.0
  %2574 = vmatpush1.msra.mxu0 0.0
  %2575 = vmatprep.subr.mxu0 0.0
  %2576 = vmatpush1.msra.mxu0 0.0
  %2577 = vmatprep.subr.mxu0 0.0
  %2578 = vmatpush1.msra.mxu0 0.0
  %2579 = vmatprep.subr.mxu0 0.0
  %2580 = vmatpush1.msra.mxu0 0.0
  %2581 = vmatprep.subr.mxu0 0.0
  %2582 = vmatpush1.msra.mxu0 0.0
  %2583 = vmatprep.subr.mxu0 0.0
  %2584 = vmatpush1.msra.mxu0 0.0
  %2585 = vmatprep.subr.mxu0 0.0
  %2586 = vmatpush1.msra.mxu0 0.0
  %2587 = vmatprep.subr.mxu0 0.0
  %2588 = vmatpush1.msra.mxu0 0.0
  %2589 = vmatprep.subr.mxu0 0.0
  %2590 = vmatpush1.msra.mxu0 0.0
  %2591 = vmatprep.subr.mxu0 0.0
  %2592 = vmatpush1.msra.mxu0 0.0
  %2593 = vmatprep.subr.mxu0 0.0
  %2594 = vmatpush1.msra.mxu0 0.0
  %2595 = vmatprep.subr.mxu0 0.0
  %2596 = vmatpush1.msra.mxu0 0.0
  %2597 = vmatprep.subr.mxu0 0.0
  %2598 = vmatpush1.msra.mxu0 0.0
  %2599 = vmatprep.mubr.f32.mxu0 0.0
  %2600 = vmatmul.mubr.f32.gmra.mrb[0].mxu0 %v2530
  %v2601 = vpop.f32.mrb[0].mxu0
  %v2602 = vadd.f32 0.0, %v2601
  %v2603 = vpop.f32.mrb[0].mxu0
  %2604 = vdwg.mxu0
  %v2606 = vsel %vm198, %v2602, 0
  %2608 = vmatprep.subr.mxu0 0.0
  %2609 = vmatpush1.msra.mxu0 %v421
  %2610 = vmatprep.subr.mxu0 0.0
  %2611 = vmatpush1.msra.mxu0 %v422
  %2612 = vmatprep.subr.mxu0 0.0
  %2613 = vmatpush1.msra.mxu0 %v423
  %2614 = vmatprep.subr.mxu0 0.0
  %2615 = vmatpush1.msra.mxu0 %v424
  %2616 = vmatprep.subr.mxu0 0.0
  %2617 = vmatpush1.msra.mxu0 0.0
  %2618 = vmatprep.subr.mxu0 0.0
  %2619 = vmatpush1.msra.mxu0 0.0
  %2620 = vmatprep.subr.mxu0 0.0
  %2621 = vmatpush1.msra.mxu0 0.0
  %2622 = vmatprep.subr.mxu0 0.0
  %2623 = vmatpush1.msra.mxu0 0.0
  %2624 = vmatprep.subr.mxu0 0.0
  %2625 = vmatpush1.msra.mxu0 0.0
  %2626 = vmatprep.subr.mxu0 0.0
  %2627 = vmatpush1.msra.mxu0 0.0
  %2628 = vmatprep.subr.mxu0 0.0
  %2629 = vmatpush1.msra.mxu0 0.0
  %2630 = vmatprep.subr.mxu0 0.0
  %2631 = vmatpush1.msra.mxu0 0.0
  %2632 = vmatprep.subr.mxu0 0.0
  %2633 = vmatpush1.msra.mxu0 0.0
  %2634 = vmatprep.subr.mxu0 0.0
  %2635 = vmatpush1.msra.mxu0 0.0
  %2636 = vmatprep.subr.mxu0 0.0
  %2637 = vmatpush1.msra.mxu0 0.0
  %2638 = vmatprep.subr.mxu0 0.0
  %2639 = vmatpush1.msra.mxu0 0.0
  %2640 = vmatprep.subr.mxu0 0.0
  %2641 = vmatpush1.msra.mxu0 0.0
  %2642 = vmatprep.subr.mxu0 0.0
  %2643 = vmatpush1.msra.mxu0 0.0
  %2644 = vmatprep.subr.mxu0 0.0
  %2645 = vmatpush1.msra.mxu0 0.0
  %2646 = vmatprep.subr.mxu0 0.0
  %2647 = vmatpush1.msra.mxu0 0.0
  %2648 = vmatprep.subr.mxu0 0.0
  %2649 = vmatpush1.msra.mxu0 0.0
  %2650 = vmatprep.subr.mxu0 0.0
  %2651 = vmatpush1.msra.mxu0 0.0
  %2652 = vmatprep.subr.mxu0 0.0
  %2653 = vmatpush1.msra.mxu0 0.0
  %2654 = vmatprep.subr.mxu0 0.0
  %2655 = vmatpush1.msra.mxu0 0.0
  %2656 = vmatprep.subr.mxu0 0.0
  %2657 = vmatpush1.msra.mxu0 0.0
  %2658 = vmatprep.subr.mxu0 0.0
  %2659 = vmatpush1.msra.mxu0 0.0
  %2660 = vmatprep.subr.mxu0 0.0
  %2661 = vmatpush1.msra.mxu0 0.0
  %2662 = vmatprep.subr.mxu0 0.0
  %2663 = vmatpush1.msra.mxu0 0.0
  %2664 = vmatprep.subr.mxu0 0.0
  %2665 = vmatpush1.msra.mxu0 0.0
  %2666 = vmatprep.subr.mxu0 0.0
  %2667 = vmatpush1.msra.mxu0 0.0
  %2668 = vmatprep.subr.mxu0 0.0
  %2669 = vmatpush1.msra.mxu0 0.0
  %2670 = vmatprep.subr.mxu0 0.0
  %2671 = vmatpush1.msra.mxu0 0.0
  %2672 = vmatprep.mubr.f32.mxu0 0.0
  %2673 = vmatmul.mubr.f32.gmra.mrb[0].mxu0 %v2606
  %v2674 = vpop.f32.mrb[0].mxu0
  %v2675 = vadd.f32 0.0, %v2674
  %v2676 = vpop.f32.mrb[0].mxu0
  %2677 = vdwg.mxu0
  %v2678 = vadd.f32 %v2524, %v2675
  %s2679 = scalar_lea.vmem %s5, 10
  %v2680 = vld [vmem:[%s2679] sm:$0x3]
  %v2682 = vsel %vm2225, %v2680, 0
  %v2685 = vsel %vm2229, %v2213, 0
  %2687 = vmatprep.subr.mxu0 0.0
  %2688 = vmatpush1.msra.mxu0 %v2685
  %2689 = vmatprep.subr.mxu0 0.0
  %2690 = vmatpush1.msra.mxu0 0.0
  %2691 = vmatprep.subr.mxu0 0.0
  %2692 = vmatpush1.msra.mxu0 0.0
  %2693 = vmatprep.subr.mxu0 0.0
  %2694 = vmatpush1.msra.mxu0 0.0
  %2695 = vmatprep.subr.mxu0 0.0
  %2696 = vmatpush1.msra.mxu0 0.0
  %2697 = vmatprep.subr.mxu0 0.0
  %2698 = vmatpush1.msra.mxu0 0.0
  %2699 = vmatprep.subr.mxu0 0.0
  %2700 = vmatpush1.msra.mxu0 0.0
  %2701 = vmatprep.subr.mxu0 0.0
  %2702 = vmatpush1.msra.mxu0 0.0
  %2703 = vmatprep.subr.mxu0 0.0
  %2704 = vmatpush1.msra.mxu0 0.0
  %2705 = vmatprep.subr.mxu0 0.0
  %2706 = vmatpush1.msra.mxu0 0.0
  %2707 = vmatprep.subr.mxu0 0.0
  %2708 = vmatpush1.msra.mxu0 0.0
  %2709 = vmatprep.subr.mxu0 0.0
  %2710 = vmatpush1.msra.mxu0 0.0
  %2711 = vmatprep.subr.mxu0 0.0
  %2712 = vmatpush1.msra.mxu0 0.0
  %2713 = vmatprep.subr.mxu0 0.0
  %2714 = vmatpush1.msra.mxu0 0.0
  %2715 = vmatprep.subr.mxu0 0.0
  %2716 = vmatpush1.msra.mxu0 0.0
  %2717 = vmatprep.subr.mxu0 0.0
  %2718 = vmatpush1.msra.mxu0 0.0
  %2719 = vmatprep.subr.mxu0 0.0
  %2720 = vmatpush1.msra.mxu0 0.0
  %2721 = vmatprep.subr.mxu0 0.0
  %2722 = vmatpush1.msra.mxu0 0.0
  %2723 = vmatprep.subr.mxu0 0.0
  %2724 = vmatpush1.msra.mxu0 0.0
  %2725 = vmatprep.subr.mxu0 0.0
  %2726 = vmatpush1.msra.mxu0 0.0
  %2727 = vmatprep.subr.mxu0 0.0
  %2728 = vmatpush1.msra.mxu0 0.0
  %2729 = vmatprep.subr.mxu0 0.0
  %2730 = vmatpush1.msra.mxu0 0.0
  %2731 = vmatprep.subr.mxu0 0.0
  %2732 = vmatpush1.msra.mxu0 0.0
  %2733 = vmatprep.subr.mxu0 0.0
  %2734 = vmatpush1.msra.mxu0 0.0
  %2735 = vmatprep.subr.mxu0 0.0
  %2736 = vmatpush1.msra.mxu0 0.0
  %2737 = vmatprep.subr.mxu0 0.0
  %2738 = vmatpush1.msra.mxu0 0.0
  %2739 = vmatprep.subr.mxu0 0.0
  %2740 = vmatpush1.msra.mxu0 0.0
  %2741 = vmatprep.subr.mxu0 0.0
  %2742 = vmatpush1.msra.mxu0 0.0
  %2743 = vmatprep.subr.mxu0 0.0
  %2744 = vmatpush1.msra.mxu0 0.0
  %2745 = vmatprep.subr.mxu0 0.0
  %2746 = vmatpush1.msra.mxu0 0.0
  %2747 = vmatprep.subr.mxu0 0.0
  %2748 = vmatpush1.msra.mxu0 0.0
  %2749 = vmatprep.subr.mxu0 0.0
  %2750 = vmatpush1.msra.mxu0 0.0
  %2751 = vmatprep.mubr.f32.mxu0 0.0
  %2752 = vmatmul.mubr.f32.gmra.mrb[0].mxu0 %v2682
  %v2753 = vpop.f32.mrb[0].mxu0
  %v2754 = vadd.f32 0.0, %v2753
  %v2755 = vpop.f32.mrb[0].mxu0
  %2756 = vdwg.mxu0
  %v2757 = vadd.f32 %v2678, %v2754
  %s2758 = scalar_lea.vmem %s5, 28
  %v2759 = vld [vmem:[%s2758] sm:$0x3]
  %v2761 = vsel %vm2225, %v2759, 0
  %2763 = vmatprep.subr.mxu0 0.0
  %2764 = vmatpush1.msra.mxu0 %v2309
  %2765 = vmatprep.subr.mxu0 0.0
  %2766 = vmatpush1.msra.mxu0 0.0
  %2767 = vmatprep.subr.mxu0 0.0
  %2768 = vmatpush1.msra.mxu0 0.0
  %2769 = vmatprep.subr.mxu0 0.0
  %2770 = vmatpush1.msra.mxu0 0.0
  %2771 = vmatprep.subr.mxu0 0.0
  %2772 = vmatpush1.msra.mxu0 0.0
  %2773 = vmatprep.subr.mxu0 0.0
  %2774 = vmatpush1.msra.mxu0 0.0
  %2775 = vmatprep.subr.mxu0 0.0
  %2776 = vmatpush1.msra.mxu0 0.0
  %2777 = vmatprep.subr.mxu0 0.0
  %2778 = vmatpush1.msra.mxu0 0.0
  %2779 = vmatprep.subr.mxu0 0.0
  %2780 = vmatpush1.msra.mxu0 0.0
  %2781 = vmatprep.subr.mxu0 0.0
  %2782 = vmatpush1.msra.mxu0 0.0
  %2783 = vmatprep.subr.mxu0 0.0
  %2784 = vmatpush1.msra.mxu0 0.0
  %2785 = vmatprep.subr.mxu0 0.0
  %2786 = vmatpush1.msra.mxu0 0.0
  %2787 = vmatprep.subr.mxu0 0.0
  %2788 = vmatpush1.msra.mxu0 0.0
  %2789 = vmatprep.subr.mxu0 0.0
  %2790 = vmatpush1.msra.mxu0 0.0
  %2791 = vmatprep.subr.mxu0 0.0
  %2792 = vmatpush1.msra.mxu0 0.0
  %2793 = vmatprep.subr.mxu0 0.0
  %2794 = vmatpush1.msra.mxu0 0.0
  %2795 = vmatprep.subr.mxu0 0.0
  %2796 = vmatpush1.msra.mxu0 0.0
  %2797 = vmatprep.subr.mxu0 0.0
  %2798 = vmatpush1.msra.mxu0 0.0
  %2799 = vmatprep.subr.mxu0 0.0
  %2800 = vmatpush1.msra.mxu0 0.0
  %2801 = vmatprep.subr.mxu0 0.0
  %2802 = vmatpush1.msra.mxu0 0.0
  %2803 = vmatprep.subr.mxu0 0.0
  %2804 = vmatpush1.msra.mxu0 0.0
  %2805 = vmatprep.subr.mxu0 0.0
  %2806 = vmatpush1.msra.mxu0 0.0
  %2807 = vmatprep.subr.mxu0 0.0
  %2808 = vmatpush1.msra.mxu0 0.0
  %2809 = vmatprep.subr.mxu0 0.0
  %2810 = vmatpush1.msra.mxu0 0.0
  %2811 = vmatprep.subr.mxu0 0.0
  %2812 = vmatpush1.msra.mxu0 0.0
  %2813 = vmatprep.subr.mxu0 0.0
  %2814 = vmatpush1.msra.mxu0 0.0
  %2815 = vmatprep.subr.mxu0 0.0
  %2816 = vmatpush1.msra.mxu0 0.0
  %2817 = vmatprep.subr.mxu0 0.0
  %2818 = vmatpush1.msra.mxu0 0.0
  %2819 = vmatprep.subr.mxu0 0.0
  %2820 = vmatpush1.msra.mxu0 0.0
  %2821 = vmatprep.subr.mxu0 0.0
  %2822 = vmatpush1.msra.mxu0 0.0
  %2823 = vmatprep.subr.mxu0 0.0
  %2824 = vmatpush1.msra.mxu0 0.0
  %2825 = vmatprep.subr.mxu0 0.0
  %2826 = vmatpush1.msra.mxu0 0.0
  %2827 = vmatprep.mubr.f32.mxu0 0.0
  %2828 = vmatmul.mubr.f32.gmra.mrb[0].mxu0 %v2761
  %v2829 = vpop.f32.mrb[0].mxu0
  %v2830 = vadd.f32 0.0, %v2829
  %v2831 = vpop.f32.mrb[0].mxu0
  %2832 = vdwg.mxu0
  %s2833 = scalar_lea.vmem %s5, 24
  %v2834 = vld [vmem:[%s2833] sm:$0x3]
  %v2836 = vsel %vm2225, %v2834, 0
  %2838 = vmatprep.subr.mxu0 0.0
  %2839 = vmatpush1.msra.mxu0 %v2231
  %2840 = vmatprep.subr.mxu0 0.0
  %2841 = vmatpush1.msra.mxu0 0.0
  %2842 = vmatprep.subr.mxu0 0.0
  %2843 = vmatpush1.msra.mxu0 0.0
  %2844 = vmatprep.subr.mxu0 0.0
  %2845 = vmatpush1.msra.mxu0 0.0
  %2846 = vmatprep.subr.mxu0 0.0
  %2847 = vmatpush1.msra.mxu0 0.0
  %2848 = vmatprep.subr.mxu0 0.0
  %2849 = vmatpush1.msra.mxu0 0.0
  %2850 = vmatprep.subr.mxu0 0.0
  %2851 = vmatpush1.msra.mxu0 0.0
  %2852 = vmatprep.subr.mxu0 0.0
  %2853 = vmatpush1.msra.mxu0 0.0
  %2854 = vmatprep.subr.mxu0 0.0
  %2855 = vmatpush1.msra.mxu0 0.0
  %2856 = vmatprep.subr.mxu0 0.0
  %2857 = vmatpush1.msra.mxu0 0.0
  %2858 = vmatprep.subr.mxu0 0.0
  %2859 = vmatpush1.msra.mxu0 0.0
  %2860 = vmatprep.subr.mxu0 0.0
  %2861 = vmatpush1.msra.mxu0 0.0
  %2862 = vmatprep.subr.mxu0 0.0
  %2863 = vmatpush1.msra.mxu0 0.0
  %2864 = vmatprep.subr.mxu0 0.0
  %2865 = vmatpush1.msra.mxu0 0.0
  %2866 = vmatprep.subr.mxu0 0.0
  %2867 = vmatpush1.msra.mxu0 0.0
  %2868 = vmatprep.subr.mxu0 0.0
  %2869 = vmatpush1.msra.mxu0 0.0
  %2870 = vmatprep.subr.mxu0 0.0
  %2871 = vmatpush1.msra.mxu0 0.0
  %2872 = vmatprep.subr.mxu0 0.0
  %2873 = vmatpush1.msra.mxu0 0.0
  %2874 = vmatprep.subr.mxu0 0.0
  %2875 = vmatpush1.msra.mxu0 0.0
  %2876 = vmatprep.subr.mxu0 0.0
  %2877 = vmatpush1.msra.mxu0 0.0
  %2878 = vmatprep.subr.mxu0 0.0
  %2879 = vmatpush1.msra.mxu0 0.0
  %2880 = vmatprep.subr.mxu0 0.0
  %2881 = vmatpush1.msra.mxu0 0.0
  %2882 = vmatprep.subr.mxu0 0.0
  %2883 = vmatpush1.msra.mxu0 0.0
  %2884 = vmatprep.subr.mxu0 0.0
  %2885 = vmatpush1.msra.mxu0 0.0
  %2886 = vmatprep.subr.mxu0 0.0
  %2887 = vmatpush1.msra.mxu0 0.0
  %2888 = vmatprep.subr.mxu0 0.0
  %2889 = vmatpush1.msra.mxu0 0.0
  %2890 = vmatprep.subr.mxu0 0.0
  %2891 = vmatpush1.msra.mxu0 0.0
  %2892 = vmatprep.subr.mxu0 0.0
  %2893 = vmatpush1.msra.mxu0 0.0
  %2894 = vmatprep.subr.mxu0 0.0
  %2895 = vmatpush1.msra.mxu0 0.0
  %2896 = vmatprep.subr.mxu0 0.0
  %2897 = vmatpush1.msra.mxu0 0.0
  %2898 = vmatprep.subr.mxu0 0.0
  %2899 = vmatpush1.msra.mxu0 0.0
  %2900 = vmatprep.subr.mxu0 0.0
  %2901 = vmatpush1.msra.mxu0 0.0
  %2902 = vmatprep.mubr.f32.mxu0 0.0
  %2903 = vmatmul.mubr.f32.gmra.mrb[0].mxu0 %v2836
  %v2904 = vpop.f32.mrb[0].mxu0
  %v2905 = vadd.f32 0.0, %v2904
  %v2906 = vpop.f32.mrb[0].mxu0
  %2907 = vdwg.mxu0
  %v2909 = vsel %vm198, %v2905, 0
  %2911 = vmatprep.subr.mxu0 0.0
  %2912 = vmatpush1.msra.mxu0 %v194
  %2913 = vmatprep.subr.mxu0 0.0
  %2914 = vmatpush1.msra.mxu0 %v195
  %2915 = vmatprep.subr.mxu0 0.0
  %2916 = vmatpush1.msra.mxu0 %v196
  %2917 = vmatprep.subr.mxu0 0.0
  %2918 = vmatpush1.msra.mxu0 %v197
  %2919 = vmatprep.subr.mxu0 0.0
  %2920 = vmatpush1.msra.mxu0 0.0
  %2921 = vmatprep.subr.mxu0 0.0
  %2922 = vmatpush1.msra.mxu0 0.0
  %2923 = vmatprep.subr.mxu0 0.0
  %2924 = vmatpush1.msra.mxu0 0.0
  %2925 = vmatprep.subr.mxu0 0.0
  %2926 = vmatpush1.msra.mxu0 0.0
  %2927 = vmatprep.subr.mxu0 0.0
  %2928 = vmatpush1.msra.mxu0 0.0
  %2929 = vmatprep.subr.mxu0 0.0
  %2930 = vmatpush1.msra.mxu0 0.0
  %2931 = vmatprep.subr.mxu0 0.0
  %2932 = vmatpush1.msra.mxu0 0.0
  %2933 = vmatprep.subr.mxu0 0.0
  %2934 = vmatpush1.msra.mxu0 0.0
  %2935 = vmatprep.subr.mxu0 0.0
  %2936 = vmatpush1.msra.mxu0 0.0
  %2937 = vmatprep.subr.mxu0 0.0
  %2938 = vmatpush1.msra.mxu0 0.0
  %2939 = vmatprep.subr.mxu0 0.0
  %2940 = vmatpush1.msra.mxu0 0.0
  %2941 = vmatprep.subr.mxu0 0.0
  %2942 = vmatpush1.msra.mxu0 0.0
  %2943 = vmatprep.subr.mxu0 0.0
  %2944 = vmatpush1.msra.mxu0 0.0
  %2945 = vmatprep.subr.mxu0 0.0
  %2946 = vmatpush1.msra.mxu0 0.0
  %2947 = vmatprep.subr.mxu0 0.0
  %2948 = vmatpush1.msra.mxu0 0.0
  %2949 = vmatprep.subr.mxu0 0.0
  %2950 = vmatpush1.msra.mxu0 0.0
  %2951 = vmatprep.subr.mxu0 0.0
  %2952 = vmatpush1.msra.mxu0 0.0
  %2953 = vmatprep.subr.mxu0 0.0
  %2954 = vmatpush1.msra.mxu0 0.0
  %2955 = vmatprep.subr.mxu0 0.0
  %2956 = vmatpush1.msra.mxu0 0.0
  %2957 = vmatprep.subr.mxu0 0.0
  %2958 = vmatpush1.msra.mxu0 0.0
  %2959 = vmatprep.subr.mxu0 0.0
  %2960 = vmatpush1.msra.mxu0 0.0
  %2961 = vmatprep.subr.mxu0 0.0
  %2962 = vmatpush1.msra.mxu0 0.0
  %2963 = vmatprep.subr.mxu0 0.0
  %2964 = vmatpush1.msra.mxu0 0.0
  %2965 = vmatprep.subr.mxu0 0.0
  %2966 = vmatpush1.msra.mxu0 0.0
  %2967 = vmatprep.subr.mxu0 0.0
  %2968 = vmatpush1.msra.mxu0 0.0
  %2969 = vmatprep.subr.mxu0 0.0
  %2970 = vmatpush1.msra.mxu0 0.0
  %2971 = vmatprep.subr.mxu0 0.0
  %2972 = vmatpush1.msra.mxu0 0.0
  %2973 = vmatprep.subr.mxu0 0.0
  %2974 = vmatpush1.msra.mxu0 0.0
  %2975 = vmatprep.mubr.f32.mxu0 0.0
  %2976 = vmatmul.mubr.f32.gmra.mrb[0].mxu0 %v2909
  %v2977 = vpop.f32.mrb[0].mxu0
  %v2978 = vadd.f32 0.0, %v2977
  %v2979 = vpop.f32.mrb[0].mxu0
  %2980 = vdwg.mxu0
  %v2982 = vsel %vm198, %v2830, 0
  %2984 = vmatprep.subr.mxu0 0.0
  %2985 = vmatpush1.msra.mxu0 %v194
  %2986 = vmatprep.subr.mxu0 0.0
  %2987 = vmatpush1.msra.mxu0 %v195
  %2988 = vmatprep.subr.mxu0 0.0
  %2989 = vmatpush1.msra.mxu0 %v196
  %2990 = vmatprep.subr.mxu0 0.0
  %2991 = vmatpush1.msra.mxu0 %v197
  %2992 = vmatprep.subr.mxu0 0.0
  %2993 = vmatpush1.msra.mxu0 0.0
  %2994 = vmatprep.subr.mxu0 0.0
  %2995 = vmatpush1.msra.mxu0 0.0
  %2996 = vmatprep.subr.mxu0 0.0
  %2997 = vmatpush1.msra.mxu0 0.0
  %2998 = vmatprep.subr.mxu0 0.0
  %2999 = vmatpush1.msra.mxu0 0.0
  %3000 = vmatprep.subr.mxu0 0.0
  %3001 = vmatpush1.msra.mxu0 0.0
  %3002 = vmatprep.subr.mxu0 0.0
  %3003 = vmatpush1.msra.mxu0 0.0
  %3004 = vmatprep.subr.mxu0 0.0
  %3005 = vmatpush1.msra.mxu0 0.0
  %3006 = vmatprep.subr.mxu0 0.0
  %3007 = vmatpush1.msra.mxu0 0.0
  %3008 = vmatprep.subr.mxu0 0.0
  %3009 = vmatpush1.msra.mxu0 0.0
  %3010 = vmatprep.subr.mxu0 0.0
  %3011 = vmatpush1.msra.mxu0 0.0
  %3012 = vmatprep.subr.mxu0 0.0
  %3013 = vmatpush1.msra.mxu0 0.0
  %3014 = vmatprep.subr.mxu0 0.0
  %3015 = vmatpush1.msra.mxu0 0.0
  %3016 = vmatprep.subr.mxu0 0.0
  %3017 = vmatpush1.msra.mxu0 0.0
  %3018 = vmatprep.subr.mxu0 0.0
  %3019 = vmatpush1.msra.mxu0 0.0
  %3020 = vmatprep.subr.mxu0 0.0
  %3021 = vmatpush1.msra.mxu0 0.0
  %3022 = vmatprep.subr.mxu0 0.0
  %3023 = vmatpush1.msra.mxu0 0.0
  %3024 = vmatprep.subr.mxu0 0.0
  %3025 = vmatpush1.msra.mxu0 0.0
  %3026 = vmatprep.subr.mxu0 0.0
  %3027 = vmatpush1.msra.mxu0 0.0
  %3028 = vmatprep.subr.mxu0 0.0
  %3029 = vmatpush1.msra.mxu0 0.0
  %3030 = vmatprep.subr.mxu0 0.0
  %3031 = vmatpush1.msra.mxu0 0.0
  %3032 = vmatprep.subr.mxu0 0.0
  %3033 = vmatpush1.msra.mxu0 0.0
  %3034 = vmatprep.subr.mxu0 0.0
  %3035 = vmatpush1.msra.mxu0 0.0
  %3036 = vmatprep.subr.mxu0 0.0
  %3037 = vmatpush1.msra.mxu0 0.0
  %3038 = vmatprep.subr.mxu0 0.0
  %3039 = vmatpush1.msra.mxu0 0.0
  %3040 = vmatprep.subr.mxu0 0.0
  %3041 = vmatpush1.msra.mxu0 0.0
  %3042 = vmatprep.subr.mxu0 0.0
  %3043 = vmatpush1.msra.mxu0 0.0
  %3044 = vmatprep.subr.mxu0 0.0
  %3045 = vmatpush1.msra.mxu0 0.0
  %3046 = vmatprep.subr.mxu0 0.0
  %3047 = vmatpush1.msra.mxu0 0.0
  %3048 = vmatprep.mubr.f32.mxu0 0.0
  %3049 = vmatmul.mubr.f32.gmra.mrb[0].mxu0 %v2982
  %v3050 = vpop.f32.mrb[0].mxu0
  %v3051 = vadd.f32 %v2978, %v3050
  %v3052 = vpop.f32.mrb[0].mxu0
  %3053 = vdwg.mxu0
  %s3054 = scalar_lea.vmem %s5, 12
  %v3055 = vld [vmem:[%s3054] sm:$0x3]
  %v3057 = vsel %vm2225, %v3055, 0
  %3059 = vmatprep.subr.mxu0 0.0
  %3060 = vmatpush1.msra.mxu0 %v2685
  %3061 = vmatprep.subr.mxu0 0.0
  %3062 = vmatpush1.msra.mxu0 0.0
  %3063 = vmatprep.subr.mxu0 0.0
  %3064 = vmatpush1.msra.mxu0 0.0
  %3065 = vmatprep.subr.mxu0 0.0
  %3066 = vmatpush1.msra.mxu0 0.0
  %3067 = vmatprep.subr.mxu0 0.0
  %3068 = vmatpush1.msra.mxu0 0.0
  %3069 = vmatprep.subr.mxu0 0.0
  %3070 = vmatpush1.msra.mxu0 0.0
  %3071 = vmatprep.subr.mxu0 0.0
  %3072 = vmatpush1.msra.mxu0 0.0
  %3073 = vmatprep.subr.mxu0 0.0
  %3074 = vmatpush1.msra.mxu0 0.0
  %3075 = vmatprep.subr.mxu0 0.0
  %3076 = vmatpush1.msra.mxu0 0.0
  %3077 = vmatprep.subr.mxu0 0.0
  %3078 = vmatpush1.msra.mxu0 0.0
  %3079 = vmatprep.subr.mxu0 0.0
  %3080 = vmatpush1.msra.mxu0 0.0
  %3081 = vmatprep.subr.mxu0 0.0
  %3082 = vmatpush1.msra.mxu0 0.0
  %3083 = vmatprep.subr.mxu0 0.0
  %3084 = vmatpush1.msra.mxu0 0.0
  %3085 = vmatprep.subr.mxu0 0.0
  %3086 = vmatpush1.msra.mxu0 0.0
  %3087 = vmatprep.subr.mxu0 0.0
  %3088 = vmatpush1.msra.mxu0 0.0
  %3089 = vmatprep.subr.mxu0 0.0
  %3090 = vmatpush1.msra.mxu0 0.0
  %3091 = vmatprep.subr.mxu0 0.0
  %3092 = vmatpush1.msra.mxu0 0.0
  %3093 = vmatprep.subr.mxu0 0.0
  %3094 = vmatpush1.msra.mxu0 0.0
  %3095 = vmatprep.subr.mxu0 0.0
  %3096 = vmatpush1.msra.mxu0 0.0
  %3097 = vmatprep.subr.mxu0 0.0
  %3098 = vmatpush1.msra.mxu0 0.0
  %3099 = vmatprep.subr.mxu0 0.0
  %3100 = vmatpush1.msra.mxu0 0.0
  %3101 = vmatprep.subr.mxu0 0.0
  %3102 = vmatpush1.msra.mxu0 0.0
  %3103 = vmatprep.subr.mxu0 0.0
  %3104 = vmatpush1.msra.mxu0 0.0
  %3105 = vmatprep.subr.mxu0 0.0
  %3106 = vmatpush1.msra.mxu0 0.0
  %3107 = vmatprep.subr.mxu0 0.0
  %3108 = vmatpush1.msra.mxu0 0.0
  %3109 = vmatprep.subr.mxu0 0.0
  %3110 = vmatpush1.msra.mxu0 0.0
  %3111 = vmatprep.subr.mxu0 0.0
  %3112 = vmatpush1.msra.mxu0 0.0
  %3113 = vmatprep.subr.mxu0 0.0
  %3114 = vmatpush1.msra.mxu0 0.0
  %3115 = vmatprep.subr.mxu0 0.0
  %3116 = vmatpush1.msra.mxu0 0.0
  %3117 = vmatprep.subr.mxu0 0.0
  %3118 = vmatpush1.msra.mxu0 0.0
  %3119 = vmatprep.subr.mxu0 0.0
  %3120 = vmatpush1.msra.mxu0 0.0
  %3121 = vmatprep.subr.mxu0 0.0
  %3122 = vmatpush1.msra.mxu0 0.0
  %3123 = vmatprep.mubr.f32.mxu0 0.0
  %3124 = vmatmul.mubr.f32.gmra.mrb[0].mxu0 %v3057
  %v3125 = vpop.f32.mrb[0].mxu0
  %v3126 = vadd.f32 0.0, %v3125
  %v3127 = vpop.f32.mrb[0].mxu0
  %3128 = vdwg.mxu0
  %v3129 = vadd.f32 %v3051, %v3126
  %s3130 = scalar_lea.vmem %s5, 8
  %v3131 = vld [vmem:[%s3130] sm:$0x3]
  %v3133 = vsel %vm2225, %v3131, 0
  %3135 = vmatprep.subr.mxu0 0.0
  %3136 = vmatpush1.msra.mxu0 %v2533
  %3137 = vmatprep.subr.mxu0 0.0
  %3138 = vmatpush1.msra.mxu0 0.0
  %3139 = vmatprep.subr.mxu0 0.0
  %3140 = vmatpush1.msra.mxu0 0.0
  %3141 = vmatprep.subr.mxu0 0.0
  %3142 = vmatpush1.msra.mxu0 0.0
  %3143 = vmatprep.subr.mxu0 0.0
  %3144 = vmatpush1.msra.mxu0 0.0
  %3145 = vmatprep.subr.mxu0 0.0
  %3146 = vmatpush1.msra.mxu0 0.0
  %3147 = vmatprep.subr.mxu0 0.0
  %3148 = vmatpush1.msra.mxu0 0.0
  %3149 = vmatprep.subr.mxu0 0.0
  %3150 = vmatpush1.msra.mxu0 0.0
  %3151 = vmatprep.subr.mxu0 0.0
  %3152 = vmatpush1.msra.mxu0 0.0
  %3153 = vmatprep.subr.mxu0 0.0
  %3154 = vmatpush1.msra.mxu0 0.0
  %3155 = vmatprep.subr.mxu0 0.0
  %3156 = vmatpush1.msra.mxu0 0.0
  %3157 = vmatprep.subr.mxu0 0.0
  %3158 = vmatpush1.msra.mxu0 0.0
  %3159 = vmatprep.subr.mxu0 0.0
  %3160 = vmatpush1.msra.mxu0 0.0
  %3161 = vmatprep.subr.mxu0 0.0
  %3162 = vmatpush1.msra.mxu0 0.0
  %3163 = vmatprep.subr.mxu0 0.0
  %3164 = vmatpush1.msra.mxu0 0.0
  %3165 = vmatprep.subr.mxu0 0.0
  %3166 = vmatpush1.msra.mxu0 0.0
  %3167 = vmatprep.subr.mxu0 0.0
  %3168 = vmatpush1.msra.mxu0 0.0
  %3169 = vmatprep.subr.mxu0 0.0
  %3170 = vmatpush1.msra.mxu0 0.0
  %3171 = vmatprep.subr.mxu0 0.0
  %3172 = vmatpush1.msra.mxu0 0.0
  %3173 = vmatprep.subr.mxu0 0.0
  %3174 = vmatpush1.msra.mxu0 0.0
  %3175 = vmatprep.subr.mxu0 0.0
  %3176 = vmatpush1.msra.mxu0 0.0
  %3177 = vmatprep.subr.mxu0 0.0
  %3178 = vmatpush1.msra.mxu0 0.0
  %3179 = vmatprep.subr.mxu0 0.0
  %3180 = vmatpush1.msra.mxu0 0.0
  %3181 = vmatprep.subr.mxu0 0.0
  %3182 = vmatpush1.msra.mxu0 0.0
  %3183 = vmatprep.subr.mxu0 0.0
  %3184 = vmatpush1.msra.mxu0 0.0
  %3185 = vmatprep.subr.mxu0 0.0
  %3186 = vmatpush1.msra.mxu0 0.0
  %3187 = vmatprep.subr.mxu0 0.0
  %3188 = vmatpush1.msra.mxu0 0.0
  %3189 = vmatprep.subr.mxu0 0.0
  %3190 = vmatpush1.msra.mxu0 0.0
  %3191 = vmatprep.subr.mxu0 0.0
  %3192 = vmatpush1.msra.mxu0 0.0
  %3193 = vmatprep.subr.mxu0 0.0
  %3194 = vmatpush1.msra.mxu0 0.0
  %3195 = vmatprep.subr.mxu0 0.0
  %3196 = vmatpush1.msra.mxu0 0.0
  %3197 = vmatprep.subr.mxu0 0.0
  %3198 = vmatpush1.msra.mxu0 0.0
  %3199 = vmatprep.mubr.f32.mxu0 0.0
  %3200 = vmatmul.mubr.f32.gmra.mrb[0].mxu0 %v3133
  %v3201 = vpop.f32.mrb[0].mxu0
  %v3202 = vadd.f32 0.0, %v3201
  %v3203 = vpop.f32.mrb[0].mxu0
  %3204 = vdwg.mxu0
  %v3205 = vadd.f32 %v3129, %v3202
  %3206 = vmatprep.subr.mxu0 0.0
  %3207 = vmatpush1.msra.mxu0 %v2309
  %3208 = vmatprep.subr.mxu0 0.0
  %3209 = vmatpush1.msra.mxu0 0.0
  %3210 = vmatprep.subr.mxu0 0.0
  %3211 = vmatpush1.msra.mxu0 0.0
  %3212 = vmatprep.subr.mxu0 0.0
  %3213 = vmatpush1.msra.mxu0 0.0
  %3214 = vmatprep.subr.mxu0 0.0
  %3215 = vmatpush1.msra.mxu0 0.0
  %3216 = vmatprep.subr.mxu0 0.0
  %3217 = vmatpush1.msra.mxu0 0.0
  %3218 = vmatprep.subr.mxu0 0.0
  %3219 = vmatpush1.msra.mxu0 0.0
  %3220 = vmatprep.subr.mxu0 0.0
  %3221 = vmatpush1.msra.mxu0 0.0
  %3222 = vmatprep.subr.mxu0 0.0
  %3223 = vmatpush1.msra.mxu0 0.0
  %3224 = vmatprep.subr.mxu0 0.0
  %3225 = vmatpush1.msra.mxu0 0.0
  %3226 = vmatprep.subr.mxu0 0.0
  %3227 = vmatpush1.msra.mxu0 0.0
  %3228 = vmatprep.subr.mxu0 0.0
  %3229 = vmatpush1.msra.mxu0 0.0
  %3230 = vmatprep.subr.mxu0 0.0
  %3231 = vmatpush1.msra.mxu0 0.0
  %3232 = vmatprep.subr.mxu0 0.0
  %3233 = vmatpush1.msra.mxu0 0.0
  %3234 = vmatprep.subr.mxu0 0.0
  %3235 = vmatpush1.msra.mxu0 0.0
  %3236 = vmatprep.subr.mxu0 0.0
  %3237 = vmatpush1.msra.mxu0 0.0
  %3238 = vmatprep.subr.mxu0 0.0
  %3239 = vmatpush1.msra.mxu0 0.0
  %3240 = vmatprep.subr.mxu0 0.0
  %3241 = vmatpush1.msra.mxu0 0.0
  %3242 = vmatprep.subr.mxu0 0.0
  %3243 = vmatpush1.msra.mxu0 0.0
  %3244 = vmatprep.subr.mxu0 0.0
  %3245 = vmatpush1.msra.mxu0 0.0
  %3246 = vmatprep.subr.mxu0 0.0
  %3247 = vmatpush1.msra.mxu0 0.0
  %3248 = vmatprep.subr.mxu0 0.0
  %3249 = vmatpush1.msra.mxu0 0.0
  %3250 = vmatprep.subr.mxu0 0.0
  %3251 = vmatpush1.msra.mxu0 0.0
  %3252 = vmatprep.subr.mxu0 0.0
  %3253 = vmatpush1.msra.mxu0 0.0
  %3254 = vmatprep.subr.mxu0 0.0
  %3255 = vmatpush1.msra.mxu0 0.0
  %3256 = vmatprep.subr.mxu0 0.0
  %3257 = vmatpush1.msra.mxu0 0.0
  %3258 = vmatprep.subr.mxu0 0.0
  %3259 = vmatpush1.msra.mxu0 0.0
  %3260 = vmatprep.subr.mxu0 0.0
  %3261 = vmatpush1.msra.mxu0 0.0
  %3262 = vmatprep.subr.mxu0 0.0
  %3263 = vmatpush1.msra.mxu0 0.0
  %3264 = vmatprep.subr.mxu0 0.0
  %3265 = vmatpush1.msra.mxu0 0.0
  %3266 = vmatprep.subr.mxu0 0.0
  %3267 = vmatpush1.msra.mxu0 0.0
  %3268 = vmatprep.subr.mxu0 0.0
  %3269 = vmatpush1.msra.mxu0 0.0
  %3270 = vmatprep.mubr.f32.mxu0 0.0
  %3271 = vmatmul.mubr.f32.gmra.mrb[0].mxu0 %v2227
  %v3272 = vpop.f32.mrb[0].mxu0
  %v3273 = vadd.f32 0.0, %v3272
  %v3274 = vpop.f32.mrb[0].mxu0
  %3275 = vdwg.mxu0
  %3276 = vmatprep.subr.mxu0 0.0
  %3277 = vmatpush1.msra.mxu0 %v2231
  %3278 = vmatprep.subr.mxu0 0.0
  %3279 = vmatpush1.msra.mxu0 0.0
  %3280 = vmatprep.subr.mxu0 0.0
  %3281 = vmatpush1.msra.mxu0 0.0
  %3282 = vmatprep.subr.mxu0 0.0
  %3283 = vmatpush1.msra.mxu0 0.0
  %3284 = vmatprep.subr.mxu0 0.0
  %3285 = vmatpush1.msra.mxu0 0.0
  %3286 = vmatprep.subr.mxu0 0.0
  %3287 = vmatpush1.msra.mxu0 0.0
  %3288 = vmatprep.subr.mxu0 0.0
  %3289 = vmatpush1.msra.mxu0 0.0
  %3290 = vmatprep.subr.mxu0 0.0
  %3291 = vmatpush1.msra.mxu0 0.0
  %3292 = vmatprep.subr.mxu0 0.0
  %3293 = vmatpush1.msra.mxu0 0.0
  %3294 = vmatprep.subr.mxu0 0.0
  %3295 = vmatpush1.msra.mxu0 0.0
  %3296 = vmatprep.subr.mxu0 0.0
  %3297 = vmatpush1.msra.mxu0 0.0
  %3298 = vmatprep.subr.mxu0 0.0
  %3299 = vmatpush1.msra.mxu0 0.0
  %3300 = vmatprep.subr.mxu0 0.0
  %3301 = vmatpush1.msra.mxu0 0.0
  %3302 = vmatprep.subr.mxu0 0.0
  %3303 = vmatpush1.msra.mxu0 0.0
  %3304 = vmatprep.subr.mxu0 0.0
  %3305 = vmatpush1.msra.mxu0 0.0
  %3306 = vmatprep.subr.mxu0 0.0
  %3307 = vmatpush1.msra.mxu0 0.0
  %3308 = vmatprep.subr.mxu0 0.0
  %3309 = vmatpush1.msra.mxu0 0.0
  %3310 = vmatprep.subr.mxu0 0.0
  %3311 = vmatpush1.msra.mxu0 0.0
  %3312 = vmatprep.subr.mxu0 0.0
  %3313 = vmatpush1.msra.mxu0 0.0
  %3314 = vmatprep.subr.mxu0 0.0
  %3315 = vmatpush1.msra.mxu0 0.0
  %3316 = vmatprep.subr.mxu0 0.0
  %3317 = vmatpush1.msra.mxu0 0.0
  %3318 = vmatprep.subr.mxu0 0.0
  %3319 = vmatpush1.msra.mxu0 0.0
  %3320 = vmatprep.subr.mxu0 0.0
  %3321 = vmatpush1.msra.mxu0 0.0
  %3322 = vmatprep.subr.mxu0 0.0
  %3323 = vmatpush1.msra.mxu0 0.0
  %3324 = vmatprep.subr.mxu0 0.0
  %3325 = vmatpush1.msra.mxu0 0.0
  %3326 = vmatprep.subr.mxu0 0.0
  %3327 = vmatpush1.msra.mxu0 0.0
  %3328 = vmatprep.subr.mxu0 0.0
  %3329 = vmatpush1.msra.mxu0 0.0
  %3330 = vmatprep.subr.mxu0 0.0
  %3331 = vmatpush1.msra.mxu0 0.0
  %3332 = vmatprep.subr.mxu0 0.0
  %3333 = vmatpush1.msra.mxu0 0.0
  %3334 = vmatprep.subr.mxu0 0.0
  %3335 = vmatpush1.msra.mxu0 0.0
  %3336 = vmatprep.subr.mxu0 0.0
  %3337 = vmatpush1.msra.mxu0 0.0
  %3338 = vmatprep.subr.mxu0 0.0
  %3339 = vmatpush1.msra.mxu0 0.0
  %3340 = vmatprep.mubr.f32.mxu0 0.0
  %3341 = vmatmul.mubr.f32.gmra.mrb[0].mxu0 %v2306
  %v3342 = vpop.f32.mrb[0].mxu0
  %v3343 = vadd.f32 0.0, %v3342
  %v3344 = vpop.f32.mrb[0].mxu0
  %3345 = vdwg.mxu0
  %v3347 = vsel %vm198, %v3343, 0
  %3349 = vmatprep.subr.mxu0 0.0
  %3350 = vmatpush1.msra.mxu0 %v194
  %3351 = vmatprep.subr.mxu0 0.0
  %3352 = vmatpush1.msra.mxu0 %v195
  %3353 = vmatprep.subr.mxu0 0.0
  %3354 = vmatpush1.msra.mxu0 %v196
  %3355 = vmatprep.subr.mxu0 0.0
  %3356 = vmatpush1.msra.mxu0 %v197
  %3357 = vmatprep.subr.mxu0 0.0
  %3358 = vmatpush1.msra.mxu0 0.0
  %3359 = vmatprep.subr.mxu0 0.0
  %3360 = vmatpush1.msra.mxu0 0.0
  %3361 = vmatprep.subr.mxu0 0.0
  %3362 = vmatpush1.msra.mxu0 0.0
  %3363 = vmatprep.subr.mxu0 0.0
  %3364 = vmatpush1.msra.mxu0 0.0
  %3365 = vmatprep.subr.mxu0 0.0
  %3366 = vmatpush1.msra.mxu0 0.0
  %3367 = vmatprep.subr.mxu0 0.0
  %3368 = vmatpush1.msra.mxu0 0.0
  %3369 = vmatprep.subr.mxu0 0.0
  %3370 = vmatpush1.msra.mxu0 0.0
  %3371 = vmatprep.subr.mxu0 0.0
  %3372 = vmatpush1.msra.mxu0 0.0
  %3373 = vmatprep.subr.mxu0 0.0
  %3374 = vmatpush1.msra.mxu0 0.0
  %3375 = vmatprep.subr.mxu0 0.0
  %3376 = vmatpush1.msra.mxu0 0.0
  %3377 = vmatprep.subr.mxu0 0.0
  %3378 = vmatpush1.msra.mxu0 0.0
  %3379 = vmatprep.subr.mxu0 0.0
  %3380 = vmatpush1.msra.mxu0 0.0
  %3381 = vmatprep.subr.mxu0 0.0
  %3382 = vmatpush1.msra.mxu0 0.0
  %3383 = vmatprep.subr.mxu0 0.0
  %3384 = vmatpush1.msra.mxu0 0.0
  %3385 = vmatprep.subr.mxu0 0.0
  %3386 = vmatpush1.msra.mxu0 0.0
  %3387 = vmatprep.subr.mxu0 0.0
  %3388 = vmatpush1.msra.mxu0 0.0
  %3389 = vmatprep.subr.mxu0 0.0
  %3390 = vmatpush1.msra.mxu0 0.0
  %3391 = vmatprep.subr.mxu0 0.0
  %3392 = vmatpush1.msra.mxu0 0.0
  %3393 = vmatprep.subr.mxu0 0.0
  %3394 = vmatpush1.msra.mxu0 0.0
  %3395 = vmatprep.subr.mxu0 0.0
  %3396 = vmatpush1.msra.mxu0 0.0
  %3397 = vmatprep.subr.mxu0 0.0
  %3398 = vmatpush1.msra.mxu0 0.0
  %3399 = vmatprep.subr.mxu0 0.0
  %3400 = vmatpush1.msra.mxu0 0.0
  %3401 = vmatprep.subr.mxu0 0.0
  %3402 = vmatpush1.msra.mxu0 0.0
  %3403 = vmatprep.subr.mxu0 0.0
  %3404 = vmatpush1.msra.mxu0 0.0
  %3405 = vmatprep.subr.mxu0 0.0
  %3406 = vmatpush1.msra.mxu0 0.0
  %3407 = vmatprep.subr.mxu0 0.0
  %3408 = vmatpush1.msra.mxu0 0.0
  %3409 = vmatprep.subr.mxu0 0.0
  %3410 = vmatpush1.msra.mxu0 0.0
  %3411 = vmatprep.subr.mxu0 0.0
  %3412 = vmatpush1.msra.mxu0 0.0
  %3413 = vmatprep.mubr.f32.mxu0 0.0
  %3414 = vmatmul.mubr.f32.gmra.mrb[0].mxu0 %v3347
  %v3415 = vpop.f32.mrb[0].mxu0
  %v3416 = vadd.f32 0.0, %v3415
  %v3417 = vpop.f32.mrb[0].mxu0
  %3418 = vdwg.mxu0
  %v3420 = vsel %vm198, %v3273, 0
  %3422 = vmatprep.subr.mxu0 0.0
  %3423 = vmatpush1.msra.mxu0 %v194
  %3424 = vmatprep.subr.mxu0 0.0
  %3425 = vmatpush1.msra.mxu0 %v195
  %3426 = vmatprep.subr.mxu0 0.0
  %3427 = vmatpush1.msra.mxu0 %v196
  %3428 = vmatprep.subr.mxu0 0.0
  %3429 = vmatpush1.msra.mxu0 %v197
  %3430 = vmatprep.subr.mxu0 0.0
  %3431 = vmatpush1.msra.mxu0 0.0
  %3432 = vmatprep.subr.mxu0 0.0
  %3433 = vmatpush1.msra.mxu0 0.0
  %3434 = vmatprep.subr.mxu0 0.0
  %3435 = vmatpush1.msra.mxu0 0.0
  %3436 = vmatprep.subr.mxu0 0.0
  %3437 = vmatpush1.msra.mxu0 0.0
  %3438 = vmatprep.subr.mxu0 0.0
  %3439 = vmatpush1.msra.mxu0 0.0
  %3440 = vmatprep.subr.mxu0 0.0
  %3441 = vmatpush1.msra.mxu0 0.0
  %3442 = vmatprep.subr.mxu0 0.0
  %3443 = vmatpush1.msra.mxu0 0.0
  %3444 = vmatprep.subr.mxu0 0.0
  %3445 = vmatpush1.msra.mxu0 0.0
  %3446 = vmatprep.subr.mxu0 0.0
  %3447 = vmatpush1.msra.mxu0 0.0
  %3448 = vmatprep.subr.mxu0 0.0
  %3449 = vmatpush1.msra.mxu0 0.0
  %3450 = vmatprep.subr.mxu0 0.0
  %3451 = vmatpush1.msra.mxu0 0.0
  %3452 = vmatprep.subr.mxu0 0.0
  %3453 = vmatpush1.msra.mxu0 0.0
  %3454 = vmatprep.subr.mxu0 0.0
  %3455 = vmatpush1.msra.mxu0 0.0
  %3456 = vmatprep.subr.mxu0 0.0
  %3457 = vmatpush1.msra.mxu0 0.0
  %3458 = vmatprep.subr.mxu0 0.0
  %3459 = vmatpush1.msra.mxu0 0.0
  %3460 = vmatprep.subr.mxu0 0.0
  %3461 = vmatpush1.msra.mxu0 0.0
  %3462 = vmatprep.subr.mxu0 0.0
  %3463 = vmatpush1.msra.mxu0 0.0
  %3464 = vmatprep.subr.mxu0 0.0
  %3465 = vmatpush1.msra.mxu0 0.0
  %3466 = vmatprep.subr.mxu0 0.0
  %3467 = vmatpush1.msra.mxu0 0.0
  %3468 = vmatprep.subr.mxu0 0.0
  %3469 = vmatpush1.msra.mxu0 0.0
  %3470 = vmatprep.subr.mxu0 0.0
  %3471 = vmatpush1.msra.mxu0 0.0
  %3472 = vmatprep.subr.mxu0 0.0
  %3473 = vmatpush1.msra.mxu0 0.0
  %3474 = vmatprep.subr.mxu0 0.0
  %3475 = vmatpush1.msra.mxu0 0.0
  %3476 = vmatprep.subr.mxu0 0.0
  %3477 = vmatpush1.msra.mxu0 0.0
  %3478 = vmatprep.subr.mxu0 0.0
  %3479 = vmatpush1.msra.mxu0 0.0
  %3480 = vmatprep.subr.mxu0 0.0
  %3481 = vmatpush1.msra.mxu0 0.0
  %3482 = vmatprep.subr.mxu0 0.0
  %3483 = vmatpush1.msra.mxu0 0.0
  %3484 = vmatprep.subr.mxu0 0.0
  %3485 = vmatpush1.msra.mxu0 0.0
  %3486 = vmatprep.mubr.f32.mxu0 0.0
  %3487 = vmatmul.mubr.f32.gmra.mrb[0].mxu0 %v3420
  %v3488 = vpop.f32.mrb[0].mxu0
  %v3489 = vadd.f32 %v3416, %v3488
  %v3490 = vpop.f32.mrb[0].mxu0
  %3491 = vdwg.mxu0
  %3492 = vmatprep.subr.mxu0 0.0
  %3493 = vmatpush1.msra.mxu0 %v2685
  %3494 = vmatprep.subr.mxu0 0.0
  %3495 = vmatpush1.msra.mxu0 0.0
  %3496 = vmatprep.subr.mxu0 0.0
  %3497 = vmatpush1.msra.mxu0 0.0
  %3498 = vmatprep.subr.mxu0 0.0
  %3499 = vmatpush1.msra.mxu0 0.0
  %3500 = vmatprep.subr.mxu0 0.0
  %3501 = vmatpush1.msra.mxu0 0.0
  %3502 = vmatprep.subr.mxu0 0.0
  %3503 = vmatpush1.msra.mxu0 0.0
  %3504 = vmatprep.subr.mxu0 0.0
  %3505 = vmatpush1.msra.mxu0 0.0
  %3506 = vmatprep.subr.mxu0 0.0
  %3507 = vmatpush1.msra.mxu0 0.0
  %3508 = vmatprep.subr.mxu0 0.0
  %3509 = vmatpush1.msra.mxu0 0.0
  %3510 = vmatprep.subr.mxu0 0.0
  %3511 = vmatpush1.msra.mxu0 0.0
  %3512 = vmatprep.subr.mxu0 0.0
  %3513 = vmatpush1.msra.mxu0 0.0
  %3514 = vmatprep.subr.mxu0 0.0
  %3515 = vmatpush1.msra.mxu0 0.0
  %3516 = vmatprep.subr.mxu0 0.0
  %3517 = vmatpush1.msra.mxu0 0.0
  %3518 = vmatprep.subr.mxu0 0.0
  %3519 = vmatpush1.msra.mxu0 0.0
  %3520 = vmatprep.subr.mxu0 0.0
  %3521 = vmatpush1.msra.mxu0 0.0
  %3522 = vmatprep.subr.mxu0 0.0
  %3523 = vmatpush1.msra.mxu0 0.0
  %3524 = vmatprep.subr.mxu0 0.0
  %3525 = vmatpush1.msra.mxu0 0.0
  %3526 = vmatprep.subr.mxu0 0.0
  %3527 = vmatpush1.msra.mxu0 0.0
  %3528 = vmatprep.subr.mxu0 0.0
  %3529 = vmatpush1.msra.mxu0 0.0
  %3530 = vmatprep.subr.mxu0 0.0
  %3531 = vmatpush1.msra.mxu0 0.0
  %3532 = vmatprep.subr.mxu0 0.0
  %3533 = vmatpush1.msra.mxu0 0.0
  %3534 = vmatprep.subr.mxu0 0.0
  %3535 = vmatpush1.msra.mxu0 0.0
  %3536 = vmatprep.subr.mxu0 0.0
  %3537 = vmatpush1.msra.mxu0 0.0
  %3538 = vmatprep.subr.mxu0 0.0
  %3539 = vmatpush1.msra.mxu0 0.0
  %3540 = vmatprep.subr.mxu0 0.0
  %3541 = vmatpush1.msra.mxu0 0.0
  %3542 = vmatprep.subr.mxu0 0.0
  %3543 = vmatpush1.msra.mxu0 0.0
  %3544 = vmatprep.subr.mxu0 0.0
  %3545 = vmatpush1.msra.mxu0 0.0
  %3546 = vmatprep.subr.mxu0 0.0
  %3547 = vmatpush1.msra.mxu0 0.0
  %3548 = vmatprep.subr.mxu0 0.0
  %3549 = vmatpush1.msra.mxu0 0.0
  %3550 = vmatprep.subr.mxu0 0.0
  %3551 = vmatpush1.msra.mxu0 0.0
  %3552 = vmatprep.subr.mxu0 0.0
  %3553 = vmatpush1.msra.mxu0 0.0
  %3554 = vmatprep.subr.mxu0 0.0
  %3555 = vmatpush1.msra.mxu0 0.0
  %3556 = vmatprep.mubr.f32.mxu0 0.0
  %3557 = vmatmul.mubr.f32.gmra.mrb[0].mxu0 %v2530
  %v3558 = vpop.f32.mrb[0].mxu0
  %v3559 = vadd.f32 0.0, %v3558
  %v3560 = vpop.f32.mrb[0].mxu0
  %3561 = vdwg.mxu0
  %v3562 = vadd.f32 %v3489, %v3559
  %3563 = vmatprep.subr.mxu0 0.0
  %3564 = vmatpush1.msra.mxu0 %v2533
  %3565 = vmatprep.subr.mxu0 0.0
  %3566 = vmatpush1.msra.mxu0 0.0
  %3567 = vmatprep.subr.mxu0 0.0
  %3568 = vmatpush1.msra.mxu0 0.0
  %3569 = vmatprep.subr.mxu0 0.0
  %3570 = vmatpush1.msra.mxu0 0.0
  %3571 = vmatprep.subr.mxu0 0.0
  %3572 = vmatpush1.msra.mxu0 0.0
  %3573 = vmatprep.subr.mxu0 0.0
  %3574 = vmatpush1.msra.mxu0 0.0
  %3575 = vmatprep.subr.mxu0 0.0
  %3576 = vmatpush1.msra.mxu0 0.0
  %3577 = vmatprep.subr.mxu0 0.0
  %3578 = vmatpush1.msra.mxu0 0.0
  %3579 = vmatprep.subr.mxu0 0.0
  %3580 = vmatpush1.msra.mxu0 0.0
  %3581 = vmatprep.subr.mxu0 0.0
  %3582 = vmatpush1.msra.mxu0 0.0
  %3583 = vmatprep.subr.mxu0 0.0
  %3584 = vmatpush1.msra.mxu0 0.0
  %3585 = vmatprep.subr.mxu0 0.0
  %3586 = vmatpush1.msra.mxu0 0.0
  %3587 = vmatprep.subr.mxu0 0.0
  %3588 = vmatpush1.msra.mxu0 0.0
  %3589 = vmatprep.subr.mxu0 0.0
  %3590 = vmatpush1.msra.mxu0 0.0
  %3591 = vmatprep.subr.mxu0 0.0
  %3592 = vmatpush1.msra.mxu0 0.0
  %3593 = vmatprep.subr.mxu0 0.0
  %3594 = vmatpush1.msra.mxu0 0.0
  %3595 = vmatprep.subr.mxu0 0.0
  %3596 = vmatpush1.msra.mxu0 0.0
  %3597 = vmatprep.subr.mxu0 0.0
  %3598 = vmatpush1.msra.mxu0 0.0
  %3599 = vmatprep.subr.mxu0 0.0
  %3600 = vmatpush1.msra.mxu0 0.0
  %3601 = vmatprep.subr.mxu0 0.0
  %3602 = vmatpush1.msra.mxu0 0.0
  %3603 = vmatprep.subr.mxu0 0.0
  %3604 = vmatpush1.msra.mxu0 0.0
  %3605 = vmatprep.subr.mxu0 0.0
  %3606 = vmatpush1.msra.mxu0 0.0
  %3607 = vmatprep.subr.mxu0 0.0
  %3608 = vmatpush1.msra.mxu0 0.0
  %3609 = vmatprep.subr.mxu0 0.0
  %3610 = vmatpush1.msra.mxu0 0.0
  %3611 = vmatprep.subr.mxu0 0.0
  %3612 = vmatpush1.msra.mxu0 0.0
  %3613 = vmatprep.subr.mxu0 0.0
  %3614 = vmatpush1.msra.mxu0 0.0
  %3615 = vmatprep.subr.mxu0 0.0
  %3616 = vmatpush1.msra.mxu0 0.0
  %3617 = vmatprep.subr.mxu0 0.0
  %3618 = vmatpush1.msra.mxu0 0.0
  %3619 = vmatprep.subr.mxu0 0.0
  %3620 = vmatpush1.msra.mxu0 0.0
  %3621 = vmatprep.subr.mxu0 0.0
  %3622 = vmatpush1.msra.mxu0 0.0
  %3623 = vmatprep.subr.mxu0 0.0
  %3624 = vmatpush1.msra.mxu0 0.0
  %3625 = vmatprep.subr.mxu0 0.0
  %3626 = vmatpush1.msra.mxu0 0.0
  %3627 = vmatprep.mubr.f32.mxu0 0.0
  %3628 = vmatmul.mubr.f32.gmra.mrb[0].mxu0 %v2682
  %v3629 = vpop.f32.mrb[0].mxu0
  %v3630 = vadd.f32 0.0, %v3629
  %v3631 = vpop.f32.mrb[0].mxu0
  %3632 = vdwg.mxu0
  %v3633 = vadd.f32 %v3562, %v3630
  %3634 = vmatprep.subr.mxu0 0.0
  %3635 = vmatpush1.msra.mxu0 %v2231
  %3636 = vmatprep.subr.mxu0 0.0
  %3637 = vmatpush1.msra.mxu0 0.0
  %3638 = vmatprep.subr.mxu0 0.0
  %3639 = vmatpush1.msra.mxu0 0.0
  %3640 = vmatprep.subr.mxu0 0.0
  %3641 = vmatpush1.msra.mxu0 0.0
  %3642 = vmatprep.subr.mxu0 0.0
  %3643 = vmatpush1.msra.mxu0 0.0
  %3644 = vmatprep.subr.mxu0 0.0
  %3645 = vmatpush1.msra.mxu0 0.0
  %3646 = vmatprep.subr.mxu0 0.0
  %3647 = vmatpush1.msra.mxu0 0.0
  %3648 = vmatprep.subr.mxu0 0.0
  %3649 = vmatpush1.msra.mxu0 0.0
  %3650 = vmatprep.subr.mxu0 0.0
  %3651 = vmatpush1.msra.mxu0 0.0
  %3652 = vmatprep.subr.mxu0 0.0
  %3653 = vmatpush1.msra.mxu0 0.0
  %3654 = vmatprep.subr.mxu0 0.0
  %3655 = vmatpush1.msra.mxu0 0.0
  %3656 = vmatprep.subr.mxu0 0.0
  %3657 = vmatpush1.msra.mxu0 0.0
  %3658 = vmatprep.subr.mxu0 0.0
  %3659 = vmatpush1.msra.mxu0 0.0
  %3660 = vmatprep.subr.mxu0 0.0
  %3661 = vmatpush1.msra.mxu0 0.0
  %3662 = vmatprep.subr.mxu0 0.0
  %3663 = vmatpush1.msra.mxu0 0.0
  %3664 = vmatprep.subr.mxu0 0.0
  %3665 = vmatpush1.msra.mxu0 0.0
  %3666 = vmatprep.subr.mxu0 0.0
  %3667 = vmatpush1.msra.mxu0 0.0
  %3668 = vmatprep.subr.mxu0 0.0
  %3669 = vmatpush1.msra.mxu0 0.0
  %3670 = vmatprep.subr.mxu0 0.0
  %3671 = vmatpush1.msra.mxu0 0.0
  %3672 = vmatprep.subr.mxu0 0.0
  %3673 = vmatpush1.msra.mxu0 0.0
  %3674 = vmatprep.subr.mxu0 0.0
  %3675 = vmatpush1.msra.mxu0 0.0
  %3676 = vmatprep.subr.mxu0 0.0
  %3677 = vmatpush1.msra.mxu0 0.0
  %3678 = vmatprep.subr.mxu0 0.0
  %3679 = vmatpush1.msra.mxu0 0.0
  %3680 = vmatprep.subr.mxu0 0.0
  %3681 = vmatpush1.msra.mxu0 0.0
  %3682 = vmatprep.subr.mxu0 0.0
  %3683 = vmatpush1.msra.mxu0 0.0
  %3684 = vmatprep.subr.mxu0 0.0
  %3685 = vmatpush1.msra.mxu0 0.0
  %3686 = vmatprep.subr.mxu0 0.0
  %3687 = vmatpush1.msra.mxu0 0.0
  %3688 = vmatprep.subr.mxu0 0.0
  %3689 = vmatpush1.msra.mxu0 0.0
  %3690 = vmatprep.subr.mxu0 0.0
  %3691 = vmatpush1.msra.mxu0 0.0
  %3692 = vmatprep.subr.mxu0 0.0
  %3693 = vmatpush1.msra.mxu0 0.0
  %3694 = vmatprep.subr.mxu0 0.0
  %3695 = vmatpush1.msra.mxu0 0.0
  %3696 = vmatprep.subr.mxu0 0.0
  %3697 = vmatpush1.msra.mxu0 0.0
  %3698 = vmatprep.mubr.f32.mxu0 0.0
  %3699 = vmatmul.mubr.f32.gmra.mrb[0].mxu0 %v2761
  %v3700 = vpop.f32.mrb[0].mxu0
  %v3701 = vadd.f32 0.0, %v3700
  %v3702 = vpop.f32.mrb[0].mxu0
  %3703 = vdwg.mxu0
  %3704 = vmatprep.subr.mxu0 0.0
  %3705 = vmatpush1.msra.mxu0 %v2309
  %3706 = vmatprep.subr.mxu0 0.0
  %3707 = vmatpush1.msra.mxu0 0.0
  %3708 = vmatprep.subr.mxu0 0.0
  %3709 = vmatpush1.msra.mxu0 0.0
  %3710 = vmatprep.subr.mxu0 0.0
  %3711 = vmatpush1.msra.mxu0 0.0
  %3712 = vmatprep.subr.mxu0 0.0
  %3713 = vmatpush1.msra.mxu0 0.0
  %3714 = vmatprep.subr.mxu0 0.0
  %3715 = vmatpush1.msra.mxu0 0.0
  %3716 = vmatprep.subr.mxu0 0.0
  %3717 = vmatpush1.msra.mxu0 0.0
  %3718 = vmatprep.subr.mxu0 0.0
  %3719 = vmatpush1.msra.mxu0 0.0
  %3720 = vmatprep.subr.mxu0 0.0
  %3721 = vmatpush1.msra.mxu0 0.0
  %3722 = vmatprep.subr.mxu0 0.0
  %3723 = vmatpush1.msra.mxu0 0.0
  %3724 = vmatprep.subr.mxu0 0.0
  %3725 = vmatpush1.msra.mxu0 0.0
  %3726 = vmatprep.subr.mxu0 0.0
  %3727 = vmatpush1.msra.mxu0 0.0
  %3728 = vmatprep.subr.mxu0 0.0
  %3729 = vmatpush1.msra.mxu0 0.0
  %3730 = vmatprep.subr.mxu0 0.0
  %3731 = vmatpush1.msra.mxu0 0.0
  %3732 = vmatprep.subr.mxu0 0.0
  %3733 = vmatpush1.msra.mxu0 0.0
  %3734 = vmatprep.subr.mxu0 0.0
  %3735 = vmatpush1.msra.mxu0 0.0
  %3736 = vmatprep.subr.mxu0 0.0
  %3737 = vmatpush1.msra.mxu0 0.0
  %3738 = vmatprep.subr.mxu0 0.0
  %3739 = vmatpush1.msra.mxu0 0.0
  %3740 = vmatprep.subr.mxu0 0.0
  %3741 = vmatpush1.msra.mxu0 0.0
  %3742 = vmatprep.subr.mxu0 0.0
  %3743 = vmatpush1.msra.mxu0 0.0
  %3744 = vmatprep.subr.mxu0 0.0
  %3745 = vmatpush1.msra.mxu0 0.0
  %3746 = vmatprep.subr.mxu0 0.0
  %3747 = vmatpush1.msra.mxu0 0.0
  %3748 = vmatprep.subr.mxu0 0.0
  %3749 = vmatpush1.msra.mxu0 0.0
  %3750 = vmatprep.subr.mxu0 0.0
  %3751 = vmatpush1.msra.mxu0 0.0
  %3752 = vmatprep.subr.mxu0 0.0
  %3753 = vmatpush1.msra.mxu0 0.0
  %3754 = vmatprep.subr.mxu0 0.0
  %3755 = vmatpush1.msra.mxu0 0.0
  %3756 = vmatprep.subr.mxu0 0.0
  %3757 = vmatpush1.msra.mxu0 0.0
  %3758 = vmatprep.subr.mxu0 0.0
  %3759 = vmatpush1.msra.mxu0 0.0
  %3760 = vmatprep.subr.mxu0 0.0
  %3761 = vmatpush1.msra.mxu0 0.0
  %3762 = vmatprep.subr.mxu0 0.0
  %3763 = vmatpush1.msra.mxu0 0.0
  %3764 = vmatprep.subr.mxu0 0.0
  %3765 = vmatpush1.msra.mxu0 0.0
  %3766 = vmatprep.subr.mxu0 0.0
  %3767 = vmatpush1.msra.mxu0 0.0
  %3768 = vmatprep.mubr.f32.mxu0 0.0
  %3769 = vmatmul.mubr.f32.gmra.mrb[0].mxu0 %v2836
  %v3770 = vpop.f32.mrb[0].mxu0
  %v3771 = vadd.f32 0.0, %v3770
  %v3772 = vpop.f32.mrb[0].mxu0
  %3773 = vdwg.mxu0
  %v3775 = vsel %vm198, %v3771, 0
  %3777 = vmatprep.subr.mxu0 0.0
  %3778 = vmatpush1.msra.mxu0 %v726
  %3779 = vmatprep.subr.mxu0 0.0
  %3780 = vmatpush1.msra.mxu0 %v727
  %3781 = vmatprep.subr.mxu0 0.0
  %3782 = vmatpush1.msra.mxu0 %v728
  %3783 = vmatprep.subr.mxu0 0.0
  %3784 = vmatpush1.msra.mxu0 %v729
  %3785 = vmatprep.subr.mxu0 0.0
  %3786 = vmatpush1.msra.mxu0 0.0
  %3787 = vmatprep.subr.mxu0 0.0
  %3788 = vmatpush1.msra.mxu0 0.0
  %3789 = vmatprep.subr.mxu0 0.0
  %3790 = vmatpush1.msra.mxu0 0.0
  %3791 = vmatprep.subr.mxu0 0.0
  %3792 = vmatpush1.msra.mxu0 0.0
  %3793 = vmatprep.subr.mxu0 0.0
  %3794 = vmatpush1.msra.mxu0 0.0
  %3795 = vmatprep.subr.mxu0 0.0
  %3796 = vmatpush1.msra.mxu0 0.0
  %3797 = vmatprep.subr.mxu0 0.0
  %3798 = vmatpush1.msra.mxu0 0.0
  %3799 = vmatprep.subr.mxu0 0.0
  %3800 = vmatpush1.msra.mxu0 0.0
  %3801 = vmatprep.subr.mxu0 0.0
  %3802 = vmatpush1.msra.mxu0 0.0
  %3803 = vmatprep.subr.mxu0 0.0
  %3804 = vmatpush1.msra.mxu0 0.0
  %3805 = vmatprep.subr.mxu0 0.0
  %3806 = vmatpush1.msra.mxu0 0.0
  %3807 = vmatprep.subr.mxu0 0.0
  %3808 = vmatpush1.msra.mxu0 0.0
  %3809 = vmatprep.subr.mxu0 0.0
  %3810 = vmatpush1.msra.mxu0 0.0
  %3811 = vmatprep.subr.mxu0 0.0
  %3812 = vmatpush1.msra.mxu0 0.0
  %3813 = vmatprep.subr.mxu0 0.0
  %3814 = vmatpush1.msra.mxu0 0.0
  %3815 = vmatprep.subr.mxu0 0.0
  %3816 = vmatpush1.msra.mxu0 0.0
  %3817 = vmatprep.subr.mxu0 0.0
  %3818 = vmatpush1.msra.mxu0 0.0
  %3819 = vmatprep.subr.mxu0 0.0
  %3820 = vmatpush1.msra.mxu0 0.0
  %3821 = vmatprep.subr.mxu0 0.0
  %3822 = vmatpush1.msra.mxu0 0.0
  %3823 = vmatprep.subr.mxu0 0.0
  %3824 = vmatpush1.msra.mxu0 0.0
  %3825 = vmatprep.subr.mxu0 0.0
  %3826 = vmatpush1.msra.mxu0 0.0
  %3827 = vmatprep.subr.mxu0 0.0
  %3828 = vmatpush1.msra.mxu0 0.0
  %3829 = vmatprep.subr.mxu0 0.0
  %3830 = vmatpush1.msra.mxu0 0.0
  %3831 = vmatprep.subr.mxu0 0.0
  %3832 = vmatpush1.msra.mxu0 0.0
  %3833 = vmatprep.subr.mxu0 0.0
  %3834 = vmatpush1.msra.mxu0 0.0
  %3835 = vmatprep.subr.mxu0 0.0
  %3836 = vmatpush1.msra.mxu0 0.0
  %3837 = vmatprep.subr.mxu0 0.0
  %3838 = vmatpush1.msra.mxu0 0.0
  %3839 = vmatprep.subr.mxu0 0.0
  %3840 = vmatpush1.msra.mxu0 0.0
  %3841 = vmatprep.mubr.f32.mxu0 0.0
  %3842 = vmatmul.mubr.f32.gmra.mrb[0].mxu0 %v3775
  %v3843 = vpop.f32.mrb[0].mxu0
  %v3844 = vadd.f32 0.0, %v3843
  %v3845 = vpop.f32.mrb[0].mxu0
  %3846 = vdwg.mxu0
  %v3848 = vsel %vm198, %v3701, 0
  %3850 = vmatprep.subr.mxu0 0.0
  %3851 = vmatpush1.msra.mxu0 %v194
  %3852 = vmatprep.subr.mxu0 0.0
  %3853 = vmatpush1.msra.mxu0 %v195
  %3854 = vmatprep.subr.mxu0 0.0
  %3855 = vmatpush1.msra.mxu0 %v196
  %3856 = vmatprep.subr.mxu0 0.0
  %3857 = vmatpush1.msra.mxu0 %v197
  %3858 = vmatprep.subr.mxu0 0.0
  %3859 = vmatpush1.msra.mxu0 0.0
  %3860 = vmatprep.subr.mxu0 0.0
  %3861 = vmatpush1.msra.mxu0 0.0
  %3862 = vmatprep.subr.mxu0 0.0
  %3863 = vmatpush1.msra.mxu0 0.0
  %3864 = vmatprep.subr.mxu0 0.0
  %3865 = vmatpush1.msra.mxu0 0.0
  %3866 = vmatprep.subr.mxu0 0.0
  %3867 = vmatpush1.msra.mxu0 0.0
  %3868 = vmatprep.subr.mxu0 0.0
  %3869 = vmatpush1.msra.mxu0 0.0
  %3870 = vmatprep.subr.mxu0 0.0
  %3871 = vmatpush1.msra.mxu0 0.0
  %3872 = vmatprep.subr.mxu0 0.0
  %3873 = vmatpush1.msra.mxu0 0.0
  %3874 = vmatprep.subr.mxu0 0.0
  %3875 = vmatpush1.msra.mxu0 0.0
  %3876 = vmatprep.subr.mxu0 0.0
  %3877 = vmatpush1.msra.mxu0 0.0
  %3878 = vmatprep.subr.mxu0 0.0
  %3879 = vmatpush1.msra.mxu0 0.0
  %3880 = vmatprep.subr.mxu0 0.0
  %3881 = vmatpush1.msra.mxu0 0.0
  %3882 = vmatprep.subr.mxu0 0.0
  %3883 = vmatpush1.msra.mxu0 0.0
  %3884 = vmatprep.subr.mxu0 0.0
  %3885 = vmatpush1.msra.mxu0 0.0
  %3886 = vmatprep.subr.mxu0 0.0
  %3887 = vmatpush1.msra.mxu0 0.0
  %3888 = vmatprep.subr.mxu0 0.0
  %3889 = vmatpush1.msra.mxu0 0.0
  %3890 = vmatprep.subr.mxu0 0.0
  %3891 = vmatpush1.msra.mxu0 0.0
  %3892 = vmatprep.subr.mxu0 0.0
  %3893 = vmatpush1.msra.mxu0 0.0
  %3894 = vmatprep.subr.mxu0 0.0
  %3895 = vmatpush1.msra.mxu0 0.0
  %3896 = vmatprep.subr.mxu0 0.0
  %3897 = vmatpush1.msra.mxu0 0.0
  %3898 = vmatprep.subr.mxu0 0.0
  %3899 = vmatpush1.msra.mxu0 0.0
  %3900 = vmatprep.subr.mxu0 0.0
  %3901 = vmatpush1.msra.mxu0 0.0
  %3902 = vmatprep.subr.mxu0 0.0
  %3903 = vmatpush1.msra.mxu0 0.0
  %3904 = vmatprep.subr.mxu0 0.0
  %3905 = vmatpush1.msra.mxu0 0.0
  %3906 = vmatprep.subr.mxu0 0.0
  %3907 = vmatpush1.msra.mxu0 0.0
  %3908 = vmatprep.subr.mxu0 0.0
  %3909 = vmatpush1.msra.mxu0 0.0
  %3910 = vmatprep.subr.mxu0 0.0
  %3911 = vmatpush1.msra.mxu0 0.0
  %3912 = vmatprep.subr.mxu0 0.0
  %3913 = vmatpush1.msra.mxu0 0.0
  %3914 = vmatprep.mubr.f32.mxu0 0.0
  %3915 = vmatmul.mubr.f32.gmra.mrb[0].mxu0 %v3848
  %v3916 = vpop.f32.mrb[0].mxu0
  %v3917 = vadd.f32 %v3844, %v3916
  %v3918 = vpop.f32.mrb[0].mxu0
  %3919 = vdwg.mxu0
  %3920 = vmatprep.subr.mxu0 0.0
  %3921 = vmatpush1.msra.mxu0 %v2533
  %3922 = vmatprep.subr.mxu0 0.0
  %3923 = vmatpush1.msra.mxu0 0.0
  %3924 = vmatprep.subr.mxu0 0.0
  %3925 = vmatpush1.msra.mxu0 0.0
  %3926 = vmatprep.subr.mxu0 0.0
  %3927 = vmatpush1.msra.mxu0 0.0
  %3928 = vmatprep.subr.mxu0 0.0
  %3929 = vmatpush1.msra.mxu0 0.0
  %3930 = vmatprep.subr.mxu0 0.0
  %3931 = vmatpush1.msra.mxu0 0.0
  %3932 = vmatprep.subr.mxu0 0.0
  %3933 = vmatpush1.msra.mxu0 0.0
  %3934 = vmatprep.subr.mxu0 0.0
  %3935 = vmatpush1.msra.mxu0 0.0
  %3936 = vmatprep.subr.mxu0 0.0
  %3937 = vmatpush1.msra.mxu0 0.0
  %3938 = vmatprep.subr.mxu0 0.0
  %3939 = vmatpush1.msra.mxu0 0.0
  %3940 = vmatprep.subr.mxu0 0.0
  %3941 = vmatpush1.msra.mxu0 0.0
  %3942 = vmatprep.subr.mxu0 0.0
  %3943 = vmatpush1.msra.mxu0 0.0
  %3944 = vmatprep.subr.mxu0 0.0
  %3945 = vmatpush1.msra.mxu0 0.0
  %3946 = vmatprep.subr.mxu0 0.0
  %3947 = vmatpush1.msra.mxu0 0.0
  %3948 = vmatprep.subr.mxu0 0.0
  %3949 = vmatpush1.msra.mxu0 0.0
  %3950 = vmatprep.subr.mxu0 0.0
  %3951 = vmatpush1.msra.mxu0 0.0
  %3952 = vmatprep.subr.mxu0 0.0
  %3953 = vmatpush1.msra.mxu0 0.0
  %3954 = vmatprep.subr.mxu0 0.0
  %3955 = vmatpush1.msra.mxu0 0.0
  %3956 = vmatprep.subr.mxu0 0.0
  %3957 = vmatpush1.msra.mxu0 0.0
  %3958 = vmatprep.subr.mxu0 0.0
  %3959 = vmatpush1.msra.mxu0 0.0
  %3960 = vmatprep.subr.mxu0 0.0
  %3961 = vmatpush1.msra.mxu0 0.0
  %3962 = vmatprep.subr.mxu0 0.0
  %3963 = vmatpush1.msra.mxu0 0.0
  %3964 = vmatprep.subr.mxu0 0.0
  %3965 = vmatpush1.msra.mxu0 0.0
  %3966 = vmatprep.subr.mxu0 0.0
  %3967 = vmatpush1.msra.mxu0 0.0
  %3968 = vmatprep.subr.mxu0 0.0
  %3969 = vmatpush1.msra.mxu0 0.0
  %3970 = vmatprep.subr.mxu0 0.0
  %3971 = vmatpush1.msra.mxu0 0.0
  %3972 = vmatprep.subr.mxu0 0.0
  %3973 = vmatpush1.msra.mxu0 0.0
  %3974 = vmatprep.subr.mxu0 0.0
  %3975 = vmatpush1.msra.mxu0 0.0
  %3976 = vmatprep.subr.mxu0 0.0
  %3977 = vmatpush1.msra.mxu0 0.0
  %3978 = vmatprep.subr.mxu0 0.0
  %3979 = vmatpush1.msra.mxu0 0.0
  %3980 = vmatprep.subr.mxu0 0.0
  %3981 = vmatpush1.msra.mxu0 0.0
  %3982 = vmatprep.subr.mxu0 0.0
  %3983 = vmatpush1.msra.mxu0 0.0
  %3984 = vmatprep.mubr.f32.mxu0 0.0
  %3985 = vmatmul.mubr.f32.gmra.mrb[0].mxu0 %v3057
  %v3986 = vpop.f32.mrb[0].mxu0
  %v3987 = vadd.f32 0.0, %v3986
  %v3988 = vpop.f32.mrb[0].mxu0
  %3989 = vdwg.mxu0
  %v3990 = vadd.f32 %v3917, %v3987
  %3991 = vmatprep.subr.mxu0 0.0
  %3992 = vmatpush1.msra.mxu0 %v2685
  %3993 = vmatprep.subr.mxu0 0.0
  %3994 = vmatpush1.msra.mxu0 0.0
  %3995 = vmatprep.subr.mxu0 0.0
  %3996 = vmatpush1.msra.mxu0 0.0
  %3997 = vmatprep.subr.mxu0 0.0
  %3998 = vmatpush1.msra.mxu0 0.0
  %3999 = vmatprep.subr.mxu0 0.0
  %4000 = vmatpush1.msra.mxu0 0.0
  %4001 = vmatprep.subr.mxu0 0.0
  %4002 = vmatpush1.msra.mxu0 0.0
  %4003 = vmatprep.subr.mxu0 0.0
  %4004 = vmatpush1.msra.mxu0 0.0
  %4005 = vmatprep.subr.mxu0 0.0
  %4006 = vmatpush1.msra.mxu0 0.0
  %4007 = vmatprep.subr.mxu0 0.0
  %4008 = vmatpush1.msra.mxu0 0.0
  %4009 = vmatprep.subr.mxu0 0.0
  %4010 = vmatpush1.msra.mxu0 0.0
  %4011 = vmatprep.subr.mxu0 0.0
  %4012 = vmatpush1.msra.mxu0 0.0
  %4013 = vmatprep.subr.mxu0 0.0
  %4014 = vmatpush1.msra.mxu0 0.0
  %4015 = vmatprep.subr.mxu0 0.0
  %4016 = vmatpush1.msra.mxu0 0.0
  %4017 = vmatprep.subr.mxu0 0.0
  %4018 = vmatpush1.msra.mxu0 0.0
  %4019 = vmatprep.subr.mxu0 0.0
  %4020 = vmatpush1.msra.mxu0 0.0
  %4021 = vmatprep.subr.mxu0 0.0
  %4022 = vmatpush1.msra.mxu0 0.0
  %4023 = vmatprep.subr.mxu0 0.0
  %4024 = vmatpush1.msra.mxu0 0.0
  %4025 = vmatprep.subr.mxu0 0.0
  %4026 = vmatpush1.msra.mxu0 0.0
  %4027 = vmatprep.subr.mxu0 0.0
  %4028 = vmatpush1.msra.mxu0 0.0
  %4029 = vmatprep.subr.mxu0 0.0
  %4030 = vmatpush1.msra.mxu0 0.0
  %4031 = vmatprep.subr.mxu0 0.0
  %4032 = vmatpush1.msra.mxu0 0.0
  %4033 = vmatprep.subr.mxu0 0.0
  %4034 = vmatpush1.msra.mxu0 0.0
  %4035 = vmatprep.subr.mxu0 0.0
  %4036 = vmatpush1.msra.mxu0 0.0
  %4037 = vmatprep.subr.mxu0 0.0
  %4038 = vmatpush1.msra.mxu0 0.0
  %4039 = vmatprep.subr.mxu0 0.0
  %4040 = vmatpush1.msra.mxu0 0.0
  %4041 = vmatprep.subr.mxu0 0.0
  %4042 = vmatpush1.msra.mxu0 0.0
  %4043 = vmatprep.subr.mxu0 0.0
  %4044 = vmatpush1.msra.mxu0 0.0
  %4045 = vmatprep.subr.mxu0 0.0
  %4046 = vmatpush1.msra.mxu0 0.0
  %4047 = vmatprep.subr.mxu0 0.0
  %4048 = vmatpush1.msra.mxu0 0.0
  %4049 = vmatprep.subr.mxu0 0.0
  %4050 = vmatpush1.msra.mxu0 0.0
  %4051 = vmatprep.subr.mxu0 0.0
  %4052 = vmatpush1.msra.mxu0 0.0
  %4053 = vmatprep.subr.mxu0 0.0
  %4054 = vmatpush1.msra.mxu0 0.0
  %4055 = vmatprep.mubr.f32.mxu0 0.0
  %4056 = vmatmul.mubr.f32.gmra.mrb[0].mxu0 %v3133
  %v4057 = vpop.f32.mrb[0].mxu0
  %v4058 = vadd.f32 0.0, %v4057
  %v4059 = vpop.f32.mrb[0].mxu0
  %4060 = vdwg.mxu0
  %v4062 = vsel %vm198, %v4058, 0
  %4064 = vmatprep.subr.mxu0 0.0
  %4065 = vmatpush1.msra.mxu0 %v1028
  %4066 = vmatprep.subr.mxu0 0.0
  %4067 = vmatpush1.msra.mxu0 %v1029
  %4068 = vmatprep.subr.mxu0 0.0
  %4069 = vmatpush1.msra.mxu0 %v1030
  %4070 = vmatprep.subr.mxu0 0.0
  %4071 = vmatpush1.msra.mxu0 %v1031
  %4072 = vmatprep.subr.mxu0 0.0
  %4073 = vmatpush1.msra.mxu0 0.0
  %4074 = vmatprep.subr.mxu0 0.0
  %4075 = vmatpush1.msra.mxu0 0.0
  %4076 = vmatprep.subr.mxu0 0.0
  %4077 = vmatpush1.msra.mxu0 0.0
  %4078 = vmatprep.subr.mxu0 0.0
  %4079 = vmatpush1.msra.mxu0 0.0
  %4080 = vmatprep.subr.mxu0 0.0
  %4081 = vmatpush1.msra.mxu0 0.0
  %4082 = vmatprep.subr.mxu0 0.0
  %4083 = vmatpush1.msra.mxu0 0.0
  %4084 = vmatprep.subr.mxu0 0.0
  %4085 = vmatpush1.msra.mxu0 0.0
  %4086 = vmatprep.subr.mxu0 0.0
  %4087 = vmatpush1.msra.mxu0 0.0
  %4088 = vmatprep.subr.mxu0 0.0
  %4089 = vmatpush1.msra.mxu0 0.0
  %4090 = vmatprep.subr.mxu0 0.0
  %4091 = vmatpush1.msra.mxu0 0.0
  %4092 = vmatprep.subr.mxu0 0.0
  %4093 = vmatpush1.msra.mxu0 0.0
  %4094 = vmatprep.subr.mxu0 0.0
  %4095 = vmatpush1.msra.mxu0 0.0
  %4096 = vmatprep.subr.mxu0 0.0
  %4097 = vmatpush1.msra.mxu0 0.0
  %4098 = vmatprep.subr.mxu0 0.0
  %4099 = vmatpush1.msra.mxu0 0.0
  %4100 = vmatprep.subr.mxu0 0.0
  %4101 = vmatpush1.msra.mxu0 0.0
  %4102 = vmatprep.subr.mxu0 0.0
  %4103 = vmatpush1.msra.mxu0 0.0
  %4104 = vmatprep.subr.mxu0 0.0
  %4105 = vmatpush1.msra.mxu0 0.0
  %4106 = vmatprep.subr.mxu0 0.0
  %4107 = vmatpush1.msra.mxu0 0.0
  %4108 = vmatprep.subr.mxu0 0.0
  %4109 = vmatpush1.msra.mxu0 0.0
  %4110 = vmatprep.subr.mxu0 0.0
  %4111 = vmatpush1.msra.mxu0 0.0
  %4112 = vmatprep.subr.mxu0 0.0
  %4113 = vmatpush1.msra.mxu0 0.0
  %4114 = vmatprep.subr.mxu0 0.0
  %4115 = vmatpush1.msra.mxu0 0.0
  %4116 = vmatprep.subr.mxu0 0.0
  %4117 = vmatpush1.msra.mxu0 0.0
  %4118 = vmatprep.subr.mxu0 0.0
  %4119 = vmatpush1.msra.mxu0 0.0
  %4120 = vmatprep.subr.mxu0 0.0
  %4121 = vmatpush1.msra.mxu0 0.0
  %4122 = vmatprep.subr.mxu0 0.0
  %4123 = vmatpush1.msra.mxu0 0.0
  %4124 = vmatprep.subr.mxu0 0.0
  %4125 = vmatpush1.msra.mxu0 0.0
  %4126 = vmatprep.subr.mxu0 0.0
  %4127 = vmatpush1.msra.mxu0 0.0
  %4128 = vmatprep.mubr.f32.mxu0 0.0
  %4129 = vmatmul.mubr.f32.gmra.mrb[0].mxu0 %v4062
  %v4130 = vpop.f32.mrb[0].mxu0
  %v4131 = vadd.f32 0.0, %v4130
  %v4132 = vpop.f32.mrb[0].mxu0
  %4133 = vdwg.mxu0
  %v4134 = vadd.f32 %v3990, %v4131
  %s4135 = scalar_lea.vmem %s5, 22
  %v4136 = vld [vmem:[%s4135] sm:$0x3]
  %v4138 = vsel %vm2225, %v4136, 0
  %4140 = vmatprep.subr.mxu0 0.0
  %4141 = vmatpush1.msra.mxu0 %v2533
  %4142 = vmatprep.subr.mxu0 0.0
  %4143 = vmatpush1.msra.mxu0 0.0
  %4144 = vmatprep.subr.mxu0 0.0
  %4145 = vmatpush1.msra.mxu0 0.0
  %4146 = vmatprep.subr.mxu0 0.0
  %4147 = vmatpush1.msra.mxu0 0.0
  %4148 = vmatprep.subr.mxu0 0.0
  %4149 = vmatpush1.msra.mxu0 0.0
  %4150 = vmatprep.subr.mxu0 0.0
  %4151 = vmatpush1.msra.mxu0 0.0
  %4152 = vmatprep.subr.mxu0 0.0
  %4153 = vmatpush1.msra.mxu0 0.0
  %4154 = vmatprep.subr.mxu0 0.0
  %4155 = vmatpush1.msra.mxu0 0.0
  %4156 = vmatprep.subr.mxu0 0.0
  %4157 = vmatpush1.msra.mxu0 0.0
  %4158 = vmatprep.subr.mxu0 0.0
  %4159 = vmatpush1.msra.mxu0 0.0
  %4160 = vmatprep.subr.mxu0 0.0
  %4161 = vmatpush1.msra.mxu0 0.0
  %4162 = vmatprep.subr.mxu0 0.0
  %4163 = vmatpush1.msra.mxu0 0.0
  %4164 = vmatprep.subr.mxu0 0.0
  %4165 = vmatpush1.msra.mxu0 0.0
  %4166 = vmatprep.subr.mxu0 0.0
  %4167 = vmatpush1.msra.mxu0 0.0
  %4168 = vmatprep.subr.mxu0 0.0
  %4169 = vmatpush1.msra.mxu0 0.0
  %4170 = vmatprep.subr.mxu0 0.0
  %4171 = vmatpush1.msra.mxu0 0.0
  %4172 = vmatprep.subr.mxu0 0.0
  %4173 = vmatpush1.msra.mxu0 0.0
  %4174 = vmatprep.subr.mxu0 0.0
  %4175 = vmatpush1.msra.mxu0 0.0
  %4176 = vmatprep.subr.mxu0 0.0
  %4177 = vmatpush1.msra.mxu0 0.0
  %4178 = vmatprep.subr.mxu0 0.0
  %4179 = vmatpush1.msra.mxu0 0.0
  %4180 = vmatprep.subr.mxu0 0.0
  %4181 = vmatpush1.msra.mxu0 0.0
  %4182 = vmatprep.subr.mxu0 0.0
  %4183 = vmatpush1.msra.mxu0 0.0
  %4184 = vmatprep.subr.mxu0 0.0
  %4185 = vmatpush1.msra.mxu0 0.0
  %4186 = vmatprep.subr.mxu0 0.0
  %4187 = vmatpush1.msra.mxu0 0.0
  %4188 = vmatprep.subr.mxu0 0.0
  %4189 = vmatpush1.msra.mxu0 0.0
  %4190 = vmatprep.subr.mxu0 0.0
  %4191 = vmatpush1.msra.mxu0 0.0
  %4192 = vmatprep.subr.mxu0 0.0
  %4193 = vmatpush1.msra.mxu0 0.0
  %4194 = vmatprep.subr.mxu0 0.0
  %4195 = vmatpush1.msra.mxu0 0.0
  %4196 = vmatprep.subr.mxu0 0.0
  %4197 = vmatpush1.msra.mxu0 0.0
  %4198 = vmatprep.subr.mxu0 0.0
  %4199 = vmatpush1.msra.mxu0 0.0
  %4200 = vmatprep.subr.mxu0 0.0
  %4201 = vmatpush1.msra.mxu0 0.0
  %4202 = vmatprep.subr.mxu0 0.0
  %4203 = vmatpush1.msra.mxu0 0.0
  %4204 = vmatprep.mubr.f32.mxu0 0.0
  %4205 = vmatmul.mubr.f32.gmra.mrb[0].mxu0 %v4138
  %v4206 = vpop.f32.mrb[0].mxu0
  %v4207 = vadd.f32 0.0, %v4206
  %v4208 = vpop.f32.mrb[0].mxu0
  %4209 = vdwg.mxu0
  %s4210 = scalar_lea.vmem %s5, 18
  %v4211 = vld [vmem:[%s4210] sm:$0x3]
  %v4213 = vsel %vm2225, %v4211, 0
  %4215 = vmatprep.subr.mxu0 0.0
  %4216 = vmatpush1.msra.mxu0 %v2685
  %4217 = vmatprep.subr.mxu0 0.0
  %4218 = vmatpush1.msra.mxu0 0.0
  %4219 = vmatprep.subr.mxu0 0.0
  %4220 = vmatpush1.msra.mxu0 0.0
  %4221 = vmatprep.subr.mxu0 0.0
  %4222 = vmatpush1.msra.mxu0 0.0
  %4223 = vmatprep.subr.mxu0 0.0
  %4224 = vmatpush1.msra.mxu0 0.0
  %4225 = vmatprep.subr.mxu0 0.0
  %4226 = vmatpush1.msra.mxu0 0.0
  %4227 = vmatprep.subr.mxu0 0.0
  %4228 = vmatpush1.msra.mxu0 0.0
  %4229 = vmatprep.subr.mxu0 0.0
  %4230 = vmatpush1.msra.mxu0 0.0
  %4231 = vmatprep.subr.mxu0 0.0
  %4232 = vmatpush1.msra.mxu0 0.0
  %4233 = vmatprep.subr.mxu0 0.0
  %4234 = vmatpush1.msra.mxu0 0.0
  %4235 = vmatprep.subr.mxu0 0.0
  %4236 = vmatpush1.msra.mxu0 0.0
  %4237 = vmatprep.subr.mxu0 0.0
  %4238 = vmatpush1.msra.mxu0 0.0
  %4239 = vmatprep.subr.mxu0 0.0
  %4240 = vmatpush1.msra.mxu0 0.0
  %4241 = vmatprep.subr.mxu0 0.0
  %4242 = vmatpush1.msra.mxu0 0.0
  %4243 = vmatprep.subr.mxu0 0.0
  %4244 = vmatpush1.msra.mxu0 0.0
  %4245 = vmatprep.subr.mxu0 0.0
  %4246 = vmatpush1.msra.mxu0 0.0
  %4247 = vmatprep.subr.mxu0 0.0
  %4248 = vmatpush1.msra.mxu0 0.0
  %4249 = vmatprep.subr.mxu0 0.0
  %4250 = vmatpush1.msra.mxu0 0.0
  %4251 = vmatprep.subr.mxu0 0.0
  %4252 = vmatpush1.msra.mxu0 0.0
  %4253 = vmatprep.subr.mxu0 0.0
  %4254 = vmatpush1.msra.mxu0 0.0
  %4255 = vmatprep.subr.mxu0 0.0
  %4256 = vmatpush1.msra.mxu0 0.0
  %4257 = vmatprep.subr.mxu0 0.0
  %4258 = vmatpush1.msra.mxu0 0.0
  %4259 = vmatprep.subr.mxu0 0.0
  %4260 = vmatpush1.msra.mxu0 0.0
  %4261 = vmatprep.subr.mxu0 0.0
  %4262 = vmatpush1.msra.mxu0 0.0
  %4263 = vmatprep.subr.mxu0 0.0
  %4264 = vmatpush1.msra.mxu0 0.0
  %4265 = vmatprep.subr.mxu0 0.0
  %4266 = vmatpush1.msra.mxu0 0.0
  %4267 = vmatprep.subr.mxu0 0.0
  %4268 = vmatpush1.msra.mxu0 0.0
  %4269 = vmatprep.subr.mxu0 0.0
  %4270 = vmatpush1.msra.mxu0 0.0
  %4271 = vmatprep.subr.mxu0 0.0
  %4272 = vmatpush1.msra.mxu0 0.0
  %4273 = vmatprep.subr.mxu0 0.0
  %4274 = vmatpush1.msra.mxu0 0.0
  %4275 = vmatprep.subr.mxu0 0.0
  %4276 = vmatpush1.msra.mxu0 0.0
  %4277 = vmatprep.subr.mxu0 0.0
  %4278 = vmatpush1.msra.mxu0 0.0
  %4279 = vmatprep.mubr.f32.mxu0 0.0
  %4280 = vmatmul.mubr.f32.gmra.mrb[0].mxu0 %v4213
  %v4281 = vpop.f32.mrb[0].mxu0
  %v4282 = vadd.f32 0.0, %v4281
  %v4283 = vpop.f32.mrb[0].mxu0
  %4284 = vdwg.mxu0
  %v4286 = vsel %vm198, %v4207, 0
  %4288 = vmatprep.subr.mxu0 0.0
  %4289 = vmatpush1.msra.mxu0 %v421
  %4290 = vmatprep.subr.mxu0 0.0
  %4291 = vmatpush1.msra.mxu0 %v422
  %4292 = vmatprep.subr.mxu0 0.0
  %4293 = vmatpush1.msra.mxu0 %v423
  %4294 = vmatprep.subr.mxu0 0.0
  %4295 = vmatpush1.msra.mxu0 %v424
  %4296 = vmatprep.subr.mxu0 0.0
  %4297 = vmatpush1.msra.mxu0 0.0
  %4298 = vmatprep.subr.mxu0 0.0
  %4299 = vmatpush1.msra.mxu0 0.0
  %4300 = vmatprep.subr.mxu0 0.0
  %4301 = vmatpush1.msra.mxu0 0.0
  %4302 = vmatprep.subr.mxu0 0.0
  %4303 = vmatpush1.msra.mxu0 0.0
  %4304 = vmatprep.subr.mxu0 0.0
  %4305 = vmatpush1.msra.mxu0 0.0
  %4306 = vmatprep.subr.mxu0 0.0
  %4307 = vmatpush1.msra.mxu0 0.0
  %4308 = vmatprep.subr.mxu0 0.0
  %4309 = vmatpush1.msra.mxu0 0.0
  %4310 = vmatprep.subr.mxu0 0.0
  %4311 = vmatpush1.msra.mxu0 0.0
  %4312 = vmatprep.subr.mxu0 0.0
  %4313 = vmatpush1.msra.mxu0 0.0
  %4314 = vmatprep.subr.mxu0 0.0
  %4315 = vmatpush1.msra.mxu0 0.0
  %4316 = vmatprep.subr.mxu0 0.0
  %4317 = vmatpush1.msra.mxu0 0.0
  %4318 = vmatprep.subr.mxu0 0.0
  %4319 = vmatpush1.msra.mxu0 0.0
  %4320 = vmatprep.subr.mxu0 0.0
  %4321 = vmatpush1.msra.mxu0 0.0
  %4322 = vmatprep.subr.mxu0 0.0
  %4323 = vmatpush1.msra.mxu0 0.0
  %4324 = vmatprep.subr.mxu0 0.0
  %4325 = vmatpush1.msra.mxu0 0.0
  %4326 = vmatprep.subr.mxu0 0.0
  %4327 = vmatpush1.msra.mxu0 0.0
  %4328 = vmatprep.subr.mxu0 0.0
  %4329 = vmatpush1.msra.mxu0 0.0
  %4330 = vmatprep.subr.mxu0 0.0
  %4331 = vmatpush1.msra.mxu0 0.0
  %4332 = vmatprep.subr.mxu0 0.0
  %4333 = vmatpush1.msra.mxu0 0.0
  %4334 = vmatprep.subr.mxu0 0.0
  %4335 = vmatpush1.msra.mxu0 0.0
  %4336 = vmatprep.subr.mxu0 0.0
  %4337 = vmatpush1.msra.mxu0 0.0
  %4338 = vmatprep.subr.mxu0 0.0
  %4339 = vmatpush1.msra.mxu0 0.0
  %4340 = vmatprep.subr.mxu0 0.0
  %4341 = vmatpush1.msra.mxu0 0.0
  %4342 = vmatprep.subr.mxu0 0.0
  %4343 = vmatpush1.msra.mxu0 0.0
  %4344 = vmatprep.subr.mxu0 0.0
  %4345 = vmatpush1.msra.mxu0 0.0
  %4346 = vmatprep.subr.mxu0 0.0
  %4347 = vmatpush1.msra.mxu0 0.0
  %4348 = vmatprep.subr.mxu0 0.0
  %4349 = vmatpush1.msra.mxu0 0.0
  %4350 = vmatprep.subr.mxu0 0.0
  %4351 = vmatpush1.msra.mxu0 0.0
  %4352 = vmatprep.mubr.f32.mxu0 0.0
  %4353 = vmatmul.mubr.f32.gmra.mrb[0].mxu0 %v4286
  %v4354 = vpop.f32.mrb[0].mxu0
  %v4355 = vadd.f32 %v4282, %v4354
  %v4356 = vpop.f32.mrb[0].mxu0
  %4357 = vdwg.mxu0
  %s4358 = scalar_lea.vmem %s5, 6
  %v4359 = vld [vmem:[%s4358] sm:$0x3]
  %v4361 = vsel %vm2225, %v4359, 0
  %4363 = vmatprep.subr.mxu0 0.0
  %4364 = vmatpush1.msra.mxu0 %v2231
  %4365 = vmatprep.subr.mxu0 0.0
  %4366 = vmatpush1.msra.mxu0 0.0
  %4367 = vmatprep.subr.mxu0 0.0
  %4368 = vmatpush1.msra.mxu0 0.0
  %4369 = vmatprep.subr.mxu0 0.0
  %4370 = vmatpush1.msra.mxu0 0.0
  %4371 = vmatprep.subr.mxu0 0.0
  %4372 = vmatpush1.msra.mxu0 0.0
  %4373 = vmatprep.subr.mxu0 0.0
  %4374 = vmatpush1.msra.mxu0 0.0
  %4375 = vmatprep.subr.mxu0 0.0
  %4376 = vmatpush1.msra.mxu0 0.0
  %4377 = vmatprep.subr.mxu0 0.0
  %4378 = vmatpush1.msra.mxu0 0.0
  %4379 = vmatprep.subr.mxu0 0.0
  %4380 = vmatpush1.msra.mxu0 0.0
  %4381 = vmatprep.subr.mxu0 0.0
  %4382 = vmatpush1.msra.mxu0 0.0
  %4383 = vmatprep.subr.mxu0 0.0
  %4384 = vmatpush1.msra.mxu0 0.0
  %4385 = vmatprep.subr.mxu0 0.0
  %4386 = vmatpush1.msra.mxu0 0.0
  %4387 = vmatprep.subr.mxu0 0.0
  %4388 = vmatpush1.msra.mxu0 0.0
  %4389 = vmatprep.subr.mxu0 0.0
  %4390 = vmatpush1.msra.mxu0 0.0
  %4391 = vmatprep.subr.mxu0 0.0
  %4392 = vmatpush1.msra.mxu0 0.0
  %4393 = vmatprep.subr.mxu0 0.0
  %4394 = vmatpush1.msra.mxu0 0.0
  %4395 = vmatprep.subr.mxu0 0.0
  %4396 = vmatpush1.msra.mxu0 0.0
  %4397 = vmatprep.subr.mxu0 0.0
  %4398 = vmatpush1.msra.mxu0 0.0
  %4399 = vmatprep.subr.mxu0 0.0
  %4400 = vmatpush1.msra.mxu0 0.0
  %4401 = vmatprep.subr.mxu0 0.0
  %4402 = vmatpush1.msra.mxu0 0.0
  %4403 = vmatprep.subr.mxu0 0.0
  %4404 = vmatpush1.msra.mxu0 0.0
  %4405 = vmatprep.subr.mxu0 0.0
  %4406 = vmatpush1.msra.mxu0 0.0
  %4407 = vmatprep.subr.mxu0 0.0
  %4408 = vmatpush1.msra.mxu0 0.0
  %4409 = vmatprep.subr.mxu0 0.0
  %4410 = vmatpush1.msra.mxu0 0.0
  %4411 = vmatprep.subr.mxu0 0.0
  %4412 = vmatpush1.msra.mxu0 0.0
  %4413 = vmatprep.subr.mxu0 0.0
  %4414 = vmatpush1.msra.mxu0 0.0
  %4415 = vmatprep.subr.mxu0 0.0
  %4416 = vmatpush1.msra.mxu0 0.0
  %4417 = vmatprep.subr.mxu0 0.0
  %4418 = vmatpush1.msra.mxu0 0.0
  %4419 = vmatprep.subr.mxu0 0.0
  %4420 = vmatpush1.msra.mxu0 0.0
  %4421 = vmatprep.subr.mxu0 0.0
  %4422 = vmatpush1.msra.mxu0 0.0
  %4423 = vmatprep.subr.mxu0 0.0
  %4424 = vmatpush1.msra.mxu0 0.0
  %4425 = vmatprep.subr.mxu0 0.0
  %4426 = vmatpush1.msra.mxu0 0.0
  %4427 = vmatprep.mubr.f32.mxu0 0.0
  %4428 = vmatmul.mubr.f32.gmra.mrb[0].mxu0 %v4361
  %v4429 = vpop.f32.mrb[0].mxu0
  %v4430 = vadd.f32 0.0, %v4429
  %v4431 = vpop.f32.mrb[0].mxu0
  %4432 = vdwg.mxu0
  %v4434 = vsel %vm198, %v4430, 0
  %4436 = vmatprep.subr.mxu0 0.0
  %4437 = vmatpush1.msra.mxu0 %v421
  %4438 = vmatprep.subr.mxu0 0.0
  %4439 = vmatpush1.msra.mxu0 %v422
  %4440 = vmatprep.subr.mxu0 0.0
  %4441 = vmatpush1.msra.mxu0 %v423
  %4442 = vmatprep.subr.mxu0 0.0
  %4443 = vmatpush1.msra.mxu0 %v424
  %4444 = vmatprep.subr.mxu0 0.0
  %4445 = vmatpush1.msra.mxu0 0.0
  %4446 = vmatprep.subr.mxu0 0.0
  %4447 = vmatpush1.msra.mxu0 0.0
  %4448 = vmatprep.subr.mxu0 0.0
  %4449 = vmatpush1.msra.mxu0 0.0
  %4450 = vmatprep.subr.mxu0 0.0
  %4451 = vmatpush1.msra.mxu0 0.0
  %4452 = vmatprep.subr.mxu0 0.0
  %4453 = vmatpush1.msra.mxu0 0.0
  %4454 = vmatprep.subr.mxu0 0.0
  %4455 = vmatpush1.msra.mxu0 0.0
  %4456 = vmatprep.subr.mxu0 0.0
  %4457 = vmatpush1.msra.mxu0 0.0
  %4458 = vmatprep.subr.mxu0 0.0
  %4459 = vmatpush1.msra.mxu0 0.0
  %4460 = vmatprep.subr.mxu0 0.0
  %4461 = vmatpush1.msra.mxu0 0.0
  %4462 = vmatprep.subr.mxu0 0.0
  %4463 = vmatpush1.msra.mxu0 0.0
  %4464 = vmatprep.subr.mxu0 0.0
  %4465 = vmatpush1.msra.mxu0 0.0
  %4466 = vmatprep.subr.mxu0 0.0
  %4467 = vmatpush1.msra.mxu0 0.0
  %4468 = vmatprep.subr.mxu0 0.0
  %4469 = vmatpush1.msra.mxu0 0.0
  %4470 = vmatprep.subr.mxu0 0.0
  %4471 = vmatpush1.msra.mxu0 0.0
  %4472 = vmatprep.subr.mxu0 0.0
  %4473 = vmatpush1.msra.mxu0 0.0
  %4474 = vmatprep.subr.mxu0 0.0
  %4475 = vmatpush1.msra.mxu0 0.0
  %4476 = vmatprep.subr.mxu0 0.0
  %4477 = vmatpush1.msra.mxu0 0.0
  %4478 = vmatprep.subr.mxu0 0.0
  %4479 = vmatpush1.msra.mxu0 0.0
  %4480 = vmatprep.subr.mxu0 0.0
  %4481 = vmatpush1.msra.mxu0 0.0
  %4482 = vmatprep.subr.mxu0 0.0
  %4483 = vmatpush1.msra.mxu0 0.0
  %4484 = vmatprep.subr.mxu0 0.0
  %4485 = vmatpush1.msra.mxu0 0.0
  %4486 = vmatprep.subr.mxu0 0.0
  %4487 = vmatpush1.msra.mxu0 0.0
  %4488 = vmatprep.subr.mxu0 0.0
  %4489 = vmatpush1.msra.mxu0 0.0
  %4490 = vmatprep.subr.mxu0 0.0
  %4491 = vmatpush1.msra.mxu0 0.0
  %4492 = vmatprep.subr.mxu0 0.0
  %4493 = vmatpush1.msra.mxu0 0.0
  %4494 = vmatprep.subr.mxu0 0.0
  %4495 = vmatpush1.msra.mxu0 0.0
  %4496 = vmatprep.subr.mxu0 0.0
  %4497 = vmatpush1.msra.mxu0 0.0
  %4498 = vmatprep.subr.mxu0 0.0
  %4499 = vmatpush1.msra.mxu0 0.0
  %4500 = vmatprep.mubr.f32.mxu0 0.0
  %4501 = vmatmul.mubr.f32.gmra.mrb[0].mxu0 %v4434
  %v4502 = vpop.f32.mrb[0].mxu0
  %v4503 = vadd.f32 0.0, %v4502
  %v4504 = vpop.f32.mrb[0].mxu0
  %4505 = vdwg.mxu0
  %v4506 = vadd.f32 %v4355, %v4503
  %s4507 = scalar_lea.vmem %s5, 2
  %v4508 = vld [vmem:[%s4507] sm:$0x3]
  %v4510 = vsel %vm2225, %v4508, 0
  %4512 = vmatprep.subr.mxu0 0.0
  %4513 = vmatpush1.msra.mxu0 %v2309
  %4514 = vmatprep.subr.mxu0 0.0
  %4515 = vmatpush1.msra.mxu0 0.0
  %4516 = vmatprep.subr.mxu0 0.0
  %4517 = vmatpush1.msra.mxu0 0.0
  %4518 = vmatprep.subr.mxu0 0.0
  %4519 = vmatpush1.msra.mxu0 0.0
  %4520 = vmatprep.subr.mxu0 0.0
  %4521 = vmatpush1.msra.mxu0 0.0
  %4522 = vmatprep.subr.mxu0 0.0
  %4523 = vmatpush1.msra.mxu0 0.0
  %4524 = vmatprep.subr.mxu0 0.0
  %4525 = vmatpush1.msra.mxu0 0.0
  %4526 = vmatprep.subr.mxu0 0.0
  %4527 = vmatpush1.msra.mxu0 0.0
  %4528 = vmatprep.subr.mxu0 0.0
  %4529 = vmatpush1.msra.mxu0 0.0
  %4530 = vmatprep.subr.mxu0 0.0
  %4531 = vmatpush1.msra.mxu0 0.0
  %4532 = vmatprep.subr.mxu0 0.0
  %4533 = vmatpush1.msra.mxu0 0.0
  %4534 = vmatprep.subr.mxu0 0.0
  %4535 = vmatpush1.msra.mxu0 0.0
  %4536 = vmatprep.subr.mxu0 0.0
  %4537 = vmatpush1.msra.mxu0 0.0
  %4538 = vmatprep.subr.mxu0 0.0
  %4539 = vmatpush1.msra.mxu0 0.0
  %4540 = vmatprep.subr.mxu0 0.0
  %4541 = vmatpush1.msra.mxu0 0.0
  %4542 = vmatprep.subr.mxu0 0.0
  %4543 = vmatpush1.msra.mxu0 0.0
  %4544 = vmatprep.subr.mxu0 0.0
  %4545 = vmatpush1.msra.mxu0 0.0
  %4546 = vmatprep.subr.mxu0 0.0
  %4547 = vmatpush1.msra.mxu0 0.0
  %4548 = vmatprep.subr.mxu0 0.0
  %4549 = vmatpush1.msra.mxu0 0.0
  %4550 = vmatprep.subr.mxu0 0.0
  %4551 = vmatpush1.msra.mxu0 0.0
  %4552 = vmatprep.subr.mxu0 0.0
  %4553 = vmatpush1.msra.mxu0 0.0
  %4554 = vmatprep.subr.mxu0 0.0
  %4555 = vmatpush1.msra.mxu0 0.0
  %4556 = vmatprep.subr.mxu0 0.0
  %4557 = vmatpush1.msra.mxu0 0.0
  %4558 = vmatprep.subr.mxu0 0.0
  %4559 = vmatpush1.msra.mxu0 0.0
  %4560 = vmatprep.subr.mxu0 0.0
  %4561 = vmatpush1.msra.mxu0 0.0
  %4562 = vmatprep.subr.mxu0 0.0
  %4563 = vmatpush1.msra.mxu0 0.0
  %4564 = vmatprep.subr.mxu0 0.0
  %4565 = vmatpush1.msra.mxu0 0.0
  %4566 = vmatprep.subr.mxu0 0.0
  %4567 = vmatpush1.msra.mxu0 0.0
  %4568 = vmatprep.subr.mxu0 0.0
  %4569 = vmatpush1.msra.mxu0 0.0
  %4570 = vmatprep.subr.mxu0 0.0
  %4571 = vmatpush1.msra.mxu0 0.0
  %4572 = vmatprep.subr.mxu0 0.0
  %4573 = vmatpush1.msra.mxu0 0.0
  %4574 = vmatprep.subr.mxu0 0.0
  %4575 = vmatpush1.msra.mxu0 0.0
  %4576 = vmatprep.mubr.f32.mxu0 0.0
  %4577 = vmatmul.mubr.f32.gmra.mrb[0].mxu0 %v4510
  %v4578 = vpop.f32.mrb[0].mxu0
  %v4579 = vadd.f32 0.0, %v4578
  %v4580 = vpop.f32.mrb[0].mxu0
  %4581 = vdwg.mxu0
  %v4582 = vadd.f32 %v4506, %v4579
  %s4583 = scalar_lea.vmem %s5, 20
  %v4584 = vld [vmem:[%s4583] sm:$0x3]
  %s4585 = scalar_lea.vmem %s5, 16
  %v4586 = vld [vmem:[%s4585] sm:$0x3]
  %v4588 = vsel %vm2225, %v4586, 0
  %4590 = vmatprep.subr.mxu0 0.0
  %4591 = vmatpush1.msra.mxu0 %v2533
  %4592 = vmatprep.subr.mxu0 0.0
  %4593 = vmatpush1.msra.mxu0 0.0
  %4594 = vmatprep.subr.mxu0 0.0
  %4595 = vmatpush1.msra.mxu0 0.0
  %4596 = vmatprep.subr.mxu0 0.0
  %4597 = vmatpush1.msra.mxu0 0.0
  %4598 = vmatprep.subr.mxu0 0.0
  %4599 = vmatpush1.msra.mxu0 0.0
  %4600 = vmatprep.subr.mxu0 0.0
  %4601 = vmatpush1.msra.mxu0 0.0
  %4602 = vmatprep.subr.mxu0 0.0
  %4603 = vmatpush1.msra.mxu0 0.0
  %4604 = vmatprep.subr.mxu0 0.0
  %4605 = vmatpush1.msra.mxu0 0.0
  %4606 = vmatprep.subr.mxu0 0.0
  %4607 = vmatpush1.msra.mxu0 0.0
  %4608 = vmatprep.subr.mxu0 0.0
  %4609 = vmatpush1.msra.mxu0 0.0
  %4610 = vmatprep.subr.mxu0 0.0
  %4611 = vmatpush1.msra.mxu0 0.0
  %4612 = vmatprep.subr.mxu0 0.0
  %4613 = vmatpush1.msra.mxu0 0.0
  %4614 = vmatprep.subr.mxu0 0.0
  %4615 = vmatpush1.msra.mxu0 0.0
  %4616 = vmatprep.subr.mxu0 0.0
  %4617 = vmatpush1.msra.mxu0 0.0
  %4618 = vmatprep.subr.mxu0 0.0
  %4619 = vmatpush1.msra.mxu0 0.0
  %4620 = vmatprep.subr.mxu0 0.0
  %4621 = vmatpush1.msra.mxu0 0.0
  %4622 = vmatprep.subr.mxu0 0.0
  %4623 = vmatpush1.msra.mxu0 0.0
  %4624 = vmatprep.subr.mxu0 0.0
  %4625 = vmatpush1.msra.mxu0 0.0
  %4626 = vmatprep.subr.mxu0 0.0
  %4627 = vmatpush1.msra.mxu0 0.0
  %4628 = vmatprep.subr.mxu0 0.0
  %4629 = vmatpush1.msra.mxu0 0.0
  %4630 = vmatprep.subr.mxu0 0.0
  %4631 = vmatpush1.msra.mxu0 0.0
  %4632 = vmatprep.subr.mxu0 0.0
  %4633 = vmatpush1.msra.mxu0 0.0
  %4634 = vmatprep.subr.mxu0 0.0
  %4635 = vmatpush1.msra.mxu0 0.0
  %4636 = vmatprep.subr.mxu0 0.0
  %4637 = vmatpush1.msra.mxu0 0.0
  %4638 = vmatprep.subr.mxu0 0.0
  %4639 = vmatpush1.msra.mxu0 0.0
  %4640 = vmatprep.subr.mxu0 0.0
  %4641 = vmatpush1.msra.mxu0 0.0
  %4642 = vmatprep.subr.mxu0 0.0
  %4643 = vmatpush1.msra.mxu0 0.0
  %4644 = vmatprep.subr.mxu0 0.0
  %4645 = vmatpush1.msra.mxu0 0.0
  %4646 = vmatprep.subr.mxu0 0.0
  %4647 = vmatpush1.msra.mxu0 0.0
  %4648 = vmatprep.subr.mxu0 0.0
  %4649 = vmatpush1.msra.mxu0 0.0
  %4650 = vmatprep.subr.mxu0 0.0
  %4651 = vmatpush1.msra.mxu0 0.0
  %4652 = vmatprep.subr.mxu0 0.0
  %4653 = vmatpush1.msra.mxu0 0.0
  %4654 = vmatprep.mubr.f32.mxu0 0.0
  %4655 = vmatmul.mubr.f32.gmra.mrb[0].mxu0 %v4588
  %v4656 = vpop.f32.mrb[0].mxu0
  %v4657 = vadd.f32 0.0, %v4656
  %v4658 = vpop.f32.mrb[0].mxu0
  %4659 = vdwg.mxu0
  %v4661 = vsel %vm2225, %v4584, 0
  %4663 = vmatprep.subr.mxu0 0.0
  %4664 = vmatpush1.msra.mxu0 %v2685
  %4665 = vmatprep.subr.mxu0 0.0
  %4666 = vmatpush1.msra.mxu0 0.0
  %4667 = vmatprep.subr.mxu0 0.0
  %4668 = vmatpush1.msra.mxu0 0.0
  %4669 = vmatprep.subr.mxu0 0.0
  %4670 = vmatpush1.msra.mxu0 0.0
  %4671 = vmatprep.subr.mxu0 0.0
  %4672 = vmatpush1.msra.mxu0 0.0
  %4673 = vmatprep.subr.mxu0 0.0
  %4674 = vmatpush1.msra.mxu0 0.0
  %4675 = vmatprep.subr.mxu0 0.0
  %4676 = vmatpush1.msra.mxu0 0.0
  %4677 = vmatprep.subr.mxu0 0.0
  %4678 = vmatpush1.msra.mxu0 0.0
  %4679 = vmatprep.subr.mxu0 0.0
  %4680 = vmatpush1.msra.mxu0 0.0
  %4681 = vmatprep.subr.mxu0 0.0
  %4682 = vmatpush1.msra.mxu0 0.0
  %4683 = vmatprep.subr.mxu0 0.0
  %4684 = vmatpush1.msra.mxu0 0.0
  %4685 = vmatprep.subr.mxu0 0.0
  %4686 = vmatpush1.msra.mxu0 0.0
  %4687 = vmatprep.subr.mxu0 0.0
  %4688 = vmatpush1.msra.mxu0 0.0
  %4689 = vmatprep.subr.mxu0 0.0
  %4690 = vmatpush1.msra.mxu0 0.0
  %4691 = vmatprep.subr.mxu0 0.0
  %4692 = vmatpush1.msra.mxu0 0.0
  %4693 = vmatprep.subr.mxu0 0.0
  %4694 = vmatpush1.msra.mxu0 0.0
  %4695 = vmatprep.subr.mxu0 0.0
  %4696 = vmatpush1.msra.mxu0 0.0
  %4697 = vmatprep.subr.mxu0 0.0
  %4698 = vmatpush1.msra.mxu0 0.0
  %4699 = vmatprep.subr.mxu0 0.0
  %4700 = vmatpush1.msra.mxu0 0.0
  %4701 = vmatprep.subr.mxu0 0.0
  %4702 = vmatpush1.msra.mxu0 0.0
  %4703 = vmatprep.subr.mxu0 0.0
  %4704 = vmatpush1.msra.mxu0 0.0
  %4705 = vmatprep.subr.mxu0 0.0
  %4706 = vmatpush1.msra.mxu0 0.0
  %4707 = vmatprep.subr.mxu0 0.0
  %4708 = vmatpush1.msra.mxu0 0.0
  %4709 = vmatprep.subr.mxu0 0.0
  %4710 = vmatpush1.msra.mxu0 0.0
  %4711 = vmatprep.subr.mxu0 0.0
  %4712 = vmatpush1.msra.mxu0 0.0
  %4713 = vmatprep.subr.mxu0 0.0
  %4714 = vmatpush1.msra.mxu0 0.0
  %4715 = vmatprep.subr.mxu0 0.0
  %4716 = vmatpush1.msra.mxu0 0.0
  %4717 = vmatprep.subr.mxu0 0.0
  %4718 = vmatpush1.msra.mxu0 0.0
  %4719 = vmatprep.subr.mxu0 0.0
  %4720 = vmatpush1.msra.mxu0 0.0
  %4721 = vmatprep.subr.mxu0 0.0
  %4722 = vmatpush1.msra.mxu0 0.0
  %4723 = vmatprep.subr.mxu0 0.0
  %4724 = vmatpush1.msra.mxu0 0.0
  %4725 = vmatprep.subr.mxu0 0.0
  %4726 = vmatpush1.msra.mxu0 0.0
  %4727 = vmatprep.mubr.f32.mxu0 0.0
  %4728 = vmatmul.mubr.f32.gmra.mrb[0].mxu0 %v4661
  %v4729 = vpop.f32.mrb[0].mxu0
  %v4730 = vadd.f32 %v4657, %v4729
  %v4731 = vpop.f32.mrb[0].mxu0
  %4732 = vdwg.mxu0
  %s4733 = scalar_lea.vmem %s5, 4
  %v4734 = vld [vmem:[%s4733] sm:$0x3]
  %v4736 = vsel %vm2225, %v4734, 0
  %4738 = vmatprep.subr.mxu0 0.0
  %4739 = vmatpush1.msra.mxu0 %v2309
  %4740 = vmatprep.subr.mxu0 0.0
  %4741 = vmatpush1.msra.mxu0 0.0
  %4742 = vmatprep.subr.mxu0 0.0
  %4743 = vmatpush1.msra.mxu0 0.0
  %4744 = vmatprep.subr.mxu0 0.0
  %4745 = vmatpush1.msra.mxu0 0.0
  %4746 = vmatprep.subr.mxu0 0.0
  %4747 = vmatpush1.msra.mxu0 0.0
  %4748 = vmatprep.subr.mxu0 0.0
  %4749 = vmatpush1.msra.mxu0 0.0
  %4750 = vmatprep.subr.mxu0 0.0
  %4751 = vmatpush1.msra.mxu0 0.0
  %4752 = vmatprep.subr.mxu0 0.0
  %4753 = vmatpush1.msra.mxu0 0.0
  %4754 = vmatprep.subr.mxu0 0.0
  %4755 = vmatpush1.msra.mxu0 0.0
  %4756 = vmatprep.subr.mxu0 0.0
  %4757 = vmatpush1.msra.mxu0 0.0
  %4758 = vmatprep.subr.mxu0 0.0
  %4759 = vmatpush1.msra.mxu0 0.0
  %4760 = vmatprep.subr.mxu0 0.0
  %4761 = vmatpush1.msra.mxu0 0.0
  %4762 = vmatprep.subr.mxu0 0.0
  %4763 = vmatpush1.msra.mxu0 0.0
  %4764 = vmatprep.subr.mxu0 0.0
  %4765 = vmatpush1.msra.mxu0 0.0
  %4766 = vmatprep.subr.mxu0 0.0
  %4767 = vmatpush1.msra.mxu0 0.0
  %4768 = vmatprep.subr.mxu0 0.0
  %4769 = vmatpush1.msra.mxu0 0.0
  %4770 = vmatprep.subr.mxu0 0.0
  %4771 = vmatpush1.msra.mxu0 0.0
  %4772 = vmatprep.subr.mxu0 0.0
  %4773 = vmatpush1.msra.mxu0 0.0
  %4774 = vmatprep.subr.mxu0 0.0
  %4775 = vmatpush1.msra.mxu0 0.0
  %4776 = vmatprep.subr.mxu0 0.0
  %4777 = vmatpush1.msra.mxu0 0.0
  %4778 = vmatprep.subr.mxu0 0.0
  %4779 = vmatpush1.msra.mxu0 0.0
  %4780 = vmatprep.subr.mxu0 0.0
  %4781 = vmatpush1.msra.mxu0 0.0
  %4782 = vmatprep.subr.mxu0 0.0
  %4783 = vmatpush1.msra.mxu0 0.0
  %4784 = vmatprep.subr.mxu0 0.0
  %4785 = vmatpush1.msra.mxu0 0.0
  %4786 = vmatprep.subr.mxu0 0.0
  %4787 = vmatpush1.msra.mxu0 0.0
  %4788 = vmatprep.subr.mxu0 0.0
  %4789 = vmatpush1.msra.mxu0 0.0
  %4790 = vmatprep.subr.mxu0 0.0
  %4791 = vmatpush1.msra.mxu0 0.0
  %4792 = vmatprep.subr.mxu0 0.0
  %4793 = vmatpush1.msra.mxu0 0.0
  %4794 = vmatprep.subr.mxu0 0.0
  %4795 = vmatpush1.msra.mxu0 0.0
  %4796 = vmatprep.subr.mxu0 0.0
  %4797 = vmatpush1.msra.mxu0 0.0
  %4798 = vmatprep.subr.mxu0 0.0
  %4799 = vmatpush1.msra.mxu0 0.0
  %4800 = vmatprep.subr.mxu0 0.0
  %4801 = vmatpush1.msra.mxu0 0.0
  %4802 = vmatprep.mubr.f32.mxu0 0.0
  %4803 = vmatmul.mubr.f32.gmra.mrb[0].mxu0 %v4736
  %v4804 = vpop.f32.mrb[0].mxu0
  %v4805 = vadd.f32 0.0, %v4804
  %v4806 = vpop.f32.mrb[0].mxu0
  %4807 = vdwg.mxu0
  %v4808 = vadd.f32 %v4730, %v4805
  %v4809 = vld [vmem:[%s5] sm:$0x3]
  %v4811 = vsel %vm2225, %v4809, 0
  %4813 = vmatprep.subr.mxu0 0.0
  %4814 = vmatpush1.msra.mxu0 %v2231
  %4815 = vmatprep.subr.mxu0 0.0
  %4816 = vmatpush1.msra.mxu0 0.0
  %4817 = vmatprep.subr.mxu0 0.0
  %4818 = vmatpush1.msra.mxu0 0.0
  %4819 = vmatprep.subr.mxu0 0.0
  %4820 = vmatpush1.msra.mxu0 0.0
  %4821 = vmatprep.subr.mxu0 0.0
  %4822 = vmatpush1.msra.mxu0 0.0
  %4823 = vmatprep.subr.mxu0 0.0
  %4824 = vmatpush1.msra.mxu0 0.0
  %4825 = vmatprep.subr.mxu0 0.0
  %4826 = vmatpush1.msra.mxu0 0.0
  %4827 = vmatprep.subr.mxu0 0.0
  %4828 = vmatpush1.msra.mxu0 0.0
  %4829 = vmatprep.subr.mxu0 0.0
  %4830 = vmatpush1.msra.mxu0 0.0
  %4831 = vmatprep.subr.mxu0 0.0
  %4832 = vmatpush1.msra.mxu0 0.0
  %4833 = vmatprep.subr.mxu0 0.0
  %4834 = vmatpush1.msra.mxu0 0.0
  %4835 = vmatprep.subr.mxu0 0.0
  %4836 = vmatpush1.msra.mxu0 0.0
  %4837 = vmatprep.subr.mxu0 0.0
  %4838 = vmatpush1.msra.mxu0 0.0
  %4839 = vmatprep.subr.mxu0 0.0
  %4840 = vmatpush1.msra.mxu0 0.0
  %4841 = vmatprep.subr.mxu0 0.0
  %4842 = vmatpush1.msra.mxu0 0.0
  %4843 = vmatprep.subr.mxu0 0.0
  %4844 = vmatpush1.msra.mxu0 0.0
  %4845 = vmatprep.subr.mxu0 0.0
  %4846 = vmatpush1.msra.mxu0 0.0
  %4847 = vmatprep.subr.mxu0 0.0
  %4848 = vmatpush1.msra.mxu0 0.0
  %4849 = vmatprep.subr.mxu0 0.0
  %4850 = vmatpush1.msra.mxu0 0.0
  %4851 = vmatprep.subr.mxu0 0.0
  %4852 = vmatpush1.msra.mxu0 0.0
  %4853 = vmatprep.subr.mxu0 0.0
  %4854 = vmatpush1.msra.mxu0 0.0
  %4855 = vmatprep.subr.mxu0 0.0
  %4856 = vmatpush1.msra.mxu0 0.0
  %4857 = vmatprep.subr.mxu0 0.0
  %4858 = vmatpush1.msra.mxu0 0.0
  %4859 = vmatprep.subr.mxu0 0.0
  %4860 = vmatpush1.msra.mxu0 0.0
  %4861 = vmatprep.subr.mxu0 0.0
  %4862 = vmatpush1.msra.mxu0 0.0
  %4863 = vmatprep.subr.mxu0 0.0
  %4864 = vmatpush1.msra.mxu0 0.0
  %4865 = vmatprep.subr.mxu0 0.0
  %4866 = vmatpush1.msra.mxu0 0.0
  %4867 = vmatprep.subr.mxu0 0.0
  %4868 = vmatpush1.msra.mxu0 0.0
  %4869 = vmatprep.subr.mxu0 0.0
  %4870 = vmatpush1.msra.mxu0 0.0
  %4871 = vmatprep.subr.mxu0 0.0
  %4872 = vmatpush1.msra.mxu0 0.0
  %4873 = vmatprep.subr.mxu0 0.0
  %4874 = vmatpush1.msra.mxu0 0.0
  %4875 = vmatprep.subr.mxu0 0.0
  %4876 = vmatpush1.msra.mxu0 0.0
  %4877 = vmatprep.mubr.f32.mxu0 0.0
  %4878 = vmatmul.mubr.f32.gmra.mrb[0].mxu0 %v4811
  %v4879 = vpop.f32.mrb[0].mxu0
  %v4880 = vadd.f32 0.0, %v4879
  %v4881 = vpop.f32.mrb[0].mxu0
  %4882 = vdwg.mxu0
  %v4883 = vadd.f32 %v4808, %v4880
  %4884 = vmatprep.subr.mxu0 0.0
  %4885 = vmatpush1.msra.mxu0 %v2533
  %4886 = vmatprep.subr.mxu0 0.0
  %4887 = vmatpush1.msra.mxu0 0.0
  %4888 = vmatprep.subr.mxu0 0.0
  %4889 = vmatpush1.msra.mxu0 0.0
  %4890 = vmatprep.subr.mxu0 0.0
  %4891 = vmatpush1.msra.mxu0 0.0
  %4892 = vmatprep.subr.mxu0 0.0
  %4893 = vmatpush1.msra.mxu0 0.0
  %4894 = vmatprep.subr.mxu0 0.0
  %4895 = vmatpush1.msra.mxu0 0.0
  %4896 = vmatprep.subr.mxu0 0.0
  %4897 = vmatpush1.msra.mxu0 0.0
  %4898 = vmatprep.subr.mxu0 0.0
  %4899 = vmatpush1.msra.mxu0 0.0
  %4900 = vmatprep.subr.mxu0 0.0
  %4901 = vmatpush1.msra.mxu0 0.0
  %4902 = vmatprep.subr.mxu0 0.0
  %4903 = vmatpush1.msra.mxu0 0.0
  %4904 = vmatprep.subr.mxu0 0.0
  %4905 = vmatpush1.msra.mxu0 0.0
  %4906 = vmatprep.subr.mxu0 0.0
  %4907 = vmatpush1.msra.mxu0 0.0
  %4908 = vmatprep.subr.mxu0 0.0
  %4909 = vmatpush1.msra.mxu0 0.0
  %4910 = vmatprep.subr.mxu0 0.0
  %4911 = vmatpush1.msra.mxu0 0.0
  %4912 = vmatprep.subr.mxu0 0.0
  %4913 = vmatpush1.msra.mxu0 0.0
  %4914 = vmatprep.subr.mxu0 0.0
  %4915 = vmatpush1.msra.mxu0 0.0
  %4916 = vmatprep.subr.mxu0 0.0
  %4917 = vmatpush1.msra.mxu0 0.0
  %4918 = vmatprep.subr.mxu0 0.0
  %4919 = vmatpush1.msra.mxu0 0.0
  %4920 = vmatprep.subr.mxu0 0.0
  %4921 = vmatpush1.msra.mxu0 0.0
  %4922 = vmatprep.subr.mxu0 0.0
  %4923 = vmatpush1.msra.mxu0 0.0
  %4924 = vmatprep.subr.mxu0 0.0
  %4925 = vmatpush1.msra.mxu0 0.0
  %4926 = vmatprep.subr.mxu0 0.0
  %4927 = vmatpush1.msra.mxu0 0.0
  %4928 = vmatprep.subr.mxu0 0.0
  %4929 = vmatpush1.msra.mxu0 0.0
  %4930 = vmatprep.subr.mxu0 0.0
  %4931 = vmatpush1.msra.mxu0 0.0
  %4932 = vmatprep.subr.mxu0 0.0
  %4933 = vmatpush1.msra.mxu0 0.0
  %4934 = vmatprep.subr.mxu0 0.0
  %4935 = vmatpush1.msra.mxu0 0.0
  %4936 = vmatprep.subr.mxu0 0.0
  %4937 = vmatpush1.msra.mxu0 0.0
  %4938 = vmatprep.subr.mxu0 0.0
  %4939 = vmatpush1.msra.mxu0 0.0
  %4940 = vmatprep.subr.mxu0 0.0
  %4941 = vmatpush1.msra.mxu0 0.0
  %4942 = vmatprep.subr.mxu0 0.0
  %4943 = vmatpush1.msra.mxu0 0.0
  %4944 = vmatprep.subr.mxu0 0.0
  %4945 = vmatpush1.msra.mxu0 0.0
  %4946 = vmatprep.subr.mxu0 0.0
  %4947 = vmatpush1.msra.mxu0 0.0
  %4948 = vmatprep.mubr.f32.mxu0 0.0
  %4949 = vmatmul.mubr.f32.gmra.mrb[0].mxu0 %v4213
  %v4950 = vpop.f32.mrb[0].mxu0
  %v4951 = vadd.f32 0.0, %v4950
  %v4952 = vpop.f32.mrb[0].mxu0
  %4953 = vdwg.mxu0
  %4954 = vmatprep.subr.mxu0 0.0
  %4955 = vmatpush1.msra.mxu0 %v2685
  %4956 = vmatprep.subr.mxu0 0.0
  %4957 = vmatpush1.msra.mxu0 0.0
  %4958 = vmatprep.subr.mxu0 0.0
  %4959 = vmatpush1.msra.mxu0 0.0
  %4960 = vmatprep.subr.mxu0 0.0
  %4961 = vmatpush1.msra.mxu0 0.0
  %4962 = vmatprep.subr.mxu0 0.0
  %4963 = vmatpush1.msra.mxu0 0.0
  %4964 = vmatprep.subr.mxu0 0.0
  %4965 = vmatpush1.msra.mxu0 0.0
  %4966 = vmatprep.subr.mxu0 0.0
  %4967 = vmatpush1.msra.mxu0 0.0
  %4968 = vmatprep.subr.mxu0 0.0
  %4969 = vmatpush1.msra.mxu0 0.0
  %4970 = vmatprep.subr.mxu0 0.0
  %4971 = vmatpush1.msra.mxu0 0.0
  %4972 = vmatprep.subr.mxu0 0.0
  %4973 = vmatpush1.msra.mxu0 0.0
  %4974 = vmatprep.subr.mxu0 0.0
  %4975 = vmatpush1.msra.mxu0 0.0
  %4976 = vmatprep.subr.mxu0 0.0
  %4977 = vmatpush1.msra.mxu0 0.0
  %4978 = vmatprep.subr.mxu0 0.0
  %4979 = vmatpush1.msra.mxu0 0.0
  %4980 = vmatprep.subr.mxu0 0.0
  %4981 = vmatpush1.msra.mxu0 0.0
  %4982 = vmatprep.subr.mxu0 0.0
  %4983 = vmatpush1.msra.mxu0 0.0
  %4984 = vmatprep.subr.mxu0 0.0
  %4985 = vmatpush1.msra.mxu0 0.0
  %4986 = vmatprep.subr.mxu0 0.0
  %4987 = vmatpush1.msra.mxu0 0.0
  %4988 = vmatprep.subr.mxu0 0.0
  %4989 = vmatpush1.msra.mxu0 0.0
  %4990 = vmatprep.subr.mxu0 0.0
  %4991 = vmatpush1.msra.mxu0 0.0
  %4992 = vmatprep.subr.mxu0 0.0
  %4993 = vmatpush1.msra.mxu0 0.0
  %4994 = vmatprep.subr.mxu0 0.0
  %4995 = vmatpush1.msra.mxu0 0.0
  %4996 = vmatprep.subr.mxu0 0.0
  %4997 = vmatpush1.msra.mxu0 0.0
  %4998 = vmatprep.subr.mxu0 0.0
  %4999 = vmatpush1.msra.mxu0 0.0
  %5000 = vmatprep.subr.mxu0 0.0
  %5001 = vmatpush1.msra.mxu0 0.0
  %5002 = vmatprep.subr.mxu0 0.0
  %5003 = vmatpush1.msra.mxu0 0.0
  %5004 = vmatprep.subr.mxu0 0.0
  %5005 = vmatpush1.msra.mxu0 0.0
  %5006 = vmatprep.subr.mxu0 0.0
  %5007 = vmatpush1.msra.mxu0 0.0
  %5008 = vmatprep.subr.mxu0 0.0
  %5009 = vmatpush1.msra.mxu0 0.0
  %5010 = vmatprep.subr.mxu0 0.0
  %5011 = vmatpush1.msra.mxu0 0.0
  %5012 = vmatprep.subr.mxu0 0.0
  %5013 = vmatpush1.msra.mxu0 0.0
  %5014 = vmatprep.subr.mxu0 0.0
  %5015 = vmatpush1.msra.mxu0 0.0
  %5016 = vmatprep.subr.mxu0 0.0
  %5017 = vmatpush1.msra.mxu0 0.0
  %5018 = vmatprep.mubr.f32.mxu0 0.0
  %5019 = vmatmul.mubr.f32.gmra.mrb[0].mxu0 %v4138
  %v5020 = vpop.f32.mrb[0].mxu0
  %v5021 = vadd.f32 %v4951, %v5020
  %v5022 = vpop.f32.mrb[0].mxu0
  %5023 = vdwg.mxu0
  %5024 = vmatprep.subr.mxu0 0.0
  %5025 = vmatpush1.msra.mxu0 %v2309
  %5026 = vmatprep.subr.mxu0 0.0
  %5027 = vmatpush1.msra.mxu0 0.0
  %5028 = vmatprep.subr.mxu0 0.0
  %5029 = vmatpush1.msra.mxu0 0.0
  %5030 = vmatprep.subr.mxu0 0.0
  %5031 = vmatpush1.msra.mxu0 0.0
  %5032 = vmatprep.subr.mxu0 0.0
  %5033 = vmatpush1.msra.mxu0 0.0
  %5034 = vmatprep.subr.mxu0 0.0
  %5035 = vmatpush1.msra.mxu0 0.0
  %5036 = vmatprep.subr.mxu0 0.0
  %5037 = vmatpush1.msra.mxu0 0.0
  %5038 = vmatprep.subr.mxu0 0.0
  %5039 = vmatpush1.msra.mxu0 0.0
  %5040 = vmatprep.subr.mxu0 0.0
  %5041 = vmatpush1.msra.mxu0 0.0
  %5042 = vmatprep.subr.mxu0 0.0
  %5043 = vmatpush1.msra.mxu0 0.0
  %5044 = vmatprep.subr.mxu0 0.0
  %5045 = vmatpush1.msra.mxu0 0.0
  %5046 = vmatprep.subr.mxu0 0.0
  %5047 = vmatpush1.msra.mxu0 0.0
  %5048 = vmatprep.subr.mxu0 0.0
  %5049 = vmatpush1.msra.mxu0 0.0
  %5050 = vmatprep.subr.mxu0 0.0
  %5051 = vmatpush1.msra.mxu0 0.0
  %5052 = vmatprep.subr.mxu0 0.0
  %5053 = vmatpush1.msra.mxu0 0.0
  %5054 = vmatprep.subr.mxu0 0.0
  %5055 = vmatpush1.msra.mxu0 0.0
  %5056 = vmatprep.subr.mxu0 0.0
  %5057 = vmatpush1.msra.mxu0 0.0
  %5058 = vmatprep.subr.mxu0 0.0
  %5059 = vmatpush1.msra.mxu0 0.0
  %5060 = vmatprep.subr.mxu0 0.0
  %5061 = vmatpush1.msra.mxu0 0.0
  %5062 = vmatprep.subr.mxu0 0.0
  %5063 = vmatpush1.msra.mxu0 0.0
  %5064 = vmatprep.subr.mxu0 0.0
  %5065 = vmatpush1.msra.mxu0 0.0
  %5066 = vmatprep.subr.mxu0 0.0
  %5067 = vmatpush1.msra.mxu0 0.0
  %5068 = vmatprep.subr.mxu0 0.0
  %5069 = vmatpush1.msra.mxu0 0.0
  %5070 = vmatprep.subr.mxu0 0.0
  %5071 = vmatpush1.msra.mxu0 0.0
  %5072 = vmatprep.subr.mxu0 0.0
  %5073 = vmatpush1.msra.mxu0 0.0
  %5074 = vmatprep.subr.mxu0 0.0
  %5075 = vmatpush1.msra.mxu0 0.0
  %5076 = vmatprep.subr.mxu0 0.0
  %5077 = vmatpush1.msra.mxu0 0.0
  %5078 = vmatprep.subr.mxu0 0.0
  %5079 = vmatpush1.msra.mxu0 0.0
  %5080 = vmatprep.subr.mxu0 0.0
  %5081 = vmatpush1.msra.mxu0 0.0
  %5082 = vmatprep.subr.mxu0 0.0
  %5083 = vmatpush1.msra.mxu0 0.0
  %5084 = vmatprep.subr.mxu0 0.0
  %5085 = vmatpush1.msra.mxu0 0.0
  %5086 = vmatprep.subr.mxu0 0.0
  %5087 = vmatpush1.msra.mxu0 0.0
  %5088 = vmatprep.mubr.f32.mxu0 0.0
  %5089 = vmatmul.mubr.f32.gmra.mrb[0].mxu0 %v4361
  %v5090 = vpop.f32.mrb[0].mxu0
  %v5091 = vadd.f32 0.0, %v5090
  %v5092 = vpop.f32.mrb[0].mxu0
  %5093 = vdwg.mxu0
  %v5094 = vadd.f32 %v5021, %v5091
  %5095 = vmatprep.subr.mxu0 0.0
  %5096 = vmatpush1.msra.mxu0 %v2231
  %5097 = vmatprep.subr.mxu0 0.0
  %5098 = vmatpush1.msra.mxu0 0.0
  %5099 = vmatprep.subr.mxu0 0.0
  %5100 = vmatpush1.msra.mxu0 0.0
  %5101 = vmatprep.subr.mxu0 0.0
  %5102 = vmatpush1.msra.mxu0 0.0
  %5103 = vmatprep.subr.mxu0 0.0
  %5104 = vmatpush1.msra.mxu0 0.0
  %5105 = vmatprep.subr.mxu0 0.0
  %5106 = vmatpush1.msra.mxu0 0.0
  %5107 = vmatprep.subr.mxu0 0.0
  %5108 = vmatpush1.msra.mxu0 0.0
  %5109 = vmatprep.subr.mxu0 0.0
  %5110 = vmatpush1.msra.mxu0 0.0
  %5111 = vmatprep.subr.mxu0 0.0
  %5112 = vmatpush1.msra.mxu0 0.0
  %5113 = vmatprep.subr.mxu0 0.0
  %5114 = vmatpush1.msra.mxu0 0.0
  %5115 = vmatprep.subr.mxu0 0.0
  %5116 = vmatpush1.msra.mxu0 0.0
  %5117 = vmatprep.subr.mxu0 0.0
  %5118 = vmatpush1.msra.mxu0 0.0
  %5119 = vmatprep.subr.mxu0 0.0
  %5120 = vmatpush1.msra.mxu0 0.0
  %5121 = vmatprep.subr.mxu0 0.0
  %5122 = vmatpush1.msra.mxu0 0.0
  %5123 = vmatprep.subr.mxu0 0.0
  %5124 = vmatpush1.msra.mxu0 0.0
  %5125 = vmatprep.subr.mxu0 0.0
  %5126 = vmatpush1.msra.mxu0 0.0
  %5127 = vmatprep.subr.mxu0 0.0
  %5128 = vmatpush1.msra.mxu0 0.0
  %5129 = vmatprep.subr.mxu0 0.0
  %5130 = vmatpush1.msra.mxu0 0.0
  %5131 = vmatprep.subr.mxu0 0.0
  %5132 = vmatpush1.msra.mxu0 0.0
  %5133 = vmatprep.subr.mxu0 0.0
  %5134 = vmatpush1.msra.mxu0 0.0
  %5135 = vmatprep.subr.mxu0 0.0
  %5136 = vmatpush1.msra.mxu0 0.0
  %5137 = vmatprep.subr.mxu0 0.0
  %5138 = vmatpush1.msra.mxu0 0.0
  %5139 = vmatprep.subr.mxu0 0.0
  %5140 = vmatpush1.msra.mxu0 0.0
  %5141 = vmatprep.subr.mxu0 0.0
  %5142 = vmatpush1.msra.mxu0 0.0
  %5143 = vmatprep.subr.mxu0 0.0
  %5144 = vmatpush1.msra.mxu0 0.0
  %5145 = vmatprep.subr.mxu0 0.0
  %5146 = vmatpush1.msra.mxu0 0.0
  %5147 = vmatprep.subr.mxu0 0.0
  %5148 = vmatpush1.msra.mxu0 0.0
  %5149 = vmatprep.subr.mxu0 0.0
  %5150 = vmatpush1.msra.mxu0 0.0
  %5151 = vmatprep.subr.mxu0 0.0
  %5152 = vmatpush1.msra.mxu0 0.0
  %5153 = vmatprep.subr.mxu0 0.0
  %5154 = vmatpush1.msra.mxu0 0.0
  %5155 = vmatprep.subr.mxu0 0.0
  %5156 = vmatpush1.msra.mxu0 0.0
  %5157 = vmatprep.subr.mxu0 0.0
  %5158 = vmatpush1.msra.mxu0 0.0
  %5159 = vmatprep.mubr.f32.mxu0 0.0
  %5160 = vmatmul.mubr.f32.gmra.mrb[0].mxu0 %v4510
  %v5161 = vpop.f32.mrb[0].mxu0
  %v5162 = vadd.f32 0.0, %v5161
  %v5163 = vpop.f32.mrb[0].mxu0
  %5164 = vdwg.mxu0
  %v5165 = vadd.f32 %v5094, %v5162
  %5166 = vmatprep.subr.mxu0 0.0
  %5167 = vmatpush1.msra.mxu0 %v2685
  %5168 = vmatprep.subr.mxu0 0.0
  %5169 = vmatpush1.msra.mxu0 0.0
  %5170 = vmatprep.subr.mxu0 0.0
  %5171 = vmatpush1.msra.mxu0 0.0
  %5172 = vmatprep.subr.mxu0 0.0
  %5173 = vmatpush1.msra.mxu0 0.0
  %5174 = vmatprep.subr.mxu0 0.0
  %5175 = vmatpush1.msra.mxu0 0.0
  %5176 = vmatprep.subr.mxu0 0.0
  %5177 = vmatpush1.msra.mxu0 0.0
  %5178 = vmatprep.subr.mxu0 0.0
  %5179 = vmatpush1.msra.mxu0 0.0
  %5180 = vmatprep.subr.mxu0 0.0
  %5181 = vmatpush1.msra.mxu0 0.0
  %5182 = vmatprep.subr.mxu0 0.0
  %5183 = vmatpush1.msra.mxu0 0.0
  %5184 = vmatprep.subr.mxu0 0.0
  %5185 = vmatpush1.msra.mxu0 0.0
  %5186 = vmatprep.subr.mxu0 0.0
  %5187 = vmatpush1.msra.mxu0 0.0
  %5188 = vmatprep.subr.mxu0 0.0
  %5189 = vmatpush1.msra.mxu0 0.0
  %5190 = vmatprep.subr.mxu0 0.0
  %5191 = vmatpush1.msra.mxu0 0.0
  %5192 = vmatprep.subr.mxu0 0.0
  %5193 = vmatpush1.msra.mxu0 0.0
  %5194 = vmatprep.subr.mxu0 0.0
  %5195 = vmatpush1.msra.mxu0 0.0
  %5196 = vmatprep.subr.mxu0 0.0
  %5197 = vmatpush1.msra.mxu0 0.0
  %5198 = vmatprep.subr.mxu0 0.0
  %5199 = vmatpush1.msra.mxu0 0.0
  %5200 = vmatprep.subr.mxu0 0.0
  %5201 = vmatpush1.msra.mxu0 0.0
  %5202 = vmatprep.subr.mxu0 0.0
  %5203 = vmatpush1.msra.mxu0 0.0
  %5204 = vmatprep.subr.mxu0 0.0
  %5205 = vmatpush1.msra.mxu0 0.0
  %5206 = vmatprep.subr.mxu0 0.0
  %5207 = vmatpush1.msra.mxu0 0.0
  %5208 = vmatprep.subr.mxu0 0.0
  %5209 = vmatpush1.msra.mxu0 0.0
  %5210 = vmatprep.subr.mxu0 0.0
  %5211 = vmatpush1.msra.mxu0 0.0
  %5212 = vmatprep.subr.mxu0 0.0
  %5213 = vmatpush1.msra.mxu0 0.0
  %5214 = vmatprep.subr.mxu0 0.0
  %5215 = vmatpush1.msra.mxu0 0.0
  %5216 = vmatprep.subr.mxu0 0.0
  %5217 = vmatpush1.msra.mxu0 0.0
  %5218 = vmatprep.subr.mxu0 0.0
  %5219 = vmatpush1.msra.mxu0 0.0
  %5220 = vmatprep.subr.mxu0 0.0
  %5221 = vmatpush1.msra.mxu0 0.0
  %5222 = vmatprep.subr.mxu0 0.0
  %5223 = vmatpush1.msra.mxu0 0.0
  %5224 = vmatprep.subr.mxu0 0.0
  %5225 = vmatpush1.msra.mxu0 0.0
  %5226 = vmatprep.subr.mxu0 0.0
  %5227 = vmatpush1.msra.mxu0 0.0
  %5228 = vmatprep.subr.mxu0 0.0
  %5229 = vmatpush1.msra.mxu0 0.0
  %5230 = vmatprep.mubr.f32.mxu0 0.0
  %5231 = vmatmul.mubr.f32.gmra.mrb[0].mxu0 %v4588
  %v5232 = vpop.f32.mrb[0].mxu0
  %v5233 = vadd.f32 0.0, %v5232
  %v5234 = vpop.f32.mrb[0].mxu0
  %5235 = vdwg.mxu0
  %v5237 = vsel %vm198, %v5233, 0
  %5239 = vmatprep.subr.mxu0 0.0
  %5240 = vmatpush1.msra.mxu0 %v1028
  %5241 = vmatprep.subr.mxu0 0.0
  %5242 = vmatpush1.msra.mxu0 %v1029
  %5243 = vmatprep.subr.mxu0 0.0
  %5244 = vmatpush1.msra.mxu0 %v1030
  %5245 = vmatprep.subr.mxu0 0.0
  %5246 = vmatpush1.msra.mxu0 %v1031
  %5247 = vmatprep.subr.mxu0 0.0
  %5248 = vmatpush1.msra.mxu0 0.0
  %5249 = vmatprep.subr.mxu0 0.0
  %5250 = vmatpush1.msra.mxu0 0.0
  %5251 = vmatprep.subr.mxu0 0.0
  %5252 = vmatpush1.msra.mxu0 0.0
  %5253 = vmatprep.subr.mxu0 0.0
  %5254 = vmatpush1.msra.mxu0 0.0
  %5255 = vmatprep.subr.mxu0 0.0
  %5256 = vmatpush1.msra.mxu0 0.0
  %5257 = vmatprep.subr.mxu0 0.0
  %5258 = vmatpush1.msra.mxu0 0.0
  %5259 = vmatprep.subr.mxu0 0.0
  %5260 = vmatpush1.msra.mxu0 0.0
  %5261 = vmatprep.subr.mxu0 0.0
  %5262 = vmatpush1.msra.mxu0 0.0
  %5263 = vmatprep.subr.mxu0 0.0
  %5264 = vmatpush1.msra.mxu0 0.0
  %5265 = vmatprep.subr.mxu0 0.0
  %5266 = vmatpush1.msra.mxu0 0.0
  %5267 = vmatprep.subr.mxu0 0.0
  %5268 = vmatpush1.msra.mxu0 0.0
  %5269 = vmatprep.subr.mxu0 0.0
  %5270 = vmatpush1.msra.mxu0 0.0
  %5271 = vmatprep.subr.mxu0 0.0
  %5272 = vmatpush1.msra.mxu0 0.0
  %5273 = vmatprep.subr.mxu0 0.0
  %5274 = vmatpush1.msra.mxu0 0.0
  %5275 = vmatprep.subr.mxu0 0.0
  %5276 = vmatpush1.msra.mxu0 0.0
  %5277 = vmatprep.subr.mxu0 0.0
  %5278 = vmatpush1.msra.mxu0 0.0
  %5279 = vmatprep.subr.mxu0 0.0
  %5280 = vmatpush1.msra.mxu0 0.0
  %5281 = vmatprep.subr.mxu0 0.0
  %5282 = vmatpush1.msra.mxu0 0.0
  %5283 = vmatprep.subr.mxu0 0.0
  %5284 = vmatpush1.msra.mxu0 0.0
  %5285 = vmatprep.subr.mxu0 0.0
  %5286 = vmatpush1.msra.mxu0 0.0
  %5287 = vmatprep.subr.mxu0 0.0
  %5288 = vmatpush1.msra.mxu0 0.0
  %5289 = vmatprep.subr.mxu0 0.0
  %5290 = vmatpush1.msra.mxu0 0.0
  %5291 = vmatprep.subr.mxu0 0.0
  %5292 = vmatpush1.msra.mxu0 0.0
  %5293 = vmatprep.subr.mxu0 0.0
  %5294 = vmatpush1.msra.mxu0 0.0
  %5295 = vmatprep.subr.mxu0 0.0
  %5296 = vmatpush1.msra.mxu0 0.0
  %5297 = vmatprep.subr.mxu0 0.0
  %5298 = vmatpush1.msra.mxu0 0.0
  %5299 = vmatprep.subr.mxu0 0.0
  %5300 = vmatpush1.msra.mxu0 0.0
  %5301 = vmatprep.subr.mxu0 0.0
  %5302 = vmatpush1.msra.mxu0 0.0
  %5303 = vmatprep.mubr.f32.mxu0 0.0
  %5304 = vmatmul.mubr.f32.gmra.mrb[0].mxu0 %v5237
  %v5305 = vpop.f32.mrb[0].mxu0
  %v5306 = vadd.f32 0.0, %v5305
  %v5307 = vpop.f32.mrb[0].mxu0
  %5308 = vdwg.mxu0
  %5309 = vmatprep.subr.mxu0 0.0
  %5310 = vmatpush1.msra.mxu0 %v2533
  %5311 = vmatprep.subr.mxu0 0.0
  %5312 = vmatpush1.msra.mxu0 0.0
  %5313 = vmatprep.subr.mxu0 0.0
  %5314 = vmatpush1.msra.mxu0 0.0
  %5315 = vmatprep.subr.mxu0 0.0
  %5316 = vmatpush1.msra.mxu0 0.0
  %5317 = vmatprep.subr.mxu0 0.0
  %5318 = vmatpush1.msra.mxu0 0.0
  %5319 = vmatprep.subr.mxu0 0.0
  %5320 = vmatpush1.msra.mxu0 0.0
  %5321 = vmatprep.subr.mxu0 0.0
  %5322 = vmatpush1.msra.mxu0 0.0
  %5323 = vmatprep.subr.mxu0 0.0
  %5324 = vmatpush1.msra.mxu0 0.0
  %5325 = vmatprep.subr.mxu0 0.0
  %5326 = vmatpush1.msra.mxu0 0.0
  %5327 = vmatprep.subr.mxu0 0.0
  %5328 = vmatpush1.msra.mxu0 0.0
  %5329 = vmatprep.subr.mxu0 0.0
  %5330 = vmatpush1.msra.mxu0 0.0
  %5331 = vmatprep.subr.mxu0 0.0
  %5332 = vmatpush1.msra.mxu0 0.0
  %5333 = vmatprep.subr.mxu0 0.0
  %5334 = vmatpush1.msra.mxu0 0.0
  %5335 = vmatprep.subr.mxu0 0.0
  %5336 = vmatpush1.msra.mxu0 0.0
  %5337 = vmatprep.subr.mxu0 0.0
  %5338 = vmatpush1.msra.mxu0 0.0
  %5339 = vmatprep.subr.mxu0 0.0
  %5340 = vmatpush1.msra.mxu0 0.0
  %5341 = vmatprep.subr.mxu0 0.0
  %5342 = vmatpush1.msra.mxu0 0.0
  %5343 = vmatprep.subr.mxu0 0.0
  %5344 = vmatpush1.msra.mxu0 0.0
  %5345 = vmatprep.subr.mxu0 0.0
  %5346 = vmatpush1.msra.mxu0 0.0
  %5347 = vmatprep.subr.mxu0 0.0
  %5348 = vmatpush1.msra.mxu0 0.0
  %5349 = vmatprep.subr.mxu0 0.0
  %5350 = vmatpush1.msra.mxu0 0.0
  %5351 = vmatprep.subr.mxu0 0.0
  %5352 = vmatpush1.msra.mxu0 0.0
  %5353 = vmatprep.subr.mxu0 0.0
  %5354 = vmatpush1.msra.mxu0 0.0
  %5355 = vmatprep.subr.mxu0 0.0
  %5356 = vmatpush1.msra.mxu0 0.0
  %5357 = vmatprep.subr.mxu0 0.0
  %5358 = vmatpush1.msra.mxu0 0.0
  %5359 = vmatprep.subr.mxu0 0.0
  %5360 = vmatpush1.msra.mxu0 0.0
  %5361 = vmatprep.subr.mxu0 0.0
  %5362 = vmatpush1.msra.mxu0 0.0
  %5363 = vmatprep.subr.mxu0 0.0
  %5364 = vmatpush1.msra.mxu0 0.0
  %5365 = vmatprep.subr.mxu0 0.0
  %5366 = vmatpush1.msra.mxu0 0.0
  %5367 = vmatprep.subr.mxu0 0.0
  %5368 = vmatpush1.msra.mxu0 0.0
  %5369 = vmatprep.subr.mxu0 0.0
  %5370 = vmatpush1.msra.mxu0 0.0
  %5371 = vmatprep.subr.mxu0 0.0
  %5372 = vmatpush1.msra.mxu0 0.0
  %5373 = vmatprep.mubr.f32.mxu0 0.0
  %5374 = vmatmul.mubr.f32.gmra.mrb[0].mxu0 %v4661
  %v5375 = vpop.f32.mrb[0].mxu0
  %v5376 = vadd.f32 %v5306, %v5375
  %v5377 = vpop.f32.mrb[0].mxu0
  %5378 = vdwg.mxu0
  %5379 = vmatprep.subr.mxu0 0.0
  %5380 = vmatpush1.msra.mxu0 %v2231
  %5381 = vmatprep.subr.mxu0 0.0
  %5382 = vmatpush1.msra.mxu0 0.0
  %5383 = vmatprep.subr.mxu0 0.0
  %5384 = vmatpush1.msra.mxu0 0.0
  %5385 = vmatprep.subr.mxu0 0.0
  %5386 = vmatpush1.msra.mxu0 0.0
  %5387 = vmatprep.subr.mxu0 0.0
  %5388 = vmatpush1.msra.mxu0 0.0
  %5389 = vmatprep.subr.mxu0 0.0
  %5390 = vmatpush1.msra.mxu0 0.0
  %5391 = vmatprep.subr.mxu0 0.0
  %5392 = vmatpush1.msra.mxu0 0.0
  %5393 = vmatprep.subr.mxu0 0.0
  %5394 = vmatpush1.msra.mxu0 0.0
  %5395 = vmatprep.subr.mxu0 0.0
  %5396 = vmatpush1.msra.mxu0 0.0
  %5397 = vmatprep.subr.mxu0 0.0
  %5398 = vmatpush1.msra.mxu0 0.0
  %5399 = vmatprep.subr.mxu0 0.0
  %5400 = vmatpush1.msra.mxu0 0.0
  %5401 = vmatprep.subr.mxu0 0.0
  %5402 = vmatpush1.msra.mxu0 0.0
  %5403 = vmatprep.subr.mxu0 0.0
  %5404 = vmatpush1.msra.mxu0 0.0
  %5405 = vmatprep.subr.mxu0 0.0
  %5406 = vmatpush1.msra.mxu0 0.0
  %5407 = vmatprep.subr.mxu0 0.0
  %5408 = vmatpush1.msra.mxu0 0.0
  %5409 = vmatprep.subr.mxu0 0.0
  %5410 = vmatpush1.msra.mxu0 0.0
  %5411 = vmatprep.subr.mxu0 0.0
  %5412 = vmatpush1.msra.mxu0 0.0
  %5413 = vmatprep.subr.mxu0 0.0
  %5414 = vmatpush1.msra.mxu0 0.0
  %5415 = vmatprep.subr.mxu0 0.0
  %5416 = vmatpush1.msra.mxu0 0.0
  %5417 = vmatprep.subr.mxu0 0.0
  %5418 = vmatpush1.msra.mxu0 0.0
  %5419 = vmatprep.subr.mxu0 0.0
  %5420 = vmatpush1.msra.mxu0 0.0
  %5421 = vmatprep.subr.mxu0 0.0
  %5422 = vmatpush1.msra.mxu0 0.0
  %5423 = vmatprep.subr.mxu0 0.0
  %5424 = vmatpush1.msra.mxu0 0.0
  %5425 = vmatprep.subr.mxu0 0.0
  %5426 = vmatpush1.msra.mxu0 0.0
  %5427 = vmatprep.subr.mxu0 0.0
  %5428 = vmatpush1.msra.mxu0 0.0
  %5429 = vmatprep.subr.mxu0 0.0
  %5430 = vmatpush1.msra.mxu0 0.0
  %5431 = vmatprep.subr.mxu0 0.0
  %5432 = vmatpush1.msra.mxu0 0.0
  %5433 = vmatprep.subr.mxu0 0.0
  %5434 = vmatpush1.msra.mxu0 0.0
  %5435 = vmatprep.subr.mxu0 0.0
  %5436 = vmatpush1.msra.mxu0 0.0
  %5437 = vmatprep.subr.mxu0 0.0
  %5438 = vmatpush1.msra.mxu0 0.0
  %5439 = vmatprep.subr.mxu0 0.0
  %5440 = vmatpush1.msra.mxu0 0.0
  %5441 = vmatprep.subr.mxu0 0.0
  %5442 = vmatpush1.msra.mxu0 0.0
  %5443 = vmatprep.mubr.f32.mxu0 0.0
  %5444 = vmatmul.mubr.f32.gmra.mrb[0].mxu0 %v4736
  %v5445 = vpop.f32.mrb[0].mxu0
  %v5446 = vadd.f32 0.0, %v5445
  %v5447 = vpop.f32.mrb[0].mxu0
  %5448 = vdwg.mxu0
  %v5449 = vadd.f32 %v5376, %v5446
  %5450 = vmatprep.subr.mxu0 0.0
  %5451 = vmatpush1.msra.mxu0 %v2309
  %5452 = vmatprep.subr.mxu0 0.0
  %5453 = vmatpush1.msra.mxu0 0.0
  %5454 = vmatprep.subr.mxu0 0.0
  %5455 = vmatpush1.msra.mxu0 0.0
  %5456 = vmatprep.subr.mxu0 0.0
  %5457 = vmatpush1.msra.mxu0 0.0
  %5458 = vmatprep.subr.mxu0 0.0
  %5459 = vmatpush1.msra.mxu0 0.0
  %5460 = vmatprep.subr.mxu0 0.0
  %5461 = vmatpush1.msra.mxu0 0.0
  %5462 = vmatprep.subr.mxu0 0.0
  %5463 = vmatpush1.msra.mxu0 0.0
  %5464 = vmatprep.subr.mxu0 0.0
  %5465 = vmatpush1.msra.mxu0 0.0
  %5466 = vmatprep.subr.mxu0 0.0
  %5467 = vmatpush1.msra.mxu0 0.0
  %5468 = vmatprep.subr.mxu0 0.0
  %5469 = vmatpush1.msra.mxu0 0.0
  %5470 = vmatprep.subr.mxu0 0.0
  %5471 = vmatpush1.msra.mxu0 0.0
  %5472 = vmatprep.subr.mxu0 0.0
  %5473 = vmatpush1.msra.mxu0 0.0
  %5474 = vmatprep.subr.mxu0 0.0
  %5475 = vmatpush1.msra.mxu0 0.0
  %5476 = vmatprep.subr.mxu0 0.0
  %5477 = vmatpush1.msra.mxu0 0.0
  %5478 = vmatprep.subr.mxu0 0.0
  %5479 = vmatpush1.msra.mxu0 0.0
  %5480 = vmatprep.subr.mxu0 0.0
  %5481 = vmatpush1.msra.mxu0 0.0
  %5482 = vmatprep.subr.mxu0 0.0
  %5483 = vmatpush1.msra.mxu0 0.0
  %5484 = vmatprep.subr.mxu0 0.0
  %5485 = vmatpush1.msra.mxu0 0.0
  %5486 = vmatprep.subr.mxu0 0.0
  %5487 = vmatpush1.msra.mxu0 0.0
  %5488 = vmatprep.subr.mxu0 0.0
  %5489 = vmatpush1.msra.mxu0 0.0
  %5490 = vmatprep.subr.mxu0 0.0
  %5491 = vmatpush1.msra.mxu0 0.0
  %5492 = vmatprep.subr.mxu0 0.0
  %5493 = vmatpush1.msra.mxu0 0.0
  %5494 = vmatprep.subr.mxu0 0.0
  %5495 = vmatpush1.msra.mxu0 0.0
  %5496 = vmatprep.subr.mxu0 0.0
  %5497 = vmatpush1.msra.mxu0 0.0
  %5498 = vmatprep.subr.mxu0 0.0
  %5499 = vmatpush1.msra.mxu0 0.0
  %5500 = vmatprep.subr.mxu0 0.0
  %5501 = vmatpush1.msra.mxu0 0.0
  %5502 = vmatprep.subr.mxu0 0.0
  %5503 = vmatpush1.msra.mxu0 0.0
  %5504 = vmatprep.subr.mxu0 0.0
  %5505 = vmatpush1.msra.mxu0 0.0
  %5506 = vmatprep.subr.mxu0 0.0
  %5507 = vmatpush1.msra.mxu0 0.0
  %5508 = vmatprep.subr.mxu0 0.0
  %5509 = vmatpush1.msra.mxu0 0.0
  %5510 = vmatprep.subr.mxu0 0.0
  %5511 = vmatpush1.msra.mxu0 0.0
  %5512 = vmatprep.subr.mxu0 0.0
  %5513 = vmatpush1.msra.mxu0 0.0
  %5514 = vmatprep.mubr.f32.mxu0 0.0
  %5515 = vmatmul.mubr.f32.gmra.mrb[0].mxu0 %v4811
  %v5516 = vpop.f32.mrb[0].mxu0
  %v5517 = vadd.f32 0.0, %v5516
  %v5518 = vpop.f32.mrb[0].mxu0
  %5519 = vdwg.mxu0
  %v5521 = vsel %vm198, %v5517, 0
  %5523 = vmatprep.subr.mxu0 0.0
  %5524 = vmatpush1.msra.mxu0 %v1028
  %5525 = vmatprep.subr.mxu0 0.0
  %5526 = vmatpush1.msra.mxu0 %v1029
  %5527 = vmatprep.subr.mxu0 0.0
  %5528 = vmatpush1.msra.mxu0 %v1030
  %5529 = vmatprep.subr.mxu0 0.0
  %5530 = vmatpush1.msra.mxu0 %v1031
  %5531 = vmatprep.subr.mxu0 0.0
  %5532 = vmatpush1.msra.mxu0 0.0
  %5533 = vmatprep.subr.mxu0 0.0
  %5534 = vmatpush1.msra.mxu0 0.0
  %5535 = vmatprep.subr.mxu0 0.0
  %5536 = vmatpush1.msra.mxu0 0.0
  %5537 = vmatprep.subr.mxu0 0.0
  %5538 = vmatpush1.msra.mxu0 0.0
  %5539 = vmatprep.subr.mxu0 0.0
  %5540 = vmatpush1.msra.mxu0 0.0
  %5541 = vmatprep.subr.mxu0 0.0
  %5542 = vmatpush1.msra.mxu0 0.0
  %5543 = vmatprep.subr.mxu0 0.0
  %5544 = vmatpush1.msra.mxu0 0.0
  %5545 = vmatprep.subr.mxu0 0.0
  %5546 = vmatpush1.msra.mxu0 0.0
  %5547 = vmatprep.subr.mxu0 0.0
  %5548 = vmatpush1.msra.mxu0 0.0
  %5549 = vmatprep.subr.mxu0 0.0
  %5550 = vmatpush1.msra.mxu0 0.0
  %5551 = vmatprep.subr.mxu0 0.0
  %5552 = vmatpush1.msra.mxu0 0.0
  %5553 = vmatprep.subr.mxu0 0.0
  %5554 = vmatpush1.msra.mxu0 0.0
  %5555 = vmatprep.subr.mxu0 0.0
  %5556 = vmatpush1.msra.mxu0 0.0
  %5557 = vmatprep.subr.mxu0 0.0
  %5558 = vmatpush1.msra.mxu0 0.0
  %5559 = vmatprep.subr.mxu0 0.0
  %5560 = vmatpush1.msra.mxu0 0.0
  %5561 = vmatprep.subr.mxu0 0.0
  %5562 = vmatpush1.msra.mxu0 0.0
  %5563 = vmatprep.subr.mxu0 0.0
  %5564 = vmatpush1.msra.mxu0 0.0
  %5565 = vmatprep.subr.mxu0 0.0
  %5566 = vmatpush1.msra.mxu0 0.0
  %5567 = vmatprep.subr.mxu0 0.0
  %5568 = vmatpush1.msra.mxu0 0.0
  %5569 = vmatprep.subr.mxu0 0.0
  %5570 = vmatpush1.msra.mxu0 0.0
  %5571 = vmatprep.subr.mxu0 0.0
  %5572 = vmatpush1.msra.mxu0 0.0
  %5573 = vmatprep.subr.mxu0 0.0
  %5574 = vmatpush1.msra.mxu0 0.0
  %5575 = vmatprep.subr.mxu0 0.0
  %5576 = vmatpush1.msra.mxu0 0.0
  %5577 = vmatprep.subr.mxu0 0.0
  %5578 = vmatpush1.msra.mxu0 0.0
  %5579 = vmatprep.subr.mxu0 0.0
  %5580 = vmatpush1.msra.mxu0 0.0
  %5581 = vmatprep.subr.mxu0 0.0
  %5582 = vmatpush1.msra.mxu0 0.0
  %5583 = vmatprep.subr.mxu0 0.0
  %5584 = vmatpush1.msra.mxu0 0.0
  %5585 = vmatprep.subr.mxu0 0.0
  %5586 = vmatpush1.msra.mxu0 0.0
  %5587 = vmatprep.mubr.f32.mxu0 0.0
  %5588 = vmatmul.mubr.f32.gmra.mrb[0].mxu0 %v5521
  %v5589 = vpop.f32.mrb[0].mxu0
  %v5590 = vadd.f32 0.0, %v5589
  %v5591 = vpop.f32.mrb[0].mxu0
  %5592 = vdwg.mxu0
  %v5593 = vadd.f32 %v5449, %v5590
  %5594 = vmatprep.subr.mxu0 0.0
  %5595 = vmatpush1.msra.mxu0 %v2533
  %5596 = vmatprep.subr.mxu0 0.0
  %5597 = vmatpush1.msra.mxu0 0.0
  %5598 = vmatprep.subr.mxu0 0.0
  %5599 = vmatpush1.msra.mxu0 0.0
  %5600 = vmatprep.subr.mxu0 0.0
  %5601 = vmatpush1.msra.mxu0 0.0
  %5602 = vmatprep.subr.mxu0 0.0
  %5603 = vmatpush1.msra.mxu0 0.0
  %5604 = vmatprep.subr.mxu0 0.0
  %5605 = vmatpush1.msra.mxu0 0.0
  %5606 = vmatprep.subr.mxu0 0.0
  %5607 = vmatpush1.msra.mxu0 0.0
  %5608 = vmatprep.subr.mxu0 0.0
  %5609 = vmatpush1.msra.mxu0 0.0
  %5610 = vmatprep.subr.mxu0 0.0
  %5611 = vmatpush1.msra.mxu0 0.0
  %5612 = vmatprep.subr.mxu0 0.0
  %5613 = vmatpush1.msra.mxu0 0.0
  %5614 = vmatprep.subr.mxu0 0.0
  %5615 = vmatpush1.msra.mxu0 0.0
  %5616 = vmatprep.subr.mxu0 0.0
  %5617 = vmatpush1.msra.mxu0 0.0
  %5618 = vmatprep.subr.mxu0 0.0
  %5619 = vmatpush1.msra.mxu0 0.0
  %5620 = vmatprep.subr.mxu0 0.0
  %5621 = vmatpush1.msra.mxu0 0.0
  %5622 = vmatprep.subr.mxu0 0.0
  %5623 = vmatpush1.msra.mxu0 0.0
  %5624 = vmatprep.subr.mxu0 0.0
  %5625 = vmatpush1.msra.mxu0 0.0
  %5626 = vmatprep.subr.mxu0 0.0
  %5627 = vmatpush1.msra.mxu0 0.0
  %5628 = vmatprep.subr.mxu0 0.0
  %5629 = vmatpush1.msra.mxu0 0.0
  %5630 = vmatprep.subr.mxu0 0.0
  %5631 = vmatpush1.msra.mxu0 0.0
  %5632 = vmatprep.subr.mxu0 0.0
  %5633 = vmatpush1.msra.mxu0 0.0
  %5634 = vmatprep.subr.mxu0 0.0
  %5635 = vmatpush1.msra.mxu0 0.0
  %5636 = vmatprep.subr.mxu0 0.0
  %5637 = vmatpush1.msra.mxu0 0.0
  %5638 = vmatprep.subr.mxu0 0.0
  %5639 = vmatpush1.msra.mxu0 0.0
  %5640 = vmatprep.subr.mxu0 0.0
  %5641 = vmatpush1.msra.mxu0 0.0
  %5642 = vmatprep.subr.mxu0 0.0
  %5643 = vmatpush1.msra.mxu0 0.0
  %5644 = vmatprep.subr.mxu0 0.0
  %5645 = vmatpush1.msra.mxu0 0.0
  %5646 = vmatprep.subr.mxu0 0.0
  %5647 = vmatpush1.msra.mxu0 0.0
  %5648 = vmatprep.subr.mxu0 0.0
  %5649 = vmatpush1.msra.mxu0 0.0
  %5650 = vmatprep.subr.mxu0 0.0
  %5651 = vmatpush1.msra.mxu0 0.0
  %5652 = vmatprep.subr.mxu0 0.0
  %5653 = vmatpush1.msra.mxu0 0.0
  %5654 = vmatprep.subr.mxu0 0.0
  %5655 = vmatpush1.msra.mxu0 0.0
  %5656 = vmatprep.subr.mxu0 0.0
  %5657 = vmatpush1.msra.mxu0 0.0
  %5658 = vmatprep.mubr.f32.mxu0 0.0
  %5659 = vmatmul.mubr.f32.gmra.mrb[0].mxu0 %v2227
  %v5660 = vpop.f32.mrb[0].mxu0
  %v5661 = vadd.f32 0.0, %v5660
  %v5662 = vpop.f32.mrb[0].mxu0
  %5663 = vdwg.mxu0
  %5664 = vmatprep.subr.mxu0 0.0
  %5665 = vmatpush1.msra.mxu0 %v2685
  %5666 = vmatprep.subr.mxu0 0.0
  %5667 = vmatpush1.msra.mxu0 0.0
  %5668 = vmatprep.subr.mxu0 0.0
  %5669 = vmatpush1.msra.mxu0 0.0
  %5670 = vmatprep.subr.mxu0 0.0
  %5671 = vmatpush1.msra.mxu0 0.0
  %5672 = vmatprep.subr.mxu0 0.0
  %5673 = vmatpush1.msra.mxu0 0.0
  %5674 = vmatprep.subr.mxu0 0.0
  %5675 = vmatpush1.msra.mxu0 0.0
  %5676 = vmatprep.subr.mxu0 0.0
  %5677 = vmatpush1.msra.mxu0 0.0
  %5678 = vmatprep.subr.mxu0 0.0
  %5679 = vmatpush1.msra.mxu0 0.0
  %5680 = vmatprep.subr.mxu0 0.0
  %5681 = vmatpush1.msra.mxu0 0.0
  %5682 = vmatprep.subr.mxu0 0.0
  %5683 = vmatpush1.msra.mxu0 0.0
  %5684 = vmatprep.subr.mxu0 0.0
  %5685 = vmatpush1.msra.mxu0 0.0
  %5686 = vmatprep.subr.mxu0 0.0
  %5687 = vmatpush1.msra.mxu0 0.0
  %5688 = vmatprep.subr.mxu0 0.0
  %5689 = vmatpush1.msra.mxu0 0.0
  %5690 = vmatprep.subr.mxu0 0.0
  %5691 = vmatpush1.msra.mxu0 0.0
  %5692 = vmatprep.subr.mxu0 0.0
  %5693 = vmatpush1.msra.mxu0 0.0
  %5694 = vmatprep.subr.mxu0 0.0
  %5695 = vmatpush1.msra.mxu0 0.0
  %5696 = vmatprep.subr.mxu0 0.0
  %5697 = vmatpush1.msra.mxu0 0.0
  %5698 = vmatprep.subr.mxu0 0.0
  %5699 = vmatpush1.msra.mxu0 0.0
  %5700 = vmatprep.subr.mxu0 0.0
  %5701 = vmatpush1.msra.mxu0 0.0
  %5702 = vmatprep.subr.mxu0 0.0
  %5703 = vmatpush1.msra.mxu0 0.0
  %5704 = vmatprep.subr.mxu0 0.0
  %5705 = vmatpush1.msra.mxu0 0.0
  %5706 = vmatprep.subr.mxu0 0.0
  %5707 = vmatpush1.msra.mxu0 0.0
  %5708 = vmatprep.subr.mxu0 0.0
  %5709 = vmatpush1.msra.mxu0 0.0
  %5710 = vmatprep.subr.mxu0 0.0
  %5711 = vmatpush1.msra.mxu0 0.0
  %5712 = vmatprep.subr.mxu0 0.0
  %5713 = vmatpush1.msra.mxu0 0.0
  %5714 = vmatprep.subr.mxu0 0.0
  %5715 = vmatpush1.msra.mxu0 0.0
  %5716 = vmatprep.subr.mxu0 0.0
  %5717 = vmatpush1.msra.mxu0 0.0
  %5718 = vmatprep.subr.mxu0 0.0
  %5719 = vmatpush1.msra.mxu0 0.0
  %5720 = vmatprep.subr.mxu0 0.0
  %5721 = vmatpush1.msra.mxu0 0.0
  %5722 = vmatprep.subr.mxu0 0.0
  %5723 = vmatpush1.msra.mxu0 0.0
  %5724 = vmatprep.subr.mxu0 0.0
  %5725 = vmatpush1.msra.mxu0 0.0
  %5726 = vmatprep.subr.mxu0 0.0
  %5727 = vmatpush1.msra.mxu0 0.0
  %5728 = vmatprep.mubr.f32.mxu0 0.0
  %5729 = vmatmul.mubr.f32.gmra.mrb[0].mxu0 %v2306
  %v5730 = vpop.f32.mrb[0].mxu0
  %v5731 = vadd.f32 0.0, %v5730
  %v5732 = vpop.f32.mrb[0].mxu0
  %5733 = vdwg.mxu0
  %v5735 = vsel %vm198, %v5661, 0
  %5737 = vmatprep.subr.mxu0 0.0
  %5738 = vmatpush1.msra.mxu0 %v421
  %5739 = vmatprep.subr.mxu0 0.0
  %5740 = vmatpush1.msra.mxu0 %v422
  %5741 = vmatprep.subr.mxu0 0.0
  %5742 = vmatpush1.msra.mxu0 %v423
  %5743 = vmatprep.subr.mxu0 0.0
  %5744 = vmatpush1.msra.mxu0 %v424
  %5745 = vmatprep.subr.mxu0 0.0
  %5746 = vmatpush1.msra.mxu0 0.0
  %5747 = vmatprep.subr.mxu0 0.0
  %5748 = vmatpush1.msra.mxu0 0.0
  %5749 = vmatprep.subr.mxu0 0.0
  %5750 = vmatpush1.msra.mxu0 0.0
  %5751 = vmatprep.subr.mxu0 0.0
  %5752 = vmatpush1.msra.mxu0 0.0
  %5753 = vmatprep.subr.mxu0 0.0
  %5754 = vmatpush1.msra.mxu0 0.0
  %5755 = vmatprep.subr.mxu0 0.0
  %5756 = vmatpush1.msra.mxu0 0.0
  %5757 = vmatprep.subr.mxu0 0.0
  %5758 = vmatpush1.msra.mxu0 0.0
  %5759 = vmatprep.subr.mxu0 0.0
  %5760 = vmatpush1.msra.mxu0 0.0
  %5761 = vmatprep.subr.mxu0 0.0
  %5762 = vmatpush1.msra.mxu0 0.0
  %5763 = vmatprep.subr.mxu0 0.0
  %5764 = vmatpush1.msra.mxu0 0.0
  %5765 = vmatprep.subr.mxu0 0.0
  %5766 = vmatpush1.msra.mxu0 0.0
  %5767 = vmatprep.subr.mxu0 0.0
  %5768 = vmatpush1.msra.mxu0 0.0
  %5769 = vmatprep.subr.mxu0 0.0
  %5770 = vmatpush1.msra.mxu0 0.0
  %5771 = vmatprep.subr.mxu0 0.0
  %5772 = vmatpush1.msra.mxu0 0.0
  %5773 = vmatprep.subr.mxu0 0.0
  %5774 = vmatpush1.msra.mxu0 0.0
  %5775 = vmatprep.subr.mxu0 0.0
  %5776 = vmatpush1.msra.mxu0 0.0
  %5777 = vmatprep.subr.mxu0 0.0
  %5778 = vmatpush1.msra.mxu0 0.0
  %5779 = vmatprep.subr.mxu0 0.0
  %5780 = vmatpush1.msra.mxu0 0.0
  %5781 = vmatprep.subr.mxu0 0.0
  %5782 = vmatpush1.msra.mxu0 0.0
  %5783 = vmatprep.subr.mxu0 0.0
  %5784 = vmatpush1.msra.mxu0 0.0
  %5785 = vmatprep.subr.mxu0 0.0
  %5786 = vmatpush1.msra.mxu0 0.0
  %5787 = vmatprep.subr.mxu0 0.0
  %5788 = vmatpush1.msra.mxu0 0.0
  %5789 = vmatprep.subr.mxu0 0.0
  %5790 = vmatpush1.msra.mxu0 0.0
  %5791 = vmatprep.subr.mxu0 0.0
  %5792 = vmatpush1.msra.mxu0 0.0
  %5793 = vmatprep.subr.mxu0 0.0
  %5794 = vmatpush1.msra.mxu0 0.0
  %5795 = vmatprep.subr.mxu0 0.0
  %5796 = vmatpush1.msra.mxu0 0.0
  %5797 = vmatprep.subr.mxu0 0.0
  %5798 = vmatpush1.msra.mxu0 0.0
  %5799 = vmatprep.subr.mxu0 0.0
  %5800 = vmatpush1.msra.mxu0 0.0
  %5801 = vmatprep.mubr.f32.mxu0 0.0
  %5802 = vmatmul.mubr.f32.gmra.mrb[0].mxu0 %v5735
  %v5803 = vpop.f32.mrb[0].mxu0
  %v5804 = vadd.f32 %v5731, %v5803
  %v5805 = vpop.f32.mrb[0].mxu0
  %5806 = vdwg.mxu0
  %5807 = vmatprep.subr.mxu0 0.0
  %5808 = vmatpush1.msra.mxu0 %v2231
  %5809 = vmatprep.subr.mxu0 0.0
  %5810 = vmatpush1.msra.mxu0 0.0
  %5811 = vmatprep.subr.mxu0 0.0
  %5812 = vmatpush1.msra.mxu0 0.0
  %5813 = vmatprep.subr.mxu0 0.0
  %5814 = vmatpush1.msra.mxu0 0.0
  %5815 = vmatprep.subr.mxu0 0.0
  %5816 = vmatpush1.msra.mxu0 0.0
  %5817 = vmatprep.subr.mxu0 0.0
  %5818 = vmatpush1.msra.mxu0 0.0
  %5819 = vmatprep.subr.mxu0 0.0
  %5820 = vmatpush1.msra.mxu0 0.0
  %5821 = vmatprep.subr.mxu0 0.0
  %5822 = vmatpush1.msra.mxu0 0.0
  %5823 = vmatprep.subr.mxu0 0.0
  %5824 = vmatpush1.msra.mxu0 0.0
  %5825 = vmatprep.subr.mxu0 0.0
  %5826 = vmatpush1.msra.mxu0 0.0
  %5827 = vmatprep.subr.mxu0 0.0
  %5828 = vmatpush1.msra.mxu0 0.0
  %5829 = vmatprep.subr.mxu0 0.0
  %5830 = vmatpush1.msra.mxu0 0.0
  %5831 = vmatprep.subr.mxu0 0.0
  %5832 = vmatpush1.msra.mxu0 0.0
  %5833 = vmatprep.subr.mxu0 0.0
  %5834 = vmatpush1.msra.mxu0 0.0
  %5835 = vmatprep.subr.mxu0 0.0
  %5836 = vmatpush1.msra.mxu0 0.0
  %5837 = vmatprep.subr.mxu0 0.0
  %5838 = vmatpush1.msra.mxu0 0.0
  %5839 = vmatprep.subr.mxu0 0.0
  %5840 = vmatpush1.msra.mxu0 0.0
  %5841 = vmatprep.subr.mxu0 0.0
  %5842 = vmatpush1.msra.mxu0 0.0
  %5843 = vmatprep.subr.mxu0 0.0
  %5844 = vmatpush1.msra.mxu0 0.0
  %5845 = vmatprep.subr.mxu0 0.0
  %5846 = vmatpush1.msra.mxu0 0.0
  %5847 = vmatprep.subr.mxu0 0.0
  %5848 = vmatpush1.msra.mxu0 0.0
  %5849 = vmatprep.subr.mxu0 0.0
  %5850 = vmatpush1.msra.mxu0 0.0
  %5851 = vmatprep.subr.mxu0 0.0
  %5852 = vmatpush1.msra.mxu0 0.0
  %5853 = vmatprep.subr.mxu0 0.0
  %5854 = vmatpush1.msra.mxu0 0.0
  %5855 = vmatprep.subr.mxu0 0.0
  %5856 = vmatpush1.msra.mxu0 0.0
  %5857 = vmatprep.subr.mxu0 0.0
  %5858 = vmatpush1.msra.mxu0 0.0
  %5859 = vmatprep.subr.mxu0 0.0
  %5860 = vmatpush1.msra.mxu0 0.0
  %5861 = vmatprep.subr.mxu0 0.0
  %5862 = vmatpush1.msra.mxu0 0.0
  %5863 = vmatprep.subr.mxu0 0.0
  %5864 = vmatpush1.msra.mxu0 0.0
  %5865 = vmatprep.subr.mxu0 0.0
  %5866 = vmatpush1.msra.mxu0 0.0
  %5867 = vmatprep.subr.mxu0 0.0
  %5868 = vmatpush1.msra.mxu0 0.0
  %5869 = vmatprep.subr.mxu0 0.0
  %5870 = vmatpush1.msra.mxu0 0.0
  %5871 = vmatprep.mubr.f32.mxu0 0.0
  %5872 = vmatmul.mubr.f32.gmra.mrb[0].mxu0 %v2530
  %v5873 = vpop.f32.mrb[0].mxu0
  %v5874 = vadd.f32 0.0, %v5873
  %v5875 = vpop.f32.mrb[0].mxu0
  %5876 = vdwg.mxu0
  %v5878 = vsel %vm198, %v5874, 0
  %5880 = vmatprep.subr.mxu0 0.0
  %5881 = vmatpush1.msra.mxu0 %v421
  %5882 = vmatprep.subr.mxu0 0.0
  %5883 = vmatpush1.msra.mxu0 %v422
  %5884 = vmatprep.subr.mxu0 0.0
  %5885 = vmatpush1.msra.mxu0 %v423
  %5886 = vmatprep.subr.mxu0 0.0
  %5887 = vmatpush1.msra.mxu0 %v424
  %5888 = vmatprep.subr.mxu0 0.0
  %5889 = vmatpush1.msra.mxu0 0.0
  %5890 = vmatprep.subr.mxu0 0.0
  %5891 = vmatpush1.msra.mxu0 0.0
  %5892 = vmatprep.subr.mxu0 0.0
  %5893 = vmatpush1.msra.mxu0 0.0
  %5894 = vmatprep.subr.mxu0 0.0
  %5895 = vmatpush1.msra.mxu0 0.0
  %5896 = vmatprep.subr.mxu0 0.0
  %5897 = vmatpush1.msra.mxu0 0.0
  %5898 = vmatprep.subr.mxu0 0.0
  %5899 = vmatpush1.msra.mxu0 0.0
  %5900 = vmatprep.subr.mxu0 0.0
  %5901 = vmatpush1.msra.mxu0 0.0
  %5902 = vmatprep.subr.mxu0 0.0
  %5903 = vmatpush1.msra.mxu0 0.0
  %5904 = vmatprep.subr.mxu0 0.0
  %5905 = vmatpush1.msra.mxu0 0.0
  %5906 = vmatprep.subr.mxu0 0.0
  %5907 = vmatpush1.msra.mxu0 0.0
  %5908 = vmatprep.subr.mxu0 0.0
  %5909 = vmatpush1.msra.mxu0 0.0
  %5910 = vmatprep.subr.mxu0 0.0
  %5911 = vmatpush1.msra.mxu0 0.0
  %5912 = vmatprep.subr.mxu0 0.0
  %5913 = vmatpush1.msra.mxu0 0.0
  %5914 = vmatprep.subr.mxu0 0.0
  %5915 = vmatpush1.msra.mxu0 0.0
  %5916 = vmatprep.subr.mxu0 0.0
  %5917 = vmatpush1.msra.mxu0 0.0
  %5918 = vmatprep.subr.mxu0 0.0
  %5919 = vmatpush1.msra.mxu0 0.0
  %5920 = vmatprep.subr.mxu0 0.0
  %5921 = vmatpush1.msra.mxu0 0.0
  %5922 = vmatprep.subr.mxu0 0.0
  %5923 = vmatpush1.msra.mxu0 0.0
  %5924 = vmatprep.subr.mxu0 0.0
  %5925 = vmatpush1.msra.mxu0 0.0
  %5926 = vmatprep.subr.mxu0 0.0
  %5927 = vmatpush1.msra.mxu0 0.0
  %5928 = vmatprep.subr.mxu0 0.0
  %5929 = vmatpush1.msra.mxu0 0.0
  %5930 = vmatprep.subr.mxu0 0.0
  %5931 = vmatpush1.msra.mxu0 0.0
  %5932 = vmatprep.subr.mxu0 0.0
  %5933 = vmatpush1.msra.mxu0 0.0
  %5934 = vmatprep.subr.mxu0 0.0
  %5935 = vmatpush1.msra.mxu0 0.0
  %5936 = vmatprep.subr.mxu0 0.0
  %5937 = vmatpush1.msra.mxu0 0.0
  %5938 = vmatprep.subr.mxu0 0.0
  %5939 = vmatpush1.msra.mxu0 0.0
  %5940 = vmatprep.subr.mxu0 0.0
  %5941 = vmatpush1.msra.mxu0 0.0
  %5942 = vmatprep.subr.mxu0 0.0
  %5943 = vmatpush1.msra.mxu0 0.0
  %5944 = vmatprep.mubr.f32.mxu0 0.0
  %5945 = vmatmul.mubr.f32.gmra.mrb[0].mxu0 %v5878
  %v5946 = vpop.f32.mrb[0].mxu0
  %v5947 = vadd.f32 0.0, %v5946
  %v5948 = vpop.f32.mrb[0].mxu0
  %5949 = vdwg.mxu0
  %v5950 = vadd.f32 %v5804, %v5947
  %5951 = vmatprep.subr.mxu0 0.0
  %5952 = vmatpush1.msra.mxu0 %v2309
  %5953 = vmatprep.subr.mxu0 0.0
  %5954 = vmatpush1.msra.mxu0 0.0
  %5955 = vmatprep.subr.mxu0 0.0
  %5956 = vmatpush1.msra.mxu0 0.0
  %5957 = vmatprep.subr.mxu0 0.0
  %5958 = vmatpush1.msra.mxu0 0.0
  %5959 = vmatprep.subr.mxu0 0.0
  %5960 = vmatpush1.msra.mxu0 0.0
  %5961 = vmatprep.subr.mxu0 0.0
  %5962 = vmatpush1.msra.mxu0 0.0
  %5963 = vmatprep.subr.mxu0 0.0
  %5964 = vmatpush1.msra.mxu0 0.0
  %5965 = vmatprep.subr.mxu0 0.0
  %5966 = vmatpush1.msra.mxu0 0.0
  %5967 = vmatprep.subr.mxu0 0.0
  %5968 = vmatpush1.msra.mxu0 0.0
  %5969 = vmatprep.subr.mxu0 0.0
  %5970 = vmatpush1.msra.mxu0 0.0
  %5971 = vmatprep.subr.mxu0 0.0
  %5972 = vmatpush1.msra.mxu0 0.0
  %5973 = vmatprep.subr.mxu0 0.0
  %5974 = vmatpush1.msra.mxu0 0.0
  %5975 = vmatprep.subr.mxu0 0.0
  %5976 = vmatpush1.msra.mxu0 0.0
  %5977 = vmatprep.subr.mxu0 0.0
  %5978 = vmatpush1.msra.mxu0 0.0
  %5979 = vmatprep.subr.mxu0 0.0
  %5980 = vmatpush1.msra.mxu0 0.0
  %5981 = vmatprep.subr.mxu0 0.0
  %5982 = vmatpush1.msra.mxu0 0.0
  %5983 = vmatprep.subr.mxu0 0.0
  %5984 = vmatpush1.msra.mxu0 0.0
  %5985 = vmatprep.subr.mxu0 0.0
  %5986 = vmatpush1.msra.mxu0 0.0
  %5987 = vmatprep.subr.mxu0 0.0
  %5988 = vmatpush1.msra.mxu0 0.0
  %5989 = vmatprep.subr.mxu0 0.0
  %5990 = vmatpush1.msra.mxu0 0.0
  %5991 = vmatprep.subr.mxu0 0.0
  %5992 = vmatpush1.msra.mxu0 0.0
  %5993 = vmatprep.subr.mxu0 0.0
  %5994 = vmatpush1.msra.mxu0 0.0
  %5995 = vmatprep.subr.mxu0 0.0
  %5996 = vmatpush1.msra.mxu0 0.0
  %5997 = vmatprep.subr.mxu0 0.0
  %5998 = vmatpush1.msra.mxu0 0.0
  %5999 = vmatprep.subr.mxu0 0.0
  %6000 = vmatpush1.msra.mxu0 0.0
  %6001 = vmatprep.subr.mxu0 0.0
  %6002 = vmatpush1.msra.mxu0 0.0
  %6003 = vmatprep.subr.mxu0 0.0
  %6004 = vmatpush1.msra.mxu0 0.0
  %6005 = vmatprep.subr.mxu0 0.0
  %6006 = vmatpush1.msra.mxu0 0.0
  %6007 = vmatprep.subr.mxu0 0.0
  %6008 = vmatpush1.msra.mxu0 0.0
  %6009 = vmatprep.subr.mxu0 0.0
  %6010 = vmatpush1.msra.mxu0 0.0
  %6011 = vmatprep.subr.mxu0 0.0
  %6012 = vmatpush1.msra.mxu0 0.0
  %6013 = vmatprep.subr.mxu0 0.0
  %6014 = vmatpush1.msra.mxu0 0.0
  %6015 = vmatprep.mubr.f32.mxu0 0.0
  %6016 = vmatmul.mubr.f32.gmra.mrb[0].mxu0 %v2682
  %v6017 = vpop.f32.mrb[0].mxu0
  %v6018 = vadd.f32 0.0, %v6017
  %v6019 = vpop.f32.mrb[0].mxu0
  %6020 = vdwg.mxu0
  %v6021 = vadd.f32 %v5950, %v6018
  %6022 = vmatprep.subr.mxu0 0.0
  %6023 = vmatpush1.msra.mxu0 %v2533
  %6024 = vmatprep.subr.mxu0 0.0
  %6025 = vmatpush1.msra.mxu0 0.0
  %6026 = vmatprep.subr.mxu0 0.0
  %6027 = vmatpush1.msra.mxu0 0.0
  %6028 = vmatprep.subr.mxu0 0.0
  %6029 = vmatpush1.msra.mxu0 0.0
  %6030 = vmatprep.subr.mxu0 0.0
  %6031 = vmatpush1.msra.mxu0 0.0
  %6032 = vmatprep.subr.mxu0 0.0
  %6033 = vmatpush1.msra.mxu0 0.0
  %6034 = vmatprep.subr.mxu0 0.0
  %6035 = vmatpush1.msra.mxu0 0.0
  %6036 = vmatprep.subr.mxu0 0.0
  %6037 = vmatpush1.msra.mxu0 0.0
  %6038 = vmatprep.subr.mxu0 0.0
  %6039 = vmatpush1.msra.mxu0 0.0
  %6040 = vmatprep.subr.mxu0 0.0
  %6041 = vmatpush1.msra.mxu0 0.0
  %6042 = vmatprep.subr.mxu0 0.0
  %6043 = vmatpush1.msra.mxu0 0.0
  %6044 = vmatprep.subr.mxu0 0.0
  %6045 = vmatpush1.msra.mxu0 0.0
  %6046 = vmatprep.subr.mxu0 0.0
  %6047 = vmatpush1.msra.mxu0 0.0
  %6048 = vmatprep.subr.mxu0 0.0
  %6049 = vmatpush1.msra.mxu0 0.0
  %6050 = vmatprep.subr.mxu0 0.0
  %6051 = vmatpush1.msra.mxu0 0.0
  %6052 = vmatprep.subr.mxu0 0.0
  %6053 = vmatpush1.msra.mxu0 0.0
  %6054 = vmatprep.subr.mxu0 0.0
  %6055 = vmatpush1.msra.mxu0 0.0
  %6056 = vmatprep.subr.mxu0 0.0
  %6057 = vmatpush1.msra.mxu0 0.0
  %6058 = vmatprep.subr.mxu0 0.0
  %6059 = vmatpush1.msra.mxu0 0.0
  %6060 = vmatprep.subr.mxu0 0.0
  %6061 = vmatpush1.msra.mxu0 0.0
  %6062 = vmatprep.subr.mxu0 0.0
  %6063 = vmatpush1.msra.mxu0 0.0
  %6064 = vmatprep.subr.mxu0 0.0
  %6065 = vmatpush1.msra.mxu0 0.0
  %6066 = vmatprep.subr.mxu0 0.0
  %6067 = vmatpush1.msra.mxu0 0.0
  %6068 = vmatprep.subr.mxu0 0.0
  %6069 = vmatpush1.msra.mxu0 0.0
  %6070 = vmatprep.subr.mxu0 0.0
  %6071 = vmatpush1.msra.mxu0 0.0
  %6072 = vmatprep.subr.mxu0 0.0
  %6073 = vmatpush1.msra.mxu0 0.0
  %6074 = vmatprep.subr.mxu0 0.0
  %6075 = vmatpush1.msra.mxu0 0.0
  %6076 = vmatprep.subr.mxu0 0.0
  %6077 = vmatpush1.msra.mxu0 0.0
  %6078 = vmatprep.subr.mxu0 0.0
  %6079 = vmatpush1.msra.mxu0 0.0
  %6080 = vmatprep.subr.mxu0 0.0
  %6081 = vmatpush1.msra.mxu0 0.0
  %6082 = vmatprep.subr.mxu0 0.0
  %6083 = vmatpush1.msra.mxu0 0.0
  %6084 = vmatprep.subr.mxu0 0.0
  %6085 = vmatpush1.msra.mxu0 0.0
  %6086 = vmatprep.mubr.f32.mxu0 0.0
  %6087 = vmatmul.mubr.f32.gmra.mrb[0].mxu0 %v2836
  %v6088 = vpop.f32.mrb[0].mxu0
  %v6089 = vadd.f32 0.0, %v6088
  %v6090 = vpop.f32.mrb[0].mxu0
  %6091 = vdwg.mxu0
  %6092 = vmatprep.subr.mxu0 0.0
  %6093 = vmatpush1.msra.mxu0 %v2685
  %6094 = vmatprep.subr.mxu0 0.0
  %6095 = vmatpush1.msra.mxu0 0.0
  %6096 = vmatprep.subr.mxu0 0.0
  %6097 = vmatpush1.msra.mxu0 0.0
  %6098 = vmatprep.subr.mxu0 0.0
  %6099 = vmatpush1.msra.mxu0 0.0
  %6100 = vmatprep.subr.mxu0 0.0
  %6101 = vmatpush1.msra.mxu0 0.0
  %6102 = vmatprep.subr.mxu0 0.0
  %6103 = vmatpush1.msra.mxu0 0.0
  %6104 = vmatprep.subr.mxu0 0.0
  %6105 = vmatpush1.msra.mxu0 0.0
  %6106 = vmatprep.subr.mxu0 0.0
  %6107 = vmatpush1.msra.mxu0 0.0
  %6108 = vmatprep.subr.mxu0 0.0
  %6109 = vmatpush1.msra.mxu0 0.0
  %6110 = vmatprep.subr.mxu0 0.0
  %6111 = vmatpush1.msra.mxu0 0.0
  %6112 = vmatprep.subr.mxu0 0.0
  %6113 = vmatpush1.msra.mxu0 0.0
  %6114 = vmatprep.subr.mxu0 0.0
  %6115 = vmatpush1.msra.mxu0 0.0
  %6116 = vmatprep.subr.mxu0 0.0
  %6117 = vmatpush1.msra.mxu0 0.0
  %6118 = vmatprep.subr.mxu0 0.0
  %6119 = vmatpush1.msra.mxu0 0.0
  %6120 = vmatprep.subr.mxu0 0.0
  %6121 = vmatpush1.msra.mxu0 0.0
  %6122 = vmatprep.subr.mxu0 0.0
  %6123 = vmatpush1.msra.mxu0 0.0
  %6124 = vmatprep.subr.mxu0 0.0
  %6125 = vmatpush1.msra.mxu0 0.0
  %6126 = vmatprep.subr.mxu0 0.0
  %6127 = vmatpush1.msra.mxu0 0.0
  %6128 = vmatprep.subr.mxu0 0.0
  %6129 = vmatpush1.msra.mxu0 0.0
  %6130 = vmatprep.subr.mxu0 0.0
  %6131 = vmatpush1.msra.mxu0 0.0
  %6132 = vmatprep.subr.mxu0 0.0
  %6133 = vmatpush1.msra.mxu0 0.0
  %6134 = vmatprep.subr.mxu0 0.0
  %6135 = vmatpush1.msra.mxu0 0.0
  %6136 = vmatprep.subr.mxu0 0.0
  %6137 = vmatpush1.msra.mxu0 0.0
  %6138 = vmatprep.subr.mxu0 0.0
  %6139 = vmatpush1.msra.mxu0 0.0
  %6140 = vmatprep.subr.mxu0 0.0
  %6141 = vmatpush1.msra.mxu0 0.0
  %6142 = vmatprep.subr.mxu0 0.0
  %6143 = vmatpush1.msra.mxu0 0.0
  %6144 = vmatprep.subr.mxu0 0.0
  %6145 = vmatpush1.msra.mxu0 0.0
  %6146 = vmatprep.subr.mxu0 0.0
  %6147 = vmatpush1.msra.mxu0 0.0
  %6148 = vmatprep.subr.mxu0 0.0
  %6149 = vmatpush1.msra.mxu0 0.0
  %6150 = vmatprep.subr.mxu0 0.0
  %6151 = vmatpush1.msra.mxu0 0.0
  %6152 = vmatprep.subr.mxu0 0.0
  %6153 = vmatpush1.msra.mxu0 0.0
  %6154 = vmatprep.subr.mxu0 0.0
  %6155 = vmatpush1.msra.mxu0 0.0
  %6156 = vmatprep.mubr.f32.mxu0 0.0
  %6157 = vmatmul.mubr.f32.gmra.mrb[0].mxu0 %v2761
  %v6158 = vpop.f32.mrb[0].mxu0
  %v6159 = vadd.f32 %v6089, %v6158
  %v6160 = vpop.f32.mrb[0].mxu0
  %6161 = vdwg.mxu0
  %6162 = vmatprep.subr.mxu0 0.0
  %6163 = vmatpush1.msra.mxu0 %v2309
  %6164 = vmatprep.subr.mxu0 0.0
  %6165 = vmatpush1.msra.mxu0 0.0
  %6166 = vmatprep.subr.mxu0 0.0
  %6167 = vmatpush1.msra.mxu0 0.0
  %6168 = vmatprep.subr.mxu0 0.0
  %6169 = vmatpush1.msra.mxu0 0.0
  %6170 = vmatprep.subr.mxu0 0.0
  %6171 = vmatpush1.msra.mxu0 0.0
  %6172 = vmatprep.subr.mxu0 0.0
  %6173 = vmatpush1.msra.mxu0 0.0
  %6174 = vmatprep.subr.mxu0 0.0
  %6175 = vmatpush1.msra.mxu0 0.0
  %6176 = vmatprep.subr.mxu0 0.0
  %6177 = vmatpush1.msra.mxu0 0.0
  %6178 = vmatprep.subr.mxu0 0.0
  %6179 = vmatpush1.msra.mxu0 0.0
  %6180 = vmatprep.subr.mxu0 0.0
  %6181 = vmatpush1.msra.mxu0 0.0
  %6182 = vmatprep.subr.mxu0 0.0
  %6183 = vmatpush1.msra.mxu0 0.0
  %6184 = vmatprep.subr.mxu0 0.0
  %6185 = vmatpush1.msra.mxu0 0.0
  %6186 = vmatprep.subr.mxu0 0.0
  %6187 = vmatpush1.msra.mxu0 0.0
  %6188 = vmatprep.subr.mxu0 0.0
  %6189 = vmatpush1.msra.mxu0 0.0
  %6190 = vmatprep.subr.mxu0 0.0
  %6191 = vmatpush1.msra.mxu0 0.0
  %6192 = vmatprep.subr.mxu0 0.0
  %6193 = vmatpush1.msra.mxu0 0.0
  %6194 = vmatprep.subr.mxu0 0.0
  %6195 = vmatpush1.msra.mxu0 0.0
  %6196 = vmatprep.subr.mxu0 0.0
  %6197 = vmatpush1.msra.mxu0 0.0
  %6198 = vmatprep.subr.mxu0 0.0
  %6199 = vmatpush1.msra.mxu0 0.0
  %6200 = vmatprep.subr.mxu0 0.0
  %6201 = vmatpush1.msra.mxu0 0.0
  %6202 = vmatprep.subr.mxu0 0.0
  %6203 = vmatpush1.msra.mxu0 0.0
  %6204 = vmatprep.subr.mxu0 0.0
  %6205 = vmatpush1.msra.mxu0 0.0
  %6206 = vmatprep.subr.mxu0 0.0
  %6207 = vmatpush1.msra.mxu0 0.0
  %6208 = vmatprep.subr.mxu0 0.0
  %6209 = vmatpush1.msra.mxu0 0.0
  %6210 = vmatprep.subr.mxu0 0.0
  %6211 = vmatpush1.msra.mxu0 0.0
  %6212 = vmatprep.subr.mxu0 0.0
  %6213 = vmatpush1.msra.mxu0 0.0
  %6214 = vmatprep.subr.mxu0 0.0
  %6215 = vmatpush1.msra.mxu0 0.0
  %6216 = vmatprep.subr.mxu0 0.0
  %6217 = vmatpush1.msra.mxu0 0.0
  %6218 = vmatprep.subr.mxu0 0.0
  %6219 = vmatpush1.msra.mxu0 0.0
  %6220 = vmatprep.subr.mxu0 0.0
  %6221 = vmatpush1.msra.mxu0 0.0
  %6222 = vmatprep.subr.mxu0 0.0
  %6223 = vmatpush1.msra.mxu0 0.0
  %6224 = vmatprep.subr.mxu0 0.0
  %6225 = vmatpush1.msra.mxu0 0.0
  %6226 = vmatprep.mubr.f32.mxu0 0.0
  %6227 = vmatmul.mubr.f32.gmra.mrb[0].mxu0 %v3057
  %v6228 = vpop.f32.mrb[0].mxu0
  %v6229 = vadd.f32 0.0, %v6228
  %v6230 = vpop.f32.mrb[0].mxu0
  %6231 = vdwg.mxu0
  %v6232 = vadd.f32 %v6159, %v6229
  %6233 = vmatprep.subr.mxu0 0.0
  %6234 = vmatpush1.msra.mxu0 %v2231
  %6235 = vmatprep.subr.mxu0 0.0
  %6236 = vmatpush1.msra.mxu0 0.0
  %6237 = vmatprep.subr.mxu0 0.0
  %6238 = vmatpush1.msra.mxu0 0.0
  %6239 = vmatprep.subr.mxu0 0.0
  %6240 = vmatpush1.msra.mxu0 0.0
  %6241 = vmatprep.subr.mxu0 0.0
  %6242 = vmatpush1.msra.mxu0 0.0
  %6243 = vmatprep.subr.mxu0 0.0
  %6244 = vmatpush1.msra.mxu0 0.0
  %6245 = vmatprep.subr.mxu0 0.0
  %6246 = vmatpush1.msra.mxu0 0.0
  %6247 = vmatprep.subr.mxu0 0.0
  %6248 = vmatpush1.msra.mxu0 0.0
  %6249 = vmatprep.subr.mxu0 0.0
  %6250 = vmatpush1.msra.mxu0 0.0
  %6251 = vmatprep.subr.mxu0 0.0
  %6252 = vmatpush1.msra.mxu0 0.0
  %6253 = vmatprep.subr.mxu0 0.0
  %6254 = vmatpush1.msra.mxu0 0.0
  %6255 = vmatprep.subr.mxu0 0.0
  %6256 = vmatpush1.msra.mxu0 0.0
  %6257 = vmatprep.subr.mxu0 0.0
  %6258 = vmatpush1.msra.mxu0 0.0
  %6259 = vmatprep.subr.mxu0 0.0
  %6260 = vmatpush1.msra.mxu0 0.0
  %6261 = vmatprep.subr.mxu0 0.0
  %6262 = vmatpush1.msra.mxu0 0.0
  %6263 = vmatprep.subr.mxu0 0.0
  %6264 = vmatpush1.msra.mxu0 0.0
  %6265 = vmatprep.subr.mxu0 0.0
  %6266 = vmatpush1.msra.mxu0 0.0
  %6267 = vmatprep.subr.mxu0 0.0
  %6268 = vmatpush1.msra.mxu0 0.0
  %6269 = vmatprep.subr.mxu0 0.0
  %6270 = vmatpush1.msra.mxu0 0.0
  %6271 = vmatprep.subr.mxu0 0.0
  %6272 = vmatpush1.msra.mxu0 0.0
  %6273 = vmatprep.subr.mxu0 0.0
  %6274 = vmatpush1.msra.mxu0 0.0
  %6275 = vmatprep.subr.mxu0 0.0
  %6276 = vmatpush1.msra.mxu0 0.0
  %6277 = vmatprep.subr.mxu0 0.0
  %6278 = vmatpush1.msra.mxu0 0.0
  %6279 = vmatprep.subr.mxu0 0.0
  %6280 = vmatpush1.msra.mxu0 0.0
  %6281 = vmatprep.subr.mxu0 0.0
  %6282 = vmatpush1.msra.mxu0 0.0
  %6283 = vmatprep.subr.mxu0 0.0
  %6284 = vmatpush1.msra.mxu0 0.0
  %6285 = vmatprep.subr.mxu0 0.0
  %6286 = vmatpush1.msra.mxu0 0.0
  %6287 = vmatprep.subr.mxu0 0.0
  %6288 = vmatpush1.msra.mxu0 0.0
  %6289 = vmatprep.subr.mxu0 0.0
  %6290 = vmatpush1.msra.mxu0 0.0
  %6291 = vmatprep.subr.mxu0 0.0
  %6292 = vmatpush1.msra.mxu0 0.0
  %6293 = vmatprep.subr.mxu0 0.0
  %6294 = vmatpush1.msra.mxu0 0.0
  %6295 = vmatprep.subr.mxu0 0.0
  %6296 = vmatpush1.msra.mxu0 0.0
  %6297 = vmatprep.mubr.f32.mxu0 0.0
  %6298 = vmatmul.mubr.f32.gmra.mrb[0].mxu0 %v3133
  %v6299 = vpop.f32.mrb[0].mxu0
  %v6300 = vadd.f32 0.0, %v6299
  %v6301 = vpop.f32.mrb[0].mxu0
  %6302 = vdwg.mxu0
  %v6303 = vadd.f32 %v6232, %v6300
  %6304 = vmatprep.subr.mxu0 0.0
  %6305 = vmatpush1.msra.mxu0 %v2533
  %6306 = vmatprep.subr.mxu0 0.0
  %6307 = vmatpush1.msra.mxu0 0.0
  %6308 = vmatprep.subr.mxu0 0.0
  %6309 = vmatpush1.msra.mxu0 0.0
  %6310 = vmatprep.subr.mxu0 0.0
  %6311 = vmatpush1.msra.mxu0 0.0
  %6312 = vmatprep.subr.mxu0 0.0
  %6313 = vmatpush1.msra.mxu0 0.0
  %6314 = vmatprep.subr.mxu0 0.0
  %6315 = vmatpush1.msra.mxu0 0.0
  %6316 = vmatprep.subr.mxu0 0.0
  %6317 = vmatpush1.msra.mxu0 0.0
  %6318 = vmatprep.subr.mxu0 0.0
  %6319 = vmatpush1.msra.mxu0 0.0
  %6320 = vmatprep.subr.mxu0 0.0
  %6321 = vmatpush1.msra.mxu0 0.0
  %6322 = vmatprep.subr.mxu0 0.0
  %6323 = vmatpush1.msra.mxu0 0.0
  %6324 = vmatprep.subr.mxu0 0.0
  %6325 = vmatpush1.msra.mxu0 0.0
  %6326 = vmatprep.subr.mxu0 0.0
  %6327 = vmatpush1.msra.mxu0 0.0
  %6328 = vmatprep.subr.mxu0 0.0
  %6329 = vmatpush1.msra.mxu0 0.0
  %6330 = vmatprep.subr.mxu0 0.0
  %6331 = vmatpush1.msra.mxu0 0.0
  %6332 = vmatprep.subr.mxu0 0.0
  %6333 = vmatpush1.msra.mxu0 0.0
  %6334 = vmatprep.subr.mxu0 0.0
  %6335 = vmatpush1.msra.mxu0 0.0
  %6336 = vmatprep.subr.mxu0 0.0
  %6337 = vmatpush1.msra.mxu0 0.0
  %6338 = vmatprep.subr.mxu0 0.0
  %6339 = vmatpush1.msra.mxu0 0.0
  %6340 = vmatprep.subr.mxu0 0.0
  %6341 = vmatpush1.msra.mxu0 0.0
  %6342 = vmatprep.subr.mxu0 0.0
  %6343 = vmatpush1.msra.mxu0 0.0
  %6344 = vmatprep.subr.mxu0 0.0
  %6345 = vmatpush1.msra.mxu0 0.0
  %6346 = vmatprep.subr.mxu0 0.0
  %6347 = vmatpush1.msra.mxu0 0.0
  %6348 = vmatprep.subr.mxu0 0.0
  %6349 = vmatpush1.msra.mxu0 0.0
  %6350 = vmatprep.subr.mxu0 0.0
  %6351 = vmatpush1.msra.mxu0 0.0
  %6352 = vmatprep.subr.mxu0 0.0
  %6353 = vmatpush1.msra.mxu0 0.0
  %6354 = vmatprep.subr.mxu0 0.0
  %6355 = vmatpush1.msra.mxu0 0.0
  %6356 = vmatprep.subr.mxu0 0.0
  %6357 = vmatpush1.msra.mxu0 0.0
  %6358 = vmatprep.subr.mxu0 0.0
  %6359 = vmatpush1.msra.mxu0 0.0
  %6360 = vmatprep.subr.mxu0 0.0
  %6361 = vmatpush1.msra.mxu0 0.0
  %6362 = vmatprep.subr.mxu0 0.0
  %6363 = vmatpush1.msra.mxu0 0.0
  %6364 = vmatprep.subr.mxu0 0.0
  %6365 = vmatpush1.msra.mxu0 0.0
  %6366 = vmatprep.subr.mxu0 0.0
  %6367 = vmatpush1.msra.mxu0 0.0
  %6368 = vmatprep.mubr.f32.mxu0 0.0
  %6369 = vmatmul.mubr.f32.gmra.mrb[0].mxu0 %v2306
  %v6370 = vpop.f32.mrb[0].mxu0
  %v6371 = vadd.f32 0.0, %v6370
  %v6372 = vpop.f32.mrb[0].mxu0
  %6373 = vdwg.mxu0
  %6374 = vmatprep.subr.mxu0 0.0
  %6375 = vmatpush1.msra.mxu0 %v2685
  %6376 = vmatprep.subr.mxu0 0.0
  %6377 = vmatpush1.msra.mxu0 0.0
  %6378 = vmatprep.subr.mxu0 0.0
  %6379 = vmatpush1.msra.mxu0 0.0
  %6380 = vmatprep.subr.mxu0 0.0
  %6381 = vmatpush1.msra.mxu0 0.0
  %6382 = vmatprep.subr.mxu0 0.0
  %6383 = vmatpush1.msra.mxu0 0.0
  %6384 = vmatprep.subr.mxu0 0.0
  %6385 = vmatpush1.msra.mxu0 0.0
  %6386 = vmatprep.subr.mxu0 0.0
  %6387 = vmatpush1.msra.mxu0 0.0
  %6388 = vmatprep.subr.mxu0 0.0
  %6389 = vmatpush1.msra.mxu0 0.0
  %6390 = vmatprep.subr.mxu0 0.0
  %6391 = vmatpush1.msra.mxu0 0.0
  %6392 = vmatprep.subr.mxu0 0.0
  %6393 = vmatpush1.msra.mxu0 0.0
  %6394 = vmatprep.subr.mxu0 0.0
  %6395 = vmatpush1.msra.mxu0 0.0
  %6396 = vmatprep.subr.mxu0 0.0
  %6397 = vmatpush1.msra.mxu0 0.0
  %6398 = vmatprep.subr.mxu0 0.0
  %6399 = vmatpush1.msra.mxu0 0.0
  %6400 = vmatprep.subr.mxu0 0.0
  %6401 = vmatpush1.msra.mxu0 0.0
  %6402 = vmatprep.subr.mxu0 0.0
  %6403 = vmatpush1.msra.mxu0 0.0
  %6404 = vmatprep.subr.mxu0 0.0
  %6405 = vmatpush1.msra.mxu0 0.0
  %6406 = vmatprep.subr.mxu0 0.0
  %6407 = vmatpush1.msra.mxu0 0.0
  %6408 = vmatprep.subr.mxu0 0.0
  %6409 = vmatpush1.msra.mxu0 0.0
  %6410 = vmatprep.subr.mxu0 0.0
  %6411 = vmatpush1.msra.mxu0 0.0
  %6412 = vmatprep.subr.mxu0 0.0
  %6413 = vmatpush1.msra.mxu0 0.0
  %6414 = vmatprep.subr.mxu0 0.0
  %6415 = vmatpush1.msra.mxu0 0.0
  %6416 = vmatprep.subr.mxu0 0.0
  %6417 = vmatpush1.msra.mxu0 0.0
  %6418 = vmatprep.subr.mxu0 0.0
  %6419 = vmatpush1.msra.mxu0 0.0
  %6420 = vmatprep.subr.mxu0 0.0
  %6421 = vmatpush1.msra.mxu0 0.0
  %6422 = vmatprep.subr.mxu0 0.0
  %6423 = vmatpush1.msra.mxu0 0.0
  %6424 = vmatprep.subr.mxu0 0.0
  %6425 = vmatpush1.msra.mxu0 0.0
  %6426 = vmatprep.subr.mxu0 0.0
  %6427 = vmatpush1.msra.mxu0 0.0
  %6428 = vmatprep.subr.mxu0 0.0
  %6429 = vmatpush1.msra.mxu0 0.0
  %6430 = vmatprep.subr.mxu0 0.0
  %6431 = vmatpush1.msra.mxu0 0.0
  %6432 = vmatprep.subr.mxu0 0.0
  %6433 = vmatpush1.msra.mxu0 0.0
  %6434 = vmatprep.subr.mxu0 0.0
  %6435 = vmatpush1.msra.mxu0 0.0
  %6436 = vmatprep.subr.mxu0 0.0
  %6437 = vmatpush1.msra.mxu0 0.0
  %6438 = vmatprep.mubr.f32.mxu0 0.0
  %6439 = vmatmul.mubr.f32.gmra.mrb[0].mxu0 %v2227
  %v6440 = vpop.f32.mrb[0].mxu0
  %v6441 = vadd.f32 %v6371, %v6440
  %v6442 = vpop.f32.mrb[0].mxu0
  %6443 = vdwg.mxu0
  %6444 = vmatprep.subr.mxu0 0.0
  %6445 = vmatpush1.msra.mxu0 %v2309
  %6446 = vmatprep.subr.mxu0 0.0
  %6447 = vmatpush1.msra.mxu0 0.0
  %6448 = vmatprep.subr.mxu0 0.0
  %6449 = vmatpush1.msra.mxu0 0.0
  %6450 = vmatprep.subr.mxu0 0.0
  %6451 = vmatpush1.msra.mxu0 0.0
  %6452 = vmatprep.subr.mxu0 0.0
  %6453 = vmatpush1.msra.mxu0 0.0
  %6454 = vmatprep.subr.mxu0 0.0
  %6455 = vmatpush1.msra.mxu0 0.0
  %6456 = vmatprep.subr.mxu0 0.0
  %6457 = vmatpush1.msra.mxu0 0.0
  %6458 = vmatprep.subr.mxu0 0.0
  %6459 = vmatpush1.msra.mxu0 0.0
  %6460 = vmatprep.subr.mxu0 0.0
  %6461 = vmatpush1.msra.mxu0 0.0
  %6462 = vmatprep.subr.mxu0 0.0
  %6463 = vmatpush1.msra.mxu0 0.0
  %6464 = vmatprep.subr.mxu0 0.0
  %6465 = vmatpush1.msra.mxu0 0.0
  %6466 = vmatprep.subr.mxu0 0.0
  %6467 = vmatpush1.msra.mxu0 0.0
  %6468 = vmatprep.subr.mxu0 0.0
  %6469 = vmatpush1.msra.mxu0 0.0
  %6470 = vmatprep.subr.mxu0 0.0
  %6471 = vmatpush1.msra.mxu0 0.0
  %6472 = vmatprep.subr.mxu0 0.0
  %6473 = vmatpush1.msra.mxu0 0.0
  %6474 = vmatprep.subr.mxu0 0.0
  %6475 = vmatpush1.msra.mxu0 0.0
  %6476 = vmatprep.subr.mxu0 0.0
  %6477 = vmatpush1.msra.mxu0 0.0
  %6478 = vmatprep.subr.mxu0 0.0
  %6479 = vmatpush1.msra.mxu0 0.0
  %6480 = vmatprep.subr.mxu0 0.0
  %6481 = vmatpush1.msra.mxu0 0.0
  %6482 = vmatprep.subr.mxu0 0.0
  %6483 = vmatpush1.msra.mxu0 0.0
  %6484 = vmatprep.subr.mxu0 0.0
  %6485 = vmatpush1.msra.mxu0 0.0
  %6486 = vmatprep.subr.mxu0 0.0
  %6487 = vmatpush1.msra.mxu0 0.0
  %6488 = vmatprep.subr.mxu0 0.0
  %6489 = vmatpush1.msra.mxu0 0.0
  %6490 = vmatprep.subr.mxu0 0.0
  %6491 = vmatpush1.msra.mxu0 0.0
  %6492 = vmatprep.subr.mxu0 0.0
  %6493 = vmatpush1.msra.mxu0 0.0
  %6494 = vmatprep.subr.mxu0 0.0
  %6495 = vmatpush1.msra.mxu0 0.0
  %6496 = vmatprep.subr.mxu0 0.0
  %6497 = vmatpush1.msra.mxu0 0.0
  %6498 = vmatprep.subr.mxu0 0.0
  %6499 = vmatpush1.msra.mxu0 0.0
  %6500 = vmatprep.subr.mxu0 0.0
  %6501 = vmatpush1.msra.mxu0 0.0
  %6502 = vmatprep.subr.mxu0 0.0
  %6503 = vmatpush1.msra.mxu0 0.0
  %6504 = vmatprep.subr.mxu0 0.0
  %6505 = vmatpush1.msra.mxu0 0.0
  %6506 = vmatprep.subr.mxu0 0.0
  %6507 = vmatpush1.msra.mxu0 0.0
  %6508 = vmatprep.mubr.f32.mxu0 0.0
  %6509 = vmatmul.mubr.f32.gmra.mrb[0].mxu0 %v2530
  %v6510 = vpop.f32.mrb[0].mxu0
  %v6511 = vadd.f32 0.0, %v6510
  %v6512 = vpop.f32.mrb[0].mxu0
  %6513 = vdwg.mxu0
  %v6514 = vadd.f32 %v6441, %v6511
  %6515 = vmatprep.subr.mxu0 0.0
  %6516 = vmatpush1.msra.mxu0 %v2231
  %6517 = vmatprep.subr.mxu0 0.0
  %6518 = vmatpush1.msra.mxu0 0.0
  %6519 = vmatprep.subr.mxu0 0.0
  %6520 = vmatpush1.msra.mxu0 0.0
  %6521 = vmatprep.subr.mxu0 0.0
  %6522 = vmatpush1.msra.mxu0 0.0
  %6523 = vmatprep.subr.mxu0 0.0
  %6524 = vmatpush1.msra.mxu0 0.0
  %6525 = vmatprep.subr.mxu0 0.0
  %6526 = vmatpush1.msra.mxu0 0.0
  %6527 = vmatprep.subr.mxu0 0.0
  %6528 = vmatpush1.msra.mxu0 0.0
  %6529 = vmatprep.subr.mxu0 0.0
  %6530 = vmatpush1.msra.mxu0 0.0
  %6531 = vmatprep.subr.mxu0 0.0
  %6532 = vmatpush1.msra.mxu0 0.0
  %6533 = vmatprep.subr.mxu0 0.0
  %6534 = vmatpush1.msra.mxu0 0.0
  %6535 = vmatprep.subr.mxu0 0.0
  %6536 = vmatpush1.msra.mxu0 0.0
  %6537 = vmatprep.subr.mxu0 0.0
  %6538 = vmatpush1.msra.mxu0 0.0
  %6539 = vmatprep.subr.mxu0 0.0
  %6540 = vmatpush1.msra.mxu0 0.0
  %6541 = vmatprep.subr.mxu0 0.0
  %6542 = vmatpush1.msra.mxu0 0.0
  %6543 = vmatprep.subr.mxu0 0.0
  %6544 = vmatpush1.msra.mxu0 0.0
  %6545 = vmatprep.subr.mxu0 0.0
  %6546 = vmatpush1.msra.mxu0 0.0
  %6547 = vmatprep.subr.mxu0 0.0
  %6548 = vmatpush1.msra.mxu0 0.0
  %6549 = vmatprep.subr.mxu0 0.0
  %6550 = vmatpush1.msra.mxu0 0.0
  %6551 = vmatprep.subr.mxu0 0.0
  %6552 = vmatpush1.msra.mxu0 0.0
  %6553 = vmatprep.subr.mxu0 0.0
  %6554 = vmatpush1.msra.mxu0 0.0
  %6555 = vmatprep.subr.mxu0 0.0
  %6556 = vmatpush1.msra.mxu0 0.0
  %6557 = vmatprep.subr.mxu0 0.0
  %6558 = vmatpush1.msra.mxu0 0.0
  %6559 = vmatprep.subr.mxu0 0.0
  %6560 = vmatpush1.msra.mxu0 0.0
  %6561 = vmatprep.subr.mxu0 0.0
  %6562 = vmatpush1.msra.mxu0 0.0
  %6563 = vmatprep.subr.mxu0 0.0
  %6564 = vmatpush1.msra.mxu0 0.0
  %6565 = vmatprep.subr.mxu0 0.0
  %6566 = vmatpush1.msra.mxu0 0.0
  %6567 = vmatprep.subr.mxu0 0.0
  %6568 = vmatpush1.msra.mxu0 0.0
  %6569 = vmatprep.subr.mxu0 0.0
  %6570 = vmatpush1.msra.mxu0 0.0
  %6571 = vmatprep.subr.mxu0 0.0
  %6572 = vmatpush1.msra.mxu0 0.0
  %6573 = vmatprep.subr.mxu0 0.0
  %6574 = vmatpush1.msra.mxu0 0.0
  %6575 = vmatprep.subr.mxu0 0.0
  %6576 = vmatpush1.msra.mxu0 0.0
  %6577 = vmatprep.subr.mxu0 0.0
  %6578 = vmatpush1.msra.mxu0 0.0
  %6579 = vmatprep.mubr.f32.mxu0 0.0
  %6580 = vmatmul.mubr.f32.gmra.mrb[0].mxu0 %v2682
  %v6581 = vpop.f32.mrb[0].mxu0
  %v6582 = vadd.f32 0.0, %v6581
  %v6583 = vpop.f32.mrb[0].mxu0
  %6584 = vdwg.mxu0
  %v6585 = vadd.f32 %v6514, %v6582
  %6586 = vmatprep.subr.mxu0 0.0
  %6587 = vmatpush1.msra.mxu0 %v2685
  %6588 = vmatprep.subr.mxu0 0.0
  %6589 = vmatpush1.msra.mxu0 0.0
  %6590 = vmatprep.subr.mxu0 0.0
  %6591 = vmatpush1.msra.mxu0 0.0
  %6592 = vmatprep.subr.mxu0 0.0
  %6593 = vmatpush1.msra.mxu0 0.0
  %6594 = vmatprep.subr.mxu0 0.0
  %6595 = vmatpush1.msra.mxu0 0.0
  %6596 = vmatprep.subr.mxu0 0.0
  %6597 = vmatpush1.msra.mxu0 0.0
  %6598 = vmatprep.subr.mxu0 0.0
  %6599 = vmatpush1.msra.mxu0 0.0
  %6600 = vmatprep.subr.mxu0 0.0
  %6601 = vmatpush1.msra.mxu0 0.0
  %6602 = vmatprep.subr.mxu0 0.0
  %6603 = vmatpush1.msra.mxu0 0.0
  %6604 = vmatprep.subr.mxu0 0.0
  %6605 = vmatpush1.msra.mxu0 0.0
  %6606 = vmatprep.subr.mxu0 0.0
  %6607 = vmatpush1.msra.mxu0 0.0
  %6608 = vmatprep.subr.mxu0 0.0
  %6609 = vmatpush1.msra.mxu0 0.0
  %6610 = vmatprep.subr.mxu0 0.0
  %6611 = vmatpush1.msra.mxu0 0.0
  %6612 = vmatprep.subr.mxu0 0.0
  %6613 = vmatpush1.msra.mxu0 0.0
  %6614 = vmatprep.subr.mxu0 0.0
  %6615 = vmatpush1.msra.mxu0 0.0
  %6616 = vmatprep.subr.mxu0 0.0
  %6617 = vmatpush1.msra.mxu0 0.0
  %6618 = vmatprep.subr.mxu0 0.0
  %6619 = vmatpush1.msra.mxu0 0.0
  %6620 = vmatprep.subr.mxu0 0.0
  %6621 = vmatpush1.msra.mxu0 0.0
  %6622 = vmatprep.subr.mxu0 0.0
  %6623 = vmatpush1.msra.mxu0 0.0
  %6624 = vmatprep.subr.mxu0 0.0
  %6625 = vmatpush1.msra.mxu0 0.0
  %6626 = vmatprep.subr.mxu0 0.0
  %6627 = vmatpush1.msra.mxu0 0.0
  %6628 = vmatprep.subr.mxu0 0.0
  %6629 = vmatpush1.msra.mxu0 0.0
  %6630 = vmatprep.subr.mxu0 0.0
  %6631 = vmatpush1.msra.mxu0 0.0
  %6632 = vmatprep.subr.mxu0 0.0
  %6633 = vmatpush1.msra.mxu0 0.0
  %6634 = vmatprep.subr.mxu0 0.0
  %6635 = vmatpush1.msra.mxu0 0.0
  %6636 = vmatprep.subr.mxu0 0.0
  %6637 = vmatpush1.msra.mxu0 0.0
  %6638 = vmatprep.subr.mxu0 0.0
  %6639 = vmatpush1.msra.mxu0 0.0
  %6640 = vmatprep.subr.mxu0 0.0
  %6641 = vmatpush1.msra.mxu0 0.0
  %6642 = vmatprep.subr.mxu0 0.0
  %6643 = vmatpush1.msra.mxu0 0.0
  %6644 = vmatprep.subr.mxu0 0.0
  %6645 = vmatpush1.msra.mxu0 0.0
  %6646 = vmatprep.subr.mxu0 0.0
  %6647 = vmatpush1.msra.mxu0 0.0
  %6648 = vmatprep.subr.mxu0 0.0
  %6649 = vmatpush1.msra.mxu0 0.0
  %6650 = vmatprep.mubr.f32.mxu0 0.0
  %6651 = vmatmul.mubr.f32.gmra.mrb[0].mxu0 %v2836
  %v6652 = vpop.f32.mrb[0].mxu0
  %v6653 = vadd.f32 0.0, %v6652
  %v6654 = vpop.f32.mrb[0].mxu0
  %6655 = vdwg.mxu0
  %v6657 = vsel %vm198, %v6653, 0
  %6659 = vmatprep.subr.mxu0 0.0
  %6660 = vmatpush1.msra.mxu0 %v1028
  %6661 = vmatprep.subr.mxu0 0.0
  %6662 = vmatpush1.msra.mxu0 %v1029
  %6663 = vmatprep.subr.mxu0 0.0
  %6664 = vmatpush1.msra.mxu0 %v1030
  %6665 = vmatprep.subr.mxu0 0.0
  %6666 = vmatpush1.msra.mxu0 %v1031
  %6667 = vmatprep.subr.mxu0 0.0
  %6668 = vmatpush1.msra.mxu0 0.0
  %6669 = vmatprep.subr.mxu0 0.0
  %6670 = vmatpush1.msra.mxu0 0.0
  %6671 = vmatprep.subr.mxu0 0.0
  %6672 = vmatpush1.msra.mxu0 0.0
  %6673 = vmatprep.subr.mxu0 0.0
  %6674 = vmatpush1.msra.mxu0 0.0
  %6675 = vmatprep.subr.mxu0 0.0
  %6676 = vmatpush1.msra.mxu0 0.0
  %6677 = vmatprep.subr.mxu0 0.0
  %6678 = vmatpush1.msra.mxu0 0.0
  %6679 = vmatprep.subr.mxu0 0.0
  %6680 = vmatpush1.msra.mxu0 0.0
  %6681 = vmatprep.subr.mxu0 0.0
  %6682 = vmatpush1.msra.mxu0 0.0
  %6683 = vmatprep.subr.mxu0 0.0
  %6684 = vmatpush1.msra.mxu0 0.0
  %6685 = vmatprep.subr.mxu0 0.0
  %6686 = vmatpush1.msra.mxu0 0.0
  %6687 = vmatprep.subr.mxu0 0.0
  %6688 = vmatpush1.msra.mxu0 0.0
  %6689 = vmatprep.subr.mxu0 0.0
  %6690 = vmatpush1.msra.mxu0 0.0
  %6691 = vmatprep.subr.mxu0 0.0
  %6692 = vmatpush1.msra.mxu0 0.0
  %6693 = vmatprep.subr.mxu0 0.0
  %6694 = vmatpush1.msra.mxu0 0.0
  %6695 = vmatprep.subr.mxu0 0.0
  %6696 = vmatpush1.msra.mxu0 0.0
  %6697 = vmatprep.subr.mxu0 0.0
  %6698 = vmatpush1.msra.mxu0 0.0
  %6699 = vmatprep.subr.mxu0 0.0
  %6700 = vmatpush1.msra.mxu0 0.0
  %6701 = vmatprep.subr.mxu0 0.0
  %6702 = vmatpush1.msra.mxu0 0.0
  %6703 = vmatprep.subr.mxu0 0.0
  %6704 = vmatpush1.msra.mxu0 0.0
  %6705 = vmatprep.subr.mxu0 0.0
  %6706 = vmatpush1.msra.mxu0 0.0
  %6707 = vmatprep.subr.mxu0 0.0
  %6708 = vmatpush1.msra.mxu0 0.0
  %6709 = vmatprep.subr.mxu0 0.0
  %6710 = vmatpush1.msra.mxu0 0.0
  %6711 = vmatprep.subr.mxu0 0.0
  %6712 = vmatpush1.msra.mxu0 0.0
  %6713 = vmatprep.subr.mxu0 0.0
  %6714 = vmatpush1.msra.mxu0 0.0
  %6715 = vmatprep.subr.mxu0 0.0
  %6716 = vmatpush1.msra.mxu0 0.0
  %6717 = vmatprep.subr.mxu0 0.0
  %6718 = vmatpush1.msra.mxu0 0.0
  %6719 = vmatprep.subr.mxu0 0.0
  %6720 = vmatpush1.msra.mxu0 0.0
  %6721 = vmatprep.subr.mxu0 0.0
  %6722 = vmatpush1.msra.mxu0 0.0
  %6723 = vmatprep.mubr.f32.mxu0 0.0
  %6724 = vmatmul.mubr.f32.gmra.mrb[0].mxu0 %v6657
  %v6725 = vpop.f32.mrb[0].mxu0
  %v6726 = vadd.f32 0.0, %v6725
  %v6727 = vpop.f32.mrb[0].mxu0
  %6728 = vdwg.mxu0
  %6729 = vmatprep.subr.mxu0 0.0
  %6730 = vmatpush1.msra.mxu0 %v2533
  %6731 = vmatprep.subr.mxu0 0.0
  %6732 = vmatpush1.msra.mxu0 0.0
  %6733 = vmatprep.subr.mxu0 0.0
  %6734 = vmatpush1.msra.mxu0 0.0
  %6735 = vmatprep.subr.mxu0 0.0
  %6736 = vmatpush1.msra.mxu0 0.0
  %6737 = vmatprep.subr.mxu0 0.0
  %6738 = vmatpush1.msra.mxu0 0.0
  %6739 = vmatprep.subr.mxu0 0.0
  %6740 = vmatpush1.msra.mxu0 0.0
  %6741 = vmatprep.subr.mxu0 0.0
  %6742 = vmatpush1.msra.mxu0 0.0
  %6743 = vmatprep.subr.mxu0 0.0
  %6744 = vmatpush1.msra.mxu0 0.0
  %6745 = vmatprep.subr.mxu0 0.0
  %6746 = vmatpush1.msra.mxu0 0.0
  %6747 = vmatprep.subr.mxu0 0.0
  %6748 = vmatpush1.msra.mxu0 0.0
  %6749 = vmatprep.subr.mxu0 0.0
  %6750 = vmatpush1.msra.mxu0 0.0
  %6751 = vmatprep.subr.mxu0 0.0
  %6752 = vmatpush1.msra.mxu0 0.0
  %6753 = vmatprep.subr.mxu0 0.0
  %6754 = vmatpush1.msra.mxu0 0.0
  %6755 = vmatprep.subr.mxu0 0.0
  %6756 = vmatpush1.msra.mxu0 0.0
  %6757 = vmatprep.subr.mxu0 0.0
  %6758 = vmatpush1.msra.mxu0 0.0
  %6759 = vmatprep.subr.mxu0 0.0
  %6760 = vmatpush1.msra.mxu0 0.0
  %6761 = vmatprep.subr.mxu0 0.0
  %6762 = vmatpush1.msra.mxu0 0.0
  %6763 = vmatprep.subr.mxu0 0.0
  %6764 = vmatpush1.msra.mxu0 0.0
  %6765 = vmatprep.subr.mxu0 0.0
  %6766 = vmatpush1.msra.mxu0 0.0
  %6767 = vmatprep.subr.mxu0 0.0
  %6768 = vmatpush1.msra.mxu0 0.0
  %6769 = vmatprep.subr.mxu0 0.0
  %6770 = vmatpush1.msra.mxu0 0.0
  %6771 = vmatprep.subr.mxu0 0.0
  %6772 = vmatpush1.msra.mxu0 0.0
  %6773 = vmatprep.subr.mxu0 0.0
  %6774 = vmatpush1.msra.mxu0 0.0
  %6775 = vmatprep.subr.mxu0 0.0
  %6776 = vmatpush1.msra.mxu0 0.0
  %6777 = vmatprep.subr.mxu0 0.0
  %6778 = vmatpush1.msra.mxu0 0.0
  %6779 = vmatprep.subr.mxu0 0.0
  %6780 = vmatpush1.msra.mxu0 0.0
  %6781 = vmatprep.subr.mxu0 0.0
  %6782 = vmatpush1.msra.mxu0 0.0
  %6783 = vmatprep.subr.mxu0 0.0
  %6784 = vmatpush1.msra.mxu0 0.0
  %6785 = vmatprep.subr.mxu0 0.0
  %6786 = vmatpush1.msra.mxu0 0.0
  %6787 = vmatprep.subr.mxu0 0.0
  %6788 = vmatpush1.msra.mxu0 0.0
  %6789 = vmatprep.subr.mxu0 0.0
  %6790 = vmatpush1.msra.mxu0 0.0
  %6791 = vmatprep.subr.mxu0 0.0
  %6792 = vmatpush1.msra.mxu0 0.0
  %6793 = vmatprep.mubr.f32.mxu0 0.0
  %6794 = vmatmul.mubr.f32.gmra.mrb[0].mxu0 %v2761
  %v6795 = vpop.f32.mrb[0].mxu0
  %v6796 = vadd.f32 %v6726, %v6795
  %v6797 = vpop.f32.mrb[0].mxu0
  %6798 = vdwg.mxu0
  %6799 = vmatprep.subr.mxu0 0.0
  %6800 = vmatpush1.msra.mxu0 %v2231
  %6801 = vmatprep.subr.mxu0 0.0
  %6802 = vmatpush1.msra.mxu0 0.0
  %6803 = vmatprep.subr.mxu0 0.0
  %6804 = vmatpush1.msra.mxu0 0.0
  %6805 = vmatprep.subr.mxu0 0.0
  %6806 = vmatpush1.msra.mxu0 0.0
  %6807 = vmatprep.subr.mxu0 0.0
  %6808 = vmatpush1.msra.mxu0 0.0
  %6809 = vmatprep.subr.mxu0 0.0
  %6810 = vmatpush1.msra.mxu0 0.0
  %6811 = vmatprep.subr.mxu0 0.0
  %6812 = vmatpush1.msra.mxu0 0.0
  %6813 = vmatprep.subr.mxu0 0.0
  %6814 = vmatpush1.msra.mxu0 0.0
  %6815 = vmatprep.subr.mxu0 0.0
  %6816 = vmatpush1.msra.mxu0 0.0
  %6817 = vmatprep.subr.mxu0 0.0
  %6818 = vmatpush1.msra.mxu0 0.0
  %6819 = vmatprep.subr.mxu0 0.0
  %6820 = vmatpush1.msra.mxu0 0.0
  %6821 = vmatprep.subr.mxu0 0.0
  %6822 = vmatpush1.msra.mxu0 0.0
  %6823 = vmatprep.subr.mxu0 0.0
  %6824 = vmatpush1.msra.mxu0 0.0
  %6825 = vmatprep.subr.mxu0 0.0
  %6826 = vmatpush1.msra.mxu0 0.0
  %6827 = vmatprep.subr.mxu0 0.0
  %6828 = vmatpush1.msra.mxu0 0.0
  %6829 = vmatprep.subr.mxu0 0.0
  %6830 = vmatpush1.msra.mxu0 0.0
  %6831 = vmatprep.subr.mxu0 0.0
  %6832 = vmatpush1.msra.mxu0 0.0
  %6833 = vmatprep.subr.mxu0 0.0
  %6834 = vmatpush1.msra.mxu0 0.0
  %6835 = vmatprep.subr.mxu0 0.0
  %6836 = vmatpush1.msra.mxu0 0.0
  %6837 = vmatprep.subr.mxu0 0.0
  %6838 = vmatpush1.msra.mxu0 0.0
  %6839 = vmatprep.subr.mxu0 0.0
  %6840 = vmatpush1.msra.mxu0 0.0
  %6841 = vmatprep.subr.mxu0 0.0
  %6842 = vmatpush1.msra.mxu0 0.0
  %6843 = vmatprep.subr.mxu0 0.0
  %6844 = vmatpush1.msra.mxu0 0.0
  %6845 = vmatprep.subr.mxu0 0.0
  %6846 = vmatpush1.msra.mxu0 0.0
  %6847 = vmatprep.subr.mxu0 0.0
  %6848 = vmatpush1.msra.mxu0 0.0
  %6849 = vmatprep.subr.mxu0 0.0
  %6850 = vmatpush1.msra.mxu0 0.0
  %6851 = vmatprep.subr.mxu0 0.0
  %6852 = vmatpush1.msra.mxu0 0.0
  %6853 = vmatprep.subr.mxu0 0.0
  %6854 = vmatpush1.msra.mxu0 0.0
  %6855 = vmatprep.subr.mxu0 0.0
  %6856 = vmatpush1.msra.mxu0 0.0
  %6857 = vmatprep.subr.mxu0 0.0
  %6858 = vmatpush1.msra.mxu0 0.0
  %6859 = vmatprep.subr.mxu0 0.0
  %6860 = vmatpush1.msra.mxu0 0.0
  %6861 = vmatprep.subr.mxu0 0.0
  %6862 = vmatpush1.msra.mxu0 0.0
  %6863 = vmatprep.mubr.f32.mxu0 0.0
  %6864 = vmatmul.mubr.f32.gmra.mrb[0].mxu0 %v3057
  %v6865 = vpop.f32.mrb[0].mxu0
  %v6866 = vadd.f32 0.0, %v6865
  %v6867 = vpop.f32.mrb[0].mxu0
  %6868 = vdwg.mxu0
  %v6869 = vadd.f32 %v6796, %v6866
  %6870 = vmatprep.subr.mxu0 0.0
  %6871 = vmatpush1.msra.mxu0 %v2309
  %6872 = vmatprep.subr.mxu0 0.0
  %6873 = vmatpush1.msra.mxu0 0.0
  %6874 = vmatprep.subr.mxu0 0.0
  %6875 = vmatpush1.msra.mxu0 0.0
  %6876 = vmatprep.subr.mxu0 0.0
  %6877 = vmatpush1.msra.mxu0 0.0
  %6878 = vmatprep.subr.mxu0 0.0
  %6879 = vmatpush1.msra.mxu0 0.0
  %6880 = vmatprep.subr.mxu0 0.0
  %6881 = vmatpush1.msra.mxu0 0.0
  %6882 = vmatprep.subr.mxu0 0.0
  %6883 = vmatpush1.msra.mxu0 0.0
  %6884 = vmatprep.subr.mxu0 0.0
  %6885 = vmatpush1.msra.mxu0 0.0
  %6886 = vmatprep.subr.mxu0 0.0
  %6887 = vmatpush1.msra.mxu0 0.0
  %6888 = vmatprep.subr.mxu0 0.0
  %6889 = vmatpush1.msra.mxu0 0.0
  %6890 = vmatprep.subr.mxu0 0.0
  %6891 = vmatpush1.msra.mxu0 0.0
  %6892 = vmatprep.subr.mxu0 0.0
  %6893 = vmatpush1.msra.mxu0 0.0
  %6894 = vmatprep.subr.mxu0 0.0
  %6895 = vmatpush1.msra.mxu0 0.0
  %6896 = vmatprep.subr.mxu0 0.0
  %6897 = vmatpush1.msra.mxu0 0.0
  %6898 = vmatprep.subr.mxu0 0.0
  %6899 = vmatpush1.msra.mxu0 0.0
  %6900 = vmatprep.subr.mxu0 0.0
  %6901 = vmatpush1.msra.mxu0 0.0
  %6902 = vmatprep.subr.mxu0 0.0
  %6903 = vmatpush1.msra.mxu0 0.0
  %6904 = vmatprep.subr.mxu0 0.0
  %6905 = vmatpush1.msra.mxu0 0.0
  %6906 = vmatprep.subr.mxu0 0.0
  %6907 = vmatpush1.msra.mxu0 0.0
  %6908 = vmatprep.subr.mxu0 0.0
  %6909 = vmatpush1.msra.mxu0 0.0
  %6910 = vmatprep.subr.mxu0 0.0
  %6911 = vmatpush1.msra.mxu0 0.0
  %6912 = vmatprep.subr.mxu0 0.0
  %6913 = vmatpush1.msra.mxu0 0.0
  %6914 = vmatprep.subr.mxu0 0.0
  %6915 = vmatpush1.msra.mxu0 0.0
  %6916 = vmatprep.subr.mxu0 0.0
  %6917 = vmatpush1.msra.mxu0 0.0
  %6918 = vmatprep.subr.mxu0 0.0
  %6919 = vmatpush1.msra.mxu0 0.0
  %6920 = vmatprep.subr.mxu0 0.0
  %6921 = vmatpush1.msra.mxu0 0.0
  %6922 = vmatprep.subr.mxu0 0.0
  %6923 = vmatpush1.msra.mxu0 0.0
  %6924 = vmatprep.subr.mxu0 0.0
  %6925 = vmatpush1.msra.mxu0 0.0
  %6926 = vmatprep.subr.mxu0 0.0
  %6927 = vmatpush1.msra.mxu0 0.0
  %6928 = vmatprep.subr.mxu0 0.0
  %6929 = vmatpush1.msra.mxu0 0.0
  %6930 = vmatprep.subr.mxu0 0.0
  %6931 = vmatpush1.msra.mxu0 0.0
  %6932 = vmatprep.subr.mxu0 0.0
  %6933 = vmatpush1.msra.mxu0 0.0
  %6934 = vmatprep.mubr.f32.mxu0 0.0
  %6935 = vmatmul.mubr.f32.gmra.mrb[0].mxu0 %v3133
  %v6936 = vpop.f32.mrb[0].mxu0
  %v6937 = vadd.f32 0.0, %v6936
  %v6938 = vpop.f32.mrb[0].mxu0
  %6939 = vdwg.mxu0
  %v6941 = vsel %vm198, %v6937, 0
  %6943 = vmatprep.subr.mxu0 0.0
  %6944 = vmatpush1.msra.mxu0 %v1028
  %6945 = vmatprep.subr.mxu0 0.0
  %6946 = vmatpush1.msra.mxu0 %v1029
  %6947 = vmatprep.subr.mxu0 0.0
  %6948 = vmatpush1.msra.mxu0 %v1030
  %6949 = vmatprep.subr.mxu0 0.0
  %6950 = vmatpush1.msra.mxu0 %v1031
  %6951 = vmatprep.subr.mxu0 0.0
  %6952 = vmatpush1.msra.mxu0 0.0
  %6953 = vmatprep.subr.mxu0 0.0
  %6954 = vmatpush1.msra.mxu0 0.0
  %6955 = vmatprep.subr.mxu0 0.0
  %6956 = vmatpush1.msra.mxu0 0.0
  %6957 = vmatprep.subr.mxu0 0.0
  %6958 = vmatpush1.msra.mxu0 0.0
  %6959 = vmatprep.subr.mxu0 0.0
  %6960 = vmatpush1.msra.mxu0 0.0
  %6961 = vmatprep.subr.mxu0 0.0
  %6962 = vmatpush1.msra.mxu0 0.0
  %6963 = vmatprep.subr.mxu0 0.0
  %6964 = vmatpush1.msra.mxu0 0.0
  %6965 = vmatprep.subr.mxu0 0.0
  %6966 = vmatpush1.msra.mxu0 0.0
  %6967 = vmatprep.subr.mxu0 0.0
  %6968 = vmatpush1.msra.mxu0 0.0
  %6969 = vmatprep.subr.mxu0 0.0
  %6970 = vmatpush1.msra.mxu0 0.0
  %6971 = vmatprep.subr.mxu0 0.0
  %6972 = vmatpush1.msra.mxu0 0.0
  %6973 = vmatprep.subr.mxu0 0.0
  %6974 = vmatpush1.msra.mxu0 0.0
  %6975 = vmatprep.subr.mxu0 0.0
  %6976 = vmatpush1.msra.mxu0 0.0
  %6977 = vmatprep.subr.mxu0 0.0
  %6978 = vmatpush1.msra.mxu0 0.0
  %6979 = vmatprep.subr.mxu0 0.0
  %6980 = vmatpush1.msra.mxu0 0.0
  %6981 = vmatprep.subr.mxu0 0.0
  %6982 = vmatpush1.msra.mxu0 0.0
  %6983 = vmatprep.subr.mxu0 0.0
  %6984 = vmatpush1.msra.mxu0 0.0
  %6985 = vmatprep.subr.mxu0 0.0
  %6986 = vmatpush1.msra.mxu0 0.0
  %6987 = vmatprep.subr.mxu0 0.0
  %6988 = vmatpush1.msra.mxu0 0.0
  %6989 = vmatprep.subr.mxu0 0.0
  %6990 = vmatpush1.msra.mxu0 0.0
  %6991 = vmatprep.subr.mxu0 0.0
  %6992 = vmatpush1.msra.mxu0 0.0
  %6993 = vmatprep.subr.mxu0 0.0
  %6994 = vmatpush1.msra.mxu0 0.0
  %6995 = vmatprep.subr.mxu0 0.0
  %6996 = vmatpush1.msra.mxu0 0.0
  %6997 = vmatprep.subr.mxu0 0.0
  %6998 = vmatpush1.msra.mxu0 0.0
  %6999 = vmatprep.subr.mxu0 0.0
  %7000 = vmatpush1.msra.mxu0 0.0
  %7001 = vmatprep.subr.mxu0 0.0
  %7002 = vmatpush1.msra.mxu0 0.0
  %7003 = vmatprep.subr.mxu0 0.0
  %7004 = vmatpush1.msra.mxu0 0.0
  %7005 = vmatprep.subr.mxu0 0.0
  %7006 = vmatpush1.msra.mxu0 0.0
  %7007 = vmatprep.mubr.f32.mxu0 0.0
  %7008 = vmatmul.mubr.f32.gmra.mrb[0].mxu0 %v6941
  %v7009 = vpop.f32.mrb[0].mxu0
  %v7010 = vadd.f32 0.0, %v7009
  %v7011 = vpop.f32.mrb[0].mxu0
  %7012 = vdwg.mxu0
  %v7013 = vadd.f32 %v6869, %v7010
  %7014 = vmatprep.subr.mxu0 0.0
  %7015 = vmatpush1.msra.mxu0 %v2231
  %7016 = vmatprep.subr.mxu0 0.0
  %7017 = vmatpush1.msra.mxu0 0.0
  %7018 = vmatprep.subr.mxu0 0.0
  %7019 = vmatpush1.msra.mxu0 0.0
  %7020 = vmatprep.subr.mxu0 0.0
  %7021 = vmatpush1.msra.mxu0 0.0
  %7022 = vmatprep.subr.mxu0 0.0
  %7023 = vmatpush1.msra.mxu0 0.0
  %7024 = vmatprep.subr.mxu0 0.0
  %7025 = vmatpush1.msra.mxu0 0.0
  %7026 = vmatprep.subr.mxu0 0.0
  %7027 = vmatpush1.msra.mxu0 0.0
  %7028 = vmatprep.subr.mxu0 0.0
  %7029 = vmatpush1.msra.mxu0 0.0
  %7030 = vmatprep.subr.mxu0 0.0
  %7031 = vmatpush1.msra.mxu0 0.0
  %7032 = vmatprep.subr.mxu0 0.0
  %7033 = vmatpush1.msra.mxu0 0.0
  %7034 = vmatprep.subr.mxu0 0.0
  %7035 = vmatpush1.msra.mxu0 0.0
  %7036 = vmatprep.subr.mxu0 0.0
  %7037 = vmatpush1.msra.mxu0 0.0
  %7038 = vmatprep.subr.mxu0 0.0
  %7039 = vmatpush1.msra.mxu0 0.0
  %7040 = vmatprep.subr.mxu0 0.0
  %7041 = vmatpush1.msra.mxu0 0.0
  %7042 = vmatprep.subr.mxu0 0.0
  %7043 = vmatpush1.msra.mxu0 0.0
  %7044 = vmatprep.subr.mxu0 0.0
  %7045 = vmatpush1.msra.mxu0 0.0
  %7046 = vmatprep.subr.mxu0 0.0
  %7047 = vmatpush1.msra.mxu0 0.0
  %7048 = vmatprep.subr.mxu0 0.0
  %7049 = vmatpush1.msra.mxu0 0.0
  %7050 = vmatprep.subr.mxu0 0.0
  %7051 = vmatpush1.msra.mxu0 0.0
  %7052 = vmatprep.subr.mxu0 0.0
  %7053 = vmatpush1.msra.mxu0 0.0
  %7054 = vmatprep.subr.mxu0 0.0
  %7055 = vmatpush1.msra.mxu0 0.0
  %7056 = vmatprep.subr.mxu0 0.0
  %7057 = vmatpush1.msra.mxu0 0.0
  %7058 = vmatprep.subr.mxu0 0.0
  %7059 = vmatpush1.msra.mxu0 0.0
  %7060 = vmatprep.subr.mxu0 0.0
  %7061 = vmatpush1.msra.mxu0 0.0
  %7062 = vmatprep.subr.mxu0 0.0
  %7063 = vmatpush1.msra.mxu0 0.0
  %7064 = vmatprep.subr.mxu0 0.0
  %7065 = vmatpush1.msra.mxu0 0.0
  %7066 = vmatprep.subr.mxu0 0.0
  %7067 = vmatpush1.msra.mxu0 0.0
  %7068 = vmatprep.subr.mxu0 0.0
  %7069 = vmatpush1.msra.mxu0 0.0
  %7070 = vmatprep.subr.mxu0 0.0
  %7071 = vmatpush1.msra.mxu0 0.0
  %7072 = vmatprep.subr.mxu0 0.0
  %7073 = vmatpush1.msra.mxu0 0.0
  %7074 = vmatprep.subr.mxu0 0.0
  %7075 = vmatpush1.msra.mxu0 0.0
  %7076 = vmatprep.subr.mxu0 0.0
  %7077 = vmatpush1.msra.mxu0 0.0
  %7078 = vmatprep.mubr.f32.mxu0 0.0
  %7079 = vmatmul.mubr.f32.gmra.mrb[0].mxu0 %v4138
  %v7080 = vpop.f32.mrb[0].mxu0
  %v7081 = vadd.f32 0.0, %v7080
  %v7082 = vpop.f32.mrb[0].mxu0
  %7083 = vdwg.mxu0
  %7084 = vmatprep.subr.mxu0 0.0
  %7085 = vmatpush1.msra.mxu0 %v2309
  %7086 = vmatprep.subr.mxu0 0.0
  %7087 = vmatpush1.msra.mxu0 0.0
  %7088 = vmatprep.subr.mxu0 0.0
  %7089 = vmatpush1.msra.mxu0 0.0
  %7090 = vmatprep.subr.mxu0 0.0
  %7091 = vmatpush1.msra.mxu0 0.0
  %7092 = vmatprep.subr.mxu0 0.0
  %7093 = vmatpush1.msra.mxu0 0.0
  %7094 = vmatprep.subr.mxu0 0.0
  %7095 = vmatpush1.msra.mxu0 0.0
  %7096 = vmatprep.subr.mxu0 0.0
  %7097 = vmatpush1.msra.mxu0 0.0
  %7098 = vmatprep.subr.mxu0 0.0
  %7099 = vmatpush1.msra.mxu0 0.0
  %7100 = vmatprep.subr.mxu0 0.0
  %7101 = vmatpush1.msra.mxu0 0.0
  %7102 = vmatprep.subr.mxu0 0.0
  %7103 = vmatpush1.msra.mxu0 0.0
  %7104 = vmatprep.subr.mxu0 0.0
  %7105 = vmatpush1.msra.mxu0 0.0
  %7106 = vmatprep.subr.mxu0 0.0
  %7107 = vmatpush1.msra.mxu0 0.0
  %7108 = vmatprep.subr.mxu0 0.0
  %7109 = vmatpush1.msra.mxu0 0.0
  %7110 = vmatprep.subr.mxu0 0.0
  %7111 = vmatpush1.msra.mxu0 0.0
  %7112 = vmatprep.subr.mxu0 0.0
  %7113 = vmatpush1.msra.mxu0 0.0
  %7114 = vmatprep.subr.mxu0 0.0
  %7115 = vmatpush1.msra.mxu0 0.0
  %7116 = vmatprep.subr.mxu0 0.0
  %7117 = vmatpush1.msra.mxu0 0.0
  %7118 = vmatprep.subr.mxu0 0.0
  %7119 = vmatpush1.msra.mxu0 0.0
  %7120 = vmatprep.subr.mxu0 0.0
  %7121 = vmatpush1.msra.mxu0 0.0
  %7122 = vmatprep.subr.mxu0 0.0
  %7123 = vmatpush1.msra.mxu0 0.0
  %7124 = vmatprep.subr.mxu0 0.0
  %7125 = vmatpush1.msra.mxu0 0.0
  %7126 = vmatprep.subr.mxu0 0.0
  %7127 = vmatpush1.msra.mxu0 0.0
  %7128 = vmatprep.subr.mxu0 0.0
  %7129 = vmatpush1.msra.mxu0 0.0
  %7130 = vmatprep.subr.mxu0 0.0
  %7131 = vmatpush1.msra.mxu0 0.0
  %7132 = vmatprep.subr.mxu0 0.0
  %7133 = vmatpush1.msra.mxu0 0.0
  %7134 = vmatprep.subr.mxu0 0.0
  %7135 = vmatpush1.msra.mxu0 0.0
  %7136 = vmatprep.subr.mxu0 0.0
  %7137 = vmatpush1.msra.mxu0 0.0
  %7138 = vmatprep.subr.mxu0 0.0
  %7139 = vmatpush1.msra.mxu0 0.0
  %7140 = vmatprep.subr.mxu0 0.0
  %7141 = vmatpush1.msra.mxu0 0.0
  %7142 = vmatprep.subr.mxu0 0.0
  %7143 = vmatpush1.msra.mxu0 0.0
  %7144 = vmatprep.subr.mxu0 0.0
  %7145 = vmatpush1.msra.mxu0 0.0
  %7146 = vmatprep.subr.mxu0 0.0
  %7147 = vmatpush1.msra.mxu0 0.0
  %7148 = vmatprep.mubr.f32.mxu0 0.0
  %7149 = vmatmul.mubr.f32.gmra.mrb[0].mxu0 %v4213
  %v7150 = vpop.f32.mrb[0].mxu0
  %v7151 = vadd.f32 0.0, %v7150
  %v7152 = vpop.f32.mrb[0].mxu0
  %7153 = vdwg.mxu0
  %v7155 = vsel %vm198, %v7081, 0
  %7157 = vmatprep.subr.mxu0 0.0
  %7158 = vmatpush1.msra.mxu0 %v421
  %7159 = vmatprep.subr.mxu0 0.0
  %7160 = vmatpush1.msra.mxu0 %v422
  %7161 = vmatprep.subr.mxu0 0.0
  %7162 = vmatpush1.msra.mxu0 %v423
  %7163 = vmatprep.subr.mxu0 0.0
  %7164 = vmatpush1.msra.mxu0 %v424
  %7165 = vmatprep.subr.mxu0 0.0
  %7166 = vmatpush1.msra.mxu0 0.0
  %7167 = vmatprep.subr.mxu0 0.0
  %7168 = vmatpush1.msra.mxu0 0.0
  %7169 = vmatprep.subr.mxu0 0.0
  %7170 = vmatpush1.msra.mxu0 0.0
  %7171 = vmatprep.subr.mxu0 0.0
  %7172 = vmatpush1.msra.mxu0 0.0
  %7173 = vmatprep.subr.mxu0 0.0
  %7174 = vmatpush1.msra.mxu0 0.0
  %7175 = vmatprep.subr.mxu0 0.0
  %7176 = vmatpush1.msra.mxu0 0.0
  %7177 = vmatprep.subr.mxu0 0.0
  %7178 = vmatpush1.msra.mxu0 0.0
  %7179 = vmatprep.subr.mxu0 0.0
  %7180 = vmatpush1.msra.mxu0 0.0
  %7181 = vmatprep.subr.mxu0 0.0
  %7182 = vmatpush1.msra.mxu0 0.0
  %7183 = vmatprep.subr.mxu0 0.0
  %7184 = vmatpush1.msra.mxu0 0.0
  %7185 = vmatprep.subr.mxu0 0.0
  %7186 = vmatpush1.msra.mxu0 0.0
  %7187 = vmatprep.subr.mxu0 0.0
  %7188 = vmatpush1.msra.mxu0 0.0
  %7189 = vmatprep.subr.mxu0 0.0
  %7190 = vmatpush1.msra.mxu0 0.0
  %7191 = vmatprep.subr.mxu0 0.0
  %7192 = vmatpush1.msra.mxu0 0.0
  %7193 = vmatprep.subr.mxu0 0.0
  %7194 = vmatpush1.msra.mxu0 0.0
  %7195 = vmatprep.subr.mxu0 0.0
  %7196 = vmatpush1.msra.mxu0 0.0
  %7197 = vmatprep.subr.mxu0 0.0
  %7198 = vmatpush1.msra.mxu0 0.0
  %7199 = vmatprep.subr.mxu0 0.0
  %7200 = vmatpush1.msra.mxu0 0.0
  %7201 = vmatprep.subr.mxu0 0.0
  %7202 = vmatpush1.msra.mxu0 0.0
  %7203 = vmatprep.subr.mxu0 0.0
  %7204 = vmatpush1.msra.mxu0 0.0
  %7205 = vmatprep.subr.mxu0 0.0
  %7206 = vmatpush1.msra.mxu0 0.0
  %7207 = vmatprep.subr.mxu0 0.0
  %7208 = vmatpush1.msra.mxu0 0.0
  %7209 = vmatprep.subr.mxu0 0.0
  %7210 = vmatpush1.msra.mxu0 0.0
  %7211 = vmatprep.subr.mxu0 0.0
  %7212 = vmatpush1.msra.mxu0 0.0
  %7213 = vmatprep.subr.mxu0 0.0
  %7214 = vmatpush1.msra.mxu0 0.0
  %7215 = vmatprep.subr.mxu0 0.0
  %7216 = vmatpush1.msra.mxu0 0.0
  %7217 = vmatprep.subr.mxu0 0.0
  %7218 = vmatpush1.msra.mxu0 0.0
  %7219 = vmatprep.subr.mxu0 0.0
  %7220 = vmatpush1.msra.mxu0 0.0
  %7221 = vmatprep.mubr.f32.mxu0 0.0
  %7222 = vmatmul.mubr.f32.gmra.mrb[0].mxu0 %v7155
  %v7223 = vpop.f32.mrb[0].mxu0
  %v7224 = vadd.f32 %v7151, %v7223
  %v7225 = vpop.f32.mrb[0].mxu0
  %7226 = vdwg.mxu0
  %7227 = vmatprep.subr.mxu0 0.0
  %7228 = vmatpush1.msra.mxu0 %v2533
  %7229 = vmatprep.subr.mxu0 0.0
  %7230 = vmatpush1.msra.mxu0 0.0
  %7231 = vmatprep.subr.mxu0 0.0
  %7232 = vmatpush1.msra.mxu0 0.0
  %7233 = vmatprep.subr.mxu0 0.0
  %7234 = vmatpush1.msra.mxu0 0.0
  %7235 = vmatprep.subr.mxu0 0.0
  %7236 = vmatpush1.msra.mxu0 0.0
  %7237 = vmatprep.subr.mxu0 0.0
  %7238 = vmatpush1.msra.mxu0 0.0
  %7239 = vmatprep.subr.mxu0 0.0
  %7240 = vmatpush1.msra.mxu0 0.0
  %7241 = vmatprep.subr.mxu0 0.0
  %7242 = vmatpush1.msra.mxu0 0.0
  %7243 = vmatprep.subr.mxu0 0.0
  %7244 = vmatpush1.msra.mxu0 0.0
  %7245 = vmatprep.subr.mxu0 0.0
  %7246 = vmatpush1.msra.mxu0 0.0
  %7247 = vmatprep.subr.mxu0 0.0
  %7248 = vmatpush1.msra.mxu0 0.0
  %7249 = vmatprep.subr.mxu0 0.0
  %7250 = vmatpush1.msra.mxu0 0.0
  %7251 = vmatprep.subr.mxu0 0.0
  %7252 = vmatpush1.msra.mxu0 0.0
  %7253 = vmatprep.subr.mxu0 0.0
  %7254 = vmatpush1.msra.mxu0 0.0
  %7255 = vmatprep.subr.mxu0 0.0
  %7256 = vmatpush1.msra.mxu0 0.0
  %7257 = vmatprep.subr.mxu0 0.0
  %7258 = vmatpush1.msra.mxu0 0.0
  %7259 = vmatprep.subr.mxu0 0.0
  %7260 = vmatpush1.msra.mxu0 0.0
  %7261 = vmatprep.subr.mxu0 0.0
  %7262 = vmatpush1.msra.mxu0 0.0
  %7263 = vmatprep.subr.mxu0 0.0
  %7264 = vmatpush1.msra.mxu0 0.0
  %7265 = vmatprep.subr.mxu0 0.0
  %7266 = vmatpush1.msra.mxu0 0.0
  %7267 = vmatprep.subr.mxu0 0.0
  %7268 = vmatpush1.msra.mxu0 0.0
  %7269 = vmatprep.subr.mxu0 0.0
  %7270 = vmatpush1.msra.mxu0 0.0
  %7271 = vmatprep.subr.mxu0 0.0
  %7272 = vmatpush1.msra.mxu0 0.0
  %7273 = vmatprep.subr.mxu0 0.0
  %7274 = vmatpush1.msra.mxu0 0.0
  %7275 = vmatprep.subr.mxu0 0.0
  %7276 = vmatpush1.msra.mxu0 0.0
  %7277 = vmatprep.subr.mxu0 0.0
  %7278 = vmatpush1.msra.mxu0 0.0
  %7279 = vmatprep.subr.mxu0 0.0
  %7280 = vmatpush1.msra.mxu0 0.0
  %7281 = vmatprep.subr.mxu0 0.0
  %7282 = vmatpush1.msra.mxu0 0.0
  %7283 = vmatprep.subr.mxu0 0.0
  %7284 = vmatpush1.msra.mxu0 0.0
  %7285 = vmatprep.subr.mxu0 0.0
  %7286 = vmatpush1.msra.mxu0 0.0
  %7287 = vmatprep.subr.mxu0 0.0
  %7288 = vmatpush1.msra.mxu0 0.0
  %7289 = vmatprep.subr.mxu0 0.0
  %7290 = vmatpush1.msra.mxu0 0.0
  %7291 = vmatprep.mubr.f32.mxu0 0.0
  %7292 = vmatmul.mubr.f32.gmra.mrb[0].mxu0 %v4361
  %v7293 = vpop.f32.mrb[0].mxu0
  %v7294 = vadd.f32 0.0, %v7293
  %v7295 = vpop.f32.mrb[0].mxu0
  %7296 = vdwg.mxu0
  %v7298 = vsel %vm198, %v7294, 0
  %7300 = vmatprep.subr.mxu0 0.0
  %7301 = vmatpush1.msra.mxu0 %v1405
  %7302 = vmatprep.subr.mxu0 0.0
  %7303 = vmatpush1.msra.mxu0 %v1406
  %7304 = vmatprep.subr.mxu0 0.0
  %7305 = vmatpush1.msra.mxu0 %v1407
  %7306 = vmatprep.subr.mxu0 0.0
  %7307 = vmatpush1.msra.mxu0 %v1408
  %7308 = vmatprep.subr.mxu0 0.0
  %7309 = vmatpush1.msra.mxu0 0.0
  %7310 = vmatprep.subr.mxu0 0.0
  %7311 = vmatpush1.msra.mxu0 0.0
  %7312 = vmatprep.subr.mxu0 0.0
  %7313 = vmatpush1.msra.mxu0 0.0
  %7314 = vmatprep.subr.mxu0 0.0
  %7315 = vmatpush1.msra.mxu0 0.0
  %7316 = vmatprep.subr.mxu0 0.0
  %7317 = vmatpush1.msra.mxu0 0.0
  %7318 = vmatprep.subr.mxu0 0.0
  %7319 = vmatpush1.msra.mxu0 0.0
  %7320 = vmatprep.subr.mxu0 0.0
  %7321 = vmatpush1.msra.mxu0 0.0
  %7322 = vmatprep.subr.mxu0 0.0
  %7323 = vmatpush1.msra.mxu0 0.0
  %7324 = vmatprep.subr.mxu0 0.0
  %7325 = vmatpush1.msra.mxu0 0.0
  %7326 = vmatprep.subr.mxu0 0.0
  %7327 = vmatpush1.msra.mxu0 0.0
  %7328 = vmatprep.subr.mxu0 0.0
  %7329 = vmatpush1.msra.mxu0 0.0
  %7330 = vmatprep.subr.mxu0 0.0
  %7331 = vmatpush1.msra.mxu0 0.0
  %7332 = vmatprep.subr.mxu0 0.0
  %7333 = vmatpush1.msra.mxu0 0.0
  %7334 = vmatprep.subr.mxu0 0.0
  %7335 = vmatpush1.msra.mxu0 0.0
  %7336 = vmatprep.subr.mxu0 0.0
  %7337 = vmatpush1.msra.mxu0 0.0
  %7338 = vmatprep.subr.mxu0 0.0
  %7339 = vmatpush1.msra.mxu0 0.0
  %7340 = vmatprep.subr.mxu0 0.0
  %7341 = vmatpush1.msra.mxu0 0.0
  %7342 = vmatprep.subr.mxu0 0.0
  %7343 = vmatpush1.msra.mxu0 0.0
  %7344 = vmatprep.subr.mxu0 0.0
  %7345 = vmatpush1.msra.mxu0 0.0
  %7346 = vmatprep.subr.mxu0 0.0
  %7347 = vmatpush1.msra.mxu0 0.0
  %7348 = vmatprep.subr.mxu0 0.0
  %7349 = vmatpush1.msra.mxu0 0.0
  %7350 = vmatprep.subr.mxu0 0.0
  %7351 = vmatpush1.msra.mxu0 0.0
  %7352 = vmatprep.subr.mxu0 0.0
  %7353 = vmatpush1.msra.mxu0 0.0
  %7354 = vmatprep.subr.mxu0 0.0
  %7355 = vmatpush1.msra.mxu0 0.0
  %7356 = vmatprep.subr.mxu0 0.0
  %7357 = vmatpush1.msra.mxu0 0.0
  %7358 = vmatprep.subr.mxu0 0.0
  %7359 = vmatpush1.msra.mxu0 0.0
  %7360 = vmatprep.subr.mxu0 0.0
  %7361 = vmatpush1.msra.mxu0 0.0
  %7362 = vmatprep.subr.mxu0 0.0
  %7363 = vmatpush1.msra.mxu0 0.0
  %7364 = vmatprep.mubr.f32.mxu0 0.0
  %7365 = vmatmul.mubr.f32.gmra.mrb[0].mxu0 %v7298
  %v7366 = vpop.f32.mrb[0].mxu0
  %v7367 = vadd.f32 0.0, %v7366
  %v7368 = vpop.f32.mrb[0].mxu0
  %7369 = vdwg.mxu0
  %v7370 = vadd.f32 %v7224, %v7367
  %7371 = vmatprep.subr.mxu0 0.0
  %7372 = vmatpush1.msra.mxu0 %v2685
  %7373 = vmatprep.subr.mxu0 0.0
  %7374 = vmatpush1.msra.mxu0 0.0
  %7375 = vmatprep.subr.mxu0 0.0
  %7376 = vmatpush1.msra.mxu0 0.0
  %7377 = vmatprep.subr.mxu0 0.0
  %7378 = vmatpush1.msra.mxu0 0.0
  %7379 = vmatprep.subr.mxu0 0.0
  %7380 = vmatpush1.msra.mxu0 0.0
  %7381 = vmatprep.subr.mxu0 0.0
  %7382 = vmatpush1.msra.mxu0 0.0
  %7383 = vmatprep.subr.mxu0 0.0
  %7384 = vmatpush1.msra.mxu0 0.0
  %7385 = vmatprep.subr.mxu0 0.0
  %7386 = vmatpush1.msra.mxu0 0.0
  %7387 = vmatprep.subr.mxu0 0.0
  %7388 = vmatpush1.msra.mxu0 0.0
  %7389 = vmatprep.subr.mxu0 0.0
  %7390 = vmatpush1.msra.mxu0 0.0
  %7391 = vmatprep.subr.mxu0 0.0
  %7392 = vmatpush1.msra.mxu0 0.0
  %7393 = vmatprep.subr.mxu0 0.0
  %7394 = vmatpush1.msra.mxu0 0.0
  %7395 = vmatprep.subr.mxu0 0.0
  %7396 = vmatpush1.msra.mxu0 0.0
  %7397 = vmatprep.subr.mxu0 0.0
  %7398 = vmatpush1.msra.mxu0 0.0
  %7399 = vmatprep.subr.mxu0 0.0
  %7400 = vmatpush1.msra.mxu0 0.0
  %7401 = vmatprep.subr.mxu0 0.0
  %7402 = vmatpush1.msra.mxu0 0.0
  %7403 = vmatprep.subr.mxu0 0.0
  %7404 = vmatpush1.msra.mxu0 0.0
  %7405 = vmatprep.subr.mxu0 0.0
  %7406 = vmatpush1.msra.mxu0 0.0
  %7407 = vmatprep.subr.mxu0 0.0
  %7408 = vmatpush1.msra.mxu0 0.0
  %7409 = vmatprep.subr.mxu0 0.0
  %7410 = vmatpush1.msra.mxu0 0.0
  %7411 = vmatprep.subr.mxu0 0.0
  %7412 = vmatpush1.msra.mxu0 0.0
  %7413 = vmatprep.subr.mxu0 0.0
  %7414 = vmatpush1.msra.mxu0 0.0
  %7415 = vmatprep.subr.mxu0 0.0
  %7416 = vmatpush1.msra.mxu0 0.0
  %7417 = vmatprep.subr.mxu0 0.0
  %7418 = vmatpush1.msra.mxu0 0.0
  %7419 = vmatprep.subr.mxu0 0.0
  %7420 = vmatpush1.msra.mxu0 0.0
  %7421 = vmatprep.subr.mxu0 0.0
  %7422 = vmatpush1.msra.mxu0 0.0
  %7423 = vmatprep.subr.mxu0 0.0
  %7424 = vmatpush1.msra.mxu0 0.0
  %7425 = vmatprep.subr.mxu0 0.0
  %7426 = vmatpush1.msra.mxu0 0.0
  %7427 = vmatprep.subr.mxu0 0.0
  %7428 = vmatpush1.msra.mxu0 0.0
  %7429 = vmatprep.subr.mxu0 0.0
  %7430 = vmatpush1.msra.mxu0 0.0
  %7431 = vmatprep.subr.mxu0 0.0
  %7432 = vmatpush1.msra.mxu0 0.0
  %7433 = vmatprep.subr.mxu0 0.0
  %7434 = vmatpush1.msra.mxu0 0.0
  %7435 = vmatprep.mubr.f32.mxu0 0.0
  %7436 = vmatmul.mubr.f32.gmra.mrb[0].mxu0 %v4510
  %v7437 = vpop.f32.mrb[0].mxu0
  %v7438 = vadd.f32 0.0, %v7437
  %v7439 = vpop.f32.mrb[0].mxu0
  %7440 = vdwg.mxu0
  %v7442 = vsel %vm198, %v7438, 0
  %7444 = vmatprep.subr.mxu0 0.0
  %7445 = vmatpush1.msra.mxu0 %v1559
  %7446 = vmatprep.subr.mxu0 0.0
  %7447 = vmatpush1.msra.mxu0 %v1560
  %7448 = vmatprep.subr.mxu0 0.0
  %7449 = vmatpush1.msra.mxu0 %v1561
  %7450 = vmatprep.subr.mxu0 0.0
  %7451 = vmatpush1.msra.mxu0 %v1562
  %7452 = vmatprep.subr.mxu0 0.0
  %7453 = vmatpush1.msra.mxu0 0.0
  %7454 = vmatprep.subr.mxu0 0.0
  %7455 = vmatpush1.msra.mxu0 0.0
  %7456 = vmatprep.subr.mxu0 0.0
  %7457 = vmatpush1.msra.mxu0 0.0
  %7458 = vmatprep.subr.mxu0 0.0
  %7459 = vmatpush1.msra.mxu0 0.0
  %7460 = vmatprep.subr.mxu0 0.0
  %7461 = vmatpush1.msra.mxu0 0.0
  %7462 = vmatprep.subr.mxu0 0.0
  %7463 = vmatpush1.msra.mxu0 0.0
  %7464 = vmatprep.subr.mxu0 0.0
  %7465 = vmatpush1.msra.mxu0 0.0
  %7466 = vmatprep.subr.mxu0 0.0
  %7467 = vmatpush1.msra.mxu0 0.0
  %7468 = vmatprep.subr.mxu0 0.0
  %7469 = vmatpush1.msra.mxu0 0.0
  %7470 = vmatprep.subr.mxu0 0.0
  %7471 = vmatpush1.msra.mxu0 0.0
  %7472 = vmatprep.subr.mxu0 0.0
  %7473 = vmatpush1.msra.mxu0 0.0
  %7474 = vmatprep.subr.mxu0 0.0
  %7475 = vmatpush1.msra.mxu0 0.0
  %7476 = vmatprep.subr.mxu0 0.0
  %7477 = vmatpush1.msra.mxu0 0.0
  %7478 = vmatprep.subr.mxu0 0.0
  %7479 = vmatpush1.msra.mxu0 0.0
  %7480 = vmatprep.subr.mxu0 0.0
  %7481 = vmatpush1.msra.mxu0 0.0
  %7482 = vmatprep.subr.mxu0 0.0
  %7483 = vmatpush1.msra.mxu0 0.0
  %7484 = vmatprep.subr.mxu0 0.0
  %7485 = vmatpush1.msra.mxu0 0.0
  %7486 = vmatprep.subr.mxu0 0.0
  %7487 = vmatpush1.msra.mxu0 0.0
  %7488 = vmatprep.subr.mxu0 0.0
  %7489 = vmatpush1.msra.mxu0 0.0
  %7490 = vmatprep.subr.mxu0 0.0
  %7491 = vmatpush1.msra.mxu0 0.0
  %7492 = vmatprep.subr.mxu0 0.0
  %7493 = vmatpush1.msra.mxu0 0.0
  %7494 = vmatprep.subr.mxu0 0.0
  %7495 = vmatpush1.msra.mxu0 0.0
  %7496 = vmatprep.subr.mxu0 0.0
  %7497 = vmatpush1.msra.mxu0 0.0
  %7498 = vmatprep.subr.mxu0 0.0
  %7499 = vmatpush1.msra.mxu0 0.0
  %7500 = vmatprep.subr.mxu0 0.0
  %7501 = vmatpush1.msra.mxu0 0.0
  %7502 = vmatprep.subr.mxu0 0.0
  %7503 = vmatpush1.msra.mxu0 0.0
  %7504 = vmatprep.subr.mxu0 0.0
  %7505 = vmatpush1.msra.mxu0 0.0
  %7506 = vmatprep.subr.mxu0 0.0
  %7507 = vmatpush1.msra.mxu0 0.0
  %7508 = vmatprep.mubr.f32.mxu0 0.0
  %7509 = vmatmul.mubr.f32.gmra.mrb[0].mxu0 %v7442
  %v7510 = vpop.f32.mrb[0].mxu0
  %v7511 = vadd.f32 0.0, %v7510
  %v7512 = vpop.f32.mrb[0].mxu0
  %7513 = vdwg.mxu0
  %v7514 = vadd.f32 %v7370, %v7511
  %7515 = vmatprep.subr.mxu0 0.0
  %7516 = vmatpush1.msra.mxu0 %v2231
  %7517 = vmatprep.subr.mxu0 0.0
  %7518 = vmatpush1.msra.mxu0 0.0
  %7519 = vmatprep.subr.mxu0 0.0
  %7520 = vmatpush1.msra.mxu0 0.0
  %7521 = vmatprep.subr.mxu0 0.0
  %7522 = vmatpush1.msra.mxu0 0.0
  %7523 = vmatprep.subr.mxu0 0.0
  %7524 = vmatpush1.msra.mxu0 0.0
  %7525 = vmatprep.subr.mxu0 0.0
  %7526 = vmatpush1.msra.mxu0 0.0
  %7527 = vmatprep.subr.mxu0 0.0
  %7528 = vmatpush1.msra.mxu0 0.0
  %7529 = vmatprep.subr.mxu0 0.0
  %7530 = vmatpush1.msra.mxu0 0.0
  %7531 = vmatprep.subr.mxu0 0.0
  %7532 = vmatpush1.msra.mxu0 0.0
  %7533 = vmatprep.subr.mxu0 0.0
  %7534 = vmatpush1.msra.mxu0 0.0
  %7535 = vmatprep.subr.mxu0 0.0
  %7536 = vmatpush1.msra.mxu0 0.0
  %7537 = vmatprep.subr.mxu0 0.0
  %7538 = vmatpush1.msra.mxu0 0.0
  %7539 = vmatprep.subr.mxu0 0.0
  %7540 = vmatpush1.msra.mxu0 0.0
  %7541 = vmatprep.subr.mxu0 0.0
  %7542 = vmatpush1.msra.mxu0 0.0
  %7543 = vmatprep.subr.mxu0 0.0
  %7544 = vmatpush1.msra.mxu0 0.0
  %7545 = vmatprep.subr.mxu0 0.0
  %7546 = vmatpush1.msra.mxu0 0.0
  %7547 = vmatprep.subr.mxu0 0.0
  %7548 = vmatpush1.msra.mxu0 0.0
  %7549 = vmatprep.subr.mxu0 0.0
  %7550 = vmatpush1.msra.mxu0 0.0
  %7551 = vmatprep.subr.mxu0 0.0
  %7552 = vmatpush1.msra.mxu0 0.0
  %7553 = vmatprep.subr.mxu0 0.0
  %7554 = vmatpush1.msra.mxu0 0.0
  %7555 = vmatprep.subr.mxu0 0.0
  %7556 = vmatpush1.msra.mxu0 0.0
  %7557 = vmatprep.subr.mxu0 0.0
  %7558 = vmatpush1.msra.mxu0 0.0
  %7559 = vmatprep.subr.mxu0 0.0
  %7560 = vmatpush1.msra.mxu0 0.0
  %7561 = vmatprep.subr.mxu0 0.0
  %7562 = vmatpush1.msra.mxu0 0.0
  %7563 = vmatprep.subr.mxu0 0.0
  %7564 = vmatpush1.msra.mxu0 0.0
  %7565 = vmatprep.subr.mxu0 0.0
  %7566 = vmatpush1.msra.mxu0 0.0
  %7567 = vmatprep.subr.mxu0 0.0
  %7568 = vmatpush1.msra.mxu0 0.0
  %7569 = vmatprep.subr.mxu0 0.0
  %7570 = vmatpush1.msra.mxu0 0.0
  %7571 = vmatprep.subr.mxu0 0.0
  %7572 = vmatpush1.msra.mxu0 0.0
  %7573 = vmatprep.subr.mxu0 0.0
  %7574 = vmatpush1.msra.mxu0 0.0
  %7575 = vmatprep.subr.mxu0 0.0
  %7576 = vmatpush1.msra.mxu0 0.0
  %7577 = vmatprep.subr.mxu0 0.0
  %7578 = vmatpush1.msra.mxu0 0.0
  %7579 = vmatprep.mubr.f32.mxu0 0.0
  %7580 = vmatmul.mubr.f32.gmra.mrb[0].mxu0 %v4588
  %v7581 = vpop.f32.mrb[0].mxu0
  %v7582 = vadd.f32 0.0, %v7581
  %v7583 = vpop.f32.mrb[0].mxu0
  %7584 = vdwg.mxu0
  %7585 = vmatprep.subr.mxu0 0.0
  %7586 = vmatpush1.msra.mxu0 %v2309
  %7587 = vmatprep.subr.mxu0 0.0
  %7588 = vmatpush1.msra.mxu0 0.0
  %7589 = vmatprep.subr.mxu0 0.0
  %7590 = vmatpush1.msra.mxu0 0.0
  %7591 = vmatprep.subr.mxu0 0.0
  %7592 = vmatpush1.msra.mxu0 0.0
  %7593 = vmatprep.subr.mxu0 0.0
  %7594 = vmatpush1.msra.mxu0 0.0
  %7595 = vmatprep.subr.mxu0 0.0
  %7596 = vmatpush1.msra.mxu0 0.0
  %7597 = vmatprep.subr.mxu0 0.0
  %7598 = vmatpush1.msra.mxu0 0.0
  %7599 = vmatprep.subr.mxu0 0.0
  %7600 = vmatpush1.msra.mxu0 0.0
  %7601 = vmatprep.subr.mxu0 0.0
  %7602 = vmatpush1.msra.mxu0 0.0
  %7603 = vmatprep.subr.mxu0 0.0
  %7604 = vmatpush1.msra.mxu0 0.0
  %7605 = vmatprep.subr.mxu0 0.0
  %7606 = vmatpush1.msra.mxu0 0.0
  %7607 = vmatprep.subr.mxu0 0.0
  %7608 = vmatpush1.msra.mxu0 0.0
  %7609 = vmatprep.subr.mxu0 0.0
  %7610 = vmatpush1.msra.mxu0 0.0
  %7611 = vmatprep.subr.mxu0 0.0
  %7612 = vmatpush1.msra.mxu0 0.0
  %7613 = vmatprep.subr.mxu0 0.0
  %7614 = vmatpush1.msra.mxu0 0.0
  %7615 = vmatprep.subr.mxu0 0.0
  %7616 = vmatpush1.msra.mxu0 0.0
  %7617 = vmatprep.subr.mxu0 0.0
  %7618 = vmatpush1.msra.mxu0 0.0
  %7619 = vmatprep.subr.mxu0 0.0
  %7620 = vmatpush1.msra.mxu0 0.0
  %7621 = vmatprep.subr.mxu0 0.0
  %7622 = vmatpush1.msra.mxu0 0.0
  %7623 = vmatprep.subr.mxu0 0.0
  %7624 = vmatpush1.msra.mxu0 0.0
  %7625 = vmatprep.subr.mxu0 0.0
  %7626 = vmatpush1.msra.mxu0 0.0
  %7627 = vmatprep.subr.mxu0 0.0
  %7628 = vmatpush1.msra.mxu0 0.0
  %7629 = vmatprep.subr.mxu0 0.0
  %7630 = vmatpush1.msra.mxu0 0.0
  %7631 = vmatprep.subr.mxu0 0.0
  %7632 = vmatpush1.msra.mxu0 0.0
  %7633 = vmatprep.subr.mxu0 0.0
  %7634 = vmatpush1.msra.mxu0 0.0
  %7635 = vmatprep.subr.mxu0 0.0
  %7636 = vmatpush1.msra.mxu0 0.0
  %7637 = vmatprep.subr.mxu0 0.0
  %7638 = vmatpush1.msra.mxu0 0.0
  %7639 = vmatprep.subr.mxu0 0.0
  %7640 = vmatpush1.msra.mxu0 0.0
  %7641 = vmatprep.subr.mxu0 0.0
  %7642 = vmatpush1.msra.mxu0 0.0
  %7643 = vmatprep.subr.mxu0 0.0
  %7644 = vmatpush1.msra.mxu0 0.0
  %7645 = vmatprep.subr.mxu0 0.0
  %7646 = vmatpush1.msra.mxu0 0.0
  %7647 = vmatprep.subr.mxu0 0.0
  %7648 = vmatpush1.msra.mxu0 0.0
  %7649 = vmatprep.mubr.f32.mxu0 0.0
  %7650 = vmatmul.mubr.f32.gmra.mrb[0].mxu0 %v4661
  %v7651 = vpop.f32.mrb[0].mxu0
  %v7652 = vadd.f32 %v7582, %v7651
  %v7653 = vpop.f32.mrb[0].mxu0
  %7654 = vdwg.mxu0
  %7655 = vmatprep.subr.mxu0 0.0
  %7656 = vmatpush1.msra.mxu0 %v2685
  %7657 = vmatprep.subr.mxu0 0.0
  %7658 = vmatpush1.msra.mxu0 0.0
  %7659 = vmatprep.subr.mxu0 0.0
  %7660 = vmatpush1.msra.mxu0 0.0
  %7661 = vmatprep.subr.mxu0 0.0
  %7662 = vmatpush1.msra.mxu0 0.0
  %7663 = vmatprep.subr.mxu0 0.0
  %7664 = vmatpush1.msra.mxu0 0.0
  %7665 = vmatprep.subr.mxu0 0.0
  %7666 = vmatpush1.msra.mxu0 0.0
  %7667 = vmatprep.subr.mxu0 0.0
  %7668 = vmatpush1.msra.mxu0 0.0
  %7669 = vmatprep.subr.mxu0 0.0
  %7670 = vmatpush1.msra.mxu0 0.0
  %7671 = vmatprep.subr.mxu0 0.0
  %7672 = vmatpush1.msra.mxu0 0.0
  %7673 = vmatprep.subr.mxu0 0.0
  %7674 = vmatpush1.msra.mxu0 0.0
  %7675 = vmatprep.subr.mxu0 0.0
  %7676 = vmatpush1.msra.mxu0 0.0
  %7677 = vmatprep.subr.mxu0 0.0
  %7678 = vmatpush1.msra.mxu0 0.0
  %7679 = vmatprep.subr.mxu0 0.0
  %7680 = vmatpush1.msra.mxu0 0.0
  %7681 = vmatprep.subr.mxu0 0.0
  %7682 = vmatpush1.msra.mxu0 0.0
  %7683 = vmatprep.subr.mxu0 0.0
  %7684 = vmatpush1.msra.mxu0 0.0
  %7685 = vmatprep.subr.mxu0 0.0
  %7686 = vmatpush1.msra.mxu0 0.0
  %7687 = vmatprep.subr.mxu0 0.0
  %7688 = vmatpush1.msra.mxu0 0.0
  %7689 = vmatprep.subr.mxu0 0.0
  %7690 = vmatpush1.msra.mxu0 0.0
  %7691 = vmatprep.subr.mxu0 0.0
  %7692 = vmatpush1.msra.mxu0 0.0
  %7693 = vmatprep.subr.mxu0 0.0
  %7694 = vmatpush1.msra.mxu0 0.0
  %7695 = vmatprep.subr.mxu0 0.0
  %7696 = vmatpush1.msra.mxu0 0.0
  %7697 = vmatprep.subr.mxu0 0.0
  %7698 = vmatpush1.msra.mxu0 0.0
  %7699 = vmatprep.subr.mxu0 0.0
  %7700 = vmatpush1.msra.mxu0 0.0
  %7701 = vmatprep.subr.mxu0 0.0
  %7702 = vmatpush1.msra.mxu0 0.0
  %7703 = vmatprep.subr.mxu0 0.0
  %7704 = vmatpush1.msra.mxu0 0.0
  %7705 = vmatprep.subr.mxu0 0.0
  %7706 = vmatpush1.msra.mxu0 0.0
  %7707 = vmatprep.subr.mxu0 0.0
  %7708 = vmatpush1.msra.mxu0 0.0
  %7709 = vmatprep.subr.mxu0 0.0
  %7710 = vmatpush1.msra.mxu0 0.0
  %7711 = vmatprep.subr.mxu0 0.0
  %7712 = vmatpush1.msra.mxu0 0.0
  %7713 = vmatprep.subr.mxu0 0.0
  %7714 = vmatpush1.msra.mxu0 0.0
  %7715 = vmatprep.subr.mxu0 0.0
  %7716 = vmatpush1.msra.mxu0 0.0
  %7717 = vmatprep.subr.mxu0 0.0
  %7718 = vmatpush1.msra.mxu0 0.0
  %7719 = vmatprep.mubr.f32.mxu0 0.0
  %7720 = vmatmul.mubr.f32.gmra.mrb[0].mxu0 %v4736
  %v7721 = vpop.f32.mrb[0].mxu0
  %v7722 = vadd.f32 0.0, %v7721
  %v7723 = vpop.f32.mrb[0].mxu0
  %7724 = vdwg.mxu0
  %v7726 = vsel %vm198, %v7722, 0
  %7728 = vmatprep.subr.mxu0 0.0
  %7729 = vmatpush1.msra.mxu0 %v1559
  %7730 = vmatprep.subr.mxu0 0.0
  %7731 = vmatpush1.msra.mxu0 %v1560
  %7732 = vmatprep.subr.mxu0 0.0
  %7733 = vmatpush1.msra.mxu0 %v1561
  %7734 = vmatprep.subr.mxu0 0.0
  %7735 = vmatpush1.msra.mxu0 %v1562
  %7736 = vmatprep.subr.mxu0 0.0
  %7737 = vmatpush1.msra.mxu0 0.0
  %7738 = vmatprep.subr.mxu0 0.0
  %7739 = vmatpush1.msra.mxu0 0.0
  %7740 = vmatprep.subr.mxu0 0.0
  %7741 = vmatpush1.msra.mxu0 0.0
  %7742 = vmatprep.subr.mxu0 0.0
  %7743 = vmatpush1.msra.mxu0 0.0
  %7744 = vmatprep.subr.mxu0 0.0
  %7745 = vmatpush1.msra.mxu0 0.0
  %7746 = vmatprep.subr.mxu0 0.0
  %7747 = vmatpush1.msra.mxu0 0.0
  %7748 = vmatprep.subr.mxu0 0.0
  %7749 = vmatpush1.msra.mxu0 0.0
  %7750 = vmatprep.subr.mxu0 0.0
  %7751 = vmatpush1.msra.mxu0 0.0
  %7752 = vmatprep.subr.mxu0 0.0
  %7753 = vmatpush1.msra.mxu0 0.0
  %7754 = vmatprep.subr.mxu0 0.0
  %7755 = vmatpush1.msra.mxu0 0.0
  %7756 = vmatprep.subr.mxu0 0.0
  %7757 = vmatpush1.msra.mxu0 0.0
  %7758 = vmatprep.subr.mxu0 0.0
  %7759 = vmatpush1.msra.mxu0 0.0
  %7760 = vmatprep.subr.mxu0 0.0
  %7761 = vmatpush1.msra.mxu0 0.0
  %7762 = vmatprep.subr.mxu0 0.0
  %7763 = vmatpush1.msra.mxu0 0.0
  %7764 = vmatprep.subr.mxu0 0.0
  %7765 = vmatpush1.msra.mxu0 0.0
  %7766 = vmatprep.subr.mxu0 0.0
  %7767 = vmatpush1.msra.mxu0 0.0
  %7768 = vmatprep.subr.mxu0 0.0
  %7769 = vmatpush1.msra.mxu0 0.0
  %7770 = vmatprep.subr.mxu0 0.0
  %7771 = vmatpush1.msra.mxu0 0.0
  %7772 = vmatprep.subr.mxu0 0.0
  %7773 = vmatpush1.msra.mxu0 0.0
  %7774 = vmatprep.subr.mxu0 0.0
  %7775 = vmatpush1.msra.mxu0 0.0
  %7776 = vmatprep.subr.mxu0 0.0
  %7777 = vmatpush1.msra.mxu0 0.0
  %7778 = vmatprep.subr.mxu0 0.0
  %7779 = vmatpush1.msra.mxu0 0.0
  %7780 = vmatprep.subr.mxu0 0.0
  %7781 = vmatpush1.msra.mxu0 0.0
  %7782 = vmatprep.subr.mxu0 0.0
  %7783 = vmatpush1.msra.mxu0 0.0
  %7784 = vmatprep.subr.mxu0 0.0
  %7785 = vmatpush1.msra.mxu0 0.0
  %7786 = vmatprep.subr.mxu0 0.0
  %7787 = vmatpush1.msra.mxu0 0.0
  %7788 = vmatprep.subr.mxu0 0.0
  %7789 = vmatpush1.msra.mxu0 0.0
  %7790 = vmatprep.subr.mxu0 0.0
  %7791 = vmatpush1.msra.mxu0 0.0
  %7792 = vmatprep.mubr.f32.mxu0 0.0
  %7793 = vmatmul.mubr.f32.gmra.mrb[0].mxu0 %v7726
  %v7794 = vpop.f32.mrb[0].mxu0
  %v7795 = vadd.f32 0.0, %v7794
  %v7796 = vpop.f32.mrb[0].mxu0
  %7797 = vdwg.mxu0
  %v7798 = vadd.f32 %v7652, %v7795
  %7799 = vmatprep.subr.mxu0 0.0
  %7800 = vmatpush1.msra.mxu0 %v2533
  %7801 = vmatprep.subr.mxu0 0.0
  %7802 = vmatpush1.msra.mxu0 0.0
  %7803 = vmatprep.subr.mxu0 0.0
  %7804 = vmatpush1.msra.mxu0 0.0
  %7805 = vmatprep.subr.mxu0 0.0
  %7806 = vmatpush1.msra.mxu0 0.0
  %7807 = vmatprep.subr.mxu0 0.0
  %7808 = vmatpush1.msra.mxu0 0.0
  %7809 = vmatprep.subr.mxu0 0.0
  %7810 = vmatpush1.msra.mxu0 0.0
  %7811 = vmatprep.subr.mxu0 0.0
  %7812 = vmatpush1.msra.mxu0 0.0
  %7813 = vmatprep.subr.mxu0 0.0
  %7814 = vmatpush1.msra.mxu0 0.0
  %7815 = vmatprep.subr.mxu0 0.0
  %7816 = vmatpush1.msra.mxu0 0.0
  %7817 = vmatprep.subr.mxu0 0.0
  %7818 = vmatpush1.msra.mxu0 0.0
  %7819 = vmatprep.subr.mxu0 0.0
  %7820 = vmatpush1.msra.mxu0 0.0
  %7821 = vmatprep.subr.mxu0 0.0
  %7822 = vmatpush1.msra.mxu0 0.0
  %7823 = vmatprep.subr.mxu0 0.0
  %7824 = vmatpush1.msra.mxu0 0.0
  %7825 = vmatprep.subr.mxu0 0.0
  %7826 = vmatpush1.msra.mxu0 0.0
  %7827 = vmatprep.subr.mxu0 0.0
  %7828 = vmatpush1.msra.mxu0 0.0
  %7829 = vmatprep.subr.mxu0 0.0
  %7830 = vmatpush1.msra.mxu0 0.0
  %7831 = vmatprep.subr.mxu0 0.0
  %7832 = vmatpush1.msra.mxu0 0.0
  %7833 = vmatprep.subr.mxu0 0.0
  %7834 = vmatpush1.msra.mxu0 0.0
  %7835 = vmatprep.subr.mxu0 0.0
  %7836 = vmatpush1.msra.mxu0 0.0
  %7837 = vmatprep.subr.mxu0 0.0
  %7838 = vmatpush1.msra.mxu0 0.0
  %7839 = vmatprep.subr.mxu0 0.0
  %7840 = vmatpush1.msra.mxu0 0.0
  %7841 = vmatprep.subr.mxu0 0.0
  %7842 = vmatpush1.msra.mxu0 0.0
  %7843 = vmatprep.subr.mxu0 0.0
  %7844 = vmatpush1.msra.mxu0 0.0
  %7845 = vmatprep.subr.mxu0 0.0
  %7846 = vmatpush1.msra.mxu0 0.0
  %7847 = vmatprep.subr.mxu0 0.0
  %7848 = vmatpush1.msra.mxu0 0.0
  %7849 = vmatprep.subr.mxu0 0.0
  %7850 = vmatpush1.msra.mxu0 0.0
  %7851 = vmatprep.subr.mxu0 0.0
  %7852 = vmatpush1.msra.mxu0 0.0
  %7853 = vmatprep.subr.mxu0 0.0
  %7854 = vmatpush1.msra.mxu0 0.0
  %7855 = vmatprep.subr.mxu0 0.0
  %7856 = vmatpush1.msra.mxu0 0.0
  %7857 = vmatprep.subr.mxu0 0.0
  %7858 = vmatpush1.msra.mxu0 0.0
  %7859 = vmatprep.subr.mxu0 0.0
  %7860 = vmatpush1.msra.mxu0 0.0
  %7861 = vmatprep.subr.mxu0 0.0
  %7862 = vmatpush1.msra.mxu0 0.0
  %7863 = vmatprep.mubr.f32.mxu0 0.0
  %7864 = vmatmul.mubr.f32.gmra.mrb[0].mxu0 %v4811
  %v7865 = vpop.f32.mrb[0].mxu0
  %v7866 = vadd.f32 0.0, %v7865
  %v7867 = vpop.f32.mrb[0].mxu0
  %7868 = vdwg.mxu0
  %v7870 = vsel %vm198, %v7866, 0
  %7872 = vmatprep.subr.mxu0 0.0
  %7873 = vmatpush1.msra.mxu0 %v1559
  %7874 = vmatprep.subr.mxu0 0.0
  %7875 = vmatpush1.msra.mxu0 %v1560
  %7876 = vmatprep.subr.mxu0 0.0
  %7877 = vmatpush1.msra.mxu0 %v1561
  %7878 = vmatprep.subr.mxu0 0.0
  %7879 = vmatpush1.msra.mxu0 %v1562
  %7880 = vmatprep.subr.mxu0 0.0
  %7881 = vmatpush1.msra.mxu0 0.0
  %7882 = vmatprep.subr.mxu0 0.0
  %7883 = vmatpush1.msra.mxu0 0.0
  %7884 = vmatprep.subr.mxu0 0.0
  %7885 = vmatpush1.msra.mxu0 0.0
  %7886 = vmatprep.subr.mxu0 0.0
  %7887 = vmatpush1.msra.mxu0 0.0
  %7888 = vmatprep.subr.mxu0 0.0
  %7889 = vmatpush1.msra.mxu0 0.0
  %7890 = vmatprep.subr.mxu0 0.0
  %7891 = vmatpush1.msra.mxu0 0.0
  %7892 = vmatprep.subr.mxu0 0.0
  %7893 = vmatpush1.msra.mxu0 0.0
  %7894 = vmatprep.subr.mxu0 0.0
  %7895 = vmatpush1.msra.mxu0 0.0
  %7896 = vmatprep.subr.mxu0 0.0
  %7897 = vmatpush1.msra.mxu0 0.0
  %7898 = vmatprep.subr.mxu0 0.0
  %7899 = vmatpush1.msra.mxu0 0.0
  %7900 = vmatprep.subr.mxu0 0.0
  %7901 = vmatpush1.msra.mxu0 0.0
  %7902 = vmatprep.subr.mxu0 0.0
  %7903 = vmatpush1.msra.mxu0 0.0
  %7904 = vmatprep.subr.mxu0 0.0
  %7905 = vmatpush1.msra.mxu0 0.0
  %7906 = vmatprep.subr.mxu0 0.0
  %7907 = vmatpush1.msra.mxu0 0.0
  %7908 = vmatprep.subr.mxu0 0.0
  %7909 = vmatpush1.msra.mxu0 0.0
  %7910 = vmatprep.subr.mxu0 0.0
  %7911 = vmatpush1.msra.mxu0 0.0
  %7912 = vmatprep.subr.mxu0 0.0
  %7913 = vmatpush1.msra.mxu0 0.0
  %7914 = vmatprep.subr.mxu0 0.0
  %7915 = vmatpush1.msra.mxu0 0.0
  %7916 = vmatprep.subr.mxu0 0.0
  %7917 = vmatpush1.msra.mxu0 0.0
  %7918 = vmatprep.subr.mxu0 0.0
  %7919 = vmatpush1.msra.mxu0 0.0
  %7920 = vmatprep.subr.mxu0 0.0
  %7921 = vmatpush1.msra.mxu0 0.0
  %7922 = vmatprep.subr.mxu0 0.0
  %7923 = vmatpush1.msra.mxu0 0.0
  %7924 = vmatprep.subr.mxu0 0.0
  %7925 = vmatpush1.msra.mxu0 0.0
  %7926 = vmatprep.subr.mxu0 0.0
  %7927 = vmatpush1.msra.mxu0 0.0
  %7928 = vmatprep.subr.mxu0 0.0
  %7929 = vmatpush1.msra.mxu0 0.0
  %7930 = vmatprep.subr.mxu0 0.0
  %7931 = vmatpush1.msra.mxu0 0.0
  %7932 = vmatprep.subr.mxu0 0.0
  %7933 = vmatpush1.msra.mxu0 0.0
  %7934 = vmatprep.subr.mxu0 0.0
  %7935 = vmatpush1.msra.mxu0 0.0
  %7936 = vmatprep.mubr.f32.mxu0 0.0
  %7937 = vmatmul.mubr.f32.gmra.mrb[0].mxu0 %v7870
  %v7938 = vpop.f32.mrb[0].mxu0
  %v7939 = vadd.f32 0.0, %v7938
  %v7940 = vpop.f32.mrb[0].mxu0
  %7941 = vdwg.mxu0
  %v7942 = vadd.f32 %v7798, %v7939
  %7943 = vmatprep.subr.mxu0 0.0
  %7944 = vmatpush1.msra.mxu0 %v2231
  %7945 = vmatprep.subr.mxu0 0.0
  %7946 = vmatpush1.msra.mxu0 0.0
  %7947 = vmatprep.subr.mxu0 0.0
  %7948 = vmatpush1.msra.mxu0 0.0
  %7949 = vmatprep.subr.mxu0 0.0
  %7950 = vmatpush1.msra.mxu0 0.0
  %7951 = vmatprep.subr.mxu0 0.0
  %7952 = vmatpush1.msra.mxu0 0.0
  %7953 = vmatprep.subr.mxu0 0.0
  %7954 = vmatpush1.msra.mxu0 0.0
  %7955 = vmatprep.subr.mxu0 0.0
  %7956 = vmatpush1.msra.mxu0 0.0
  %7957 = vmatprep.subr.mxu0 0.0
  %7958 = vmatpush1.msra.mxu0 0.0
  %7959 = vmatprep.subr.mxu0 0.0
  %7960 = vmatpush1.msra.mxu0 0.0
  %7961 = vmatprep.subr.mxu0 0.0
  %7962 = vmatpush1.msra.mxu0 0.0
  %7963 = vmatprep.subr.mxu0 0.0
  %7964 = vmatpush1.msra.mxu0 0.0
  %7965 = vmatprep.subr.mxu0 0.0
  %7966 = vmatpush1.msra.mxu0 0.0
  %7967 = vmatprep.subr.mxu0 0.0
  %7968 = vmatpush1.msra.mxu0 0.0
  %7969 = vmatprep.subr.mxu0 0.0
  %7970 = vmatpush1.msra.mxu0 0.0
  %7971 = vmatprep.subr.mxu0 0.0
  %7972 = vmatpush1.msra.mxu0 0.0
  %7973 = vmatprep.subr.mxu0 0.0
  %7974 = vmatpush1.msra.mxu0 0.0
  %7975 = vmatprep.subr.mxu0 0.0
  %7976 = vmatpush1.msra.mxu0 0.0
  %7977 = vmatprep.subr.mxu0 0.0
  %7978 = vmatpush1.msra.mxu0 0.0
  %7979 = vmatprep.subr.mxu0 0.0
  %7980 = vmatpush1.msra.mxu0 0.0
  %7981 = vmatprep.subr.mxu0 0.0
  %7982 = vmatpush1.msra.mxu0 0.0
  %7983 = vmatprep.subr.mxu0 0.0
  %7984 = vmatpush1.msra.mxu0 0.0
  %7985 = vmatprep.subr.mxu0 0.0
  %7986 = vmatpush1.msra.mxu0 0.0
  %7987 = vmatprep.subr.mxu0 0.0
  %7988 = vmatpush1.msra.mxu0 0.0
  %7989 = vmatprep.subr.mxu0 0.0
  %7990 = vmatpush1.msra.mxu0 0.0
  %7991 = vmatprep.subr.mxu0 0.0
  %7992 = vmatpush1.msra.mxu0 0.0
  %7993 = vmatprep.subr.mxu0 0.0
  %7994 = vmatpush1.msra.mxu0 0.0
  %7995 = vmatprep.subr.mxu0 0.0
  %7996 = vmatpush1.msra.mxu0 0.0
  %7997 = vmatprep.subr.mxu0 0.0
  %7998 = vmatpush1.msra.mxu0 0.0
  %7999 = vmatprep.subr.mxu0 0.0
  %8000 = vmatpush1.msra.mxu0 0.0
  %8001 = vmatprep.subr.mxu0 0.0
  %8002 = vmatpush1.msra.mxu0 0.0
  %8003 = vmatprep.subr.mxu0 0.0
  %8004 = vmatpush1.msra.mxu0 0.0
  %8005 = vmatprep.subr.mxu0 0.0
  %8006 = vmatpush1.msra.mxu0 0.0
  %8007 = vmatprep.mubr.f32.mxu0 0.0
  %8008 = vmatmul.mubr.f32.gmra.mrb[0].mxu0 %v4213
  %v8009 = vpop.f32.mrb[0].mxu0
  %v8010 = vadd.f32 0.0, %v8009
  %v8011 = vpop.f32.mrb[0].mxu0
  %8012 = vdwg.mxu0
  %8013 = vmatprep.subr.mxu0 0.0
  %8014 = vmatpush1.msra.mxu0 %v2309
  %8015 = vmatprep.subr.mxu0 0.0
  %8016 = vmatpush1.msra.mxu0 0.0
  %8017 = vmatprep.subr.mxu0 0.0
  %8018 = vmatpush1.msra.mxu0 0.0
  %8019 = vmatprep.subr.mxu0 0.0
  %8020 = vmatpush1.msra.mxu0 0.0
  %8021 = vmatprep.subr.mxu0 0.0
  %8022 = vmatpush1.msra.mxu0 0.0
  %8023 = vmatprep.subr.mxu0 0.0
  %8024 = vmatpush1.msra.mxu0 0.0
  %8025 = vmatprep.subr.mxu0 0.0
  %8026 = vmatpush1.msra.mxu0 0.0
  %8027 = vmatprep.subr.mxu0 0.0
  %8028 = vmatpush1.msra.mxu0 0.0
  %8029 = vmatprep.subr.mxu0 0.0
  %8030 = vmatpush1.msra.mxu0 0.0
  %8031 = vmatprep.subr.mxu0 0.0
  %8032 = vmatpush1.msra.mxu0 0.0
  %8033 = vmatprep.subr.mxu0 0.0
  %8034 = vmatpush1.msra.mxu0 0.0
  %8035 = vmatprep.subr.mxu0 0.0
  %8036 = vmatpush1.msra.mxu0 0.0
  %8037 = vmatprep.subr.mxu0 0.0
  %8038 = vmatpush1.msra.mxu0 0.0
  %8039 = vmatprep.subr.mxu0 0.0
  %8040 = vmatpush1.msra.mxu0 0.0
  %8041 = vmatprep.subr.mxu0 0.0
  %8042 = vmatpush1.msra.mxu0 0.0
  %8043 = vmatprep.subr.mxu0 0.0
  %8044 = vmatpush1.msra.mxu0 0.0
  %8045 = vmatprep.subr.mxu0 0.0
  %8046 = vmatpush1.msra.mxu0 0.0
  %8047 = vmatprep.subr.mxu0 0.0
  %8048 = vmatpush1.msra.mxu0 0.0
  %8049 = vmatprep.subr.mxu0 0.0
  %8050 = vmatpush1.msra.mxu0 0.0
  %8051 = vmatprep.subr.mxu0 0.0
  %8052 = vmatpush1.msra.mxu0 0.0
  %8053 = vmatprep.subr.mxu0 0.0
  %8054 = vmatpush1.msra.mxu0 0.0
  %8055 = vmatprep.subr.mxu0 0.0
  %8056 = vmatpush1.msra.mxu0 0.0
  %8057 = vmatprep.subr.mxu0 0.0
  %8058 = vmatpush1.msra.mxu0 0.0
  %8059 = vmatprep.subr.mxu0 0.0
  %8060 = vmatpush1.msra.mxu0 0.0
  %8061 = vmatprep.subr.mxu0 0.0
  %8062 = vmatpush1.msra.mxu0 0.0
  %8063 = vmatprep.subr.mxu0 0.0
  %8064 = vmatpush1.msra.mxu0 0.0
  %8065 = vmatprep.subr.mxu0 0.0
  %8066 = vmatpush1.msra.mxu0 0.0
  %8067 = vmatprep.subr.mxu0 0.0
  %8068 = vmatpush1.msra.mxu0 0.0
  %8069 = vmatprep.subr.mxu0 0.0
  %8070 = vmatpush1.msra.mxu0 0.0
  %8071 = vmatprep.subr.mxu0 0.0
  %8072 = vmatpush1.msra.mxu0 0.0
  %8073 = vmatprep.subr.mxu0 0.0
  %8074 = vmatpush1.msra.mxu0 0.0
  %8075 = vmatprep.subr.mxu0 0.0
  %8076 = vmatpush1.msra.mxu0 0.0
  %8077 = vmatprep.mubr.f32.mxu0 0.0
  %8078 = vmatmul.mubr.f32.gmra.mrb[0].mxu0 %v4138
  %v8079 = vpop.f32.mrb[0].mxu0
  %v8080 = vadd.f32 %v8010, %v8079
  %v8081 = vpop.f32.mrb[0].mxu0
  %8082 = vdwg.mxu0
  %8083 = vmatprep.subr.mxu0 0.0
  %8084 = vmatpush1.msra.mxu0 %v2685
  %8085 = vmatprep.subr.mxu0 0.0
  %8086 = vmatpush1.msra.mxu0 0.0
  %8087 = vmatprep.subr.mxu0 0.0
  %8088 = vmatpush1.msra.mxu0 0.0
  %8089 = vmatprep.subr.mxu0 0.0
  %8090 = vmatpush1.msra.mxu0 0.0
  %8091 = vmatprep.subr.mxu0 0.0
  %8092 = vmatpush1.msra.mxu0 0.0
  %8093 = vmatprep.subr.mxu0 0.0
  %8094 = vmatpush1.msra.mxu0 0.0
  %8095 = vmatprep.subr.mxu0 0.0
  %8096 = vmatpush1.msra.mxu0 0.0
  %8097 = vmatprep.subr.mxu0 0.0
  %8098 = vmatpush1.msra.mxu0 0.0
  %8099 = vmatprep.subr.mxu0 0.0
  %8100 = vmatpush1.msra.mxu0 0.0
  %8101 = vmatprep.subr.mxu0 0.0
  %8102 = vmatpush1.msra.mxu0 0.0
  %8103 = vmatprep.subr.mxu0 0.0
  %8104 = vmatpush1.msra.mxu0 0.0
  %8105 = vmatprep.subr.mxu0 0.0
  %8106 = vmatpush1.msra.mxu0 0.0
  %8107 = vmatprep.subr.mxu0 0.0
  %8108 = vmatpush1.msra.mxu0 0.0
  %8109 = vmatprep.subr.mxu0 0.0
  %8110 = vmatpush1.msra.mxu0 0.0
  %8111 = vmatprep.subr.mxu0 0.0
  %8112 = vmatpush1.msra.mxu0 0.0
  %8113 = vmatprep.subr.mxu0 0.0
  %8114 = vmatpush1.msra.mxu0 0.0
  %8115 = vmatprep.subr.mxu0 0.0
  %8116 = vmatpush1.msra.mxu0 0.0
  %8117 = vmatprep.subr.mxu0 0.0
  %8118 = vmatpush1.msra.mxu0 0.0
  %8119 = vmatprep.subr.mxu0 0.0
  %8120 = vmatpush1.msra.mxu0 0.0
  %8121 = vmatprep.subr.mxu0 0.0
  %8122 = vmatpush1.msra.mxu0 0.0
  %8123 = vmatprep.subr.mxu0 0.0
  %8124 = vmatpush1.msra.mxu0 0.0
  %8125 = vmatprep.subr.mxu0 0.0
  %8126 = vmatpush1.msra.mxu0 0.0
  %8127 = vmatprep.subr.mxu0 0.0
  %8128 = vmatpush1.msra.mxu0 0.0
  %8129 = vmatprep.subr.mxu0 0.0
  %8130 = vmatpush1.msra.mxu0 0.0
  %8131 = vmatprep.subr.mxu0 0.0
  %8132 = vmatpush1.msra.mxu0 0.0
  %8133 = vmatprep.subr.mxu0 0.0
  %8134 = vmatpush1.msra.mxu0 0.0
  %8135 = vmatprep.subr.mxu0 0.0
  %8136 = vmatpush1.msra.mxu0 0.0
  %8137 = vmatprep.subr.mxu0 0.0
  %8138 = vmatpush1.msra.mxu0 0.0
  %8139 = vmatprep.subr.mxu0 0.0
  %8140 = vmatpush1.msra.mxu0 0.0
  %8141 = vmatprep.subr.mxu0 0.0
  %8142 = vmatpush1.msra.mxu0 0.0
  %8143 = vmatprep.subr.mxu0 0.0
  %8144 = vmatpush1.msra.mxu0 0.0
  %8145 = vmatprep.subr.mxu0 0.0
  %8146 = vmatpush1.msra.mxu0 0.0
  %8147 = vmatprep.mubr.f32.mxu0 0.0
  %8148 = vmatmul.mubr.f32.gmra.mrb[0].mxu0 %v4361
  %v8149 = vpop.f32.mrb[0].mxu0
  %v8150 = vadd.f32 0.0, %v8149
  %v8151 = vpop.f32.mrb[0].mxu0
  %8152 = vdwg.mxu0
  %v8154 = vsel %vm198, %v8150, 0
  %8156 = vmatprep.subr.mxu0 0.0
  %8157 = vmatpush1.msra.mxu0 %v1559
  %8158 = vmatprep.subr.mxu0 0.0
  %8159 = vmatpush1.msra.mxu0 %v1560
  %8160 = vmatprep.subr.mxu0 0.0
  %8161 = vmatpush1.msra.mxu0 %v1561
  %8162 = vmatprep.subr.mxu0 0.0
  %8163 = vmatpush1.msra.mxu0 %v1562
  %8164 = vmatprep.subr.mxu0 0.0
  %8165 = vmatpush1.msra.mxu0 0.0
  %8166 = vmatprep.subr.mxu0 0.0
  %8167 = vmatpush1.msra.mxu0 0.0
  %8168 = vmatprep.subr.mxu0 0.0
  %8169 = vmatpush1.msra.mxu0 0.0
  %8170 = vmatprep.subr.mxu0 0.0
  %8171 = vmatpush1.msra.mxu0 0.0
  %8172 = vmatprep.subr.mxu0 0.0
  %8173 = vmatpush1.msra.mxu0 0.0
  %8174 = vmatprep.subr.mxu0 0.0
  %8175 = vmatpush1.msra.mxu0 0.0
  %8176 = vmatprep.subr.mxu0 0.0
  %8177 = vmatpush1.msra.mxu0 0.0
  %8178 = vmatprep.subr.mxu0 0.0
  %8179 = vmatpush1.msra.mxu0 0.0
  %8180 = vmatprep.subr.mxu0 0.0
  %8181 = vmatpush1.msra.mxu0 0.0
  %8182 = vmatprep.subr.mxu0 0.0
  %8183 = vmatpush1.msra.mxu0 0.0
  %8184 = vmatprep.subr.mxu0 0.0
  %8185 = vmatpush1.msra.mxu0 0.0
  %8186 = vmatprep.subr.mxu0 0.0
  %8187 = vmatpush1.msra.mxu0 0.0
  %8188 = vmatprep.subr.mxu0 0.0
  %8189 = vmatpush1.msra.mxu0 0.0
  %8190 = vmatprep.subr.mxu0 0.0
  %8191 = vmatpush1.msra.mxu0 0.0
  %8192 = vmatprep.subr.mxu0 0.0
  %8193 = vmatpush1.msra.mxu0 0.0
  %8194 = vmatprep.subr.mxu0 0.0
  %8195 = vmatpush1.msra.mxu0 0.0
  %8196 = vmatprep.subr.mxu0 0.0
  %8197 = vmatpush1.msra.mxu0 0.0
  %8198 = vmatprep.subr.mxu0 0.0
  %8199 = vmatpush1.msra.mxu0 0.0
  %8200 = vmatprep.subr.mxu0 0.0
  %8201 = vmatpush1.msra.mxu0 0.0
  %8202 = vmatprep.subr.mxu0 0.0
  %8203 = vmatpush1.msra.mxu0 0.0
  %8204 = vmatprep.subr.mxu0 0.0
  %8205 = vmatpush1.msra.mxu0 0.0
  %8206 = vmatprep.subr.mxu0 0.0
  %8207 = vmatpush1.msra.mxu0 0.0
  %8208 = vmatprep.subr.mxu0 0.0
  %8209 = vmatpush1.msra.mxu0 0.0
  %8210 = vmatprep.subr.mxu0 0.0
  %8211 = vmatpush1.msra.mxu0 0.0
  %8212 = vmatprep.subr.mxu0 0.0
  %8213 = vmatpush1.msra.mxu0 0.0
  %8214 = vmatprep.subr.mxu0 0.0
  %8215 = vmatpush1.msra.mxu0 0.0
  %8216 = vmatprep.subr.mxu0 0.0
  %8217 = vmatpush1.msra.mxu0 0.0
  %8218 = vmatprep.subr.mxu0 0.0
  %8219 = vmatpush1.msra.mxu0 0.0
  %8220 = vmatprep.mubr.f32.mxu0 0.0
  %8221 = vmatmul.mubr.f32.gmra.mrb[0].mxu0 %v8154
  %v8222 = vpop.f32.mrb[0].mxu0
  %v8223 = vadd.f32 0.0, %v8222
  %v8224 = vpop.f32.mrb[0].mxu0
  %8225 = vdwg.mxu0
  %v8226 = vadd.f32 %v8080, %v8223
  %8227 = vmatprep.subr.mxu0 0.0
  %8228 = vmatpush1.msra.mxu0 %v2533
  %8229 = vmatprep.subr.mxu0 0.0
  %8230 = vmatpush1.msra.mxu0 0.0
  %8231 = vmatprep.subr.mxu0 0.0
  %8232 = vmatpush1.msra.mxu0 0.0
  %8233 = vmatprep.subr.mxu0 0.0
  %8234 = vmatpush1.msra.mxu0 0.0
  %8235 = vmatprep.subr.mxu0 0.0
  %8236 = vmatpush1.msra.mxu0 0.0
  %8237 = vmatprep.subr.mxu0 0.0
  %8238 = vmatpush1.msra.mxu0 0.0
  %8239 = vmatprep.subr.mxu0 0.0
  %8240 = vmatpush1.msra.mxu0 0.0
  %8241 = vmatprep.subr.mxu0 0.0
  %8242 = vmatpush1.msra.mxu0 0.0
  %8243 = vmatprep.subr.mxu0 0.0
  %8244 = vmatpush1.msra.mxu0 0.0
  %8245 = vmatprep.subr.mxu0 0.0
  %8246 = vmatpush1.msra.mxu0 0.0
  %8247 = vmatprep.subr.mxu0 0.0
  %8248 = vmatpush1.msra.mxu0 0.0
  %8249 = vmatprep.subr.mxu0 0.0
  %8250 = vmatpush1.msra.mxu0 0.0
  %8251 = vmatprep.subr.mxu0 0.0
  %8252 = vmatpush1.msra.mxu0 0.0
  %8253 = vmatprep.subr.mxu0 0.0
  %8254 = vmatpush1.msra.mxu0 0.0
  %8255 = vmatprep.subr.mxu0 0.0
  %8256 = vmatpush1.msra.mxu0 0.0
  %8257 = vmatprep.subr.mxu0 0.0
  %8258 = vmatpush1.msra.mxu0 0.0
  %8259 = vmatprep.subr.mxu0 0.0
  %8260 = vmatpush1.msra.mxu0 0.0
  %8261 = vmatprep.subr.mxu0 0.0
  %8262 = vmatpush1.msra.mxu0 0.0
  %8263 = vmatprep.subr.mxu0 0.0
  %8264 = vmatpush1.msra.mxu0 0.0
  %8265 = vmatprep.subr.mxu0 0.0
  %8266 = vmatpush1.msra.mxu0 0.0
  %8267 = vmatprep.subr.mxu0 0.0
  %8268 = vmatpush1.msra.mxu0 0.0
  %8269 = vmatprep.subr.mxu0 0.0
  %8270 = vmatpush1.msra.mxu0 0.0
  %8271 = vmatprep.subr.mxu0 0.0
  %8272 = vmatpush1.msra.mxu0 0.0
  %8273 = vmatprep.subr.mxu0 0.0
  %8274 = vmatpush1.msra.mxu0 0.0
  %8275 = vmatprep.subr.mxu0 0.0
  %8276 = vmatpush1.msra.mxu0 0.0
  %8277 = vmatprep.subr.mxu0 0.0
  %8278 = vmatpush1.msra.mxu0 0.0
  %8279 = vmatprep.subr.mxu0 0.0
  %8280 = vmatpush1.msra.mxu0 0.0
  %8281 = vmatprep.subr.mxu0 0.0
  %8282 = vmatpush1.msra.mxu0 0.0
  %8283 = vmatprep.subr.mxu0 0.0
  %8284 = vmatpush1.msra.mxu0 0.0
  %8285 = vmatprep.subr.mxu0 0.0
  %8286 = vmatpush1.msra.mxu0 0.0
  %8287 = vmatprep.subr.mxu0 0.0
  %8288 = vmatpush1.msra.mxu0 0.0
  %8289 = vmatprep.subr.mxu0 0.0
  %8290 = vmatpush1.msra.mxu0 0.0
  %8291 = vmatprep.mubr.f32.mxu0 0.0
  %8292 = vmatmul.mubr.f32.gmra.mrb[0].mxu0 %v4510
  %v8293 = vpop.f32.mrb[0].mxu0
  %v8294 = vadd.f32 0.0, %v8293
  %v8295 = vpop.f32.mrb[0].mxu0
  %8296 = vdwg.mxu0
  %v8298 = vsel %vm198, %v8294, 0
  %8300 = vmatprep.subr.mxu0 0.0
  %8301 = vmatpush1.msra.mxu0 %v1559
  %8302 = vmatprep.subr.mxu0 0.0
  %8303 = vmatpush1.msra.mxu0 %v1560
  %8304 = vmatprep.subr.mxu0 0.0
  %8305 = vmatpush1.msra.mxu0 %v1561
  %8306 = vmatprep.subr.mxu0 0.0
  %8307 = vmatpush1.msra.mxu0 %v1562
  %8308 = vmatprep.subr.mxu0 0.0
  %8309 = vmatpush1.msra.mxu0 0.0
  %8310 = vmatprep.subr.mxu0 0.0
  %8311 = vmatpush1.msra.mxu0 0.0
  %8312 = vmatprep.subr.mxu0 0.0
  %8313 = vmatpush1.msra.mxu0 0.0
  %8314 = vmatprep.subr.mxu0 0.0
  %8315 = vmatpush1.msra.mxu0 0.0
  %8316 = vmatprep.subr.mxu0 0.0
  %8317 = vmatpush1.msra.mxu0 0.0
  %8318 = vmatprep.subr.mxu0 0.0
  %8319 = vmatpush1.msra.mxu0 0.0
  %8320 = vmatprep.subr.mxu0 0.0
  %8321 = vmatpush1.msra.mxu0 0.0
  %8322 = vmatprep.subr.mxu0 0.0
  %8323 = vmatpush1.msra.mxu0 0.0
  %8324 = vmatprep.subr.mxu0 0.0
  %8325 = vmatpush1.msra.mxu0 0.0
  %8326 = vmatprep.subr.mxu0 0.0
  %8327 = vmatpush1.msra.mxu0 0.0
  %8328 = vmatprep.subr.mxu0 0.0
  %8329 = vmatpush1.msra.mxu0 0.0
  %8330 = vmatprep.subr.mxu0 0.0
  %8331 = vmatpush1.msra.mxu0 0.0
  %8332 = vmatprep.subr.mxu0 0.0
  %8333 = vmatpush1.msra.mxu0 0.0
  %8334 = vmatprep.subr.mxu0 0.0
  %8335 = vmatpush1.msra.mxu0 0.0
  %8336 = vmatprep.subr.mxu0 0.0
  %8337 = vmatpush1.msra.mxu0 0.0
  %8338 = vmatprep.subr.mxu0 0.0
  %8339 = vmatpush1.msra.mxu0 0.0
  %8340 = vmatprep.subr.mxu0 0.0
  %8341 = vmatpush1.msra.mxu0 0.0
  %8342 = vmatprep.subr.mxu0 0.0
  %8343 = vmatpush1.msra.mxu0 0.0
  %8344 = vmatprep.subr.mxu0 0.0
  %8345 = vmatpush1.msra.mxu0 0.0
  %8346 = vmatprep.subr.mxu0 0.0
  %8347 = vmatpush1.msra.mxu0 0.0
  %8348 = vmatprep.subr.mxu0 0.0
  %8349 = vmatpush1.msra.mxu0 0.0
  %8350 = vmatprep.subr.mxu0 0.0
  %8351 = vmatpush1.msra.mxu0 0.0
  %8352 = vmatprep.subr.mxu0 0.0
  %8353 = vmatpush1.msra.mxu0 0.0
  %8354 = vmatprep.subr.mxu0 0.0
  %8355 = vmatpush1.msra.mxu0 0.0
  %8356 = vmatprep.subr.mxu0 0.0
  %8357 = vmatpush1.msra.mxu0 0.0
  %8358 = vmatprep.subr.mxu0 0.0
  %8359 = vmatpush1.msra.mxu0 0.0
  %8360 = vmatprep.subr.mxu0 0.0
  %8361 = vmatpush1.msra.mxu0 0.0
  %8362 = vmatprep.subr.mxu0 0.0
  %8363 = vmatpush1.msra.mxu0 0.0
  %8364 = vmatprep.mubr.f32.mxu0 0.0
  %8365 = vmatmul.mubr.f32.gmra.mrb[0].mxu0 %v8298
  %v8366 = vpop.f32.mrb[0].mxu0
  %v8367 = vadd.f32 0.0, %v8366
  %v8368 = vpop.f32.mrb[0].mxu0
  %8369 = vdwg.mxu0
  %v8370 = vadd.f32 %v8226, %v8367
  %8371 = vmatprep.subr.mxu0 0.0
  %8372 = vmatpush1.msra.mxu0 %v2309
  %8373 = vmatprep.subr.mxu0 0.0
  %8374 = vmatpush1.msra.mxu0 0.0
  %8375 = vmatprep.subr.mxu0 0.0
  %8376 = vmatpush1.msra.mxu0 0.0
  %8377 = vmatprep.subr.mxu0 0.0
  %8378 = vmatpush1.msra.mxu0 0.0
  %8379 = vmatprep.subr.mxu0 0.0
  %8380 = vmatpush1.msra.mxu0 0.0
  %8381 = vmatprep.subr.mxu0 0.0
  %8382 = vmatpush1.msra.mxu0 0.0
  %8383 = vmatprep.subr.mxu0 0.0
  %8384 = vmatpush1.msra.mxu0 0.0
  %8385 = vmatprep.subr.mxu0 0.0
  %8386 = vmatpush1.msra.mxu0 0.0
  %8387 = vmatprep.subr.mxu0 0.0
  %8388 = vmatpush1.msra.mxu0 0.0
  %8389 = vmatprep.subr.mxu0 0.0
  %8390 = vmatpush1.msra.mxu0 0.0
  %8391 = vmatprep.subr.mxu0 0.0
  %8392 = vmatpush1.msra.mxu0 0.0
  %8393 = vmatprep.subr.mxu0 0.0
  %8394 = vmatpush1.msra.mxu0 0.0
  %8395 = vmatprep.subr.mxu0 0.0
  %8396 = vmatpush1.msra.mxu0 0.0
  %8397 = vmatprep.subr.mxu0 0.0
  %8398 = vmatpush1.msra.mxu0 0.0
  %8399 = vmatprep.subr.mxu0 0.0
  %8400 = vmatpush1.msra.mxu0 0.0
  %8401 = vmatprep.subr.mxu0 0.0
  %8402 = vmatpush1.msra.mxu0 0.0
  %8403 = vmatprep.subr.mxu0 0.0
  %8404 = vmatpush1.msra.mxu0 0.0
  %8405 = vmatprep.subr.mxu0 0.0
  %8406 = vmatpush1.msra.mxu0 0.0
  %8407 = vmatprep.subr.mxu0 0.0
  %8408 = vmatpush1.msra.mxu0 0.0
  %8409 = vmatprep.subr.mxu0 0.0
  %8410 = vmatpush1.msra.mxu0 0.0
  %8411 = vmatprep.subr.mxu0 0.0
  %8412 = vmatpush1.msra.mxu0 0.0
  %8413 = vmatprep.subr.mxu0 0.0
  %8414 = vmatpush1.msra.mxu0 0.0
  %8415 = vmatprep.subr.mxu0 0.0
  %8416 = vmatpush1.msra.mxu0 0.0
  %8417 = vmatprep.subr.mxu0 0.0
  %8418 = vmatpush1.msra.mxu0 0.0
  %8419 = vmatprep.subr.mxu0 0.0
  %8420 = vmatpush1.msra.mxu0 0.0
  %8421 = vmatprep.subr.mxu0 0.0
  %8422 = vmatpush1.msra.mxu0 0.0
  %8423 = vmatprep.subr.mxu0 0.0
  %8424 = vmatpush1.msra.mxu0 0.0
  %8425 = vmatprep.subr.mxu0 0.0
  %8426 = vmatpush1.msra.mxu0 0.0
  %8427 = vmatprep.subr.mxu0 0.0
  %8428 = vmatpush1.msra.mxu0 0.0
  %8429 = vmatprep.subr.mxu0 0.0
  %8430 = vmatpush1.msra.mxu0 0.0
  %8431 = vmatprep.subr.mxu0 0.0
  %8432 = vmatpush1.msra.mxu0 0.0
  %8433 = vmatprep.subr.mxu0 0.0
  %8434 = vmatpush1.msra.mxu0 0.0
  %8435 = vmatprep.mubr.f32.mxu0 0.0
  %8436 = vmatmul.mubr.f32.gmra.mrb[0].mxu0 %v4588
  %v8437 = vpop.f32.mrb[0].mxu0
  %v8438 = vadd.f32 0.0, %v8437
  %v8439 = vpop.f32.mrb[0].mxu0
  %8440 = vdwg.mxu0
  %v8442 = vsel %vm198, %v8438, 0
  %8444 = vmatprep.subr.mxu0 0.0
  %8445 = vmatpush1.msra.mxu0 %v1028
  %8446 = vmatprep.subr.mxu0 0.0
  %8447 = vmatpush1.msra.mxu0 %v1029
  %8448 = vmatprep.subr.mxu0 0.0
  %8449 = vmatpush1.msra.mxu0 %v1030
  %8450 = vmatprep.subr.mxu0 0.0
  %8451 = vmatpush1.msra.mxu0 %v1031
  %8452 = vmatprep.subr.mxu0 0.0
  %8453 = vmatpush1.msra.mxu0 0.0
  %8454 = vmatprep.subr.mxu0 0.0
  %8455 = vmatpush1.msra.mxu0 0.0
  %8456 = vmatprep.subr.mxu0 0.0
  %8457 = vmatpush1.msra.mxu0 0.0
  %8458 = vmatprep.subr.mxu0 0.0
  %8459 = vmatpush1.msra.mxu0 0.0
  %8460 = vmatprep.subr.mxu0 0.0
  %8461 = vmatpush1.msra.mxu0 0.0
  %8462 = vmatprep.subr.mxu0 0.0
  %8463 = vmatpush1.msra.mxu0 0.0
  %8464 = vmatprep.subr.mxu0 0.0
  %8465 = vmatpush1.msra.mxu0 0.0
  %8466 = vmatprep.subr.mxu0 0.0
  %8467 = vmatpush1.msra.mxu0 0.0
  %8468 = vmatprep.subr.mxu0 0.0
  %8469 = vmatpush1.msra.mxu0 0.0
  %8470 = vmatprep.subr.mxu0 0.0
  %8471 = vmatpush1.msra.mxu0 0.0
  %8472 = vmatprep.subr.mxu0 0.0
  %8473 = vmatpush1.msra.mxu0 0.0
  %8474 = vmatprep.subr.mxu0 0.0
  %8475 = vmatpush1.msra.mxu0 0.0
  %8476 = vmatprep.subr.mxu0 0.0
  %8477 = vmatpush1.msra.mxu0 0.0
  %8478 = vmatprep.subr.mxu0 0.0
  %8479 = vmatpush1.msra.mxu0 0.0
  %8480 = vmatprep.subr.mxu0 0.0
  %8481 = vmatpush1.msra.mxu0 0.0
  %8482 = vmatprep.subr.mxu0 0.0
  %8483 = vmatpush1.msra.mxu0 0.0
  %8484 = vmatprep.subr.mxu0 0.0
  %8485 = vmatpush1.msra.mxu0 0.0
  %8486 = vmatprep.subr.mxu0 0.0
  %8487 = vmatpush1.msra.mxu0 0.0
  %8488 = vmatprep.subr.mxu0 0.0
  %8489 = vmatpush1.msra.mxu0 0.0
  %8490 = vmatprep.subr.mxu0 0.0
  %8491 = vmatpush1.msra.mxu0 0.0
  %8492 = vmatprep.subr.mxu0 0.0
  %8493 = vmatpush1.msra.mxu0 0.0
  %8494 = vmatprep.subr.mxu0 0.0
  %8495 = vmatpush1.msra.mxu0 0.0
  %8496 = vmatprep.subr.mxu0 0.0
  %8497 = vmatpush1.msra.mxu0 0.0
  %8498 = vmatprep.subr.mxu0 0.0
  %8499 = vmatpush1.msra.mxu0 0.0
  %8500 = vmatprep.subr.mxu0 0.0
  %8501 = vmatpush1.msra.mxu0 0.0
  %8502 = vmatprep.subr.mxu0 0.0
  %8503 = vmatpush1.msra.mxu0 0.0
  %8504 = vmatprep.subr.mxu0 0.0
  %8505 = vmatpush1.msra.mxu0 0.0
  %8506 = vmatprep.subr.mxu0 0.0
  %8507 = vmatpush1.msra.mxu0 0.0
  %8508 = vmatprep.mubr.f32.mxu0 0.0
  %8509 = vmatmul.mubr.f32.gmra.mrb[0].mxu0 %v8442
  %v8510 = vpop.f32.mrb[0].mxu0
  %v8511 = vadd.f32 0.0, %v8510
  %v8512 = vpop.f32.mrb[0].mxu0
  %8513 = vdwg.mxu0
  %8514 = vmatprep.subr.mxu0 0.0
  %8515 = vmatpush1.msra.mxu0 %v2231
  %8516 = vmatprep.subr.mxu0 0.0
  %8517 = vmatpush1.msra.mxu0 0.0
  %8518 = vmatprep.subr.mxu0 0.0
  %8519 = vmatpush1.msra.mxu0 0.0
  %8520 = vmatprep.subr.mxu0 0.0
  %8521 = vmatpush1.msra.mxu0 0.0
  %8522 = vmatprep.subr.mxu0 0.0
  %8523 = vmatpush1.msra.mxu0 0.0
  %8524 = vmatprep.subr.mxu0 0.0
  %8525 = vmatpush1.msra.mxu0 0.0
  %8526 = vmatprep.subr.mxu0 0.0
  %8527 = vmatpush1.msra.mxu0 0.0
  %8528 = vmatprep.subr.mxu0 0.0
  %8529 = vmatpush1.msra.mxu0 0.0
  %8530 = vmatprep.subr.mxu0 0.0
  %8531 = vmatpush1.msra.mxu0 0.0
  %8532 = vmatprep.subr.mxu0 0.0
  %8533 = vmatpush1.msra.mxu0 0.0
  %8534 = vmatprep.subr.mxu0 0.0
  %8535 = vmatpush1.msra.mxu0 0.0
  %8536 = vmatprep.subr.mxu0 0.0
  %8537 = vmatpush1.msra.mxu0 0.0
  %8538 = vmatprep.subr.mxu0 0.0
  %8539 = vmatpush1.msra.mxu0 0.0
  %8540 = vmatprep.subr.mxu0 0.0
  %8541 = vmatpush1.msra.mxu0 0.0
  %8542 = vmatprep.subr.mxu0 0.0
  %8543 = vmatpush1.msra.mxu0 0.0
  %8544 = vmatprep.subr.mxu0 0.0
  %8545 = vmatpush1.msra.mxu0 0.0
  %8546 = vmatprep.subr.mxu0 0.0
  %8547 = vmatpush1.msra.mxu0 0.0
  %8548 = vmatprep.subr.mxu0 0.0
  %8549 = vmatpush1.msra.mxu0 0.0
  %8550 = vmatprep.subr.mxu0 0.0
  %8551 = vmatpush1.msra.mxu0 0.0
  %8552 = vmatprep.subr.mxu0 0.0
  %8553 = vmatpush1.msra.mxu0 0.0
  %8554 = vmatprep.subr.mxu0 0.0
  %8555 = vmatpush1.msra.mxu0 0.0
  %8556 = vmatprep.subr.mxu0 0.0
  %8557 = vmatpush1.msra.mxu0 0.0
  %8558 = vmatprep.subr.mxu0 0.0
  %8559 = vmatpush1.msra.mxu0 0.0
  %8560 = vmatprep.subr.mxu0 0.0
  %8561 = vmatpush1.msra.mxu0 0.0
  %8562 = vmatprep.subr.mxu0 0.0
  %8563 = vmatpush1.msra.mxu0 0.0
  %8564 = vmatprep.subr.mxu0 0.0
  %8565 = vmatpush1.msra.mxu0 0.0
  %8566 = vmatprep.subr.mxu0 0.0
  %8567 = vmatpush1.msra.mxu0 0.0
  %8568 = vmatprep.subr.mxu0 0.0
  %8569 = vmatpush1.msra.mxu0 0.0
  %8570 = vmatprep.subr.mxu0 0.0
  %8571 = vmatpush1.msra.mxu0 0.0
  %8572 = vmatprep.subr.mxu0 0.0
  %8573 = vmatpush1.msra.mxu0 0.0
  %8574 = vmatprep.subr.mxu0 0.0
  %8575 = vmatpush1.msra.mxu0 0.0
  %8576 = vmatprep.subr.mxu0 0.0
  %8577 = vmatpush1.msra.mxu0 0.0
  %8578 = vmatprep.mubr.f32.mxu0 0.0
  %8579 = vmatmul.mubr.f32.gmra.mrb[0].mxu0 %v4661
  %v8580 = vpop.f32.mrb[0].mxu0
  %v8581 = vadd.f32 %v8511, %v8580
  %v8582 = vpop.f32.mrb[0].mxu0
  %8583 = vdwg.mxu0
  %8584 = vmatprep.subr.mxu0 0.0
  %8585 = vmatpush1.msra.mxu0 %v2533
  %8586 = vmatprep.subr.mxu0 0.0
  %8587 = vmatpush1.msra.mxu0 0.0
  %8588 = vmatprep.subr.mxu0 0.0
  %8589 = vmatpush1.msra.mxu0 0.0
  %8590 = vmatprep.subr.mxu0 0.0
  %8591 = vmatpush1.msra.mxu0 0.0
  %8592 = vmatprep.subr.mxu0 0.0
  %8593 = vmatpush1.msra.mxu0 0.0
  %8594 = vmatprep.subr.mxu0 0.0
  %8595 = vmatpush1.msra.mxu0 0.0
  %8596 = vmatprep.subr.mxu0 0.0
  %8597 = vmatpush1.msra.mxu0 0.0
  %8598 = vmatprep.subr.mxu0 0.0
  %8599 = vmatpush1.msra.mxu0 0.0
  %8600 = vmatprep.subr.mxu0 0.0
  %8601 = vmatpush1.msra.mxu0 0.0
  %8602 = vmatprep.subr.mxu0 0.0
  %8603 = vmatpush1.msra.mxu0 0.0
  %8604 = vmatprep.subr.mxu0 0.0
  %8605 = vmatpush1.msra.mxu0 0.0
  %8606 = vmatprep.subr.mxu0 0.0
  %8607 = vmatpush1.msra.mxu0 0.0
  %8608 = vmatprep.subr.mxu0 0.0
  %8609 = vmatpush1.msra.mxu0 0.0
  %8610 = vmatprep.subr.mxu0 0.0
  %8611 = vmatpush1.msra.mxu0 0.0
  %8612 = vmatprep.subr.mxu0 0.0
  %8613 = vmatpush1.msra.mxu0 0.0
  %8614 = vmatprep.subr.mxu0 0.0
  %8615 = vmatpush1.msra.mxu0 0.0
  %8616 = vmatprep.subr.mxu0 0.0
  %8617 = vmatpush1.msra.mxu0 0.0
  %8618 = vmatprep.subr.mxu0 0.0
  %8619 = vmatpush1.msra.mxu0 0.0
  %8620 = vmatprep.subr.mxu0 0.0
  %8621 = vmatpush1.msra.mxu0 0.0
  %8622 = vmatprep.subr.mxu0 0.0
  %8623 = vmatpush1.msra.mxu0 0.0
  %8624 = vmatprep.subr.mxu0 0.0
  %8625 = vmatpush1.msra.mxu0 0.0
  %8626 = vmatprep.subr.mxu0 0.0
  %8627 = vmatpush1.msra.mxu0 0.0
  %8628 = vmatprep.subr.mxu0 0.0
  %8629 = vmatpush1.msra.mxu0 0.0
  %8630 = vmatprep.subr.mxu0 0.0
  %8631 = vmatpush1.msra.mxu0 0.0
  %8632 = vmatprep.subr.mxu0 0.0
  %8633 = vmatpush1.msra.mxu0 0.0
  %8634 = vmatprep.subr.mxu0 0.0
  %8635 = vmatpush1.msra.mxu0 0.0
  %8636 = vmatprep.subr.mxu0 0.0
  %8637 = vmatpush1.msra.mxu0 0.0
  %8638 = vmatprep.subr.mxu0 0.0
  %8639 = vmatpush1.msra.mxu0 0.0
  %8640 = vmatprep.subr.mxu0 0.0
  %8641 = vmatpush1.msra.mxu0 0.0
  %8642 = vmatprep.subr.mxu0 0.0
  %8643 = vmatpush1.msra.mxu0 0.0
  %8644 = vmatprep.subr.mxu0 0.0
  %8645 = vmatpush1.msra.mxu0 0.0
  %8646 = vmatprep.subr.mxu0 0.0
  %8647 = vmatpush1.msra.mxu0 0.0
  %8648 = vmatprep.mubr.f32.mxu0 0.0
  %8649 = vmatmul.mubr.f32.gmra.mrb[0].mxu0 %v4736
  %v8650 = vpop.f32.mrb[0].mxu0
  %v8651 = vadd.f32 0.0, %v8650
  %v8652 = vpop.f32.mrb[0].mxu0
  %8653 = vdwg.mxu0
  %v8655 = vsel %vm198, %v8651, 0
  %8657 = vmatprep.subr.mxu0 0.0
  %8658 = vmatpush1.msra.mxu0 %v1559
  %8659 = vmatprep.subr.mxu0 0.0
  %8660 = vmatpush1.msra.mxu0 %v1560
  %8661 = vmatprep.subr.mxu0 0.0
  %8662 = vmatpush1.msra.mxu0 %v1561
  %8663 = vmatprep.subr.mxu0 0.0
  %8664 = vmatpush1.msra.mxu0 %v1562
  %8665 = vmatprep.subr.mxu0 0.0
  %8666 = vmatpush1.msra.mxu0 0.0
  %8667 = vmatprep.subr.mxu0 0.0
  %8668 = vmatpush1.msra.mxu0 0.0
  %8669 = vmatprep.subr.mxu0 0.0
  %8670 = vmatpush1.msra.mxu0 0.0
  %8671 = vmatprep.subr.mxu0 0.0
  %8672 = vmatpush1.msra.mxu0 0.0
  %8673 = vmatprep.subr.mxu0 0.0
  %8674 = vmatpush1.msra.mxu0 0.0
  %8675 = vmatprep.subr.mxu0 0.0
  %8676 = vmatpush1.msra.mxu0 0.0
  %8677 = vmatprep.subr.mxu0 0.0
  %8678 = vmatpush1.msra.mxu0 0.0
  %8679 = vmatprep.subr.mxu0 0.0
  %8680 = vmatpush1.msra.mxu0 0.0
  %8681 = vmatprep.subr.mxu0 0.0
  %8682 = vmatpush1.msra.mxu0 0.0
  %8683 = vmatprep.subr.mxu0 0.0
  %8684 = vmatpush1.msra.mxu0 0.0
  %8685 = vmatprep.subr.mxu0 0.0
  %8686 = vmatpush1.msra.mxu0 0.0
  %8687 = vmatprep.subr.mxu0 0.0
  %8688 = vmatpush1.msra.mxu0 0.0
  %8689 = vmatprep.subr.mxu0 0.0
  %8690 = vmatpush1.msra.mxu0 0.0
  %8691 = vmatprep.subr.mxu0 0.0
  %8692 = vmatpush1.msra.mxu0 0.0
  %8693 = vmatprep.subr.mxu0 0.0
  %8694 = vmatpush1.msra.mxu0 0.0
  %8695 = vmatprep.subr.mxu0 0.0
  %8696 = vmatpush1.msra.mxu0 0.0
  %8697 = vmatprep.subr.mxu0 0.0
  %8698 = vmatpush1.msra.mxu0 0.0
  %8699 = vmatprep.subr.mxu0 0.0
  %8700 = vmatpush1.msra.mxu0 0.0
  %8701 = vmatprep.subr.mxu0 0.0
  %8702 = vmatpush1.msra.mxu0 0.0
  %8703 = vmatprep.subr.mxu0 0.0
  %8704 = vmatpush1.msra.mxu0 0.0
  %8705 = vmatprep.subr.mxu0 0.0
  %8706 = vmatpush1.msra.mxu0 0.0
  %8707 = vmatprep.subr.mxu0 0.0
  %8708 = vmatpush1.msra.mxu0 0.0
  %8709 = vmatprep.subr.mxu0 0.0
  %8710 = vmatpush1.msra.mxu0 0.0
  %8711 = vmatprep.subr.mxu0 0.0
  %8712 = vmatpush1.msra.mxu0 0.0
  %8713 = vmatprep.subr.mxu0 0.0
  %8714 = vmatpush1.msra.mxu0 0.0
  %8715 = vmatprep.subr.mxu0 0.0
  %8716 = vmatpush1.msra.mxu0 0.0
  %8717 = vmatprep.subr.mxu0 0.0
  %8718 = vmatpush1.msra.mxu0 0.0
  %8719 = vmatprep.subr.mxu0 0.0
  %8720 = vmatpush1.msra.mxu0 0.0
  %8721 = vmatprep.mubr.f32.mxu0 0.0
  %8722 = vmatmul.mubr.f32.gmra.mrb[0].mxu0 %v8655
  %v8723 = vpop.f32.mrb[0].mxu0
  %v8724 = vadd.f32 0.0, %v8723
  %v8725 = vpop.f32.mrb[0].mxu0
  %8726 = vdwg.mxu0
  %v8727 = vadd.f32 %v8581, %v8724
  %8728 = vmatprep.subr.mxu0 0.0
  %8729 = vmatpush1.msra.mxu0 %v2685
  %8730 = vmatprep.subr.mxu0 0.0
  %8731 = vmatpush1.msra.mxu0 0.0
  %8732 = vmatprep.subr.mxu0 0.0
  %8733 = vmatpush1.msra.mxu0 0.0
  %8734 = vmatprep.subr.mxu0 0.0
  %8735 = vmatpush1.msra.mxu0 0.0
  %8736 = vmatprep.subr.mxu0 0.0
  %8737 = vmatpush1.msra.mxu0 0.0
  %8738 = vmatprep.subr.mxu0 0.0
  %8739 = vmatpush1.msra.mxu0 0.0
  %8740 = vmatprep.subr.mxu0 0.0
  %8741 = vmatpush1.msra.mxu0 0.0
  %8742 = vmatprep.subr.mxu0 0.0
  %8743 = vmatpush1.msra.mxu0 0.0
  %8744 = vmatprep.subr.mxu0 0.0
  %8745 = vmatpush1.msra.mxu0 0.0
  %8746 = vmatprep.subr.mxu0 0.0
  %8747 = vmatpush1.msra.mxu0 0.0
  %8748 = vmatprep.subr.mxu0 0.0
  %8749 = vmatpush1.msra.mxu0 0.0
  %8750 = vmatprep.subr.mxu0 0.0
  %8751 = vmatpush1.msra.mxu0 0.0
  %8752 = vmatprep.subr.mxu0 0.0
  %8753 = vmatpush1.msra.mxu0 0.0
  %8754 = vmatprep.subr.mxu0 0.0
  %8755 = vmatpush1.msra.mxu0 0.0
  %8756 = vmatprep.subr.mxu0 0.0
  %8757 = vmatpush1.msra.mxu0 0.0
  %8758 = vmatprep.subr.mxu0 0.0
  %8759 = vmatpush1.msra.mxu0 0.0
  %8760 = vmatprep.subr.mxu0 0.0
  %8761 = vmatpush1.msra.mxu0 0.0
  %8762 = vmatprep.subr.mxu0 0.0
  %8763 = vmatpush1.msra.mxu0 0.0
  %8764 = vmatprep.subr.mxu0 0.0
  %8765 = vmatpush1.msra.mxu0 0.0
  %8766 = vmatprep.subr.mxu0 0.0
  %8767 = vmatpush1.msra.mxu0 0.0
  %8768 = vmatprep.subr.mxu0 0.0
  %8769 = vmatpush1.msra.mxu0 0.0
  %8770 = vmatprep.subr.mxu0 0.0
  %8771 = vmatpush1.msra.mxu0 0.0
  %8772 = vmatprep.subr.mxu0 0.0
  %8773 = vmatpush1.msra.mxu0 0.0
  %8774 = vmatprep.subr.mxu0 0.0
  %8775 = vmatpush1.msra.mxu0 0.0
  %8776 = vmatprep.subr.mxu0 0.0
  %8777 = vmatpush1.msra.mxu0 0.0
  %8778 = vmatprep.subr.mxu0 0.0
  %8779 = vmatpush1.msra.mxu0 0.0
  %8780 = vmatprep.subr.mxu0 0.0
  %8781 = vmatpush1.msra.mxu0 0.0
  %8782 = vmatprep.subr.mxu0 0.0
  %8783 = vmatpush1.msra.mxu0 0.0
  %8784 = vmatprep.subr.mxu0 0.0
  %8785 = vmatpush1.msra.mxu0 0.0
  %8786 = vmatprep.subr.mxu0 0.0
  %8787 = vmatpush1.msra.mxu0 0.0
  %8788 = vmatprep.subr.mxu0 0.0
  %8789 = vmatpush1.msra.mxu0 0.0
  %8790 = vmatprep.subr.mxu0 0.0
  %8791 = vmatpush1.msra.mxu0 0.0
  %8792 = vmatprep.mubr.f32.mxu0 0.0
  %8793 = vmatmul.mubr.f32.gmra.mrb[0].mxu0 %v4811
  %v8794 = vpop.f32.mrb[0].mxu0
  %v8795 = vadd.f32 0.0, %v8794
  %v8796 = vpop.f32.mrb[0].mxu0
  %8797 = vdwg.mxu0
  %v8799 = vsel %vm198, %v8795, 0
  %8801 = vmatprep.subr.mxu0 0.0
  %8802 = vmatpush1.msra.mxu0 %v2084
  %8803 = vmatprep.subr.mxu0 0.0
  %8804 = vmatpush1.msra.mxu0 %v2085
  %8805 = vmatprep.subr.mxu0 0.0
  %8806 = vmatpush1.msra.mxu0 %v2086
  %8807 = vmatprep.subr.mxu0 0.0
  %8808 = vmatpush1.msra.mxu0 %v2087
  %8809 = vmatprep.subr.mxu0 0.0
  %8810 = vmatpush1.msra.mxu0 0.0
  %8811 = vmatprep.subr.mxu0 0.0
  %8812 = vmatpush1.msra.mxu0 0.0
  %8813 = vmatprep.subr.mxu0 0.0
  %8814 = vmatpush1.msra.mxu0 0.0
  %8815 = vmatprep.subr.mxu0 0.0
  %8816 = vmatpush1.msra.mxu0 0.0
  %8817 = vmatprep.subr.mxu0 0.0
  %8818 = vmatpush1.msra.mxu0 0.0
  %8819 = vmatprep.subr.mxu0 0.0
  %8820 = vmatpush1.msra.mxu0 0.0
  %8821 = vmatprep.subr.mxu0 0.0
  %8822 = vmatpush1.msra.mxu0 0.0
  %8823 = vmatprep.subr.mxu0 0.0
  %8824 = vmatpush1.msra.mxu0 0.0
  %8825 = vmatprep.subr.mxu0 0.0
  %8826 = vmatpush1.msra.mxu0 0.0
  %8827 = vmatprep.subr.mxu0 0.0
  %8828 = vmatpush1.msra.mxu0 0.0
  %8829 = vmatprep.subr.mxu0 0.0
  %8830 = vmatpush1.msra.mxu0 0.0
  %8831 = vmatprep.subr.mxu0 0.0
  %8832 = vmatpush1.msra.mxu0 0.0
  %8833 = vmatprep.subr.mxu0 0.0
  %8834 = vmatpush1.msra.mxu0 0.0
  %8835 = vmatprep.subr.mxu0 0.0
  %8836 = vmatpush1.msra.mxu0 0.0
  %8837 = vmatprep.subr.mxu0 0.0
  %8838 = vmatpush1.msra.mxu0 0.0
  %8839 = vmatprep.subr.mxu0 0.0
  %8840 = vmatpush1.msra.mxu0 0.0
  %8841 = vmatprep.subr.mxu0 0.0
  %8842 = vmatpush1.msra.mxu0 0.0
  %8843 = vmatprep.subr.mxu0 0.0
  %8844 = vmatpush1.msra.mxu0 0.0
  %8845 = vmatprep.subr.mxu0 0.0
  %8846 = vmatpush1.msra.mxu0 0.0
  %8847 = vmatprep.subr.mxu0 0.0
  %8848 = vmatpush1.msra.mxu0 0.0
  %8849 = vmatprep.subr.mxu0 0.0
  %8850 = vmatpush1.msra.mxu0 0.0
  %8851 = vmatprep.subr.mxu0 0.0
  %8852 = vmatpush1.msra.mxu0 0.0
  %8853 = vmatprep.subr.mxu0 0.0
  %8854 = vmatpush1.msra.mxu0 0.0
  %8855 = vmatprep.subr.mxu0 0.0
  %8856 = vmatpush1.msra.mxu0 0.0
  %8857 = vmatprep.subr.mxu0 0.0
  %8858 = vmatpush1.msra.mxu0 0.0
  %8859 = vmatprep.subr.mxu0 0.0
  %8860 = vmatpush1.msra.mxu0 0.0
  %8861 = vmatprep.subr.mxu0 0.0
  %8862 = vmatpush1.msra.mxu0 0.0
  %8863 = vmatprep.subr.mxu0 0.0
  %8864 = vmatpush1.msra.mxu0 0.0
  %8865 = vmatprep.mubr.f32.mxu0 0.0
  %8866 = vmatmul.mubr.f32.gmra.mrb[0].mxu0 %v8799
  %v8867 = vpop.f32.mrb[0].mxu0
  %v8868 = vadd.f32 0.0, %v8867
  %v8869 = vpop.f32.mrb[0].mxu0
  %8870 = vdwg.mxu0
  %v8871 = vadd.f32 %v8727, %v8868
  %v8872 = vadd.f32 %v2757, %v3205
  %v8873 = vadd.f32 %v8872, %v3633
  %v8874 = vadd.f32 %v8873, %v4134
  %v8875 = vadd.f32 %v8874, %v4582
  %v8876 = vadd.f32 %v8875, %v4883
  %v8877 = vadd.f32 %v8876, %v5165
  %v8878 = vadd.f32 %v8877, %v5593
  %v8879 = vadd.f32 %v8878, %v6021
  %v8880 = vadd.f32 %v8879, %v6303
  %v8881 = vadd.f32 %v8880, %v6585
  %v8882 = vadd.f32 %v8881, %v7013
  %v8883 = vadd.f32 %v8882, %v7514
  %v8884 = vadd.f32 %v8883, %v7942
  %v8885 = vadd.f32 %v8884, %v8370
  %v8886 = vadd.f32 %v8885, %v8871
  %vm8887 = vcmask 254976
  %v8888 = vsel %vm8887, %v8886, 0.0
  %8889 = vadd.xlane.f32.xlu0 %v8888
  %v8890 = vpop.xlane.xlu0 %8889
  %v8891 = vmul.f32 %v8890, 0.001953125
  %v8892 = vsub.f32 %v2757, %v8891
  %v8893 = vmul.f32 %v8892, %v8892
  %v8894 = vsel %vm8887, %v8893, 0.0
  %8895 = vadd.xlane.f32.xlu0 %v8894
  %v8896 = vpop.xlane.xlu0 %8895
  %v8897 = vsub.f32 %v3205, %v8891
  %v8898 = vmul.f32 %v8897, %v8897
  %v8899 = vsel %vm8887, %v8898, 0.0
  %8900 = vadd.xlane.f32.xlu0 %v8899
  %v8901 = vpop.xlane.xlu0 %8900
  %v8902 = vadd.f32 %v8896, %v8901
  %v8903 = vsub.f32 %v3633, %v8891
  %v8904 = vmul.f32 %v8903, %v8903
  %v8905 = vsel %vm8887, %v8904, 0.0
  %8906 = vadd.xlane.f32.xlu0 %v8905
  %v8907 = vpop.xlane.xlu0 %8906
  %v8908 = vadd.f32 %v8902, %v8907
  %v8909 = vsub.f32 %v4134, %v8891
  %v8910 = vmul.f32 %v8909, %v8909
  %v8911 = vsel %vm8887, %v8910, 0.0
  %8912 = vadd.xlane.f32.xlu0 %v8911
  %v8913 = vpop.xlane.xlu0 %8912
  %v8914 = vadd.f32 %v8908, %v8913
  %v8915 = vsub.f32 %v4582, %v8891
  %v8916 = vmul.f32 %v8915, %v8915
  %v8917 = vsel %vm8887, %v8916, 0.0
  %8918 = vadd.xlane.f32.xlu0 %v8917
  %v8919 = vpop.xlane.xlu0 %8918
  %v8920 = vadd.f32 %v8914, %v8919
  %v8921 = vsub.f32 %v4883, %v8891
  %v8922 = vmul.f32 %v8921, %v8921
  %v8923 = vsel %vm8887, %v8922, 0.0
  %8924 = vadd.xlane.f32.xlu0 %v8923
  %v8925 = vpop.xlane.xlu0 %8924
  %v8926 = vadd.f32 %v8920, %v8925
  %v8927 = vsub.f32 %v5165, %v8891
  %v8928 = vmul.f32 %v8927, %v8927
  %v8929 = vsel %vm8887, %v8928, 0.0
  %8930 = vadd.xlane.f32.xlu0 %v8929
  %v8931 = vpop.xlane.xlu0 %8930
  %v8932 = vadd.f32 %v8926, %v8931
  %v8933 = vsub.f32 %v5593, %v8891
  %v8934 = vmul.f32 %v8933, %v8933
  %v8935 = vsel %vm8887, %v8934, 0.0
  %8936 = vadd.xlane.f32.xlu0 %v8935
  %v8937 = vpop.xlane.xlu0 %8936
  %v8938 = vadd.f32 %v8932, %v8937
  %v8939 = vsub.f32 %v6021, %v8891
  %v8940 = vmul.f32 %v8939, %v8939
  %v8941 = vsel %vm8887, %v8940, 0.0
  %8942 = vadd.xlane.f32.xlu0 %v8941
  %v8943 = vpop.xlane.xlu0 %8942
  %v8944 = vadd.f32 %v8938, %v8943
  %v8945 = vsub.f32 %v6303, %v8891
  %v8946 = vmul.f32 %v8945, %v8945
  %v8947 = vsel %vm8887, %v8946, 0.0
  %8948 = vadd.xlane.f32.xlu0 %v8947
  %v8949 = vpop.xlane.xlu0 %8948
  %v8950 = vadd.f32 %v8944, %v8949
  %v8951 = vsub.f32 %v6585, %v8891
  %v8952 = vmul.f32 %v8951, %v8951
  %v8953 = vsel %vm8887, %v8952, 0.0
  %8954 = vadd.xlane.f32.xlu0 %v8953
  %v8955 = vpop.xlane.xlu0 %8954
  %v8956 = vadd.f32 %v8950, %v8955
  %v8957 = vsub.f32 %v7013, %v8891
  %v8958 = vmul.f32 %v8957, %v8957
  %v8959 = vsel %vm8887, %v8958, 0.0
  %8960 = vadd.xlane.f32.xlu0 %v8959
  %v8961 = vpop.xlane.xlu0 %8960
  %v8962 = vadd.f32 %v8956, %v8961
  %v8963 = vsub.f32 %v7514, %v8891
  %v8964 = vmul.f32 %v8963, %v8963
  %v8965 = vsel %vm8887, %v8964, 0.0
  %8966 = vadd.xlane.f32.xlu0 %v8965
  %v8967 = vpop.xlane.xlu0 %8966
  %v8968 = vadd.f32 %v8962, %v8967
  %v8969 = vsub.f32 %v7942, %v8891
  %v8970 = vmul.f32 %v8969, %v8969
  %v8971 = vsel %vm8887, %v8970, 0.0
  %8972 = vadd.xlane.f32.xlu0 %v8971
  %v8973 = vpop.xlane.xlu0 %8972
  %v8974 = vadd.f32 %v8968, %v8973
  %v8975 = vsub.f32 %v8370, %v8891
  %v8976 = vmul.f32 %v8975, %v8975
  %v8977 = vsel %vm8887, %v8976, 0.0
  %8978 = vadd.xlane.f32.xlu0 %v8977
  %v8979 = vpop.xlane.xlu0 %8978
  %v8980 = vadd.f32 %v8974, %v8979
  %v8981 = vsub.f32 %v8871, %v8891
  %v8982 = vmul.f32 %v8981, %v8981
  %v8983 = vsel %vm8887, %v8982, 0.0
  %8984 = vadd.xlane.f32.xlu0 %v8983
  %v8985 = vpop.xlane.xlu0 %8984
  %v8986 = vadd.f32 %v8980, %v8985
  %v8987 = vmul.f32 %v8986, 0.001953125
  %v8988 = vld [vmem:[%s6] sm:$0x3]
  %v8989 = vadd.f32 %v8987, 1e-05
  %v8990 = vrsqrt.pop %v8989
  %v8991 = vmul.f32 %v8988, %v8990
  %v8992 = vld [vmem:[%s7] sm:$0x3]
  %v8993 = vmul.f32 %v8891, %v8991
  %v8994 = vsub.f32 %v8992, %v8993
  %8996 = vset.pattern.permute.xlu0 0
  %8997 = vperm.xlu0 %8996, %v8991
  %v8998 = vpop.permute.xlu0 %8997
  %v9000 = vmul.f32 %v2757, %v8998
  %9002 = vset.pattern.permute.xlu0 0
  %9003 = vperm.xlu0 %9002, %v8994
  %v9004 = vpop.permute.xlu0 %9003
  %v9006 = vadd.f32 %v9000, %v9004
  %v9007 = vmax.f32 %v9006, 0.0
  %v9008 = vmul.f32 %v3205, %v8998
  %v9009 = vadd.f32 %v9008, %v9004
  %v9010 = vmax.f32 %v9009, 0.0
  %v9011 = vmul.f32 %v3633, %v8998
  %v9012 = vadd.f32 %v9011, %v9004
  %v9013 = vmax.f32 %v9012, 0.0
  %v9014 = vmul.f32 %v4134, %v8998
  %v9015 = vadd.f32 %v9014, %v9004
  %v9016 = vmax.f32 %v9015, 0.0
  %v9017 = vmul.f32 %v4582, %v8998
  %v9018 = vadd.f32 %v9017, %v9004
  %v9019 = vmax.f32 %v9018, 0.0
  %v9020 = vmul.f32 %v4883, %v8998
  %v9021 = vadd.f32 %v9020, %v9004
  %v9022 = vmax.f32 %v9021, 0.0
  %v9023 = vmul.f32 %v5165, %v8998
  %v9024 = vadd.f32 %v9023, %v9004
  %v9025 = vmax.f32 %v9024, 0.0
  %v9026 = vmul.f32 %v5593, %v8998
  %v9027 = vadd.f32 %v9026, %v9004
  %v9028 = vmax.f32 %v9027, 0.0
  %v9029 = vmul.f32 %v6021, %v8998
  %v9030 = vadd.f32 %v9029, %v9004
  %v9031 = vmax.f32 %v9030, 0.0
  %v9032 = vmul.f32 %v6303, %v8998
  %v9033 = vadd.f32 %v9032, %v9004
  %v9034 = vmax.f32 %v9033, 0.0
  %v9035 = vmul.f32 %v6585, %v8998
  %v9036 = vadd.f32 %v9035, %v9004
  %v9037 = vmax.f32 %v9036, 0.0
  %v9038 = vmul.f32 %v7013, %v8998
  %v9039 = vadd.f32 %v9038, %v9004
  %v9040 = vmax.f32 %v9039, 0.0
  %v9041 = vmul.f32 %v7514, %v8998
  %v9042 = vadd.f32 %v9041, %v9004
  %v9043 = vmax.f32 %v9042, 0.0
  %v9044 = vmul.f32 %v7942, %v8998
  %v9045 = vadd.f32 %v9044, %v9004
  %v9046 = vmax.f32 %v9045, 0.0
  %v9047 = vmul.f32 %v8370, %v8998
  %v9048 = vadd.f32 %v9047, %v9004
  %v9049 = vmax.f32 %v9048, 0.0
  %v9050 = vmul.f32 %v8871, %v8998
  %v9051 = vadd.f32 %v9050, %v9004
  %v9052 = vmax.f32 %v9051, 0.0
  %v9053 = vld [vmem:[%s8] sm:$0x1]
  %v9054 = vld [vmem:[#allocation2] sm:$0x1]
  %9056 = vset.pattern.permute.xlu0 0
  %9057 = vperm.xlu0 %9056, %v9054
  %v9058 = vpop.permute.xlu0 %9057
  %v9060 = vlaneseq
  %v9061 = vshrl.u32 %v9060, 7
  %v9062 = vsub.s32 0, %v9061
  %v9063 = vrot.slane %v9058, %v9062
  %vm9064 = vcmask 15360
  %v9066 = vsel %vm9064, %v9053, 0
  %vm9068 = vcmask 1041408
  %v9070 = vsel %vm9068, %v9007, 0
  %9072 = vmatprep.subr.mxu0 0.0
  %9073 = vmatpush1.msra.mxu0 %v9070
  %9074 = vmatprep.subr.mxu0 0.0
  %9075 = vmatpush1.msra.mxu0 0.0
  %9076 = vmatprep.subr.mxu0 0.0
  %9077 = vmatpush1.msra.mxu0 0.0
  %9078 = vmatprep.subr.mxu0 0.0
  %9079 = vmatpush1.msra.mxu0 0.0
  %9080 = vmatprep.subr.mxu0 0.0
  %9081 = vmatpush1.msra.mxu0 0.0
  %9082 = vmatprep.subr.mxu0 0.0
  %9083 = vmatpush1.msra.mxu0 0.0
  %9084 = vmatprep.subr.mxu0 0.0
  %9085 = vmatpush1.msra.mxu0 0.0
  %9086 = vmatprep.subr.mxu0 0.0
  %9087 = vmatpush1.msra.mxu0 0.0
  %9088 = vmatprep.subr.mxu0 0.0
  %9089 = vmatpush1.msra.mxu0 0.0
  %9090 = vmatprep.subr.mxu0 0.0
  %9091 = vmatpush1.msra.mxu0 0.0
  %9092 = vmatprep.subr.mxu0 0.0
  %9093 = vmatpush1.msra.mxu0 0.0
  %9094 = vmatprep.subr.mxu0 0.0
  %9095 = vmatpush1.msra.mxu0 0.0
  %9096 = vmatprep.subr.mxu0 0.0
  %9097 = vmatpush1.msra.mxu0 0.0
  %9098 = vmatprep.subr.mxu0 0.0
  %9099 = vmatpush1.msra.mxu0 0.0
  %9100 = vmatprep.subr.mxu0 0.0
  %9101 = vmatpush1.msra.mxu0 0.0
  %9102 = vmatprep.subr.mxu0 0.0
  %9103 = vmatpush1.msra.mxu0 0.0
  %9104 = vmatprep.subr.mxu0 0.0
  %9105 = vmatpush1.msra.mxu0 0.0
  %9106 = vmatprep.subr.mxu0 0.0
  %9107 = vmatpush1.msra.mxu0 0.0
  %9108 = vmatprep.subr.mxu0 0.0
  %9109 = vmatpush1.msra.mxu0 0.0
  %9110 = vmatprep.subr.mxu0 0.0
  %9111 = vmatpush1.msra.mxu0 0.0
  %9112 = vmatprep.subr.mxu0 0.0
  %9113 = vmatpush1.msra.mxu0 0.0
  %9114 = vmatprep.subr.mxu0 0.0
  %9115 = vmatpush1.msra.mxu0 0.0
  %9116 = vmatprep.subr.mxu0 0.0
  %9117 = vmatpush1.msra.mxu0 0.0
  %9118 = vmatprep.subr.mxu0 0.0
  %9119 = vmatpush1.msra.mxu0 0.0
  %9120 = vmatprep.subr.mxu0 0.0
  %9121 = vmatpush1.msra.mxu0 0.0
  %9122 = vmatprep.subr.mxu0 0.0
  %9123 = vmatpush1.msra.mxu0 0.0
  %9124 = vmatprep.subr.mxu0 0.0
  %9125 = vmatpush1.msra.mxu0 0.0
  %9126 = vmatprep.subr.mxu0 0.0
  %9127 = vmatpush1.msra.mxu0 0.0
  %9128 = vmatprep.subr.mxu0 0.0
  %9129 = vmatpush1.msra.mxu0 0.0
  %9130 = vmatprep.subr.mxu0 0.0
  %9131 = vmatpush1.msra.mxu0 0.0
  %9132 = vmatprep.subr.mxu0 0.0
  %9133 = vmatpush1.msra.mxu0 0.0
  %9134 = vmatprep.subr.mxu0 0.0
  %9135 = vmatpush1.msra.mxu0 0.0
  %9136 = vmatprep.mubr.f32.mxu0 0.0
  %9137 = vmatmul.mubr.f32.gmra.mrb[0].mxu0 %v9066
  %v9138 = vpop.f32.mrb[0].mxu0
  %v9139 = vadd.f32 %v9063, %v9138
  %v9140 = vpop.f32.mrb[0].mxu0
  %9141 = vdwg.mxu0
  %vm9142 = vcmask 253952
  %9143 = vst.msk [vmem:[%s10] sm:$0x1] %vm9142, %v9139
  %v9145 = vsel %vm9068, %v9010, 0
  %9147 = vmatprep.subr.mxu0 0.0
  %9148 = vmatpush1.msra.mxu0 %v9145
  %9149 = vmatprep.subr.mxu0 0.0
  %9150 = vmatpush1.msra.mxu0 0.0
  %9151 = vmatprep.subr.mxu0 0.0
  %9152 = vmatpush1.msra.mxu0 0.0
  %9153 = vmatprep.subr.mxu0 0.0
  %9154 = vmatpush1.msra.mxu0 0.0
  %9155 = vmatprep.subr.mxu0 0.0
  %9156 = vmatpush1.msra.mxu0 0.0
  %9157 = vmatprep.subr.mxu0 0.0
  %9158 = vmatpush1.msra.mxu0 0.0
  %9159 = vmatprep.subr.mxu0 0.0
  %9160 = vmatpush1.msra.mxu0 0.0
  %9161 = vmatprep.subr.mxu0 0.0
  %9162 = vmatpush1.msra.mxu0 0.0
  %9163 = vmatprep.subr.mxu0 0.0
  %9164 = vmatpush1.msra.mxu0 0.0
  %9165 = vmatprep.subr.mxu0 0.0
  %9166 = vmatpush1.msra.mxu0 0.0
  %9167 = vmatprep.subr.mxu0 0.0
  %9168 = vmatpush1.msra.mxu0 0.0
  %9169 = vmatprep.subr.mxu0 0.0
  %9170 = vmatpush1.msra.mxu0 0.0
  %9171 = vmatprep.subr.mxu0 0.0
  %9172 = vmatpush1.msra.mxu0 0.0
  %9173 = vmatprep.subr.mxu0 0.0
  %9174 = vmatpush1.msra.mxu0 0.0
  %9175 = vmatprep.subr.mxu0 0.0
  %9176 = vmatpush1.msra.mxu0 0.0
  %9177 = vmatprep.subr.mxu0 0.0
  %9178 = vmatpush1.msra.mxu0 0.0
  %9179 = vmatprep.subr.mxu0 0.0
  %9180 = vmatpush1.msra.mxu0 0.0
  %9181 = vmatprep.subr.mxu0 0.0
  %9182 = vmatpush1.msra.mxu0 0.0
  %9183 = vmatprep.subr.mxu0 0.0
  %9184 = vmatpush1.msra.mxu0 0.0
  %9185 = vmatprep.subr.mxu0 0.0
  %9186 = vmatpush1.msra.mxu0 0.0
  %9187 = vmatprep.subr.mxu0 0.0
  %9188 = vmatpush1.msra.mxu0 0.0
  %9189 = vmatprep.subr.mxu0 0.0
  %9190 = vmatpush1.msra.mxu0 0.0
  %9191 = vmatprep.subr.mxu0 0.0
  %9192 = vmatpush1.msra.mxu0 0.0
  %9193 = vmatprep.subr.mxu0 0.0
  %9194 = vmatpush1.msra.mxu0 0.0
  %9195 = vmatprep.subr.mxu0 0.0
  %9196 = vmatpush1.msra.mxu0 0.0
  %9197 = vmatprep.subr.mxu0 0.0
  %9198 = vmatpush1.msra.mxu0 0.0
  %9199 = vmatprep.subr.mxu0 0.0
  %9200 = vmatpush1.msra.mxu0 0.0
  %9201 = vmatprep.subr.mxu0 0.0
  %9202 = vmatpush1.msra.mxu0 0.0
  %9203 = vmatprep.subr.mxu0 0.0
  %9204 = vmatpush1.msra.mxu0 0.0
  %9205 = vmatprep.subr.mxu0 0.0
  %9206 = vmatpush1.msra.mxu0 0.0
  %9207 = vmatprep.subr.mxu0 0.0
  %9208 = vmatpush1.msra.mxu0 0.0
  %9209 = vmatprep.subr.mxu0 0.0
  %9210 = vmatpush1.msra.mxu0 0.0
  %9211 = vmatprep.mubr.f32.mxu0 0.0
  %9212 = vmatmul.mubr.f32.gmra.mrb[0].mxu0 %v9066
  %v9213 = vpop.f32.mrb[0].mxu0
  %v9214 = vadd.f32 %v9063, %v9213
  %v9215 = vpop.f32.mrb[0].mxu0
  %9216 = vdwg.mxu0
  %9217 = vst.msk [vmem:[%s10 + $0x1] sm:$0x1] %vm9142, %v9214
  %v9219 = vsel %vm9068, %v9013, 0
  %9221 = vmatprep.subr.mxu0 0.0
  %9222 = vmatpush1.msra.mxu0 %v9219
  %9223 = vmatprep.subr.mxu0 0.0
  %9224 = vmatpush1.msra.mxu0 0.0
  %9225 = vmatprep.subr.mxu0 0.0
  %9226 = vmatpush1.msra.mxu0 0.0
  %9227 = vmatprep.subr.mxu0 0.0
  %9228 = vmatpush1.msra.mxu0 0.0
  %9229 = vmatprep.subr.mxu0 0.0
  %9230 = vmatpush1.msra.mxu0 0.0
  %9231 = vmatprep.subr.mxu0 0.0
  %9232 = vmatpush1.msra.mxu0 0.0
  %9233 = vmatprep.subr.mxu0 0.0
  %9234 = vmatpush1.msra.mxu0 0.0
  %9235 = vmatprep.subr.mxu0 0.0
  %9236 = vmatpush1.msra.mxu0 0.0
  %9237 = vmatprep.subr.mxu0 0.0
  %9238 = vmatpush1.msra.mxu0 0.0
  %9239 = vmatprep.subr.mxu0 0.0
  %9240 = vmatpush1.msra.mxu0 0.0
  %9241 = vmatprep.subr.mxu0 0.0
  %9242 = vmatpush1.msra.mxu0 0.0
  %9243 = vmatprep.subr.mxu0 0.0
  %9244 = vmatpush1.msra.mxu0 0.0
  %9245 = vmatprep.subr.mxu0 0.0
  %9246 = vmatpush1.msra.mxu0 0.0
  %9247 = vmatprep.subr.mxu0 0.0
  %9248 = vmatpush1.msra.mxu0 0.0
  %9249 = vmatprep.subr.mxu0 0.0
  %9250 = vmatpush1.msra.mxu0 0.0
  %9251 = vmatprep.subr.mxu0 0.0
  %9252 = vmatpush1.msra.mxu0 0.0
  %9253 = vmatprep.subr.mxu0 0.0
  %9254 = vmatpush1.msra.mxu0 0.0
  %9255 = vmatprep.subr.mxu0 0.0
  %9256 = vmatpush1.msra.mxu0 0.0
  %9257 = vmatprep.subr.mxu0 0.0
  %9258 = vmatpush1.msra.mxu0 0.0
  %9259 = vmatprep.subr.mxu0 0.0
  %9260 = vmatpush1.msra.mxu0 0.0
  %9261 = vmatprep.subr.mxu0 0.0
  %9262 = vmatpush1.msra.mxu0 0.0
  %9263 = vmatprep.subr.mxu0 0.0
  %9264 = vmatpush1.msra.mxu0 0.0
  %9265 = vmatprep.subr.mxu0 0.0
  %9266 = vmatpush1.msra.mxu0 0.0
  %9267 = vmatprep.subr.mxu0 0.0
  %9268 = vmatpush1.msra.mxu0 0.0
  %9269 = vmatprep.subr.mxu0 0.0
  %9270 = vmatpush1.msra.mxu0 0.0
  %9271 = vmatprep.subr.mxu0 0.0
  %9272 = vmatpush1.msra.mxu0 0.0
  %9273 = vmatprep.subr.mxu0 0.0
  %9274 = vmatpush1.msra.mxu0 0.0
  %9275 = vmatprep.subr.mxu0 0.0
  %9276 = vmatpush1.msra.mxu0 0.0
  %9277 = vmatprep.subr.mxu0 0.0
  %9278 = vmatpush1.msra.mxu0 0.0
  %9279 = vmatprep.subr.mxu0 0.0
  %9280 = vmatpush1.msra.mxu0 0.0
  %9281 = vmatprep.subr.mxu0 0.0
  %9282 = vmatpush1.msra.mxu0 0.0
  %9283 = vmatprep.subr.mxu0 0.0
  %9284 = vmatpush1.msra.mxu0 0.0
  %9285 = vmatprep.mubr.f32.mxu0 0.0
  %9286 = vmatmul.mubr.f32.gmra.mrb[0].mxu0 %v9066
  %v9287 = vpop.f32.mrb[0].mxu0
  %v9288 = vadd.f32 %v9063, %v9287
  %v9289 = vpop.f32.mrb[0].mxu0
  %9290 = vdwg.mxu0
  %9291 = vst.msk [vmem:[%s10 + $0x2] sm:$0x1] %vm9142, %v9288
  %v9293 = vsel %vm9068, %v9016, 0
  %9295 = vmatprep.subr.mxu0 0.0
  %9296 = vmatpush1.msra.mxu0 %v9293
  %9297 = vmatprep.subr.mxu0 0.0
  %9298 = vmatpush1.msra.mxu0 0.0
  %9299 = vmatprep.subr.mxu0 0.0
  %9300 = vmatpush1.msra.mxu0 0.0
  %9301 = vmatprep.subr.mxu0 0.0
  %9302 = vmatpush1.msra.mxu0 0.0
  %9303 = vmatprep.subr.mxu0 0.0
  %9304 = vmatpush1.msra.mxu0 0.0
  %9305 = vmatprep.subr.mxu0 0.0
  %9306 = vmatpush1.msra.mxu0 0.0
  %9307 = vmatprep.subr.mxu0 0.0
  %9308 = vmatpush1.msra.mxu0 0.0
  %9309 = vmatprep.subr.mxu0 0.0
  %9310 = vmatpush1.msra.mxu0 0.0
  %9311 = vmatprep.subr.mxu0 0.0
  %9312 = vmatpush1.msra.mxu0 0.0
  %9313 = vmatprep.subr.mxu0 0.0
  %9314 = vmatpush1.msra.mxu0 0.0
  %9315 = vmatprep.subr.mxu0 0.0
  %9316 = vmatpush1.msra.mxu0 0.0
  %9317 = vmatprep.subr.mxu0 0.0
  %9318 = vmatpush1.msra.mxu0 0.0
  %9319 = vmatprep.subr.mxu0 0.0
  %9320 = vmatpush1.msra.mxu0 0.0
  %9321 = vmatprep.subr.mxu0 0.0
  %9322 = vmatpush1.msra.mxu0 0.0
  %9323 = vmatprep.subr.mxu0 0.0
  %9324 = vmatpush1.msra.mxu0 0.0
  %9325 = vmatprep.subr.mxu0 0.0
  %9326 = vmatpush1.msra.mxu0 0.0
  %9327 = vmatprep.subr.mxu0 0.0
  %9328 = vmatpush1.msra.mxu0 0.0
  %9329 = vmatprep.subr.mxu0 0.0
  %9330 = vmatpush1.msra.mxu0 0.0
  %9331 = vmatprep.subr.mxu0 0.0
  %9332 = vmatpush1.msra.mxu0 0.0
  %9333 = vmatprep.subr.mxu0 0.0
  %9334 = vmatpush1.msra.mxu0 0.0
  %9335 = vmatprep.subr.mxu0 0.0
  %9336 = vmatpush1.msra.mxu0 0.0
  %9337 = vmatprep.subr.mxu0 0.0
  %9338 = vmatpush1.msra.mxu0 0.0
  %9339 = vmatprep.subr.mxu0 0.0
  %9340 = vmatpush1.msra.mxu0 0.0
  %9341 = vmatprep.subr.mxu0 0.0
  %9342 = vmatpush1.msra.mxu0 0.0
  %9343 = vmatprep.subr.mxu0 0.0
  %9344 = vmatpush1.msra.mxu0 0.0
  %9345 = vmatprep.subr.mxu0 0.0
  %9346 = vmatpush1.msra.mxu0 0.0
  %9347 = vmatprep.subr.mxu0 0.0
  %9348 = vmatpush1.msra.mxu0 0.0
  %9349 = vmatprep.subr.mxu0 0.0
  %9350 = vmatpush1.msra.mxu0 0.0
  %9351 = vmatprep.subr.mxu0 0.0
  %9352 = vmatpush1.msra.mxu0 0.0
  %9353 = vmatprep.subr.mxu0 0.0
  %9354 = vmatpush1.msra.mxu0 0.0
  %9355 = vmatprep.subr.mxu0 0.0
  %9356 = vmatpush1.msra.mxu0 0.0
  %9357 = vmatprep.subr.mxu0 0.0
  %9358 = vmatpush1.msra.mxu0 0.0
  %9359 = vmatprep.mubr.f32.mxu0 0.0
  %9360 = vmatmul.mubr.f32.gmra.mrb[0].mxu0 %v9066
  %v9361 = vpop.f32.mrb[0].mxu0
  %v9362 = vadd.f32 %v9063, %v9361
  %v9363 = vpop.f32.mrb[0].mxu0
  %9364 = vdwg.mxu0
  %9365 = vst.msk [vmem:[%s10 + $0x3] sm:$0x1] %vm9142, %v9362
  %v9367 = vsel %vm9068, %v9019, 0
  %9369 = vmatprep.subr.mxu0 0.0
  %9370 = vmatpush1.msra.mxu0 %v9367
  %9371 = vmatprep.subr.mxu0 0.0
  %9372 = vmatpush1.msra.mxu0 0.0
  %9373 = vmatprep.subr.mxu0 0.0
  %9374 = vmatpush1.msra.mxu0 0.0
  %9375 = vmatprep.subr.mxu0 0.0
  %9376 = vmatpush1.msra.mxu0 0.0
  %9377 = vmatprep.subr.mxu0 0.0
  %9378 = vmatpush1.msra.mxu0 0.0
  %9379 = vmatprep.subr.mxu0 0.0
  %9380 = vmatpush1.msra.mxu0 0.0
  %9381 = vmatprep.subr.mxu0 0.0
  %9382 = vmatpush1.msra.mxu0 0.0
  %9383 = vmatprep.subr.mxu0 0.0
  %9384 = vmatpush1.msra.mxu0 0.0
  %9385 = vmatprep.subr.mxu0 0.0
  %9386 = vmatpush1.msra.mxu0 0.0
  %9387 = vmatprep.subr.mxu0 0.0
  %9388 = vmatpush1.msra.mxu0 0.0
  %9389 = vmatprep.subr.mxu0 0.0
  %9390 = vmatpush1.msra.mxu0 0.0
  %9391 = vmatprep.subr.mxu0 0.0
  %9392 = vmatpush1.msra.mxu0 0.0
  %9393 = vmatprep.subr.mxu0 0.0
  %9394 = vmatpush1.msra.mxu0 0.0
  %9395 = vmatprep.subr.mxu0 0.0
  %9396 = vmatpush1.msra.mxu0 0.0
  %9397 = vmatprep.subr.mxu0 0.0
  %9398 = vmatpush1.msra.mxu0 0.0
  %9399 = vmatprep.subr.mxu0 0.0
  %9400 = vmatpush1.msra.mxu0 0.0
  %9401 = vmatprep.subr.mxu0 0.0
  %9402 = vmatpush1.msra.mxu0 0.0
  %9403 = vmatprep.subr.mxu0 0.0
  %9404 = vmatpush1.msra.mxu0 0.0
  %9405 = vmatprep.subr.mxu0 0.0
  %9406 = vmatpush1.msra.mxu0 0.0
  %9407 = vmatprep.subr.mxu0 0.0
  %9408 = vmatpush1.msra.mxu0 0.0
  %9409 = vmatprep.subr.mxu0 0.0
  %9410 = vmatpush1.msra.mxu0 0.0
  %9411 = vmatprep.subr.mxu0 0.0
  %9412 = vmatpush1.msra.mxu0 0.0
  %9413 = vmatprep.subr.mxu0 0.0
  %9414 = vmatpush1.msra.mxu0 0.0
  %9415 = vmatprep.subr.mxu0 0.0
  %9416 = vmatpush1.msra.mxu0 0.0
  %9417 = vmatprep.subr.mxu0 0.0
  %9418 = vmatpush1.msra.mxu0 0.0
  %9419 = vmatprep.subr.mxu0 0.0
  %9420 = vmatpush1.msra.mxu0 0.0
  %9421 = vmatprep.subr.mxu0 0.0
  %9422 = vmatpush1.msra.mxu0 0.0
  %9423 = vmatprep.subr.mxu0 0.0
  %9424 = vmatpush1.msra.mxu0 0.0
  %9425 = vmatprep.subr.mxu0 0.0
  %9426 = vmatpush1.msra.mxu0 0.0
  %9427 = vmatprep.subr.mxu0 0.0
  %9428 = vmatpush1.msra.mxu0 0.0
  %9429 = vmatprep.subr.mxu0 0.0
  %9430 = vmatpush1.msra.mxu0 0.0
  %9431 = vmatprep.subr.mxu0 0.0
  %9432 = vmatpush1.msra.mxu0 0.0
  %9433 = vmatprep.mubr.f32.mxu0 0.0
  %9434 = vmatmul.mubr.f32.gmra.mrb[0].mxu0 %v9066
  %v9435 = vpop.f32.mrb[0].mxu0
  %v9436 = vadd.f32 %v9063, %v9435
  %v9437 = vpop.f32.mrb[0].mxu0
  %9438 = vdwg.mxu0
  %9439 = vst.msk [vmem:[%s10 + $0x4] sm:$0x1] %vm9142, %v9436
  %v9441 = vsel %vm9068, %v9022, 0
  %9443 = vmatprep.subr.mxu0 0.0
  %9444 = vmatpush1.msra.mxu0 %v9441
  %9445 = vmatprep.subr.mxu0 0.0
  %9446 = vmatpush1.msra.mxu0 0.0
  %9447 = vmatprep.subr.mxu0 0.0
  %9448 = vmatpush1.msra.mxu0 0.0
  %9449 = vmatprep.subr.mxu0 0.0
  %9450 = vmatpush1.msra.mxu0 0.0
  %9451 = vmatprep.subr.mxu0 0.0
  %9452 = vmatpush1.msra.mxu0 0.0
  %9453 = vmatprep.subr.mxu0 0.0
  %9454 = vmatpush1.msra.mxu0 0.0
  %9455 = vmatprep.subr.mxu0 0.0
  %9456 = vmatpush1.msra.mxu0 0.0
  %9457 = vmatprep.subr.mxu0 0.0
  %9458 = vmatpush1.msra.mxu0 0.0
  %9459 = vmatprep.subr.mxu0 0.0
  %9460 = vmatpush1.msra.mxu0 0.0
  %9461 = vmatprep.subr.mxu0 0.0
  %9462 = vmatpush1.msra.mxu0 0.0
  %9463 = vmatprep.subr.mxu0 0.0
  %9464 = vmatpush1.msra.mxu0 0.0
  %9465 = vmatprep.subr.mxu0 0.0
  %9466 = vmatpush1.msra.mxu0 0.0
  %9467 = vmatprep.subr.mxu0 0.0
  %9468 = vmatpush1.msra.mxu0 0.0
  %9469 = vmatprep.subr.mxu0 0.0
  %9470 = vmatpush1.msra.mxu0 0.0
  %9471 = vmatprep.subr.mxu0 0.0
  %9472 = vmatpush1.msra.mxu0 0.0
  %9473 = vmatprep.subr.mxu0 0.0
  %9474 = vmatpush1.msra.mxu0 0.0
  %9475 = vmatprep.subr.mxu0 0.0
  %9476 = vmatpush1.msra.mxu0 0.0
  %9477 = vmatprep.subr.mxu0 0.0
  %9478 = vmatpush1.msra.mxu0 0.0
  %9479 = vmatprep.subr.mxu0 0.0
  %9480 = vmatpush1.msra.mxu0 0.0
  %9481 = vmatprep.subr.mxu0 0.0
  %9482 = vmatpush1.msra.mxu0 0.0
  %9483 = vmatprep.subr.mxu0 0.0
  %9484 = vmatpush1.msra.mxu0 0.0
  %9485 = vmatprep.subr.mxu0 0.0
  %9486 = vmatpush1.msra.mxu0 0.0
  %9487 = vmatprep.subr.mxu0 0.0
  %9488 = vmatpush1.msra.mxu0 0.0
  %9489 = vmatprep.subr.mxu0 0.0
  %9490 = vmatpush1.msra.mxu0 0.0
  %9491 = vmatprep.subr.mxu0 0.0
  %9492 = vmatpush1.msra.mxu0 0.0
  %9493 = vmatprep.subr.mxu0 0.0
  %9494 = vmatpush1.msra.mxu0 0.0
  %9495 = vmatprep.subr.mxu0 0.0
  %9496 = vmatpush1.msra.mxu0 0.0
  %9497 = vmatprep.subr.mxu0 0.0
  %9498 = vmatpush1.msra.mxu0 0.0
  %9499 = vmatprep.subr.mxu0 0.0
  %9500 = vmatpush1.msra.mxu0 0.0
  %9501 = vmatprep.subr.mxu0 0.0
  %9502 = vmatpush1.msra.mxu0 0.0
  %9503 = vmatprep.subr.mxu0 0.0
  %9504 = vmatpush1.msra.mxu0 0.0
  %9505 = vmatprep.subr.mxu0 0.0
  %9506 = vmatpush1.msra.mxu0 0.0
  %9507 = vmatprep.mubr.f32.mxu0 0.0
  %9508 = vmatmul.mubr.f32.gmra.mrb[0].mxu0 %v9066
  %v9509 = vpop.f32.mrb[0].mxu0
  %v9510 = vadd.f32 %v9063, %v9509
  %v9511 = vpop.f32.mrb[0].mxu0
  %9512 = vdwg.mxu0
  %9513 = vst.msk [vmem:[%s10 + $0x5] sm:$0x1] %vm9142, %v9510
  %v9515 = vsel %vm9068, %v9025, 0
  %9517 = vmatprep.subr.mxu0 0.0
  %9518 = vmatpush1.msra.mxu0 %v9515
  %9519 = vmatprep.subr.mxu0 0.0
  %9520 = vmatpush1.msra.mxu0 0.0
  %9521 = vmatprep.subr.mxu0 0.0
  %9522 = vmatpush1.msra.mxu0 0.0
  %9523 = vmatprep.subr.mxu0 0.0
  %9524 = vmatpush1.msra.mxu0 0.0
  %9525 = vmatprep.subr.mxu0 0.0
  %9526 = vmatpush1.msra.mxu0 0.0
  %9527 = vmatprep.subr.mxu0 0.0
  %9528 = vmatpush1.msra.mxu0 0.0
  %9529 = vmatprep.subr.mxu0 0.0
  %9530 = vmatpush1.msra.mxu0 0.0
  %9531 = vmatprep.subr.mxu0 0.0
  %9532 = vmatpush1.msra.mxu0 0.0
  %9533 = vmatprep.subr.mxu0 0.0
  %9534 = vmatpush1.msra.mxu0 0.0
  %9535 = vmatprep.subr.mxu0 0.0
  %9536 = vmatpush1.msra.mxu0 0.0
  %9537 = vmatprep.subr.mxu0 0.0
  %9538 = vmatpush1.msra.mxu0 0.0
  %9539 = vmatprep.subr.mxu0 0.0
  %9540 = vmatpush1.msra.mxu0 0.0
  %9541 = vmatprep.subr.mxu0 0.0
  %9542 = vmatpush1.msra.mxu0 0.0
  %9543 = vmatprep.subr.mxu0 0.0
  %9544 = vmatpush1.msra.mxu0 0.0
  %9545 = vmatprep.subr.mxu0 0.0
  %9546 = vmatpush1.msra.mxu0 0.0
  %9547 = vmatprep.subr.mxu0 0.0
  %9548 = vmatpush1.msra.mxu0 0.0
  %9549 = vmatprep.subr.mxu0 0.0
  %9550 = vmatpush1.msra.mxu0 0.0
  %9551 = vmatprep.subr.mxu0 0.0
  %9552 = vmatpush1.msra.mxu0 0.0
  %9553 = vmatprep.subr.mxu0 0.0
  %9554 = vmatpush1.msra.mxu0 0.0
  %9555 = vmatprep.subr.mxu0 0.0
  %9556 = vmatpush1.msra.mxu0 0.0
  %9557 = vmatprep.subr.mxu0 0.0
  %9558 = vmatpush1.msra.mxu0 0.0
  %9559 = vmatprep.subr.mxu0 0.0
  %9560 = vmatpush1.msra.mxu0 0.0
  %9561 = vmatprep.subr.mxu0 0.0
  %9562 = vmatpush1.msra.mxu0 0.0
  %9563 = vmatprep.subr.mxu0 0.0
  %9564 = vmatpush1.msra.mxu0 0.0
  %9565 = vmatprep.subr.mxu0 0.0
  %9566 = vmatpush1.msra.mxu0 0.0
  %9567 = vmatprep.subr.mxu0 0.0
  %9568 = vmatpush1.msra.mxu0 0.0
  %9569 = vmatprep.subr.mxu0 0.0
  %9570 = vmatpush1.msra.mxu0 0.0
  %9571 = vmatprep.subr.mxu0 0.0
  %9572 = vmatpush1.msra.mxu0 0.0
  %9573 = vmatprep.subr.mxu0 0.0
  %9574 = vmatpush1.msra.mxu0 0.0
  %9575 = vmatprep.subr.mxu0 0.0
  %9576 = vmatpush1.msra.mxu0 0.0
  %9577 = vmatprep.subr.mxu0 0.0
  %9578 = vmatpush1.msra.mxu0 0.0
  %9579 = vmatprep.subr.mxu0 0.0
  %9580 = vmatpush1.msra.mxu0 0.0
  %9581 = vmatprep.mubr.f32.mxu0 0.0
  %9582 = vmatmul.mubr.f32.gmra.mrb[0].mxu0 %v9066
  %v9583 = vpop.f32.mrb[0].mxu0
  %v9584 = vadd.f32 %v9063, %v9583
  %v9585 = vpop.f32.mrb[0].mxu0
  %9586 = vdwg.mxu0
  %9587 = vst.msk [vmem:[%s10 + $0x6] sm:$0x1] %vm9142, %v9584
  %v9589 = vsel %vm9068, %v9028, 0
  %9591 = vmatprep.subr.mxu0 0.0
  %9592 = vmatpush1.msra.mxu0 %v9589
  %9593 = vmatprep.subr.mxu0 0.0
  %9594 = vmatpush1.msra.mxu0 0.0
  %9595 = vmatprep.subr.mxu0 0.0
  %9596 = vmatpush1.msra.mxu0 0.0
  %9597 = vmatprep.subr.mxu0 0.0
  %9598 = vmatpush1.msra.mxu0 0.0
  %9599 = vmatprep.subr.mxu0 0.0
  %9600 = vmatpush1.msra.mxu0 0.0
  %9601 = vmatprep.subr.mxu0 0.0
  %9602 = vmatpush1.msra.mxu0 0.0
  %9603 = vmatprep.subr.mxu0 0.0
  %9604 = vmatpush1.msra.mxu0 0.0
  %9605 = vmatprep.subr.mxu0 0.0
  %9606 = vmatpush1.msra.mxu0 0.0
  %9607 = vmatprep.subr.mxu0 0.0
  %9608 = vmatpush1.msra.mxu0 0.0
  %9609 = vmatprep.subr.mxu0 0.0
  %9610 = vmatpush1.msra.mxu0 0.0
  %9611 = vmatprep.subr.mxu0 0.0
  %9612 = vmatpush1.msra.mxu0 0.0
  %9613 = vmatprep.subr.mxu0 0.0
  %9614 = vmatpush1.msra.mxu0 0.0
  %9615 = vmatprep.subr.mxu0 0.0
  %9616 = vmatpush1.msra.mxu0 0.0
  %9617 = vmatprep.subr.mxu0 0.0
  %9618 = vmatpush1.msra.mxu0 0.0
  %9619 = vmatprep.subr.mxu0 0.0
  %9620 = vmatpush1.msra.mxu0 0.0
  %9621 = vmatprep.subr.mxu0 0.0
  %9622 = vmatpush1.msra.mxu0 0.0
  %9623 = vmatprep.subr.mxu0 0.0
  %9624 = vmatpush1.msra.mxu0 0.0
  %9625 = vmatprep.subr.mxu0 0.0
  %9626 = vmatpush1.msra.mxu0 0.0
  %9627 = vmatprep.subr.mxu0 0.0
  %9628 = vmatpush1.msra.mxu0 0.0
  %9629 = vmatprep.subr.mxu0 0.0
  %9630 = vmatpush1.msra.mxu0 0.0
  %9631 = vmatprep.subr.mxu0 0.0
  %9632 = vmatpush1.msra.mxu0 0.0
  %9633 = vmatprep.subr.mxu0 0.0
  %9634 = vmatpush1.msra.mxu0 0.0
  %9635 = vmatprep.subr.mxu0 0.0
  %9636 = vmatpush1.msra.mxu0 0.0
  %9637 = vmatprep.subr.mxu0 0.0
  %9638 = vmatpush1.msra.mxu0 0.0
  %9639 = vmatprep.subr.mxu0 0.0
  %9640 = vmatpush1.msra.mxu0 0.0
  %9641 = vmatprep.subr.mxu0 0.0
  %9642 = vmatpush1.msra.mxu0 0.0
  %9643 = vmatprep.subr.mxu0 0.0
  %9644 = vmatpush1.msra.mxu0 0.0
  %9645 = vmatprep.subr.mxu0 0.0
  %9646 = vmatpush1.msra.mxu0 0.0
  %9647 = vmatprep.subr.mxu0 0.0
  %9648 = vmatpush1.msra.mxu0 0.0
  %9649 = vmatprep.subr.mxu0 0.0
  %9650 = vmatpush1.msra.mxu0 0.0
  %9651 = vmatprep.subr.mxu0 0.0
  %9652 = vmatpush1.msra.mxu0 0.0
  %9653 = vmatprep.subr.mxu0 0.0
  %9654 = vmatpush1.msra.mxu0 0.0
  %9655 = vmatprep.mubr.f32.mxu0 0.0
  %9656 = vmatmul.mubr.f32.gmra.mrb[0].mxu0 %v9066
  %v9657 = vpop.f32.mrb[0].mxu0
  %v9658 = vadd.f32 %v9063, %v9657
  %v9659 = vpop.f32.mrb[0].mxu0
  %9660 = vdwg.mxu0
  %9661 = vst.msk [vmem:[%s10 + $0x7] sm:$0x1] %vm9142, %v9658
  %v9663 = vsel %vm9068, %v9031, 0
  %9665 = vmatprep.subr.mxu0 0.0
  %9666 = vmatpush1.msra.mxu0 %v9663
  %9667 = vmatprep.subr.mxu0 0.0
  %9668 = vmatpush1.msra.mxu0 0.0
  %9669 = vmatprep.subr.mxu0 0.0
  %9670 = vmatpush1.msra.mxu0 0.0
  %9671 = vmatprep.subr.mxu0 0.0
  %9672 = vmatpush1.msra.mxu0 0.0
  %9673 = vmatprep.subr.mxu0 0.0
  %9674 = vmatpush1.msra.mxu0 0.0
  %9675 = vmatprep.subr.mxu0 0.0
  %9676 = vmatpush1.msra.mxu0 0.0
  %9677 = vmatprep.subr.mxu0 0.0
  %9678 = vmatpush1.msra.mxu0 0.0
  %9679 = vmatprep.subr.mxu0 0.0
  %9680 = vmatpush1.msra.mxu0 0.0
  %9681 = vmatprep.subr.mxu0 0.0
  %9682 = vmatpush1.msra.mxu0 0.0
  %9683 = vmatprep.subr.mxu0 0.0
  %9684 = vmatpush1.msra.mxu0 0.0
  %9685 = vmatprep.subr.mxu0 0.0
  %9686 = vmatpush1.msra.mxu0 0.0
  %9687 = vmatprep.subr.mxu0 0.0
  %9688 = vmatpush1.msra.mxu0 0.0
  %9689 = vmatprep.subr.mxu0 0.0
  %9690 = vmatpush1.msra.mxu0 0.0
  %9691 = vmatprep.subr.mxu0 0.0
  %9692 = vmatpush1.msra.mxu0 0.0
  %9693 = vmatprep.subr.mxu0 0.0
  %9694 = vmatpush1.msra.mxu0 0.0
  %9695 = vmatprep.subr.mxu0 0.0
  %9696 = vmatpush1.msra.mxu0 0.0
  %9697 = vmatprep.subr.mxu0 0.0
  %9698 = vmatpush1.msra.mxu0 0.0
  %9699 = vmatprep.subr.mxu0 0.0
  %9700 = vmatpush1.msra.mxu0 0.0
  %9701 = vmatprep.subr.mxu0 0.0
  %9702 = vmatpush1.msra.mxu0 0.0
  %9703 = vmatprep.subr.mxu0 0.0
  %9704 = vmatpush1.msra.mxu0 0.0
  %9705 = vmatprep.subr.mxu0 0.0
  %9706 = vmatpush1.msra.mxu0 0.0
  %9707 = vmatprep.subr.mxu0 0.0
  %9708 = vmatpush1.msra.mxu0 0.0
  %9709 = vmatprep.subr.mxu0 0.0
  %9710 = vmatpush1.msra.mxu0 0.0
  %9711 = vmatprep.subr.mxu0 0.0
  %9712 = vmatpush1.msra.mxu0 0.0
  %9713 = vmatprep.subr.mxu0 0.0
  %9714 = vmatpush1.msra.mxu0 0.0
  %9715 = vmatprep.subr.mxu0 0.0
  %9716 = vmatpush1.msra.mxu0 0.0
  %9717 = vmatprep.subr.mxu0 0.0
  %9718 = vmatpush1.msra.mxu0 0.0
  %9719 = vmatprep.subr.mxu0 0.0
  %9720 = vmatpush1.msra.mxu0 0.0
  %9721 = vmatprep.subr.mxu0 0.0
  %9722 = vmatpush1.msra.mxu0 0.0
  %9723 = vmatprep.subr.mxu0 0.0
  %9724 = vmatpush1.msra.mxu0 0.0
  %9725 = vmatprep.subr.mxu0 0.0
  %9726 = vmatpush1.msra.mxu0 0.0
  %9727 = vmatprep.subr.mxu0 0.0
  %9728 = vmatpush1.msra.mxu0 0.0
  %9729 = vmatprep.mubr.f32.mxu0 0.0
  %9730 = vmatmul.mubr.f32.gmra.mrb[0].mxu0 %v9066
  %v9731 = vpop.f32.mrb[0].mxu0
  %v9732 = vadd.f32 %v9063, %v9731
  %v9733 = vpop.f32.mrb[0].mxu0
  %9734 = vdwg.mxu0
  %9735 = vst.msk [vmem:[%s10 + $0x8] sm:$0x1] %vm9142, %v9732
  %v9737 = vsel %vm9068, %v9034, 0
  %9739 = vmatprep.subr.mxu0 0.0
  %9740 = vmatpush1.msra.mxu0 %v9737
  %9741 = vmatprep.subr.mxu0 0.0
  %9742 = vmatpush1.msra.mxu0 0.0
  %9743 = vmatprep.subr.mxu0 0.0
  %9744 = vmatpush1.msra.mxu0 0.0
  %9745 = vmatprep.subr.mxu0 0.0
  %9746 = vmatpush1.msra.mxu0 0.0
  %9747 = vmatprep.subr.mxu0 0.0
  %9748 = vmatpush1.msra.mxu0 0.0
  %9749 = vmatprep.subr.mxu0 0.0
  %9750 = vmatpush1.msra.mxu0 0.0
  %9751 = vmatprep.subr.mxu0 0.0
  %9752 = vmatpush1.msra.mxu0 0.0
  %9753 = vmatprep.subr.mxu0 0.0
  %9754 = vmatpush1.msra.mxu0 0.0
  %9755 = vmatprep.subr.mxu0 0.0
  %9756 = vmatpush1.msra.mxu0 0.0
  %9757 = vmatprep.subr.mxu0 0.0
  %9758 = vmatpush1.msra.mxu0 0.0
  %9759 = vmatprep.subr.mxu0 0.0
  %9760 = vmatpush1.msra.mxu0 0.0
  %9761 = vmatprep.subr.mxu0 0.0
  %9762 = vmatpush1.msra.mxu0 0.0
  %9763 = vmatprep.subr.mxu0 0.0
  %9764 = vmatpush1.msra.mxu0 0.0
  %9765 = vmatprep.subr.mxu0 0.0
  %9766 = vmatpush1.msra.mxu0 0.0
  %9767 = vmatprep.subr.mxu0 0.0
  %9768 = vmatpush1.msra.mxu0 0.0
  %9769 = vmatprep.subr.mxu0 0.0
  %9770 = vmatpush1.msra.mxu0 0.0
  %9771 = vmatprep.subr.mxu0 0.0
  %9772 = vmatpush1.msra.mxu0 0.0
  %9773 = vmatprep.subr.mxu0 0.0
  %9774 = vmatpush1.msra.mxu0 0.0
  %9775 = vmatprep.subr.mxu0 0.0
  %9776 = vmatpush1.msra.mxu0 0.0
  %9777 = vmatprep.subr.mxu0 0.0
  %9778 = vmatpush1.msra.mxu0 0.0
  %9779 = vmatprep.subr.mxu0 0.0
  %9780 = vmatpush1.msra.mxu0 0.0
  %9781 = vmatprep.subr.mxu0 0.0
  %9782 = vmatpush1.msra.mxu0 0.0
  %9783 = vmatprep.subr.mxu0 0.0
  %9784 = vmatpush1.msra.mxu0 0.0
  %9785 = vmatprep.subr.mxu0 0.0
  %9786 = vmatpush1.msra.mxu0 0.0
  %9787 = vmatprep.subr.mxu0 0.0
  %9788 = vmatpush1.msra.mxu0 0.0
  %9789 = vmatprep.subr.mxu0 0.0
  %9790 = vmatpush1.msra.mxu0 0.0
  %9791 = vmatprep.subr.mxu0 0.0
  %9792 = vmatpush1.msra.mxu0 0.0
  %9793 = vmatprep.subr.mxu0 0.0
  %9794 = vmatpush1.msra.mxu0 0.0
  %9795 = vmatprep.subr.mxu0 0.0
  %9796 = vmatpush1.msra.mxu0 0.0
  %9797 = vmatprep.subr.mxu0 0.0
  %9798 = vmatpush1.msra.mxu0 0.0
  %9799 = vmatprep.subr.mxu0 0.0
  %9800 = vmatpush1.msra.mxu0 0.0
  %9801 = vmatprep.subr.mxu0 0.0
  %9802 = vmatpush1.msra.mxu0 0.0
  %9803 = vmatprep.mubr.f32.mxu0 0.0
  %9804 = vmatmul.mubr.f32.gmra.mrb[0].mxu0 %v9066
  %v9805 = vpop.f32.mrb[0].mxu0
  %v9806 = vadd.f32 %v9063, %v9805
  %v9807 = vpop.f32.mrb[0].mxu0
  %9808 = vdwg.mxu0
  %9809 = vst.msk [vmem:[%s10 + $0x9] sm:$0x1] %vm9142, %v9806
  %v9811 = vsel %vm9068, %v9037, 0
  %9813 = vmatprep.subr.mxu0 0.0
  %9814 = vmatpush1.msra.mxu0 %v9811
  %9815 = vmatprep.subr.mxu0 0.0
  %9816 = vmatpush1.msra.mxu0 0.0
  %9817 = vmatprep.subr.mxu0 0.0
  %9818 = vmatpush1.msra.mxu0 0.0
  %9819 = vmatprep.subr.mxu0 0.0
  %9820 = vmatpush1.msra.mxu0 0.0
  %9821 = vmatprep.subr.mxu0 0.0
  %9822 = vmatpush1.msra.mxu0 0.0
  %9823 = vmatprep.subr.mxu0 0.0
  %9824 = vmatpush1.msra.mxu0 0.0
  %9825 = vmatprep.subr.mxu0 0.0
  %9826 = vmatpush1.msra.mxu0 0.0
  %9827 = vmatprep.subr.mxu0 0.0
  %9828 = vmatpush1.msra.mxu0 0.0
  %9829 = vmatprep.subr.mxu0 0.0
  %9830 = vmatpush1.msra.mxu0 0.0
  %9831 = vmatprep.subr.mxu0 0.0
  %9832 = vmatpush1.msra.mxu0 0.0
  %9833 = vmatprep.subr.mxu0 0.0
  %9834 = vmatpush1.msra.mxu0 0.0
  %9835 = vmatprep.subr.mxu0 0.0
  %9836 = vmatpush1.msra.mxu0 0.0
  %9837 = vmatprep.subr.mxu0 0.0
  %9838 = vmatpush1.msra.mxu0 0.0
  %9839 = vmatprep.subr.mxu0 0.0
  %9840 = vmatpush1.msra.mxu0 0.0
  %9841 = vmatprep.subr.mxu0 0.0
  %9842 = vmatpush1.msra.mxu0 0.0
  %9843 = vmatprep.subr.mxu0 0.0
  %9844 = vmatpush1.msra.mxu0 0.0
  %9845 = vmatprep.subr.mxu0 0.0
  %9846 = vmatpush1.msra.mxu0 0.0
  %9847 = vmatprep.subr.mxu0 0.0
  %9848 = vmatpush1.msra.mxu0 0.0
  %9849 = vmatprep.subr.mxu0 0.0
  %9850 = vmatpush1.msra.mxu0 0.0
  %9851 = vmatprep.subr.mxu0 0.0
  %9852 = vmatpush1.msra.mxu0 0.0
  %9853 = vmatprep.subr.mxu0 0.0
  %9854 = vmatpush1.msra.mxu0 0.0
  %9855 = vmatprep.subr.mxu0 0.0
  %9856 = vmatpush1.msra.mxu0 0.0
  %9857 = vmatprep.subr.mxu0 0.0
  %9858 = vmatpush1.msra.mxu0 0.0
  %9859 = vmatprep.subr.mxu0 0.0
  %9860 = vmatpush1.msra.mxu0 0.0
  %9861 = vmatprep.subr.mxu0 0.0
  %9862 = vmatpush1.msra.mxu0 0.0
  %9863 = vmatprep.subr.mxu0 0.0
  %9864 = vmatpush1.msra.mxu0 0.0
  %9865 = vmatprep.subr.mxu0 0.0
  %9866 = vmatpush1.msra.mxu0 0.0
  %9867 = vmatprep.subr.mxu0 0.0
  %9868 = vmatpush1.msra.mxu0 0.0
  %9869 = vmatprep.subr.mxu0 0.0
  %9870 = vmatpush1.msra.mxu0 0.0
  %9871 = vmatprep.subr.mxu0 0.0
  %9872 = vmatpush1.msra.mxu0 0.0
  %9873 = vmatprep.subr.mxu0 0.0
  %9874 = vmatpush1.msra.mxu0 0.0
  %9875 = vmatprep.subr.mxu0 0.0
  %9876 = vmatpush1.msra.mxu0 0.0
  %9877 = vmatprep.mubr.f32.mxu0 0.0
  %9878 = vmatmul.mubr.f32.gmra.mrb[0].mxu0 %v9066
  %v9879 = vpop.f32.mrb[0].mxu0
  %v9880 = vadd.f32 %v9063, %v9879
  %v9881 = vpop.f32.mrb[0].mxu0
  %9882 = vdwg.mxu0
  %9883 = vst.msk [vmem:[%s10 + $0xa] sm:$0x1] %vm9142, %v9880
  %v9885 = vsel %vm9068, %v9040, 0
  %9887 = vmatprep.subr.mxu0 0.0
  %9888 = vmatpush1.msra.mxu0 %v9885
  %9889 = vmatprep.subr.mxu0 0.0
  %9890 = vmatpush1.msra.mxu0 0.0
  %9891 = vmatprep.subr.mxu0 0.0
  %9892 = vmatpush1.msra.mxu0 0.0
  %9893 = vmatprep.subr.mxu0 0.0
  %9894 = vmatpush1.msra.mxu0 0.0
  %9895 = vmatprep.subr.mxu0 0.0
  %9896 = vmatpush1.msra.mxu0 0.0
  %9897 = vmatprep.subr.mxu0 0.0
  %9898 = vmatpush1.msra.mxu0 0.0
  %9899 = vmatprep.subr.mxu0 0.0
  %9900 = vmatpush1.msra.mxu0 0.0
  %9901 = vmatprep.subr.mxu0 0.0
  %9902 = vmatpush1.msra.mxu0 0.0
  %9903 = vmatprep.subr.mxu0 0.0
  %9904 = vmatpush1.msra.mxu0 0.0
  %9905 = vmatprep.subr.mxu0 0.0
  %9906 = vmatpush1.msra.mxu0 0.0
  %9907 = vmatprep.subr.mxu0 0.0
  %9908 = vmatpush1.msra.mxu0 0.0
  %9909 = vmatprep.subr.mxu0 0.0
  %9910 = vmatpush1.msra.mxu0 0.0
  %9911 = vmatprep.subr.mxu0 0.0
  %9912 = vmatpush1.msra.mxu0 0.0
  %9913 = vmatprep.subr.mxu0 0.0
  %9914 = vmatpush1.msra.mxu0 0.0
  %9915 = vmatprep.subr.mxu0 0.0
  %9916 = vmatpush1.msra.mxu0 0.0
  %9917 = vmatprep.subr.mxu0 0.0
  %9918 = vmatpush1.msra.mxu0 0.0
  %9919 = vmatprep.subr.mxu0 0.0
  %9920 = vmatpush1.msra.mxu0 0.0
  %9921 = vmatprep.subr.mxu0 0.0
  %9922 = vmatpush1.msra.mxu0 0.0
  %9923 = vmatprep.subr.mxu0 0.0
  %9924 = vmatpush1.msra.mxu0 0.0
  %9925 = vmatprep.subr.mxu0 0.0
  %9926 = vmatpush1.msra.mxu0 0.0
  %9927 = vmatprep.subr.mxu0 0.0
  %9928 = vmatpush1.msra.mxu0 0.0
  %9929 = vmatprep.subr.mxu0 0.0
  %9930 = vmatpush1.msra.mxu0 0.0
  %9931 = vmatprep.subr.mxu0 0.0
  %9932 = vmatpush1.msra.mxu0 0.0
  %9933 = vmatprep.subr.mxu0 0.0
  %9934 = vmatpush1.msra.mxu0 0.0
  %9935 = vmatprep.subr.mxu0 0.0
  %9936 = vmatpush1.msra.mxu0 0.0
  %9937 = vmatprep.subr.mxu0 0.0
  %9938 = vmatpush1.msra.mxu0 0.0
  %9939 = vmatprep.subr.mxu0 0.0
  %9940 = vmatpush1.msra.mxu0 0.0
  %9941 = vmatprep.subr.mxu0 0.0
  %9942 = vmatpush1.msra.mxu0 0.0
  %9943 = vmatprep.subr.mxu0 0.0
  %9944 = vmatpush1.msra.mxu0 0.0
  %9945 = vmatprep.subr.mxu0 0.0
  %9946 = vmatpush1.msra.mxu0 0.0
  %9947 = vmatprep.subr.mxu0 0.0
  %9948 = vmatpush1.msra.mxu0 0.0
  %9949 = vmatprep.subr.mxu0 0.0
  %9950 = vmatpush1.msra.mxu0 0.0
  %9951 = vmatprep.mubr.f32.mxu0 0.0
  %9952 = vmatmul.mubr.f32.gmra.mrb[0].mxu0 %v9066
  %v9953 = vpop.f32.mrb[0].mxu0
  %v9954 = vadd.f32 %v9063, %v9953
  %v9955 = vpop.f32.mrb[0].mxu0
  %9956 = vdwg.mxu0
  %9957 = vst.msk [vmem:[%s10 + $0xb] sm:$0x1] %vm9142, %v9954
  %v9959 = vsel %vm9068, %v9043, 0
  %9961 = vmatprep.subr.mxu0 0.0
  %9962 = vmatpush1.msra.mxu0 %v9959
  %9963 = vmatprep.subr.mxu0 0.0
  %9964 = vmatpush1.msra.mxu0 0.0
  %9965 = vmatprep.subr.mxu0 0.0
  %9966 = vmatpush1.msra.mxu0 0.0
  %9967 = vmatprep.subr.mxu0 0.0
  %9968 = vmatpush1.msra.mxu0 0.0
  %9969 = vmatprep.subr.mxu0 0.0
  %9970 = vmatpush1.msra.mxu0 0.0
  %9971 = vmatprep.subr.mxu0 0.0
  %9972 = vmatpush1.msra.mxu0 0.0
  %9973 = vmatprep.subr.mxu0 0.0
  %9974 = vmatpush1.msra.mxu0 0.0
  %9975 = vmatprep.subr.mxu0 0.0
  %9976 = vmatpush1.msra.mxu0 0.0
  %9977 = vmatprep.subr.mxu0 0.0
  %9978 = vmatpush1.msra.mxu0 0.0
  %9979 = vmatprep.subr.mxu0 0.0
  %9980 = vmatpush1.msra.mxu0 0.0
  %9981 = vmatprep.subr.mxu0 0.0
  %9982 = vmatpush1.msra.mxu0 0.0
  %9983 = vmatprep.subr.mxu0 0.0
  %9984 = vmatpush1.msra.mxu0 0.0
  %9985 = vmatprep.subr.mxu0 0.0
  %9986 = vmatpush1.msra.mxu0 0.0
  %9987 = vmatprep.subr.mxu0 0.0
  %9988 = vmatpush1.msra.mxu0 0.0
  %9989 = vmatprep.subr.mxu0 0.0
  %9990 = vmatpush1.msra.mxu0 0.0
  %9991 = vmatprep.subr.mxu0 0.0
  %9992 = vmatpush1.msra.mxu0 0.0
  %9993 = vmatprep.subr.mxu0 0.0
  %9994 = vmatpush1.msra.mxu0 0.0
  %9995 = vmatprep.subr.mxu0 0.0
  %9996 = vmatpush1.msra.mxu0 0.0
  %9997 = vmatprep.subr.mxu0 0.0
  %9998 = vmatpush1.msra.mxu0 0.0
  %9999 = vmatprep.subr.mxu0 0.0
  %10000 = vmatpush1.msra.mxu0 0.0
  %10001 = vmatprep.subr.mxu0 0.0
  %10002 = vmatpush1.msra.mxu0 0.0
  %10003 = vmatprep.subr.mxu0 0.0
  %10004 = vmatpush1.msra.mxu0 0.0
  %10005 = vmatprep.subr.mxu0 0.0
  %10006 = vmatpush1.msra.mxu0 0.0
  %10007 = vmatprep.subr.mxu0 0.0
  %10008 = vmatpush1.msra.mxu0 0.0
  %10009 = vmatprep.subr.mxu0 0.0
  %10010 = vmatpush1.msra.mxu0 0.0
  %10011 = vmatprep.subr.mxu0 0.0
  %10012 = vmatpush1.msra.mxu0 0.0
  %10013 = vmatprep.subr.mxu0 0.0
  %10014 = vmatpush1.msra.mxu0 0.0
  %10015 = vmatprep.subr.mxu0 0.0
  %10016 = vmatpush1.msra.mxu0 0.0
  %10017 = vmatprep.subr.mxu0 0.0
  %10018 = vmatpush1.msra.mxu0 0.0
  %10019 = vmatprep.subr.mxu0 0.0
  %10020 = vmatpush1.msra.mxu0 0.0
  %10021 = vmatprep.subr.mxu0 0.0
  %10022 = vmatpush1.msra.mxu0 0.0
  %10023 = vmatprep.subr.mxu0 0.0
  %10024 = vmatpush1.msra.mxu0 0.0
  %10025 = vmatprep.mubr.f32.mxu0 0.0
  %10026 = vmatmul.mubr.f32.gmra.mrb[0].mxu0 %v9066
  %v10027 = vpop.f32.mrb[0].mxu0
  %v10028 = vadd.f32 %v9063, %v10027
  %v10029 = vpop.f32.mrb[0].mxu0
  %10030 = vdwg.mxu0
  %10031 = vst.msk [vmem:[%s10 + $0xc] sm:$0x1] %vm9142, %v10028
  %v10033 = vsel %vm9068, %v9046, 0
  %10035 = vmatprep.subr.mxu0 0.0
  %10036 = vmatpush1.msra.mxu0 %v10033
  %10037 = vmatprep.subr.mxu0 0.0
  %10038 = vmatpush1.msra.mxu0 0.0
  %10039 = vmatprep.subr.mxu0 0.0
  %10040 = vmatpush1.msra.mxu0 0.0
  %10041 = vmatprep.subr.mxu0 0.0
  %10042 = vmatpush1.msra.mxu0 0.0
  %10043 = vmatprep.subr.mxu0 0.0
  %10044 = vmatpush1.msra.mxu0 0.0
  %10045 = vmatprep.subr.mxu0 0.0
  %10046 = vmatpush1.msra.mxu0 0.0
  %10047 = vmatprep.subr.mxu0 0.0
  %10048 = vmatpush1.msra.mxu0 0.0
  %10049 = vmatprep.subr.mxu0 0.0
  %10050 = vmatpush1.msra.mxu0 0.0
  %10051 = vmatprep.subr.mxu0 0.0
  %10052 = vmatpush1.msra.mxu0 0.0
  %10053 = vmatprep.subr.mxu0 0.0
  %10054 = vmatpush1.msra.mxu0 0.0
  %10055 = vmatprep.subr.mxu0 0.0
  %10056 = vmatpush1.msra.mxu0 0.0
  %10057 = vmatprep.subr.mxu0 0.0
  %10058 = vmatpush1.msra.mxu0 0.0
  %10059 = vmatprep.subr.mxu0 0.0
  %10060 = vmatpush1.msra.mxu0 0.0
  %10061 = vmatprep.subr.mxu0 0.0
  %10062 = vmatpush1.msra.mxu0 0.0
  %10063 = vmatprep.subr.mxu0 0.0
  %10064 = vmatpush1.msra.mxu0 0.0
  %10065 = vmatprep.subr.mxu0 0.0
  %10066 = vmatpush1.msra.mxu0 0.0
  %10067 = vmatprep.subr.mxu0 0.0
  %10068 = vmatpush1.msra.mxu0 0.0
  %10069 = vmatprep.subr.mxu0 0.0
  %10070 = vmatpush1.msra.mxu0 0.0
  %10071 = vmatprep.subr.mxu0 0.0
  %10072 = vmatpush1.msra.mxu0 0.0
  %10073 = vmatprep.subr.mxu0 0.0
  %10074 = vmatpush1.msra.mxu0 0.0
  %10075 = vmatprep.subr.mxu0 0.0
  %10076 = vmatpush1.msra.mxu0 0.0
  %10077 = vmatprep.subr.mxu0 0.0
  %10078 = vmatpush1.msra.mxu0 0.0
  %10079 = vmatprep.subr.mxu0 0.0
  %10080 = vmatpush1.msra.mxu0 0.0
  %10081 = vmatprep.subr.mxu0 0.0
  %10082 = vmatpush1.msra.mxu0 0.0
  %10083 = vmatprep.subr.mxu0 0.0
  %10084 = vmatpush1.msra.mxu0 0.0
  %10085 = vmatprep.subr.mxu0 0.0
  %10086 = vmatpush1.msra.mxu0 0.0
  %10087 = vmatprep.subr.mxu0 0.0
  %10088 = vmatpush1.msra.mxu0 0.0
  %10089 = vmatprep.subr.mxu0 0.0
  %10090 = vmatpush1.msra.mxu0 0.0
  %10091 = vmatprep.subr.mxu0 0.0
  %10092 = vmatpush1.msra.mxu0 0.0
  %10093 = vmatprep.subr.mxu0 0.0
  %10094 = vmatpush1.msra.mxu0 0.0
  %10095 = vmatprep.subr.mxu0 0.0
  %10096 = vmatpush1.msra.mxu0 0.0
  %10097 = vmatprep.subr.mxu0 0.0
  %10098 = vmatpush1.msra.mxu0 0.0
  %10099 = vmatprep.mubr.f32.mxu0 0.0
  %10100 = vmatmul.mubr.f32.gmra.mrb[0].mxu0 %v9066
  %v10101 = vpop.f32.mrb[0].mxu0
  %v10102 = vadd.f32 %v9063, %v10101
  %v10103 = vpop.f32.mrb[0].mxu0
  %10104 = vdwg.mxu0
  %10105 = vst.msk [vmem:[%s10 + $0xd] sm:$0x1] %vm9142, %v10102
  %v10107 = vsel %vm9068, %v9049, 0
  %10109 = vmatprep.subr.mxu0 0.0
  %10110 = vmatpush1.msra.mxu0 %v10107
  %10111 = vmatprep.subr.mxu0 0.0
  %10112 = vmatpush1.msra.mxu0 0.0
  %10113 = vmatprep.subr.mxu0 0.0
  %10114 = vmatpush1.msra.mxu0 0.0
  %10115 = vmatprep.subr.mxu0 0.0
  %10116 = vmatpush1.msra.mxu0 0.0
  %10117 = vmatprep.subr.mxu0 0.0
  %10118 = vmatpush1.msra.mxu0 0.0
  %10119 = vmatprep.subr.mxu0 0.0
  %10120 = vmatpush1.msra.mxu0 0.0
  %10121 = vmatprep.subr.mxu0 0.0
  %10122 = vmatpush1.msra.mxu0 0.0
  %10123 = vmatprep.subr.mxu0 0.0
  %10124 = vmatpush1.msra.mxu0 0.0
  %10125 = vmatprep.subr.mxu0 0.0
  %10126 = vmatpush1.msra.mxu0 0.0
  %10127 = vmatprep.subr.mxu0 0.0
  %10128 = vmatpush1.msra.mxu0 0.0
  %10129 = vmatprep.subr.mxu0 0.0
  %10130 = vmatpush1.msra.mxu0 0.0
  %10131 = vmatprep.subr.mxu0 0.0
  %10132 = vmatpush1.msra.mxu0 0.0
  %10133 = vmatprep.subr.mxu0 0.0
  %10134 = vmatpush1.msra.mxu0 0.0
  %10135 = vmatprep.subr.mxu0 0.0
  %10136 = vmatpush1.msra.mxu0 0.0
  %10137 = vmatprep.subr.mxu0 0.0
  %10138 = vmatpush1.msra.mxu0 0.0
  %10139 = vmatprep.subr.mxu0 0.0
  %10140 = vmatpush1.msra.mxu0 0.0
  %10141 = vmatprep.subr.mxu0 0.0
  %10142 = vmatpush1.msra.mxu0 0.0
  %10143 = vmatprep.subr.mxu0 0.0
  %10144 = vmatpush1.msra.mxu0 0.0
  %10145 = vmatprep.subr.mxu0 0.0
  %10146 = vmatpush1.msra.mxu0 0.0
  %10147 = vmatprep.subr.mxu0 0.0
  %10148 = vmatpush1.msra.mxu0 0.0
  %10149 = vmatprep.subr.mxu0 0.0
  %10150 = vmatpush1.msra.mxu0 0.0
  %10151 = vmatprep.subr.mxu0 0.0
  %10152 = vmatpush1.msra.mxu0 0.0
  %10153 = vmatprep.subr.mxu0 0.0
  %10154 = vmatpush1.msra.mxu0 0.0
  %10155 = vmatprep.subr.mxu0 0.0
  %10156 = vmatpush1.msra.mxu0 0.0
  %10157 = vmatprep.subr.mxu0 0.0
  %10158 = vmatpush1.msra.mxu0 0.0
  %10159 = vmatprep.subr.mxu0 0.0
  %10160 = vmatpush1.msra.mxu0 0.0
  %10161 = vmatprep.subr.mxu0 0.0
  %10162 = vmatpush1.msra.mxu0 0.0
  %10163 = vmatprep.subr.mxu0 0.0
  %10164 = vmatpush1.msra.mxu0 0.0
  %10165 = vmatprep.subr.mxu0 0.0
  %10166 = vmatpush1.msra.mxu0 0.0
  %10167 = vmatprep.subr.mxu0 0.0
  %10168 = vmatpush1.msra.mxu0 0.0
  %10169 = vmatprep.subr.mxu0 0.0
  %10170 = vmatpush1.msra.mxu0 0.0
  %10171 = vmatprep.subr.mxu0 0.0
  %10172 = vmatpush1.msra.mxu0 0.0
  %10173 = vmatprep.mubr.f32.mxu0 0.0
  %10174 = vmatmul.mubr.f32.gmra.mrb[0].mxu0 %v9066
  %v10175 = vpop.f32.mrb[0].mxu0
  %v10176 = vadd.f32 %v9063, %v10175
  %v10177 = vpop.f32.mrb[0].mxu0
  %10178 = vdwg.mxu0
  %10179 = vst.msk [vmem:[%s10 + $0xe] sm:$0x1] %vm9142, %v10176
  %v10181 = vsel %vm9068, %v9052, 0
  %10183 = vmatprep.subr.mxu0 0.0
  %10184 = vmatpush1.msra.mxu0 %v10181
  %10185 = vmatprep.subr.mxu0 0.0
  %10186 = vmatpush1.msra.mxu0 0.0
  %10187 = vmatprep.subr.mxu0 0.0
  %10188 = vmatpush1.msra.mxu0 0.0
  %10189 = vmatprep.subr.mxu0 0.0
  %10190 = vmatpush1.msra.mxu0 0.0
  %10191 = vmatprep.subr.mxu0 0.0
  %10192 = vmatpush1.msra.mxu0 0.0
  %10193 = vmatprep.subr.mxu0 0.0
  %10194 = vmatpush1.msra.mxu0 0.0
  %10195 = vmatprep.subr.mxu0 0.0
  %10196 = vmatpush1.msra.mxu0 0.0
  %10197 = vmatprep.subr.mxu0 0.0
  %10198 = vmatpush1.msra.mxu0 0.0
  %10199 = vmatprep.subr.mxu0 0.0
  %10200 = vmatpush1.msra.mxu0 0.0
  %10201 = vmatprep.subr.mxu0 0.0
  %10202 = vmatpush1.msra.mxu0 0.0
  %10203 = vmatprep.subr.mxu0 0.0
  %10204 = vmatpush1.msra.mxu0 0.0
  %10205 = vmatprep.subr.mxu0 0.0
  %10206 = vmatpush1.msra.mxu0 0.0
  %10207 = vmatprep.subr.mxu0 0.0
  %10208 = vmatpush1.msra.mxu0 0.0
  %10209 = vmatprep.subr.mxu0 0.0
  %10210 = vmatpush1.msra.mxu0 0.0
  %10211 = vmatprep.subr.mxu0 0.0
  %10212 = vmatpush1.msra.mxu0 0.0
  %10213 = vmatprep.subr.mxu0 0.0
  %10214 = vmatpush1.msra.mxu0 0.0
  %10215 = vmatprep.subr.mxu0 0.0
  %10216 = vmatpush1.msra.mxu0 0.0
  %10217 = vmatprep.subr.mxu0 0.0
  %10218 = vmatpush1.msra.mxu0 0.0
  %10219 = vmatprep.subr.mxu0 0.0
  %10220 = vmatpush1.msra.mxu0 0.0
  %10221 = vmatprep.subr.mxu0 0.0
  %10222 = vmatpush1.msra.mxu0 0.0
  %10223 = vmatprep.subr.mxu0 0.0
  %10224 = vmatpush1.msra.mxu0 0.0
  %10225 = vmatprep.subr.mxu0 0.0
  %10226 = vmatpush1.msra.mxu0 0.0
  %10227 = vmatprep.subr.mxu0 0.0
  %10228 = vmatpush1.msra.mxu0 0.0
  %10229 = vmatprep.subr.mxu0 0.0
  %10230 = vmatpush1.msra.mxu0 0.0
  %10231 = vmatprep.subr.mxu0 0.0
  %10232 = vmatpush1.msra.mxu0 0.0
  %10233 = vmatprep.subr.mxu0 0.0
  %10234 = vmatpush1.msra.mxu0 0.0
  %10235 = vmatprep.subr.mxu0 0.0
  %10236 = vmatpush1.msra.mxu0 0.0
  %10237 = vmatprep.subr.mxu0 0.0
  %10238 = vmatpush1.msra.mxu0 0.0
  %10239 = vmatprep.subr.mxu0 0.0
  %10240 = vmatpush1.msra.mxu0 0.0
  %10241 = vmatprep.subr.mxu0 0.0
  %10242 = vmatpush1.msra.mxu0 0.0
  %10243 = vmatprep.subr.mxu0 0.0
  %10244 = vmatpush1.msra.mxu0 0.0
  %10245 = vmatprep.subr.mxu0 0.0
  %10246 = vmatpush1.msra.mxu0 0.0
  %10247 = vmatprep.mubr.f32.mxu0 0.0
  %10248 = vmatmul.mubr.f32.gmra.mrb[0].mxu0 %v9066
  %v10249 = vpop.f32.mrb[0].mxu0
  %v10250 = vadd.f32 %v9063, %v10249
  %v10251 = vpop.f32.mrb[0].mxu0
  %10252 = vdwg.mxu0
  %10253 = vst.msk [vmem:[%s10 + $0xf] sm:$0x1] %vm9142, %v10250
  // Predicated region
  $region42: #{decoder_forward.1} parent=0 // pred_check
    _
  $region43: #{decoder_forward.1} parent=0 // pred_check_branch
    %10255 = sbr.rel (0) target = $region45
  $region44: #{decoder_forward.1} parent=0 // pred_region
    _
  $region45: #{decoder_forward.1} parent=0 // pred_fallthru
    _
  // Predicated region
  $region46: #{decoder_forward.1} parent=0 // pred_check
    _
  $region47: #{decoder_forward.1} parent=0 // pred_check_branch
    %10257 = sbr.rel (0) target = $region49
  $region48: #{decoder_forward.1} parent=0 // pred_region
    _
  $region49: #{decoder_forward.1} parent=0 // pred_fallthru
    _

</llo_original>
